<compile_context>
chip_gen: v7x
topology: tpu7x:2x2x1
jax: 0.10.0
libtpu: 0.0.40
codegen_flags: <defaults>
</compile_context>

<pallas_src>
import jax
import jax.numpy as jnp
import numpy as np
from jax.experimental import pallas as pl
from jax.experimental.pallas import tpu as pltpu

# ---- SirenNet hyperparameters ------------------------------------------------
DIM_IN = 3
DIM_HIDDEN = 32
DIM_OUT = 1
NUM_LAYERS = 3          # hidden Siren layers; +1 final linear layer
W0 = 1.0
W0_INITIAL = 30.0

DIM_IN_PAD = 8          # pad the 3-feature input to 8 sublanes
LANE = 128
MAX_TILE = 2048         # points (lanes) per grid step


def _round_up(x, m):
    return ((x + m - 1) // m) * m


def _chip_flags():
    """(multi_core, bf16_act) inferred from the local TPU generation.

    Safe fallbacks: unknown device -> single-core tiling + f32 activations
    (always correct, just not the fastest choice).
    """
    kind = ""
    try:
        kind = jax.devices()[0].device_kind.lower()
    except Exception:
        pass
    # Chips whose TensorCores share the "parallel" grid axes (megacore / v7x).
    multi_core = any(t in kind for t in ("v4", "v5p", "v7"))
    # bf16 VPU/EUP available (v6e and later); v5e stays f32 for activations.
    bf16_act = any(t in kind for t in ("v6", "v7"))
    return multi_core, bf16_act


def make_intensity_kernel(n_lin, act_dtype, mxu_dtype):
    """n_lin = NUM_LAYERS hidden Siren layers + 1 final linear layer."""

    def kernel(x_ref, *refs):
        w_refs = refs[:n_lin]               # weights (w0 pre-folded; >=1 in bf16)
        b_refs = refs[n_lin:2 * n_lin]      # (out_i, 1) f32, w0 pre-folded
        o_ref = refs[2 * n_lin]             # (DIM_OUT, tile)

        x = x_ref[...]                                                   # (8, tile) f32

        # Layer 0 (weights/bias already scaled by w0_initial on the host).
        # The pre-bias map is linear (odd) in x: compute it once, reuse -z for
        # the -x branch.  Kept in f32: contraction depth is only 8 and the x30
        # scaling would amplify bf16 rounding ahead of the first sin.
        z = jnp.dot(w_refs[0][...], x,
                    preferred_element_type=jnp.float32)                  # (H, tile)
        b0 = b_refs[0][...]                                              # (H, 1)
        hp = jnp.sin(z + b0).astype(act_dtype)                           # +x branch
        hm = jnp.sin(b0 - z).astype(act_dtype)                           # -x branch

        # Remaining hidden Siren layers: bf16 MXU operands, f32 accumulate/sin.
        for i in range(1, n_lin - 1):
            w = w_refs[i][...]                                           # bf16
            b = b_refs[i][...]                                           # f32 (H, 1)
            hp = jnp.sin(
                jnp.dot(w, hp.astype(mxu_dtype),
                        preferred_element_type=jnp.float32) + b).astype(act_dtype)
            hm = jnp.sin(
                jnp.dot(w, hm.astype(mxu_dtype),
                        preferred_element_type=jnp.float32) + b).astype(act_dtype)

        # Final linear layer (Identity activation).
        wl = w_refs[n_lin - 1][...]                                      # bf16 (1, H)
        bl = b_refs[n_lin - 1][...]                                      # f32 (1, 1)
        yp = jnp.dot(wl, hp.astype(mxu_dtype),
                     preferred_element_type=jnp.float32) + bl
        ym = jnp.dot(wl, hm.astype(mxu_dtype),
                     preferred_element_type=jnp.float32) + bl

        # IntensityNet: net_mag(x) + net_mag(-x)  -> lane-dense (1, tile) store.
        o_ref[...] = (yp + ym).astype(o_ref.dtype)

    return kernel


def intensity_net_pallas(x, weights, biases):
    """IntensityNet forward.

    x:        (N, DIM_IN) float32
    weights:  list of torch-layout Linear weights, weights[i] shape (out_i, in_i)
    biases:   list of biases, biases[i] shape (out_i,)
    returns:  (N, DIM_OUT) float32
    """
    N, din = x.shape
    n_lin = len(weights)

    multi_core, bf16_act = _chip_flags()
    act_dtype = jnp.bfloat16 if bf16_act else jnp.float32   # stored activations
    mxu_dtype = jnp.bfloat16                                 # matmul operands

    # Tile / grid selection:
    #   * dual-TC chips: even tile count so both cores get equal work.
    #   * single-TC chips: fewest / largest tiles (grid=1 for small/medium N).
    if multi_core:
        n_tiles = 2 * pl.cdiv(N, 2 * MAX_TILE)
    else:
        n_tiles = pl.cdiv(N, MAX_TILE)
    n_tiles = max(1, int(n_tiles))
    tile = _round_up(max(int(pl.cdiv(N, n_tiles)), 1), LANE)
    n_pad = n_tiles * tile
    grid = (n_tiles,)

    # Transposed, lane-dense layout: features on sublanes (3 -> 8), points on lanes.
    # TODO(synk): for very large N this wrapper pad+transpose is an extra HBM
    # round trip; producing x directly in (8, N) layout upstream removes it.
    x_t = jnp.zeros((DIM_IN_PAD, n_pad), jnp.float32)
    x_t = x_t.at[:din, :N].set(x.T.astype(jnp.float32))

    # Pre-fold w0 / w0_initial into hidden-layer weights & biases, pad the first
    # layer's contraction dim 3 -> 8, and cast layers >= 1 to bf16 (MXU operands).
    ws, bs = [], []
    for i, (w, b) in enumerate(zip(weights, biases)):
        w = jnp.asarray(w, jnp.float32)
        b = jnp.asarray(b, jnp.float32).reshape(-1, 1)
        if i < n_lin - 1:
            freq = W0_INITIAL if i == 0 else W0
            w = w * freq
            b = b * freq
        if i == 0:
            w = jnp.pad(w, ((0, 0), (0, DIM_IN_PAD - w.shape[1])))   # stays f32
        else:
            w = w.astype(mxu_dtype)                                   # bf16 operand
        ws.append(w)
        bs.append(b)

    rep = lambda i: (0, 0)                           # replicated full-array blocks
    in_specs = [pl.BlockSpec((DIM_IN_PAD, tile), lambda i: (0, i))]
    in_specs += [pl.BlockSpec(w.shape, rep) for w in ws]
    in_specs += [pl.BlockSpec(b.shape, rep) for b in bs]
    out_specs = pl.BlockSpec((DIM_OUT, tile), lambda i: (0, i))

    out = pl.pallas_call(
        make_intensity_kernel(n_lin, act_dtype, mxu_dtype),
        out_shape=jax.ShapeDtypeStruct((DIM_OUT, n_pad), jnp.float32),
        grid_spec=pltpu.PrefetchScalarGridSpec(
            num_scalar_prefetch=0,
            grid=grid,
            in_specs=in_specs,
            out_specs=out_specs,
        ),
        compiler_params=pltpu.CompilerParams(
            dimension_semantics=("parallel",),
        ),
    )(x_t, *ws, *bs)

    # Back to the torch module's (N, DIM_OUT) layout, dropping the pad columns.
    return out[:, :N].T


def init_siren_params(key):
    """Deterministic SIREN-style init, torch Linear layout: W (out, in), b (out,)."""
    dims_in = [DIM_IN] + [DIM_HIDDEN] * NUM_LAYERS
    dims_out = [DIM_HIDDEN] * NUM_LAYERS + [DIM_OUT]
    weights, biases = [], []
    for i, (din, dout) in enumerate(zip(dims_in, dims_out)):
        key, kw, kb = jax.random.split(key, 3)
        if i == 0:
            bound = 1.0 / din
        else:
            bound = float(np.sqrt(6.0 / din)) / W0
        w = jax.random.uniform(kw, (dout, din), jnp.float32, -bound, bound)
        b = jax.random.uniform(kb, (dout,), jnp.float32, -bound, bound)
        weights.append(w)
        biases.append(b)
    return weights, biases


def intensity_net_ref(x, weights, biases):
    """Plain-JAX f32 reference of IntensityNet forward (unscaled torch-layout params)."""
    n_lin = len(weights)

    def siren_mlp(h):
        for i in range(n_lin):
            z = h @ weights[i].T + biases[i]
            if i < n_lin - 1:
                freq = W0_INITIAL if i == 0 else W0
                h = jnp.sin(freq * z)
            else:
                h = z
        return h

    return siren_mlp(x) + siren_mlp(-x)


if __name__ == "__main__":
    key = jax.random.PRNGKey(0)
    key, kx = jax.random.split(key)

    N = 300  # deliberately NOT a multiple of the tile -> exercises padding path
    x = jax.random.uniform(kx, (N, DIM_IN), jnp.float32, -1.0, 1.0)

    weights, biases = init_siren_params(key)

    out = jax.block_until_ready(intensity_net_pallas(x, weights, biases))

    ref = intensity_net_ref(x, weights, biases)
    # Tolerance reflects bf16 MXU operands / bf16-stored activations in the
    # kernel vs. the pure-f32 reference.
    np.testing.assert_allclose(np.asarray(out), np.asarray(ref), rtol=5e-2, atol=5e-2)

    print("KERNEL_OK")
</pallas_src>

<mosaic_0001>
module attributes {stable_mosaic.version = 11 : i64} {
  func.func @kernel(%arg0: i32, %arg1: memref<8x384xf32, #tpu.memory_space<vmem>>, %arg2: memref<32x8xf32, #tpu.memory_space<vmem>>, %arg3: memref<32x32xbf16, #tpu.memory_space<vmem>>, %arg4: memref<32x32xbf16, #tpu.memory_space<vmem>>, %arg5: memref<1x32xbf16, #tpu.memory_space<vmem>>, %arg6: memref<32x1xf32, #tpu.memory_space<vmem>>, %arg7: memref<32x1xf32, #tpu.memory_space<vmem>>, %arg8: memref<32x1xf32, #tpu.memory_space<vmem>>, %arg9: memref<1x1xf32, #tpu.memory_space<vmem>>, %arg10: memref<1x384xf32, #tpu.memory_space<vmem>>) attributes {dimension_semantics = [#tpu.dimension_semantics<parallel>], iteration_bounds = array<i64: 1>, scalar_prefetch = 0 : i64, scratch_operands = 0 : i64, tpu.core_type = #tpu.core_type<tc>, window_params = [{transform_indices = @transform_0, window_bounds = array<i64: 8, 384>}, {pipeline_mode = #tpu.pipeline_mode<synchronous>, transform_indices = @transform_1, window_bounds = array<i64: 32, 8>}, {pipeline_mode = #tpu.pipeline_mode<synchronous>, transform_indices = @transform_2, window_bounds = array<i64: 32, 32>}, {pipeline_mode = #tpu.pipeline_mode<synchronous>, transform_indices = @transform_3, window_bounds = array<i64: 32, 32>}, {pipeline_mode = #tpu.pipeline_mode<synchronous>, transform_indices = @transform_4, window_bounds = array<i64: 1, 32>}, {pipeline_mode = #tpu.pipeline_mode<synchronous>, transform_indices = @transform_5, window_bounds = array<i64: 32, 1>}, {pipeline_mode = #tpu.pipeline_mode<synchronous>, transform_indices = @transform_6, window_bounds = array<i64: 32, 1>}, {pipeline_mode = #tpu.pipeline_mode<synchronous>, transform_indices = @transform_7, window_bounds = array<i64: 32, 1>}, {pipeline_mode = #tpu.pipeline_mode<synchronous>, transform_indices = @transform_8, window_bounds = array<i64: 1, 1>}, {transform_indices = @transform_9, window_bounds = array<i64: 1, 384>}]} {
    %c0 = arith.constant 0 : index
    %c0_0 = arith.constant 0 : index
    %0 = vector.load %arg1[%c0, %c0_0] : memref<8x384xf32, #tpu.memory_space<vmem>>, vector<8x384xf32>
    %c0_1 = arith.constant 0 : index
    %c0_2 = arith.constant 0 : index
    %1 = vector.load %arg2[%c0_1, %c0_2] : memref<32x8xf32, #tpu.memory_space<vmem>>, vector<32x8xf32>
    %cst = arith.constant dense<0.000000e+00> : vector<32x384xf32>
    %2 = tpu.matmul %1, %0, %cst {dimension_numbers = #tpu.dot_dimension_numbers<[1], [0], [0], [1], [0, 0, 1, 1], [], []>} : vector<32x8xf32>, vector<8x384xf32>, vector<32x384xf32> -> vector<32x384xf32>
    %c0_3 = arith.constant 0 : index
    %c0_4 = arith.constant 0 : index
    %3 = vector.load %arg6[%c0_3, %c0_4] : memref<32x1xf32, #tpu.memory_space<vmem>>, vector<32x1xf32>
    %4 = vector.broadcast %3 : vector<32x1xf32> to vector<32x384xf32>
    %5 = arith.addf %2, %4 : vector<32x384xf32>
    %6 = math.sin %5 : vector<32x384xf32>
    %7 = vector.broadcast %3 : vector<32x1xf32> to vector<32x384xf32>
    %8 = arith.subf %7, %2 : vector<32x384xf32>
    %9 = math.sin %8 : vector<32x384xf32>
    %c0_5 = arith.constant 0 : index
    %c0_6 = arith.constant 0 : index
    %10 = vector.load %arg3[%c0_5, %c0_6] : memref<32x32xbf16, #tpu.memory_space<vmem>>, vector<32x32xbf16>
    %c0_7 = arith.constant 0 : index
    %c0_8 = arith.constant 0 : index
    %11 = vector.load %arg7[%c0_7, %c0_8] : memref<32x1xf32, #tpu.memory_space<vmem>>, vector<32x1xf32>
    %12 = arith.truncf %6 : vector<32x384xf32> to vector<32x384xbf16>
    %cst_9 = arith.constant dense<0.000000e+00> : vector<32x384xf32>
    %13 = tpu.matmul %10, %12, %cst_9 {dimension_numbers = #tpu.dot_dimension_numbers<[1], [0], [0], [1], [0, 0, 1, 1], [], []>} : vector<32x32xbf16>, vector<32x384xbf16>, vector<32x384xf32> -> vector<32x384xf32>
    %14 = vector.broadcast %11 : vector<32x1xf32> to vector<32x384xf32>
    %15 = arith.addf %13, %14 : vector<32x384xf32>
    %16 = math.sin %15 : vector<32x384xf32>
    %17 = arith.truncf %9 : vector<32x384xf32> to vector<32x384xbf16>
    %cst_10 = arith.constant dense<0.000000e+00> : vector<32x384xf32>
    %18 = tpu.matmul %10, %17, %cst_10 {dimension_numbers = #tpu.dot_dimension_numbers<[1], [0], [0], [1], [0, 0, 1, 1], [], []>} : vector<32x32xbf16>, vector<32x384xbf16>, vector<32x384xf32> -> vector<32x384xf32>
    %19 = vector.broadcast %11 : vector<32x1xf32> to vector<32x384xf32>
    %20 = arith.addf %18, %19 : vector<32x384xf32>
    %21 = math.sin %20 : vector<32x384xf32>
    %c0_11 = arith.constant 0 : index
    %c0_12 = arith.constant 0 : index
    %22 = vector.load %arg4[%c0_11, %c0_12] : memref<32x32xbf16, #tpu.memory_space<vmem>>, vector<32x32xbf16>
    %c0_13 = arith.constant 0 : index
    %c0_14 = arith.constant 0 : index
    %23 = vector.load %arg8[%c0_13, %c0_14] : memref<32x1xf32, #tpu.memory_space<vmem>>, vector<32x1xf32>
    %24 = arith.truncf %16 : vector<32x384xf32> to vector<32x384xbf16>
    %cst_15 = arith.constant dense<0.000000e+00> : vector<32x384xf32>
    %25 = tpu.matmul %22, %24, %cst_15 {dimension_numbers = #tpu.dot_dimension_numbers<[1], [0], [0], [1], [0, 0, 1, 1], [], []>} : vector<32x32xbf16>, vector<32x384xbf16>, vector<32x384xf32> -> vector<32x384xf32>
    %26 = vector.broadcast %23 : vector<32x1xf32> to vector<32x384xf32>
    %27 = arith.addf %25, %26 : vector<32x384xf32>
    %28 = math.sin %27 : vector<32x384xf32>
    %29 = arith.truncf %21 : vector<32x384xf32> to vector<32x384xbf16>
    %cst_16 = arith.constant dense<0.000000e+00> : vector<32x384xf32>
    %30 = tpu.matmul %22, %29, %cst_16 {dimension_numbers = #tpu.dot_dimension_numbers<[1], [0], [0], [1], [0, 0, 1, 1], [], []>} : vector<32x32xbf16>, vector<32x384xbf16>, vector<32x384xf32> -> vector<32x384xf32>
    %31 = vector.broadcast %23 : vector<32x1xf32> to vector<32x384xf32>
    %32 = arith.addf %30, %31 : vector<32x384xf32>
    %33 = math.sin %32 : vector<32x384xf32>
    %c0_17 = arith.constant 0 : index
    %c0_18 = arith.constant 0 : index
    %34 = vector.load %arg5[%c0_17, %c0_18] : memref<1x32xbf16, #tpu.memory_space<vmem>>, vector<1x32xbf16>
    %c0_19 = arith.constant 0 : index
    %c0_20 = arith.constant 0 : index
    %35 = vector.load %arg9[%c0_19, %c0_20] : memref<1x1xf32, #tpu.memory_space<vmem>>, vector<1x1xf32>
    %36 = arith.truncf %28 : vector<32x384xf32> to vector<32x384xbf16>
    %cst_21 = arith.constant dense<0.000000e+00> : vector<1x384xf32>
    %37 = tpu.matmul %34, %36, %cst_21 {dimension_numbers = #tpu.dot_dimension_numbers<[1], [0], [0], [1], [0, 0, 1, 1], [], []>} : vector<1x32xbf16>, vector<32x384xbf16>, vector<1x384xf32> -> vector<1x384xf32>
    %38 = vector.broadcast %35 : vector<1x1xf32> to vector<1x384xf32>
    %39 = arith.addf %37, %38 : vector<1x384xf32>
    %40 = arith.truncf %33 : vector<32x384xf32> to vector<32x384xbf16>
    %cst_22 = arith.constant dense<0.000000e+00> : vector<1x384xf32>
    %41 = tpu.matmul %34, %40, %cst_22 {dimension_numbers = #tpu.dot_dimension_numbers<[1], [0], [0], [1], [0, 0, 1, 1], [], []>} : vector<1x32xbf16>, vector<32x384xbf16>, vector<1x384xf32> -> vector<1x384xf32>
    %42 = vector.broadcast %35 : vector<1x1xf32> to vector<1x384xf32>
    %43 = arith.addf %41, %42 : vector<1x384xf32>
    %44 = arith.addf %39, %43 : vector<1x384xf32>
    %c0_23 = arith.constant 0 : index
    %c0_24 = arith.constant 0 : index
    %45 = vector.load %arg10[%c0_23, %c0_24] : memref<1x384xf32, #tpu.memory_space<vmem>>, vector<1x384xf32>
    tpu.vector_store %arg10[%c0_23, %c0_24], %44 {strides = array<i32>} : memref<1x384xf32, #tpu.memory_space<vmem>>, vector<1x384xf32>,
    return
  }
  func.func @transform_0(%arg0: i32) -> (i32, i32) {
    %c0_i32 = arith.constant 0 : i32
    %c0_i32_0 = arith.constant 0 : i32
    return %c0_i32, %arg0 : i32, i32
  }
  func.func @transform_1(%arg0: i32) -> (i32, i32) {
    %c0_i32 = arith.constant 0 : i32
    %c0_i32_0 = arith.constant 0 : i32
    %c0_i32_1 = arith.constant 0 : i32
    return %c0_i32, %c0_i32_0 : i32, i32
  }
  func.func @transform_2(%arg0: i32) -> (i32, i32) {
    %c0_i32 = arith.constant 0 : i32
    %c0_i32_0 = arith.constant 0 : i32
    %c0_i32_1 = arith.constant 0 : i32
    return %c0_i32, %c0_i32_0 : i32, i32
  }
  func.func @transform_3(%arg0: i32) -> (i32, i32) {
    %c0_i32 = arith.constant 0 : i32
    %c0_i32_0 = arith.constant 0 : i32
    %c0_i32_1 = arith.constant 0 : i32
    return %c0_i32, %c0_i32_0 : i32, i32
  }
  func.func @transform_4(%arg0: i32) -> (i32, i32) {
    %c0_i32 = arith.constant 0 : i32
    %c0_i32_0 = arith.constant 0 : i32
    %c0_i32_1 = arith.constant 0 : i32
    return %c0_i32, %c0_i32_0 : i32, i32
  }
  func.func @transform_5(%arg0: i32) -> (i32, i32) {
    %c0_i32 = arith.constant 0 : i32
    %c0_i32_0 = arith.constant 0 : i32
    %c0_i32_1 = arith.constant 0 : i32
    return %c0_i32, %c0_i32_0 : i32, i32
  }
  func.func @transform_6(%arg0: i32) -> (i32, i32) {
    %c0_i32 = arith.constant 0 : i32
    %c0_i32_0 = arith.constant 0 : i32
    %c0_i32_1 = arith.constant 0 : i32
    return %c0_i32, %c0_i32_0 : i32, i32
  }
  func.func @transform_7(%arg0: i32) -> (i32, i32) {
    %c0_i32 = arith.constant 0 : i32
    %c0_i32_0 = arith.constant 0 : i32
    %c0_i32_1 = arith.constant 0 : i32
    return %c0_i32, %c0_i32_0 : i32, i32
  }
  func.func @transform_8(%arg0: i32) -> (i32, i32) {
    %c0_i32 = arith.constant 0 : i32
    %c0_i32_0 = arith.constant 0 : i32
    %c0_i32_1 = arith.constant 0 : i32
    return %c0_i32, %c0_i32_0 : i32, i32
  }
  func.func @transform_9(%arg0: i32) -> (i32, i32) {
    %c0_i32 = arith.constant 0 : i32
    %c0_i32_0 = arith.constant 0 : i32
    return %c0_i32, %arg0 : i32, i32
  }
}

</mosaic_0001>

<llo_original>
// kernel: tpu_custom_call.1
$region0: #{tpu_custom_call.1}
  #allocation0 [shape = 'u32[]', space=smem, size = 0x4, offset = 0x4, fixed_abs, tag = 'smem constant byte address 0x4 - core index']
  #allocation1 [shape = 'u32[144,128]{1,0:T(1,128)}', space=vmem, size = 0x12000, scoped, tag = 'internal scratch']
  #allocation2 [shape = 'f32[1,1]{1,0:T(1,128)S(1)}', space=vmem, size = 0x200, scoped, tag = 'scoped memory for tpu_custom_call.1']
  %s0 = inlined_call_operand.vmem [shape: f32[8,384], index: 0, kind: input, shape index: {}]
  %s1 = inlined_call_operand.vmem [shape: f32[32,8], index: 1, kind: input, shape index: {}]
  %s2 = inlined_call_operand.vmem [shape: bf16[32,32], index: 2, kind: input, shape index: {}]
  %s3 = inlined_call_operand.vmem [shape: bf16[32,32], index: 3, kind: input, shape index: {}]
  %s4 = inlined_call_operand.vmem [shape: bf16[1,32], index: 4, kind: input, shape index: {}]
  %s5 = inlined_call_operand.vmem [shape: f32[32,1], index: 5, kind: input, shape index: {}]
  %s6 = inlined_call_operand.vmem [shape: f32[32,1], index: 6, kind: input, shape index: {}]
  %s7 = inlined_call_operand.vmem [shape: f32[32,1], index: 7, kind: input, shape index: {}]
  %s8 = inlined_call_operand.<no memory space> [shape: f32[1,1], index: 8, kind: input, shape index: {}]
  %s9 = inlined_call_operand.hbm [shape: f32[1,384], index: 9, kind: output, shape index: {}]
  %s10 = sld [smem:[#allocation0]]
  $region46: #{tpu_custom_call.1} parent=0
    _
  %s12 = ssub.s32 1, %s10
  %s13 = scalar_select 0, %s12, %s10
  %v14 = vstv %s8
  %15 = vst [vmem:[#allocation2] sm:$0x1] %v14
  $region1: #{tpu_custom_call.1} parent=0
    #allocation3 [shape = 'u8[1536]{0}', space=vmem, size = 0x800, scoped, tag = 'output window, operand 0, single buffered']
    #allocation4 [shape = 's32[1]{0}', space=sflag, size = 0x4, scoped, tag = 'scoped memory for tpu_custom_call.1']
    %16 = vsyncpa [#allocation4], 0
    // Predicated region
    $region2: #{tpu_custom_call.1} parent=1 // pred_check
      _
    $region3: #{tpu_custom_call.1} parent=1 // pred_check_branch
      %18 = sbr.rel (0) target = $region5
    $region4: #{tpu_custom_call.1} parent=1 // pred_region
      _
    $region5: #{tpu_custom_call.1} parent=1 // pred_fallthru
      _
    // Predicated region
    $region6: #{tpu_custom_call.1} parent=1 // pred_check
      _
    $region7: #{tpu_custom_call.1} parent=1 // pred_check_branch
      %20 = sbr.rel (0) target = $region9
    $region8: #{tpu_custom_call.1} parent=1 // pred_region
      _
    $region9: #{tpu_custom_call.1} parent=1 // pred_fallthru
      _
    // Predicated region
    $region10: #{tpu_custom_call.1} parent=1 // pred_check
      _
    $region11: #{tpu_custom_call.1} parent=1 // pred_check_branch
      %22 = sbr.rel (0) target = $region13
    $region12: #{tpu_custom_call.1} parent=1 // pred_region
      _
    $region13: #{tpu_custom_call.1} parent=1 // pred_fallthru
      _
    // Predicated region
    $region14: #{tpu_custom_call.1} parent=1 // pred_check
      _
    $region15: #{tpu_custom_call.1} parent=1 // pred_check_branch
      %24 = sbr.rel (0) target = $region17
    $region16: #{tpu_custom_call.1} parent=1 // pred_region
      _
    $region17: #{tpu_custom_call.1} parent=1 // pred_fallthru
      _
    // Predicated region
    $region18: #{tpu_custom_call.1} parent=1 // pred_check
      _
    $region19: #{tpu_custom_call.1} parent=1 // pred_check_branch
      %26 = sbr.rel (0) target = $region21
    $region20: #{tpu_custom_call.1} parent=1 // pred_region
      _
    $region21: #{tpu_custom_call.1} parent=1 // pred_fallthru
      _
    // Predicated region
    $region22: #{tpu_custom_call.1} parent=1 // pred_check
      _
    $region23: #{tpu_custom_call.1} parent=1 // pred_check_branch
      %28 = sbr.rel (0) target = $region25
    $region24: #{tpu_custom_call.1} parent=1 // pred_region
      _
    $region25: #{tpu_custom_call.1} parent=1 // pred_fallthru
      _
    // Predicated region
    $region26: #{tpu_custom_call.1} parent=1 // pred_check
      _
    $region27: #{tpu_custom_call.1} parent=1 // pred_check_branch
      %30 = sbr.rel (0) target = $region29
    $region28: #{tpu_custom_call.1} parent=1 // pred_region
      _
    $region29: #{tpu_custom_call.1} parent=1 // pred_fallthru
      _
    // Predicated region
    $region30: #{tpu_custom_call.1} parent=1 // pred_check
      _
    $region31: #{tpu_custom_call.1} parent=1 // pred_check_branch
      %32 = sbr.rel (0) target = $region33
    $region32: #{tpu_custom_call.1} parent=1 // pred_region
      _
    $region33: #{tpu_custom_call.1} parent=1 // pred_fallthru
      _
    // Predicated region
    $region34: #{tpu_custom_call.1} parent=1 // pred_check
      _
    $region35: #{tpu_custom_call.1} parent=1 // pred_check_branch
      %34 = sbr.rel (0) target = $region37
    $region36: #{tpu_custom_call.1} parent=1 // pred_region
      _
    $region37: #{tpu_custom_call.1} parent=1 // pred_fallthru
      _
    %v36 = vld [vmem:[%s0] sm:$0xff]
    %v37 = vld [vmem:[%s0 + $0x8] sm:$0xff]
    %v38 = vld [vmem:[%s0 + $0x10] sm:$0xff]
    %v39 = vld [vmem:[%s1] sm:$0xff]
    %v40 = vld [vmem:[%s1 + $0x8] sm:$0xff]
    %v41 = vld [vmem:[%s1 + $0x10] sm:$0xff]
    %v42 = vld [vmem:[%s1 + $0x18] sm:$0xff]
    %vm43 = vcmask 64512
    %v45 = vsel %vm43, %v39, 0
    %v48 = vsel %vm43, %v40, 0
    %v51 = vsel %vm43, %v41, 0
    %v54 = vsel %vm43, %v42, 0
    %56 = vmatprep.subr.mxu0 %v37
    %57 = vmatpush1.msra.mxu0 %v36
    %58 = vmatprep.subr.mxu0 0.0
    %59 = vmatpush1.msra.mxu0 0.0
    %60 = vmatprep.subr.mxu0 0.0
    %61 = vmatpush1.msra.mxu0 0.0
    %62 = vmatprep.subr.mxu0 0.0
    %63 = vmatpush1.msra.mxu0 0.0
    %64 = vmatprep.subr.mxu0 0.0
    %65 = vmatpush1.msra.mxu0 0.0
    %66 = vmatprep.subr.mxu0 0.0
    %67 = vmatpush1.msra.mxu0 0.0
    %68 = vmatprep.subr.mxu0 0.0
    %69 = vmatpush1.msra.mxu0 0.0
    %70 = vmatprep.subr.mxu0 0.0
    %71 = vmatpush1.msra.mxu0 0.0
    %72 = vmatprep.subr.mxu0 0.0
    %73 = vmatpush1.msra.mxu0 0.0
    %74 = vmatprep.subr.mxu0 0.0
    %75 = vmatpush1.msra.mxu0 0.0
    %76 = vmatprep.subr.mxu0 0.0
    %77 = vmatpush1.msra.mxu0 0.0
    %78 = vmatprep.subr.mxu0 0.0
    %79 = vmatpush1.msra.mxu0 0.0
    %80 = vmatprep.subr.mxu0 0.0
    %81 = vmatpush1.msra.mxu0 0.0
    %82 = vmatprep.subr.mxu0 0.0
    %83 = vmatpush1.msra.mxu0 0.0
    %84 = vmatprep.subr.mxu0 0.0
    %85 = vmatpush1.msra.mxu0 0.0
    %86 = vmatprep.subr.mxu0 0.0
    %87 = vmatpush1.msra.mxu0 0.0
    %88 = vmatprep.subr.mxu0 0.0
    %89 = vmatpush1.msra.mxu0 0.0
    %90 = vmatprep.subr.mxu0 0.0
    %91 = vmatpush1.msra.mxu0 0.0
    %92 = vmatprep.subr.mxu0 0.0
    %93 = vmatpush1.msra.mxu0 0.0
    %94 = vmatprep.subr.mxu0 0.0
    %95 = vmatpush1.msra.mxu0 0.0
    %96 = vmatprep.subr.mxu0 0.0
    %97 = vmatpush1.msra.mxu0 0.0
    %98 = vmatprep.subr.mxu0 0.0
    %99 = vmatpush1.msra.mxu0 0.0
    %100 = vmatprep.subr.mxu0 0.0
    %101 = vmatpush1.msra.mxu0 0.0
    %102 = vmatprep.subr.mxu0 0.0
    %103 = vmatpush1.msra.mxu0 0.0
    %104 = vmatprep.subr.mxu0 0.0
    %105 = vmatpush1.msra.mxu0 0.0
    %106 = vmatprep.subr.mxu0 0.0
    %107 = vmatpush1.msra.mxu0 0.0
    %108 = vmatprep.subr.mxu0 0.0
    %109 = vmatpush1.msra.mxu0 0.0
    %110 = vmatprep.subr.mxu0 0.0
    %111 = vmatpush1.msra.mxu0 0.0
    %112 = vmatprep.subr.mxu0 0.0
    %113 = vmatpush1.msra.mxu0 0.0
    %114 = vmatprep.subr.mxu0 0.0
    %115 = vmatpush1.msra.mxu0 0.0
    %116 = vmatprep.subr.mxu0 0.0
    %117 = vmatpush1.msra.mxu0 0.0
    %118 = vmatprep.subr.mxu0 0.0
    %119 = vmatpush1.msra.mxu0 0.0
    %120 = vmatprep.mubr.f32.mxu0 0.0
    %121 = vmatmul.mubr.f32.gmra.mrb[0].mxu0 %v45
    %v122 = vpop.f32.mrb[0].mxu0
    %v123 = vadd.f32 0.0, %v122
    %v124 = vpop.f32.mrb[0].mxu0
    %v125 = vadd.f32 0.0, %v124
    %126 = vmatprep.mubr.f32.mxu0 0.0
    %127 = vmatmul.mubr.f32.gmra.mrb[0].mxu0 %v48
    %v128 = vpop.f32.mrb[0].mxu0
    %v129 = vadd.f32 0.0, %v128
    %v130 = vpop.f32.mrb[0].mxu0
    %v131 = vadd.f32 0.0, %v130
    %132 = vmatprep.mubr.f32.mxu0 0.0
    %133 = vmatmul.mubr.f32.gmra.mrb[0].mxu0 %v51
    %v134 = vpop.f32.mrb[0].mxu0
    %v135 = vadd.f32 0.0, %v134
    %v136 = vpop.f32.mrb[0].mxu0
    %v137 = vadd.f32 0.0, %v136
    %138 = vmatprep.mubr.f32.mxu0 0.0
    %139 = vmatmul.mubr.f32.gmra.mrb[0].mxu0 %v54
    %v140 = vpop.f32.mrb[0].mxu0
    %v141 = vadd.f32 0.0, %v140
    %v142 = vpop.f32.mrb[0].mxu0
    %v143 = vadd.f32 0.0, %v142
    %144 = vdwg.mxu0
    %145 = vmatprep.subr.mxu0 0.0
    %146 = vmatpush1.msra.mxu0 %v38
    %147 = vmatprep.subr.mxu0 0.0
    %148 = vmatpush1.msra.mxu0 0.0
    %149 = vmatprep.subr.mxu0 0.0
    %150 = vmatpush1.msra.mxu0 0.0
    %151 = vmatprep.subr.mxu0 0.0
    %152 = vmatpush1.msra.mxu0 0.0
    %153 = vmatprep.subr.mxu0 0.0
    %154 = vmatpush1.msra.mxu0 0.0
    %155 = vmatprep.subr.mxu0 0.0
    %156 = vmatpush1.msra.mxu0 0.0
    %157 = vmatprep.subr.mxu0 0.0
    %158 = vmatpush1.msra.mxu0 0.0
    %159 = vmatprep.subr.mxu0 0.0
    %160 = vmatpush1.msra.mxu0 0.0
    %161 = vmatprep.subr.mxu0 0.0
    %162 = vmatpush1.msra.mxu0 0.0
    %163 = vmatprep.subr.mxu0 0.0
    %164 = vmatpush1.msra.mxu0 0.0
    %165 = vmatprep.subr.mxu0 0.0
    %166 = vmatpush1.msra.mxu0 0.0
    %167 = vmatprep.subr.mxu0 0.0
    %168 = vmatpush1.msra.mxu0 0.0
    %169 = vmatprep.subr.mxu0 0.0
    %170 = vmatpush1.msra.mxu0 0.0
    %171 = vmatprep.subr.mxu0 0.0
    %172 = vmatpush1.msra.mxu0 0.0
    %173 = vmatprep.subr.mxu0 0.0
    %174 = vmatpush1.msra.mxu0 0.0
    %175 = vmatprep.subr.mxu0 0.0
    %176 = vmatpush1.msra.mxu0 0.0
    %177 = vmatprep.subr.mxu0 0.0
    %178 = vmatpush1.msra.mxu0 0.0
    %179 = vmatprep.subr.mxu0 0.0
    %180 = vmatpush1.msra.mxu0 0.0
    %181 = vmatprep.subr.mxu0 0.0
    %182 = vmatpush1.msra.mxu0 0.0
    %183 = vmatprep.subr.mxu0 0.0
    %184 = vmatpush1.msra.mxu0 0.0
    %185 = vmatprep.subr.mxu0 0.0
    %186 = vmatpush1.msra.mxu0 0.0
    %187 = vmatprep.subr.mxu0 0.0
    %188 = vmatpush1.msra.mxu0 0.0
    %189 = vmatprep.subr.mxu0 0.0
    %190 = vmatpush1.msra.mxu0 0.0
    %191 = vmatprep.subr.mxu0 0.0
    %192 = vmatpush1.msra.mxu0 0.0
    %193 = vmatprep.subr.mxu0 0.0
    %194 = vmatpush1.msra.mxu0 0.0
    %195 = vmatprep.subr.mxu0 0.0
    %196 = vmatpush1.msra.mxu0 0.0
    %197 = vmatprep.subr.mxu0 0.0
    %198 = vmatpush1.msra.mxu0 0.0
    %199 = vmatprep.subr.mxu0 0.0
    %200 = vmatpush1.msra.mxu0 0.0
    %201 = vmatprep.subr.mxu0 0.0
    %202 = vmatpush1.msra.mxu0 0.0
    %203 = vmatprep.subr.mxu0 0.0
    %204 = vmatpush1.msra.mxu0 0.0
    %205 = vmatprep.subr.mxu0 0.0
    %206 = vmatpush1.msra.mxu0 0.0
    %207 = vmatprep.subr.mxu0 0.0
    %208 = vmatpush1.msra.mxu0 0.0
    %209 = vmatprep.mubr.f32.mxu0 0.0
    %210 = vmatmul.mubr.f32.gmra.mrb[0].mxu0 %v45
    %v211 = vpop.f32.mrb[0].mxu0
    %v212 = vadd.f32 0.0, %v211
    %v213 = vpop.f32.mrb[0].mxu0
    %214 = vmatprep.mubr.f32.mxu0 0.0
    %215 = vmatmul.mubr.f32.gmra.mrb[0].mxu0 %v48
    %v216 = vpop.f32.mrb[0].mxu0
    %v217 = vadd.f32 0.0, %v216
    %v218 = vpop.f32.mrb[0].mxu0
    %219 = vmatprep.mubr.f32.mxu0 0.0
    %220 = vmatmul.mubr.f32.gmra.mrb[0].mxu0 %v51
    %v221 = vpop.f32.mrb[0].mxu0
    %v222 = vadd.f32 0.0, %v221
    %v223 = vpop.f32.mrb[0].mxu0
    %224 = vmatprep.mubr.f32.mxu0 0.0
    %225 = vmatmul.mubr.f32.gmra.mrb[0].mxu0 %v54
    %v226 = vpop.f32.mrb[0].mxu0
    %v227 = vadd.f32 0.0, %v226
    %v228 = vpop.f32.mrb[0].mxu0
    %229 = vdwg.mxu0
    %v230 = vld [vmem:[%s5] sm:$0xff]
    %v231 = vld [vmem:[%s5 + $0x8] sm:$0xff]
    %v232 = vld [vmem:[%s5 + $0x10] sm:$0xff]
    %v233 = vld [vmem:[%s5 + $0x18] sm:$0xff]
    %235 = vset.pattern.permute.xlu0 0
    %236 = vperm.xlu0 %235, %v230
    %v237 = vpop.permute.xlu0 %236
    %240 = vset.pattern.permute.xlu0 0
    %241 = vperm.xlu0 %240, %v231
    %v242 = vpop.permute.xlu0 %241
    %245 = vset.pattern.permute.xlu0 0
    %246 = vperm.xlu0 %245, %v232
    %v247 = vpop.permute.xlu0 %246
    %250 = vset.pattern.permute.xlu0 0
    %251 = vperm.xlu0 %250, %v233
    %v252 = vpop.permute.xlu0 %251
    %v254 = vadd.f32 %v123, %v237
    %v255 = vadd.f32 %v125, %v237
    %v256 = vadd.f32 %v212, %v237
    %v257 = vadd.f32 %v129, %v242
    %v258 = vadd.f32 %v131, %v242
    %v259 = vadd.f32 %v217, %v242
    %v260 = vadd.f32 %v135, %v247
    %v261 = vadd.f32 %v137, %v247
    %v262 = vadd.f32 %v222, %v247
    %v263 = vadd.f32 %v141, %v252
    %v264 = vadd.f32 %v143, %v252
    %v265 = vadd.f32 %v227, %v252
    %v266 = vand.u32 2147483647, %v254
    %vm267 = vcmp.le.f32.partialorder %v266, 0.7853982
    %vm268 = vcmp.lt.s32.totalorder %v254, 0
    %v269 = vand.u32 %v254, 2139095040
    %v270 = vshrl.u32 %v269, 23
    %v271 = vsub.s32 %v270, 127
    %v272 = vand.u32 2147483647, %v254
    %v273 = vand.u32 %v272, 8388607
    %v274 = vor.u32 %v273, 8388608
    %v275 = vsub.s32 0, %v274
    %v276 = vadd.s32 %v271, 1
    %vm277 = vcmp.gt.s32.totalorder %v276, 0
    %v278 = vsel %vm277, %v276, 0
    %v279 = vshrl.u32 %v278, 5
    %v280 = vand.u32 %v278, 31
    %v281 = vsub.s32 32, %v280
    %v282 = vshrl.u32 683565275, %v281
    %v283 = vshll.u32 683565275, %v280
    %v284 = vshrl.u32 2475754826, %v281
    %v285 = vor.u32 %v283, %v284
    %v286 = vshll.u32 2475754826, %v280
    %v287 = vshrl.u32 2131351028, %v281
    %v288 = vor.u32 %v286, %v287
    %v289 = vshll.u32 2131351028, %v280
    %v290 = vshrl.u32 2102212464, %v281
    %v291 = vor.u32 %v289, %v290
    %v292 = vshll.u32 2102212464, %v280
    %v293 = vshrl.u32 920167782, %v281
    %v294 = vor.u32 %v292, %v293
    %v295 = vshll.u32 920167782, %v280
    %v296 = vshrl.u32 1326507024, %v281
    %v297 = vor.u32 %v295, %v296
    %vm298 = vcmp.lt.s32.totalorder %v279, 1
    %vm299 = vcmp.lt.s32.totalorder %v279, 2
    %vm300 = vcmp.lt.s32.totalorder %v279, 3
    %vm301 = vcmp.lt.s32.totalorder %v279, 4
    %v302 = vsel %vm298, %v282, %v285
    %v303 = vsel %vm301, %v291, 2102212464
    %v304 = vsel %vm300, %v288, %v303
    %v305 = vsel %vm299, %v302, %v304
    %v306 = vsel %vm298, %v285, %v288
    %v307 = vsel %vm301, %v294, 920167782
    %v308 = vsel %vm300, %v291, %v307
    %v309 = vsel %vm299, %v306, %v308
    %v310 = vsel %vm298, %v288, %v291
    %v311 = vsel %vm301, %v297, 1326507024
    %v312 = vsel %vm300, %v294, %v311
    %v313 = vsel %vm299, %v310, %v312
    %v314 = vshll.u32 %v274, 8
    %v315 = vmul.u32.u64.compose %v314, %v313
    %v316 = vextract.low.u32 %v315
    %v317 = vextract.high.u32 %v315
    %v318 = vmul.u32.u64.compose %v314, %v309
    %v319 = vextract.low.u32 %v318
    %v320 = vextract.high.u32 %v318
    %v321 = vmul.u32 %v314, %v305
    %v322 = vadd.s32 %v317, %v319
    %vm323 = vc.u32 %v317, %v319
    %v324 = vadd.s32 %v320, 1
    %v325 = vsel %vm323, %v324, %v320
    %v326 = vadd.s32 %v321, %v325
    %v327 = vadd.s32 %v326, 536870912
    %v328 = vshrl.u32 %v327, 30
    %v329 = vshll.u32 %v328, 30
    %v330 = vsub.s32 %v326, %v329
    %vm331 = vcmp.lt.s32.totalorder %v330, 0
    %v332 = vsub.s32 0, %v330
    %v333 = vsel %vm331, %v332, %v330
    %v334 = vclz %v333
    %v335 = vsub.s32 %v334, 2
    %vm336 = vcmp.gt.s32.totalorder 0, %v335
    %v337 = vsel %vm336, 0, %v335
    %v338 = vsub.s32 32, %v337
    %v339 = vshll.u32 %v330, %v337
    %v340 = vshrl.u32 %v322, %v338
    %v341 = vor.u32 %v339, %v340
    %v342 = vsub.s32 4294967266, %v337
    %v343 = vadd.s32 %v342, 127
    %v344 = vshll.u32 %v343, 23
    %v345 = vor.u32 4788187, %v344
    %v346 = vand.u32 2147483647, %v345
    %v348 = vcvt.s32.f32 %v341
    %v349 = vmul.f32 %v348, %v346
    %v350 = vxor.u32 %v349, 2147483648
    %v351 = vsel %vm268, %v350, %v349
    %v352 = vsub.s32 4, %v328
    %v353 = vsel %vm268, %v352, %v328
    %v354 = vsel %vm267, %v254, %v351
    %v355 = vsel %vm267, 0, %v353
    %v356 = vcosq.f32.pop %v354
    %v357 = vsinq.f32.pop %v354
    %vm358 = vweird.f32 %v254
    %v359 = vadd.s32 %v355, 3
    %v360 = vand.u32 %v359, 3
    %vm361 = vcmp.lt.s32.totalorder %v360, 2
    %vm362 = vcmp.eq.s32.totalorder %v360, 0
    %v363 = vxor.u32 %v357, 2147483648
    %v364 = vsel %vm362, %v356, %v363
    %vm365 = vcmp.eq.s32.totalorder %v360, 2
    %v366 = vxor.u32 %v356, 2147483648
    %v367 = vsel %vm365, %v366, %v357
    %v368 = vsel %vm361, %v364, %v367
    %v369 = vsel %vm358, nan, %v368
    %v370 = vand.u32 2147483647, %v255
    %vm371 = vcmp.le.f32.partialorder %v370, 0.7853982
    %vm372 = vcmp.lt.s32.totalorder %v255, 0
    %v373 = vand.u32 %v255, 2139095040
    %v374 = vshrl.u32 %v373, 23
    %v375 = vsub.s32 %v374, 127
    %v376 = vand.u32 2147483647, %v255
    %v377 = vand.u32 %v376, 8388607
    %v378 = vor.u32 %v377, 8388608
    %v379 = vsub.s32 0, %v378
    %v380 = vadd.s32 %v375, 1
    %vm381 = vcmp.gt.s32.totalorder %v380, 0
    %v382 = vsel %vm381, %v380, 0
    %v383 = vshrl.u32 %v382, 5
    %v384 = vand.u32 %v382, 31
    %v385 = vsub.s32 32, %v384
    %v386 = vshrl.u32 683565275, %v385
    %v387 = vshll.u32 683565275, %v384
    %v388 = vshrl.u32 2475754826, %v385
    %v389 = vor.u32 %v387, %v388
    %v390 = vshll.u32 2475754826, %v384
    %v391 = vshrl.u32 2131351028, %v385
    %v392 = vor.u32 %v390, %v391
    %v393 = vshll.u32 2131351028, %v384
    %v394 = vshrl.u32 2102212464, %v385
    %v395 = vor.u32 %v393, %v394
    %v396 = vshll.u32 2102212464, %v384
    %v397 = vshrl.u32 920167782, %v385
    %v398 = vor.u32 %v396, %v397
    %v399 = vshll.u32 920167782, %v384
    %v400 = vshrl.u32 1326507024, %v385
    %v401 = vor.u32 %v399, %v400
    %vm402 = vcmp.lt.s32.totalorder %v383, 1
    %vm403 = vcmp.lt.s32.totalorder %v383, 2
    %vm404 = vcmp.lt.s32.totalorder %v383, 3
    %vm405 = vcmp.lt.s32.totalorder %v383, 4
    %v406 = vsel %vm402, %v386, %v389
    %v407 = vsel %vm405, %v395, 2102212464
    %v408 = vsel %vm404, %v392, %v407
    %v409 = vsel %vm403, %v406, %v408
    %v410 = vsel %vm402, %v389, %v392
    %v411 = vsel %vm405, %v398, 920167782
    %v412 = vsel %vm404, %v395, %v411
    %v413 = vsel %vm403, %v410, %v412
    %v414 = vsel %vm402, %v392, %v395
    %v415 = vsel %vm405, %v401, 1326507024
    %v416 = vsel %vm404, %v398, %v415
    %v417 = vsel %vm403, %v414, %v416
    %v418 = vshll.u32 %v378, 8
    %v419 = vmul.u32.u64.compose %v418, %v417
    %v420 = vextract.low.u32 %v419
    %v421 = vextract.high.u32 %v419
    %v422 = vmul.u32.u64.compose %v418, %v413
    %v423 = vextract.low.u32 %v422
    %v424 = vextract.high.u32 %v422
    %v425 = vmul.u32 %v418, %v409
    %v426 = vadd.s32 %v421, %v423
    %vm427 = vc.u32 %v421, %v423
    %v428 = vadd.s32 %v424, 1
    %v429 = vsel %vm427, %v428, %v424
    %v430 = vadd.s32 %v425, %v429
    %v431 = vadd.s32 %v430, 536870912
    %v432 = vshrl.u32 %v431, 30
    %v433 = vshll.u32 %v432, 30
    %v434 = vsub.s32 %v430, %v433
    %vm435 = vcmp.lt.s32.totalorder %v434, 0
    %v436 = vsub.s32 0, %v434
    %v437 = vsel %vm435, %v436, %v434
    %v438 = vclz %v437
    %v439 = vsub.s32 %v438, 2
    %vm440 = vcmp.gt.s32.totalorder 0, %v439
    %v441 = vsel %vm440, 0, %v439
    %v442 = vsub.s32 32, %v441
    %v443 = vshll.u32 %v434, %v441
    %v444 = vshrl.u32 %v426, %v442
    %v445 = vor.u32 %v443, %v444
    %v446 = vsub.s32 4294967266, %v441
    %v447 = vadd.s32 %v446, 127
    %v448 = vshll.u32 %v447, 23
    %v449 = vor.u32 4788187, %v448
    %v450 = vand.u32 2147483647, %v449
    %v452 = vcvt.s32.f32 %v445
    %v453 = vmul.f32 %v452, %v450
    %v454 = vxor.u32 %v453, 2147483648
    %v455 = vsel %vm372, %v454, %v453
    %v456 = vsub.s32 4, %v432
    %v457 = vsel %vm372, %v456, %v432
    %v458 = vsel %vm371, %v255, %v455
    %v459 = vsel %vm371, 0, %v457
    %v460 = vcosq.f32.pop %v458
    %v461 = vsinq.f32.pop %v458
    %vm462 = vweird.f32 %v255
    %v463 = vadd.s32 %v459, 3
    %v464 = vand.u32 %v463, 3
    %vm465 = vcmp.lt.s32.totalorder %v464, 2
    %vm466 = vcmp.eq.s32.totalorder %v464, 0
    %v467 = vxor.u32 %v461, 2147483648
    %v468 = vsel %vm466, %v460, %v467
    %vm469 = vcmp.eq.s32.totalorder %v464, 2
    %v470 = vxor.u32 %v460, 2147483648
    %v471 = vsel %vm469, %v470, %v461
    %v472 = vsel %vm465, %v468, %v471
    %v473 = vsel %vm462, nan, %v472
    %v474 = vand.u32 2147483647, %v256
    %vm475 = vcmp.le.f32.partialorder %v474, 0.7853982
    %vm476 = vcmp.lt.s32.totalorder %v256, 0
    %v477 = vand.u32 %v256, 2139095040
    %v478 = vshrl.u32 %v477, 23
    %v479 = vsub.s32 %v478, 127
    %v480 = vand.u32 2147483647, %v256
    %v481 = vand.u32 %v480, 8388607
    %v482 = vor.u32 %v481, 8388608
    %v483 = vsub.s32 0, %v482
    %v484 = vadd.s32 %v479, 1
    %vm485 = vcmp.gt.s32.totalorder %v484, 0
    %v486 = vsel %vm485, %v484, 0
    %v487 = vshrl.u32 %v486, 5
    %v488 = vand.u32 %v486, 31
    %v489 = vsub.s32 32, %v488
    %v490 = vshrl.u32 683565275, %v489
    %v491 = vshll.u32 683565275, %v488
    %v492 = vshrl.u32 2475754826, %v489
    %v493 = vor.u32 %v491, %v492
    %v494 = vshll.u32 2475754826, %v488
    %v495 = vshrl.u32 2131351028, %v489
    %v496 = vor.u32 %v494, %v495
    %v497 = vshll.u32 2131351028, %v488
    %v498 = vshrl.u32 2102212464, %v489
    %v499 = vor.u32 %v497, %v498
    %v500 = vshll.u32 2102212464, %v488
    %v501 = vshrl.u32 920167782, %v489
    %v502 = vor.u32 %v500, %v501
    %v503 = vshll.u32 920167782, %v488
    %v504 = vshrl.u32 1326507024, %v489
    %v505 = vor.u32 %v503, %v504
    %vm506 = vcmp.lt.s32.totalorder %v487, 1
    %vm507 = vcmp.lt.s32.totalorder %v487, 2
    %vm508 = vcmp.lt.s32.totalorder %v487, 3
    %vm509 = vcmp.lt.s32.totalorder %v487, 4
    %v510 = vsel %vm506, %v490, %v493
    %v511 = vsel %vm509, %v499, 2102212464
    %v512 = vsel %vm508, %v496, %v511
    %v513 = vsel %vm507, %v510, %v512
    %v514 = vsel %vm506, %v493, %v496
    %v515 = vsel %vm509, %v502, 920167782
    %v516 = vsel %vm508, %v499, %v515
    %v517 = vsel %vm507, %v514, %v516
    %v518 = vsel %vm506, %v496, %v499
    %v519 = vsel %vm509, %v505, 1326507024
    %v520 = vsel %vm508, %v502, %v519
    %v521 = vsel %vm507, %v518, %v520
    %v522 = vshll.u32 %v482, 8
    %v523 = vmul.u32.u64.compose %v522, %v521
    %v524 = vextract.low.u32 %v523
    %v525 = vextract.high.u32 %v523
    %v526 = vmul.u32.u64.compose %v522, %v517
    %v527 = vextract.low.u32 %v526
    %v528 = vextract.high.u32 %v526
    %v529 = vmul.u32 %v522, %v513
    %v530 = vadd.s32 %v525, %v527
    %vm531 = vc.u32 %v525, %v527
    %v532 = vadd.s32 %v528, 1
    %v533 = vsel %vm531, %v532, %v528
    %v534 = vadd.s32 %v529, %v533
    %v535 = vadd.s32 %v534, 536870912
    %v536 = vshrl.u32 %v535, 30
    %v537 = vshll.u32 %v536, 30
    %v538 = vsub.s32 %v534, %v537
    %vm539 = vcmp.lt.s32.totalorder %v538, 0
    %v540 = vsub.s32 0, %v538
    %v541 = vsel %vm539, %v540, %v538
    %v542 = vclz %v541
    %v543 = vsub.s32 %v542, 2
    %vm544 = vcmp.gt.s32.totalorder 0, %v543
    %v545 = vsel %vm544, 0, %v543
    %v546 = vsub.s32 32, %v545
    %v547 = vshll.u32 %v538, %v545
    %v548 = vshrl.u32 %v530, %v546
    %v549 = vor.u32 %v547, %v548
    %v550 = vsub.s32 4294967266, %v545
    %v551 = vadd.s32 %v550, 127
    %v552 = vshll.u32 %v551, 23
    %v553 = vor.u32 4788187, %v552
    %v554 = vand.u32 2147483647, %v553
    %v556 = vcvt.s32.f32 %v549
    %v557 = vmul.f32 %v556, %v554
    %v558 = vxor.u32 %v557, 2147483648
    %v559 = vsel %vm476, %v558, %v557
    %v560 = vsub.s32 4, %v536
    %v561 = vsel %vm476, %v560, %v536
    %v562 = vsel %vm475, %v256, %v559
    %v563 = vsel %vm475, 0, %v561
    %v564 = vcosq.f32.pop %v562
    %v565 = vsinq.f32.pop %v562
    %vm566 = vweird.f32 %v256
    %v567 = vadd.s32 %v563, 3
    %v568 = vand.u32 %v567, 3
    %vm569 = vcmp.lt.s32.totalorder %v568, 2
    %vm570 = vcmp.eq.s32.totalorder %v568, 0
    %v571 = vxor.u32 %v565, 2147483648
    %v572 = vsel %vm570, %v564, %v571
    %vm573 = vcmp.eq.s32.totalorder %v568, 2
    %v574 = vxor.u32 %v564, 2147483648
    %v575 = vsel %vm573, %v574, %v565
    %v576 = vsel %vm569, %v572, %v575
    %v577 = vsel %vm566, nan, %v576
    %v578 = vand.u32 2147483647, %v257
    %vm579 = vcmp.le.f32.partialorder %v578, 0.7853982
    %vm580 = vcmp.lt.s32.totalorder %v257, 0
    %v581 = vand.u32 %v257, 2139095040
    %v582 = vshrl.u32 %v581, 23
    %v583 = vsub.s32 %v582, 127
    %v584 = vand.u32 2147483647, %v257
    %v585 = vand.u32 %v584, 8388607
    %v586 = vor.u32 %v585, 8388608
    %v587 = vsub.s32 0, %v586
    %v588 = vadd.s32 %v583, 1
    %vm589 = vcmp.gt.s32.totalorder %v588, 0
    %v590 = vsel %vm589, %v588, 0
    %v591 = vshrl.u32 %v590, 5
    %v592 = vand.u32 %v590, 31
    %v593 = vsub.s32 32, %v592
    %v594 = vshrl.u32 683565275, %v593
    %v595 = vshll.u32 683565275, %v592
    %v596 = vshrl.u32 2475754826, %v593
    %v597 = vor.u32 %v595, %v596
    %v598 = vshll.u32 2475754826, %v592
    %v599 = vshrl.u32 2131351028, %v593
    %v600 = vor.u32 %v598, %v599
    %v601 = vshll.u32 2131351028, %v592
    %v602 = vshrl.u32 2102212464, %v593
    %v603 = vor.u32 %v601, %v602
    %v604 = vshll.u32 2102212464, %v592
    %v605 = vshrl.u32 920167782, %v593
    %v606 = vor.u32 %v604, %v605
    %v607 = vshll.u32 920167782, %v592
    %v608 = vshrl.u32 1326507024, %v593
    %v609 = vor.u32 %v607, %v608
    %vm610 = vcmp.lt.s32.totalorder %v591, 1
    %vm611 = vcmp.lt.s32.totalorder %v591, 2
    %vm612 = vcmp.lt.s32.totalorder %v591, 3
    %vm613 = vcmp.lt.s32.totalorder %v591, 4
    %v614 = vsel %vm610, %v594, %v597
    %v615 = vsel %vm613, %v603, 2102212464
    %v616 = vsel %vm612, %v600, %v615
    %v617 = vsel %vm611, %v614, %v616
    %v618 = vsel %vm610, %v597, %v600
    %v619 = vsel %vm613, %v606, 920167782
    %v620 = vsel %vm612, %v603, %v619
    %v621 = vsel %vm611, %v618, %v620
    %v622 = vsel %vm610, %v600, %v603
    %v623 = vsel %vm613, %v609, 1326507024
    %v624 = vsel %vm612, %v606, %v623
    %v625 = vsel %vm611, %v622, %v624
    %v626 = vshll.u32 %v586, 8
    %v627 = vmul.u32.u64.compose %v626, %v625
    %v628 = vextract.low.u32 %v627
    %v629 = vextract.high.u32 %v627
    %v630 = vmul.u32.u64.compose %v626, %v621
    %v631 = vextract.low.u32 %v630
    %v632 = vextract.high.u32 %v630
    %v633 = vmul.u32 %v626, %v617
    %v634 = vadd.s32 %v629, %v631
    %vm635 = vc.u32 %v629, %v631
    %v636 = vadd.s32 %v632, 1
    %v637 = vsel %vm635, %v636, %v632
    %v638 = vadd.s32 %v633, %v637
    %v639 = vadd.s32 %v638, 536870912
    %v640 = vshrl.u32 %v639, 30
    %v641 = vshll.u32 %v640, 30
    %v642 = vsub.s32 %v638, %v641
    %vm643 = vcmp.lt.s32.totalorder %v642, 0
    %v644 = vsub.s32 0, %v642
    %v645 = vsel %vm643, %v644, %v642
    %v646 = vclz %v645
    %v647 = vsub.s32 %v646, 2
    %vm648 = vcmp.gt.s32.totalorder 0, %v647
    %v649 = vsel %vm648, 0, %v647
    %v650 = vsub.s32 32, %v649
    %v651 = vshll.u32 %v642, %v649
    %v652 = vshrl.u32 %v634, %v650
    %v653 = vor.u32 %v651, %v652
    %v654 = vsub.s32 4294967266, %v649
    %v655 = vadd.s32 %v654, 127
    %v656 = vshll.u32 %v655, 23
    %v657 = vor.u32 4788187, %v656
    %v658 = vand.u32 2147483647, %v657
    %v660 = vcvt.s32.f32 %v653
    %v661 = vmul.f32 %v660, %v658
    %v662 = vxor.u32 %v661, 2147483648
    %v663 = vsel %vm580, %v662, %v661
    %v664 = vsub.s32 4, %v640
    %v665 = vsel %vm580, %v664, %v640
    %v666 = vsel %vm579, %v257, %v663
    %v667 = vsel %vm579, 0, %v665
    %v668 = vcosq.f32.pop %v666
    %v669 = vsinq.f32.pop %v666
    %vm670 = vweird.f32 %v257
    %v671 = vadd.s32 %v667, 3
    %v672 = vand.u32 %v671, 3
    %vm673 = vcmp.lt.s32.totalorder %v672, 2
    %vm674 = vcmp.eq.s32.totalorder %v672, 0
    %v675 = vxor.u32 %v669, 2147483648
    %v676 = vsel %vm674, %v668, %v675
    %vm677 = vcmp.eq.s32.totalorder %v672, 2
    %v678 = vxor.u32 %v668, 2147483648
    %v679 = vsel %vm677, %v678, %v669
    %v680 = vsel %vm673, %v676, %v679
    %v681 = vsel %vm670, nan, %v680
    %v682 = vand.u32 2147483647, %v258
    %vm683 = vcmp.le.f32.partialorder %v682, 0.7853982
    %vm684 = vcmp.lt.s32.totalorder %v258, 0
    %v685 = vand.u32 %v258, 2139095040
    %v686 = vshrl.u32 %v685, 23
    %v687 = vsub.s32 %v686, 127
    %v688 = vand.u32 2147483647, %v258
    %v689 = vand.u32 %v688, 8388607
    %v690 = vor.u32 %v689, 8388608
    %v691 = vsub.s32 0, %v690
    %v692 = vadd.s32 %v687, 1
    %vm693 = vcmp.gt.s32.totalorder %v692, 0
    %v694 = vsel %vm693, %v692, 0
    %v695 = vshrl.u32 %v694, 5
    %v696 = vand.u32 %v694, 31
    %v697 = vsub.s32 32, %v696
    %v698 = vshrl.u32 683565275, %v697
    %v699 = vshll.u32 683565275, %v696
    %v700 = vshrl.u32 2475754826, %v697
    %v701 = vor.u32 %v699, %v700
    %v702 = vshll.u32 2475754826, %v696
    %v703 = vshrl.u32 2131351028, %v697
    %v704 = vor.u32 %v702, %v703
    %v705 = vshll.u32 2131351028, %v696
    %v706 = vshrl.u32 2102212464, %v697
    %v707 = vor.u32 %v705, %v706
    %v708 = vshll.u32 2102212464, %v696
    %v709 = vshrl.u32 920167782, %v697
    %v710 = vor.u32 %v708, %v709
    %v711 = vshll.u32 920167782, %v696
    %v712 = vshrl.u32 1326507024, %v697
    %v713 = vor.u32 %v711, %v712
    %vm714 = vcmp.lt.s32.totalorder %v695, 1
    %vm715 = vcmp.lt.s32.totalorder %v695, 2
    %vm716 = vcmp.lt.s32.totalorder %v695, 3
    %vm717 = vcmp.lt.s32.totalorder %v695, 4
    %v718 = vsel %vm714, %v698, %v701
    %v719 = vsel %vm717, %v707, 2102212464
    %v720 = vsel %vm716, %v704, %v719
    %v721 = vsel %vm715, %v718, %v720
    %v722 = vsel %vm714, %v701, %v704
    %v723 = vsel %vm717, %v710, 920167782
    %v724 = vsel %vm716, %v707, %v723
    %v725 = vsel %vm715, %v722, %v724
    %v726 = vsel %vm714, %v704, %v707
    %v727 = vsel %vm717, %v713, 1326507024
    %v728 = vsel %vm716, %v710, %v727
    %v729 = vsel %vm715, %v726, %v728
    %v730 = vshll.u32 %v690, 8
    %v731 = vmul.u32.u64.compose %v730, %v729
    %v732 = vextract.low.u32 %v731
    %v733 = vextract.high.u32 %v731
    %v734 = vmul.u32.u64.compose %v730, %v725
    %v735 = vextract.low.u32 %v734
    %v736 = vextract.high.u32 %v734
    %v737 = vmul.u32 %v730, %v721
    %v738 = vadd.s32 %v733, %v735
    %vm739 = vc.u32 %v733, %v735
    %v740 = vadd.s32 %v736, 1
    %v741 = vsel %vm739, %v740, %v736
    %v742 = vadd.s32 %v737, %v741
    %v743 = vadd.s32 %v742, 536870912
    %v744 = vshrl.u32 %v743, 30
    %v745 = vshll.u32 %v744, 30
    %v746 = vsub.s32 %v742, %v745
    %vm747 = vcmp.lt.s32.totalorder %v746, 0
    %v748 = vsub.s32 0, %v746
    %v749 = vsel %vm747, %v748, %v746
    %v750 = vclz %v749
    %v751 = vsub.s32 %v750, 2
    %vm752 = vcmp.gt.s32.totalorder 0, %v751
    %v753 = vsel %vm752, 0, %v751
    %v754 = vsub.s32 32, %v753
    %v755 = vshll.u32 %v746, %v753
    %v756 = vshrl.u32 %v738, %v754
    %v757 = vor.u32 %v755, %v756
    %v758 = vsub.s32 4294967266, %v753
    %v759 = vadd.s32 %v758, 127
    %v760 = vshll.u32 %v759, 23
    %v761 = vor.u32 4788187, %v760
    %v762 = vand.u32 2147483647, %v761
    %v764 = vcvt.s32.f32 %v757
    %v765 = vmul.f32 %v764, %v762
    %v766 = vxor.u32 %v765, 2147483648
    %v767 = vsel %vm684, %v766, %v765
    %v768 = vsub.s32 4, %v744
    %v769 = vsel %vm684, %v768, %v744
    %v770 = vsel %vm683, %v258, %v767
    %v771 = vsel %vm683, 0, %v769
    %v772 = vcosq.f32.pop %v770
    %v773 = vsinq.f32.pop %v770
    %vm774 = vweird.f32 %v258
    %v775 = vadd.s32 %v771, 3
    %v776 = vand.u32 %v775, 3
    %vm777 = vcmp.lt.s32.totalorder %v776, 2
    %vm778 = vcmp.eq.s32.totalorder %v776, 0
    %v779 = vxor.u32 %v773, 2147483648
    %v780 = vsel %vm778, %v772, %v779
    %vm781 = vcmp.eq.s32.totalorder %v776, 2
    %v782 = vxor.u32 %v772, 2147483648
    %v783 = vsel %vm781, %v782, %v773
    %v784 = vsel %vm777, %v780, %v783
    %v785 = vsel %vm774, nan, %v784
    %v786 = vand.u32 2147483647, %v259
    %vm787 = vcmp.le.f32.partialorder %v786, 0.7853982
    %vm788 = vcmp.lt.s32.totalorder %v259, 0
    %v789 = vand.u32 %v259, 2139095040
    %v790 = vshrl.u32 %v789, 23
    %v791 = vsub.s32 %v790, 127
    %v792 = vand.u32 2147483647, %v259
    %v793 = vand.u32 %v792, 8388607
    %v794 = vor.u32 %v793, 8388608
    %v795 = vsub.s32 0, %v794
    %v796 = vadd.s32 %v791, 1
    %vm797 = vcmp.gt.s32.totalorder %v796, 0
    %v798 = vsel %vm797, %v796, 0
    %v799 = vshrl.u32 %v798, 5
    %v800 = vand.u32 %v798, 31
    %v801 = vsub.s32 32, %v800
    %v802 = vshrl.u32 683565275, %v801
    %v803 = vshll.u32 683565275, %v800
    %v804 = vshrl.u32 2475754826, %v801
    %v805 = vor.u32 %v803, %v804
    %v806 = vshll.u32 2475754826, %v800
    %v807 = vshrl.u32 2131351028, %v801
    %v808 = vor.u32 %v806, %v807
    %v809 = vshll.u32 2131351028, %v800
    %v810 = vshrl.u32 2102212464, %v801
    %v811 = vor.u32 %v809, %v810
    %v812 = vshll.u32 2102212464, %v800
    %v813 = vshrl.u32 920167782, %v801
    %v814 = vor.u32 %v812, %v813
    %v815 = vshll.u32 920167782, %v800
    %v816 = vshrl.u32 1326507024, %v801
    %v817 = vor.u32 %v815, %v816
    %vm818 = vcmp.lt.s32.totalorder %v799, 1
    %vm819 = vcmp.lt.s32.totalorder %v799, 2
    %vm820 = vcmp.lt.s32.totalorder %v799, 3
    %vm821 = vcmp.lt.s32.totalorder %v799, 4
    %v822 = vsel %vm818, %v802, %v805
    %v823 = vsel %vm821, %v811, 2102212464
    %v824 = vsel %vm820, %v808, %v823
    %v825 = vsel %vm819, %v822, %v824
    %v826 = vsel %vm818, %v805, %v808
    %v827 = vsel %vm821, %v814, 920167782
    %v828 = vsel %vm820, %v811, %v827
    %v829 = vsel %vm819, %v826, %v828
    %v830 = vsel %vm818, %v808, %v811
    %v831 = vsel %vm821, %v817, 1326507024
    %v832 = vsel %vm820, %v814, %v831
    %v833 = vsel %vm819, %v830, %v832
    %v834 = vshll.u32 %v794, 8
    %v835 = vmul.u32.u64.compose %v834, %v833
    %v836 = vextract.low.u32 %v835
    %v837 = vextract.high.u32 %v835
    %v838 = vmul.u32.u64.compose %v834, %v829
    %v839 = vextract.low.u32 %v838
    %v840 = vextract.high.u32 %v838
    %v841 = vmul.u32 %v834, %v825
    %v842 = vadd.s32 %v837, %v839
    %vm843 = vc.u32 %v837, %v839
    %v844 = vadd.s32 %v840, 1
    %v845 = vsel %vm843, %v844, %v840
    %v846 = vadd.s32 %v841, %v845
    %v847 = vadd.s32 %v846, 536870912
    %v848 = vshrl.u32 %v847, 30
    %v849 = vshll.u32 %v848, 30
    %v850 = vsub.s32 %v846, %v849
    %vm851 = vcmp.lt.s32.totalorder %v850, 0
    %v852 = vsub.s32 0, %v850
    %v853 = vsel %vm851, %v852, %v850
    %v854 = vclz %v853
    %v855 = vsub.s32 %v854, 2
    %vm856 = vcmp.gt.s32.totalorder 0, %v855
    %v857 = vsel %vm856, 0, %v855
    %v858 = vsub.s32 32, %v857
    %v859 = vshll.u32 %v850, %v857
    %v860 = vshrl.u32 %v842, %v858
    %v861 = vor.u32 %v859, %v860
    %v862 = vsub.s32 4294967266, %v857
    %v863 = vadd.s32 %v862, 127
    %v864 = vshll.u32 %v863, 23
    %v865 = vor.u32 4788187, %v864
    %v866 = vand.u32 2147483647, %v865
    %v868 = vcvt.s32.f32 %v861
    %v869 = vmul.f32 %v868, %v866
    %v870 = vxor.u32 %v869, 2147483648
    %v871 = vsel %vm788, %v870, %v869
    %v872 = vsub.s32 4, %v848
    %v873 = vsel %vm788, %v872, %v848
    %v874 = vsel %vm787, %v259, %v871
    %v875 = vsel %vm787, 0, %v873
    %v876 = vcosq.f32.pop %v874
    %v877 = vsinq.f32.pop %v874
    %vm878 = vweird.f32 %v259
    %v879 = vadd.s32 %v875, 3
    %v880 = vand.u32 %v879, 3
    %vm881 = vcmp.lt.s32.totalorder %v880, 2
    %vm882 = vcmp.eq.s32.totalorder %v880, 0
    %v883 = vxor.u32 %v877, 2147483648
    %v884 = vsel %vm882, %v876, %v883
    %vm885 = vcmp.eq.s32.totalorder %v880, 2
    %v886 = vxor.u32 %v876, 2147483648
    %v887 = vsel %vm885, %v886, %v877
    %v888 = vsel %vm881, %v884, %v887
    %v889 = vsel %vm878, nan, %v888
    %v890 = vand.u32 2147483647, %v260
    %vm891 = vcmp.le.f32.partialorder %v890, 0.7853982
    %vm892 = vcmp.lt.s32.totalorder %v260, 0
    %v893 = vand.u32 %v260, 2139095040
    %v894 = vshrl.u32 %v893, 23
    %v895 = vsub.s32 %v894, 127
    %v896 = vand.u32 2147483647, %v260
    %v897 = vand.u32 %v896, 8388607
    %v898 = vor.u32 %v897, 8388608
    %v899 = vsub.s32 0, %v898
    %v900 = vadd.s32 %v895, 1
    %vm901 = vcmp.gt.s32.totalorder %v900, 0
    %v902 = vsel %vm901, %v900, 0
    %v903 = vshrl.u32 %v902, 5
    %v904 = vand.u32 %v902, 31
    %v905 = vsub.s32 32, %v904
    %v906 = vshrl.u32 683565275, %v905
    %v907 = vshll.u32 683565275, %v904
    %v908 = vshrl.u32 2475754826, %v905
    %v909 = vor.u32 %v907, %v908
    %v910 = vshll.u32 2475754826, %v904
    %v911 = vshrl.u32 2131351028, %v905
    %v912 = vor.u32 %v910, %v911
    %v913 = vshll.u32 2131351028, %v904
    %v914 = vshrl.u32 2102212464, %v905
    %v915 = vor.u32 %v913, %v914
    %v916 = vshll.u32 2102212464, %v904
    %v917 = vshrl.u32 920167782, %v905
    %v918 = vor.u32 %v916, %v917
    %v919 = vshll.u32 920167782, %v904
    %v920 = vshrl.u32 1326507024, %v905
    %v921 = vor.u32 %v919, %v920
    %vm922 = vcmp.lt.s32.totalorder %v903, 1
    %vm923 = vcmp.lt.s32.totalorder %v903, 2
    %vm924 = vcmp.lt.s32.totalorder %v903, 3
    %vm925 = vcmp.lt.s32.totalorder %v903, 4
    %v926 = vsel %vm922, %v906, %v909
    %v927 = vsel %vm925, %v915, 2102212464
    %v928 = vsel %vm924, %v912, %v927
    %v929 = vsel %vm923, %v926, %v928
    %v930 = vsel %vm922, %v909, %v912
    %v931 = vsel %vm925, %v918, 920167782
    %v932 = vsel %vm924, %v915, %v931
    %v933 = vsel %vm923, %v930, %v932
    %v934 = vsel %vm922, %v912, %v915
    %v935 = vsel %vm925, %v921, 1326507024
    %v936 = vsel %vm924, %v918, %v935
    %v937 = vsel %vm923, %v934, %v936
    %v938 = vshll.u32 %v898, 8
    %v939 = vmul.u32.u64.compose %v938, %v937
    %v940 = vextract.low.u32 %v939
    %v941 = vextract.high.u32 %v939
    %v942 = vmul.u32.u64.compose %v938, %v933
    %v943 = vextract.low.u32 %v942
    %v944 = vextract.high.u32 %v942
    %v945 = vmul.u32 %v938, %v929
    %v946 = vadd.s32 %v941, %v943
    %vm947 = vc.u32 %v941, %v943
    %v948 = vadd.s32 %v944, 1
    %v949 = vsel %vm947, %v948, %v944
    %v950 = vadd.s32 %v945, %v949
    %v951 = vadd.s32 %v950, 536870912
    %v952 = vshrl.u32 %v951, 30
    %v953 = vshll.u32 %v952, 30
    %v954 = vsub.s32 %v950, %v953
    %vm955 = vcmp.lt.s32.totalorder %v954, 0
    %v956 = vsub.s32 0, %v954
    %v957 = vsel %vm955, %v956, %v954
    %v958 = vclz %v957
    %v959 = vsub.s32 %v958, 2
    %vm960 = vcmp.gt.s32.totalorder 0, %v959
    %v961 = vsel %vm960, 0, %v959
    %v962 = vsub.s32 32, %v961
    %v963 = vshll.u32 %v954, %v961
    %v964 = vshrl.u32 %v946, %v962
    %v965 = vor.u32 %v963, %v964
    %v966 = vsub.s32 4294967266, %v961
    %v967 = vadd.s32 %v966, 127
    %v968 = vshll.u32 %v967, 23
    %v969 = vor.u32 4788187, %v968
    %v970 = vand.u32 2147483647, %v969
    %v972 = vcvt.s32.f32 %v965
    %v973 = vmul.f32 %v972, %v970
    %v974 = vxor.u32 %v973, 2147483648
    %v975 = vsel %vm892, %v974, %v973
    %v976 = vsub.s32 4, %v952
    %v977 = vsel %vm892, %v976, %v952
    %v978 = vsel %vm891, %v260, %v975
    %v979 = vsel %vm891, 0, %v977
    %v980 = vcosq.f32.pop %v978
    %v981 = vsinq.f32.pop %v978
    %vm982 = vweird.f32 %v260
    %v983 = vadd.s32 %v979, 3
    %v984 = vand.u32 %v983, 3
    %vm985 = vcmp.lt.s32.totalorder %v984, 2
    %vm986 = vcmp.eq.s32.totalorder %v984, 0
    %v987 = vxor.u32 %v981, 2147483648
    %v988 = vsel %vm986, %v980, %v987
    %vm989 = vcmp.eq.s32.totalorder %v984, 2
    %v990 = vxor.u32 %v980, 2147483648
    %v991 = vsel %vm989, %v990, %v981
    %v992 = vsel %vm985, %v988, %v991
    %v993 = vsel %vm982, nan, %v992
    %v994 = vand.u32 2147483647, %v261
    %vm995 = vcmp.le.f32.partialorder %v994, 0.7853982
    %vm996 = vcmp.lt.s32.totalorder %v261, 0
    %v997 = vand.u32 %v261, 2139095040
    %v998 = vshrl.u32 %v997, 23
    %v999 = vsub.s32 %v998, 127
    %v1000 = vand.u32 2147483647, %v261
    %v1001 = vand.u32 %v1000, 8388607
    %v1002 = vor.u32 %v1001, 8388608
    %v1003 = vsub.s32 0, %v1002
    %v1004 = vadd.s32 %v999, 1
    %vm1005 = vcmp.gt.s32.totalorder %v1004, 0
    %v1006 = vsel %vm1005, %v1004, 0
    %v1007 = vshrl.u32 %v1006, 5
    %v1008 = vand.u32 %v1006, 31
    %v1009 = vsub.s32 32, %v1008
    %v1010 = vshrl.u32 683565275, %v1009
    %v1011 = vshll.u32 683565275, %v1008
    %v1012 = vshrl.u32 2475754826, %v1009
    %v1013 = vor.u32 %v1011, %v1012
    %v1014 = vshll.u32 2475754826, %v1008
    %v1015 = vshrl.u32 2131351028, %v1009
    %v1016 = vor.u32 %v1014, %v1015
    %v1017 = vshll.u32 2131351028, %v1008
    %v1018 = vshrl.u32 2102212464, %v1009
    %v1019 = vor.u32 %v1017, %v1018
    %v1020 = vshll.u32 2102212464, %v1008
    %v1021 = vshrl.u32 920167782, %v1009
    %v1022 = vor.u32 %v1020, %v1021
    %v1023 = vshll.u32 920167782, %v1008
    %v1024 = vshrl.u32 1326507024, %v1009
    %v1025 = vor.u32 %v1023, %v1024
    %vm1026 = vcmp.lt.s32.totalorder %v1007, 1
    %vm1027 = vcmp.lt.s32.totalorder %v1007, 2
    %vm1028 = vcmp.lt.s32.totalorder %v1007, 3
    %vm1029 = vcmp.lt.s32.totalorder %v1007, 4
    %v1030 = vsel %vm1026, %v1010, %v1013
    %v1031 = vsel %vm1029, %v1019, 2102212464
    %v1032 = vsel %vm1028, %v1016, %v1031
    %v1033 = vsel %vm1027, %v1030, %v1032
    %v1034 = vsel %vm1026, %v1013, %v1016
    %v1035 = vsel %vm1029, %v1022, 920167782
    %v1036 = vsel %vm1028, %v1019, %v1035
    %v1037 = vsel %vm1027, %v1034, %v1036
    %v1038 = vsel %vm1026, %v1016, %v1019
    %v1039 = vsel %vm1029, %v1025, 1326507024
    %v1040 = vsel %vm1028, %v1022, %v1039
    %v1041 = vsel %vm1027, %v1038, %v1040
    %v1042 = vshll.u32 %v1002, 8
    %v1043 = vmul.u32.u64.compose %v1042, %v1041
    %v1044 = vextract.low.u32 %v1043
    %v1045 = vextract.high.u32 %v1043
    %v1046 = vmul.u32.u64.compose %v1042, %v1037
    %v1047 = vextract.low.u32 %v1046
    %v1048 = vextract.high.u32 %v1046
    %v1049 = vmul.u32 %v1042, %v1033
    %v1050 = vadd.s32 %v1045, %v1047
    %vm1051 = vc.u32 %v1045, %v1047
    %v1052 = vadd.s32 %v1048, 1
    %v1053 = vsel %vm1051, %v1052, %v1048
    %v1054 = vadd.s32 %v1049, %v1053
    %v1055 = vadd.s32 %v1054, 536870912
    %v1056 = vshrl.u32 %v1055, 30
    %v1057 = vshll.u32 %v1056, 30
    %v1058 = vsub.s32 %v1054, %v1057
    %vm1059 = vcmp.lt.s32.totalorder %v1058, 0
    %v1060 = vsub.s32 0, %v1058
    %v1061 = vsel %vm1059, %v1060, %v1058
    %v1062 = vclz %v1061
    %v1063 = vsub.s32 %v1062, 2
    %vm1064 = vcmp.gt.s32.totalorder 0, %v1063
    %v1065 = vsel %vm1064, 0, %v1063
    %v1066 = vsub.s32 32, %v1065
    %v1067 = vshll.u32 %v1058, %v1065
    %v1068 = vshrl.u32 %v1050, %v1066
    %v1069 = vor.u32 %v1067, %v1068
    %v1070 = vsub.s32 4294967266, %v1065
    %v1071 = vadd.s32 %v1070, 127
    %v1072 = vshll.u32 %v1071, 23
    %v1073 = vor.u32 4788187, %v1072
    %v1074 = vand.u32 2147483647, %v1073
    %v1076 = vcvt.s32.f32 %v1069
    %v1077 = vmul.f32 %v1076, %v1074
    %v1078 = vxor.u32 %v1077, 2147483648
    %v1079 = vsel %vm996, %v1078, %v1077
    %v1080 = vsub.s32 4, %v1056
    %v1081 = vsel %vm996, %v1080, %v1056
    %v1082 = vsel %vm995, %v261, %v1079
    %v1083 = vsel %vm995, 0, %v1081
    %v1084 = vcosq.f32.pop %v1082
    %v1085 = vsinq.f32.pop %v1082
    %vm1086 = vweird.f32 %v261
    %v1087 = vadd.s32 %v1083, 3
    %v1088 = vand.u32 %v1087, 3
    %vm1089 = vcmp.lt.s32.totalorder %v1088, 2
    %vm1090 = vcmp.eq.s32.totalorder %v1088, 0
    %v1091 = vxor.u32 %v1085, 2147483648
    %v1092 = vsel %vm1090, %v1084, %v1091
    %vm1093 = vcmp.eq.s32.totalorder %v1088, 2
    %v1094 = vxor.u32 %v1084, 2147483648
    %v1095 = vsel %vm1093, %v1094, %v1085
    %v1096 = vsel %vm1089, %v1092, %v1095
    %v1097 = vsel %vm1086, nan, %v1096
    %v1098 = vand.u32 2147483647, %v262
    %vm1099 = vcmp.le.f32.partialorder %v1098, 0.7853982
    %vm1100 = vcmp.lt.s32.totalorder %v262, 0
    %v1101 = vand.u32 %v262, 2139095040
    %v1102 = vshrl.u32 %v1101, 23
    %v1103 = vsub.s32 %v1102, 127
    %v1104 = vand.u32 2147483647, %v262
    %v1105 = vand.u32 %v1104, 8388607
    %v1106 = vor.u32 %v1105, 8388608
    %v1107 = vsub.s32 0, %v1106
    %v1108 = vadd.s32 %v1103, 1
    %vm1109 = vcmp.gt.s32.totalorder %v1108, 0
    %v1110 = vsel %vm1109, %v1108, 0
    %v1111 = vshrl.u32 %v1110, 5
    %v1112 = vand.u32 %v1110, 31
    %v1113 = vsub.s32 32, %v1112
    %v1114 = vshrl.u32 683565275, %v1113
    %v1115 = vshll.u32 683565275, %v1112
    %v1116 = vshrl.u32 2475754826, %v1113
    %v1117 = vor.u32 %v1115, %v1116
    %v1118 = vshll.u32 2475754826, %v1112
    %v1119 = vshrl.u32 2131351028, %v1113
    %v1120 = vor.u32 %v1118, %v1119
    %v1121 = vshll.u32 2131351028, %v1112
    %v1122 = vshrl.u32 2102212464, %v1113
    %v1123 = vor.u32 %v1121, %v1122
    %v1124 = vshll.u32 2102212464, %v1112
    %v1125 = vshrl.u32 920167782, %v1113
    %v1126 = vor.u32 %v1124, %v1125
    %v1127 = vshll.u32 920167782, %v1112
    %v1128 = vshrl.u32 1326507024, %v1113
    %v1129 = vor.u32 %v1127, %v1128
    %vm1130 = vcmp.lt.s32.totalorder %v1111, 1
    %vm1131 = vcmp.lt.s32.totalorder %v1111, 2
    %vm1132 = vcmp.lt.s32.totalorder %v1111, 3
    %vm1133 = vcmp.lt.s32.totalorder %v1111, 4
    %v1134 = vsel %vm1130, %v1114, %v1117
    %v1135 = vsel %vm1133, %v1123, 2102212464
    %v1136 = vsel %vm1132, %v1120, %v1135
    %v1137 = vsel %vm1131, %v1134, %v1136
    %v1138 = vsel %vm1130, %v1117, %v1120
    %v1139 = vsel %vm1133, %v1126, 920167782
    %v1140 = vsel %vm1132, %v1123, %v1139
    %v1141 = vsel %vm1131, %v1138, %v1140
    %v1142 = vsel %vm1130, %v1120, %v1123
    %v1143 = vsel %vm1133, %v1129, 1326507024
    %v1144 = vsel %vm1132, %v1126, %v1143
    %v1145 = vsel %vm1131, %v1142, %v1144
    %v1146 = vshll.u32 %v1106, 8
    %v1147 = vmul.u32.u64.compose %v1146, %v1145
    %v1148 = vextract.low.u32 %v1147
    %v1149 = vextract.high.u32 %v1147
    %v1150 = vmul.u32.u64.compose %v1146, %v1141
    %v1151 = vextract.low.u32 %v1150
    %v1152 = vextract.high.u32 %v1150
    %v1153 = vmul.u32 %v1146, %v1137
    %v1154 = vadd.s32 %v1149, %v1151
    %vm1155 = vc.u32 %v1149, %v1151
    %v1156 = vadd.s32 %v1152, 1
    %v1157 = vsel %vm1155, %v1156, %v1152
    %v1158 = vadd.s32 %v1153, %v1157
    %v1159 = vadd.s32 %v1158, 536870912
    %v1160 = vshrl.u32 %v1159, 30
    %v1161 = vshll.u32 %v1160, 30
    %v1162 = vsub.s32 %v1158, %v1161
    %vm1163 = vcmp.lt.s32.totalorder %v1162, 0
    %v1164 = vsub.s32 0, %v1162
    %v1165 = vsel %vm1163, %v1164, %v1162
    %v1166 = vclz %v1165
    %v1167 = vsub.s32 %v1166, 2
    %vm1168 = vcmp.gt.s32.totalorder 0, %v1167
    %v1169 = vsel %vm1168, 0, %v1167
    %v1170 = vsub.s32 32, %v1169
    %v1171 = vshll.u32 %v1162, %v1169
    %v1172 = vshrl.u32 %v1154, %v1170
    %v1173 = vor.u32 %v1171, %v1172
    %v1174 = vsub.s32 4294967266, %v1169
    %v1175 = vadd.s32 %v1174, 127
    %v1176 = vshll.u32 %v1175, 23
    %v1177 = vor.u32 4788187, %v1176
    %v1178 = vand.u32 2147483647, %v1177
    %v1180 = vcvt.s32.f32 %v1173
    %v1181 = vmul.f32 %v1180, %v1178
    %v1182 = vxor.u32 %v1181, 2147483648
    %v1183 = vsel %vm1100, %v1182, %v1181
    %v1184 = vsub.s32 4, %v1160
    %v1185 = vsel %vm1100, %v1184, %v1160
    %v1186 = vsel %vm1099, %v262, %v1183
    %v1187 = vsel %vm1099, 0, %v1185
    %v1188 = vcosq.f32.pop %v1186
    %v1189 = vsinq.f32.pop %v1186
    %vm1190 = vweird.f32 %v262
    %v1191 = vadd.s32 %v1187, 3
    %v1192 = vand.u32 %v1191, 3
    %vm1193 = vcmp.lt.s32.totalorder %v1192, 2
    %vm1194 = vcmp.eq.s32.totalorder %v1192, 0
    %v1195 = vxor.u32 %v1189, 2147483648
    %v1196 = vsel %vm1194, %v1188, %v1195
    %vm1197 = vcmp.eq.s32.totalorder %v1192, 2
    %v1198 = vxor.u32 %v1188, 2147483648
    %v1199 = vsel %vm1197, %v1198, %v1189
    %v1200 = vsel %vm1193, %v1196, %v1199
    %v1201 = vsel %vm1190, nan, %v1200
    %v1202 = vand.u32 2147483647, %v263
    %vm1203 = vcmp.le.f32.partialorder %v1202, 0.7853982
    %vm1204 = vcmp.lt.s32.totalorder %v263, 0
    %v1205 = vand.u32 %v263, 2139095040
    %v1206 = vshrl.u32 %v1205, 23
    %v1207 = vsub.s32 %v1206, 127
    %v1208 = vand.u32 2147483647, %v263
    %v1209 = vand.u32 %v1208, 8388607
    %v1210 = vor.u32 %v1209, 8388608
    %v1211 = vsub.s32 0, %v1210
    %v1212 = vadd.s32 %v1207, 1
    %vm1213 = vcmp.gt.s32.totalorder %v1212, 0
    %v1214 = vsel %vm1213, %v1212, 0
    %v1215 = vshrl.u32 %v1214, 5
    %v1216 = vand.u32 %v1214, 31
    %v1217 = vsub.s32 32, %v1216
    %v1218 = vshrl.u32 683565275, %v1217
    %v1219 = vshll.u32 683565275, %v1216
    %v1220 = vshrl.u32 2475754826, %v1217
    %v1221 = vor.u32 %v1219, %v1220
    %v1222 = vshll.u32 2475754826, %v1216
    %v1223 = vshrl.u32 2131351028, %v1217
    %v1224 = vor.u32 %v1222, %v1223
    %v1225 = vshll.u32 2131351028, %v1216
    %v1226 = vshrl.u32 2102212464, %v1217
    %v1227 = vor.u32 %v1225, %v1226
    %v1228 = vshll.u32 2102212464, %v1216
    %v1229 = vshrl.u32 920167782, %v1217
    %v1230 = vor.u32 %v1228, %v1229
    %v1231 = vshll.u32 920167782, %v1216
    %v1232 = vshrl.u32 1326507024, %v1217
    %v1233 = vor.u32 %v1231, %v1232
    %vm1234 = vcmp.lt.s32.totalorder %v1215, 1
    %vm1235 = vcmp.lt.s32.totalorder %v1215, 2
    %vm1236 = vcmp.lt.s32.totalorder %v1215, 3
    %vm1237 = vcmp.lt.s32.totalorder %v1215, 4
    %v1238 = vsel %vm1234, %v1218, %v1221
    %v1239 = vsel %vm1237, %v1227, 2102212464
    %v1240 = vsel %vm1236, %v1224, %v1239
    %v1241 = vsel %vm1235, %v1238, %v1240
    %v1242 = vsel %vm1234, %v1221, %v1224
    %v1243 = vsel %vm1237, %v1230, 920167782
    %v1244 = vsel %vm1236, %v1227, %v1243
    %v1245 = vsel %vm1235, %v1242, %v1244
    %v1246 = vsel %vm1234, %v1224, %v1227
    %v1247 = vsel %vm1237, %v1233, 1326507024
    %v1248 = vsel %vm1236, %v1230, %v1247
    %v1249 = vsel %vm1235, %v1246, %v1248
    %v1250 = vshll.u32 %v1210, 8
    %v1251 = vmul.u32.u64.compose %v1250, %v1249
    %v1252 = vextract.low.u32 %v1251
    %v1253 = vextract.high.u32 %v1251
    %v1254 = vmul.u32.u64.compose %v1250, %v1245
    %v1255 = vextract.low.u32 %v1254
    %v1256 = vextract.high.u32 %v1254
    %v1257 = vmul.u32 %v1250, %v1241
    %v1258 = vadd.s32 %v1253, %v1255
    %vm1259 = vc.u32 %v1253, %v1255
    %v1260 = vadd.s32 %v1256, 1
    %v1261 = vsel %vm1259, %v1260, %v1256
    %v1262 = vadd.s32 %v1257, %v1261
    %v1263 = vadd.s32 %v1262, 536870912
    %v1264 = vshrl.u32 %v1263, 30
    %v1265 = vshll.u32 %v1264, 30
    %v1266 = vsub.s32 %v1262, %v1265
    %vm1267 = vcmp.lt.s32.totalorder %v1266, 0
    %v1268 = vsub.s32 0, %v1266
    %v1269 = vsel %vm1267, %v1268, %v1266
    %v1270 = vclz %v1269
    %v1271 = vsub.s32 %v1270, 2
    %vm1272 = vcmp.gt.s32.totalorder 0, %v1271
    %v1273 = vsel %vm1272, 0, %v1271
    %v1274 = vsub.s32 32, %v1273
    %v1275 = vshll.u32 %v1266, %v1273
    %v1276 = vshrl.u32 %v1258, %v1274
    %v1277 = vor.u32 %v1275, %v1276
    %v1278 = vsub.s32 4294967266, %v1273
    %v1279 = vadd.s32 %v1278, 127
    %v1280 = vshll.u32 %v1279, 23
    %v1281 = vor.u32 4788187, %v1280
    %v1282 = vand.u32 2147483647, %v1281
    %v1284 = vcvt.s32.f32 %v1277
    %v1285 = vmul.f32 %v1284, %v1282
    %v1286 = vxor.u32 %v1285, 2147483648
    %v1287 = vsel %vm1204, %v1286, %v1285
    %v1288 = vsub.s32 4, %v1264
    %v1289 = vsel %vm1204, %v1288, %v1264
    %v1290 = vsel %vm1203, %v263, %v1287
    %v1291 = vsel %vm1203, 0, %v1289
    %v1292 = vcosq.f32.pop %v1290
    %v1293 = vsinq.f32.pop %v1290
    %vm1294 = vweird.f32 %v263
    %v1295 = vadd.s32 %v1291, 3
    %v1296 = vand.u32 %v1295, 3
    %vm1297 = vcmp.lt.s32.totalorder %v1296, 2
    %vm1298 = vcmp.eq.s32.totalorder %v1296, 0
    %v1299 = vxor.u32 %v1293, 2147483648
    %v1300 = vsel %vm1298, %v1292, %v1299
    %vm1301 = vcmp.eq.s32.totalorder %v1296, 2
    %v1302 = vxor.u32 %v1292, 2147483648
    %v1303 = vsel %vm1301, %v1302, %v1293
    %v1304 = vsel %vm1297, %v1300, %v1303
    %v1305 = vsel %vm1294, nan, %v1304
    %v1306 = vand.u32 2147483647, %v264
    %vm1307 = vcmp.le.f32.partialorder %v1306, 0.7853982
    %vm1308 = vcmp.lt.s32.totalorder %v264, 0
    %v1309 = vand.u32 %v264, 2139095040
    %v1310 = vshrl.u32 %v1309, 23
    %v1311 = vsub.s32 %v1310, 127
    %v1312 = vand.u32 2147483647, %v264
    %v1313 = vand.u32 %v1312, 8388607
    %v1314 = vor.u32 %v1313, 8388608
    %v1315 = vsub.s32 0, %v1314
    %v1316 = vadd.s32 %v1311, 1
    %vm1317 = vcmp.gt.s32.totalorder %v1316, 0
    %v1318 = vsel %vm1317, %v1316, 0
    %v1319 = vshrl.u32 %v1318, 5
    %v1320 = vand.u32 %v1318, 31
    %v1321 = vsub.s32 32, %v1320
    %v1322 = vshrl.u32 683565275, %v1321
    %v1323 = vshll.u32 683565275, %v1320
    %v1324 = vshrl.u32 2475754826, %v1321
    %v1325 = vor.u32 %v1323, %v1324
    %v1326 = vshll.u32 2475754826, %v1320
    %v1327 = vshrl.u32 2131351028, %v1321
    %v1328 = vor.u32 %v1326, %v1327
    %v1329 = vshll.u32 2131351028, %v1320
    %v1330 = vshrl.u32 2102212464, %v1321
    %v1331 = vor.u32 %v1329, %v1330
    %v1332 = vshll.u32 2102212464, %v1320
    %v1333 = vshrl.u32 920167782, %v1321
    %v1334 = vor.u32 %v1332, %v1333
    %v1335 = vshll.u32 920167782, %v1320
    %v1336 = vshrl.u32 1326507024, %v1321
    %v1337 = vor.u32 %v1335, %v1336
    %vm1338 = vcmp.lt.s32.totalorder %v1319, 1
    %vm1339 = vcmp.lt.s32.totalorder %v1319, 2
    %vm1340 = vcmp.lt.s32.totalorder %v1319, 3
    %vm1341 = vcmp.lt.s32.totalorder %v1319, 4
    %v1342 = vsel %vm1338, %v1322, %v1325
    %v1343 = vsel %vm1341, %v1331, 2102212464
    %v1344 = vsel %vm1340, %v1328, %v1343
    %v1345 = vsel %vm1339, %v1342, %v1344
    %v1346 = vsel %vm1338, %v1325, %v1328
    %v1347 = vsel %vm1341, %v1334, 920167782
    %v1348 = vsel %vm1340, %v1331, %v1347
    %v1349 = vsel %vm1339, %v1346, %v1348
    %v1350 = vsel %vm1338, %v1328, %v1331
    %v1351 = vsel %vm1341, %v1337, 1326507024
    %v1352 = vsel %vm1340, %v1334, %v1351
    %v1353 = vsel %vm1339, %v1350, %v1352
    %v1354 = vshll.u32 %v1314, 8
    %v1355 = vmul.u32.u64.compose %v1354, %v1353
    %v1356 = vextract.low.u32 %v1355
    %v1357 = vextract.high.u32 %v1355
    %v1358 = vmul.u32.u64.compose %v1354, %v1349
    %v1359 = vextract.low.u32 %v1358
    %v1360 = vextract.high.u32 %v1358
    %v1361 = vmul.u32 %v1354, %v1345
    %v1362 = vadd.s32 %v1357, %v1359
    %vm1363 = vc.u32 %v1357, %v1359
    %v1364 = vadd.s32 %v1360, 1
    %v1365 = vsel %vm1363, %v1364, %v1360
    %v1366 = vadd.s32 %v1361, %v1365
    %v1367 = vadd.s32 %v1366, 536870912
    %v1368 = vshrl.u32 %v1367, 30
    %v1369 = vshll.u32 %v1368, 30
    %v1370 = vsub.s32 %v1366, %v1369
    %vm1371 = vcmp.lt.s32.totalorder %v1370, 0
    %v1372 = vsub.s32 0, %v1370
    %v1373 = vsel %vm1371, %v1372, %v1370
    %v1374 = vclz %v1373
    %v1375 = vsub.s32 %v1374, 2
    %vm1376 = vcmp.gt.s32.totalorder 0, %v1375
    %v1377 = vsel %vm1376, 0, %v1375
    %v1378 = vsub.s32 32, %v1377
    %v1379 = vshll.u32 %v1370, %v1377
    %v1380 = vshrl.u32 %v1362, %v1378
    %v1381 = vor.u32 %v1379, %v1380
    %v1382 = vsub.s32 4294967266, %v1377
    %v1383 = vadd.s32 %v1382, 127
    %v1384 = vshll.u32 %v1383, 23
    %v1385 = vor.u32 4788187, %v1384
    %v1386 = vand.u32 2147483647, %v1385
    %v1388 = vcvt.s32.f32 %v1381
    %v1389 = vmul.f32 %v1388, %v1386
    %v1390 = vxor.u32 %v1389, 2147483648
    %v1391 = vsel %vm1308, %v1390, %v1389
    %v1392 = vsub.s32 4, %v1368
    %v1393 = vsel %vm1308, %v1392, %v1368
    %v1394 = vsel %vm1307, %v264, %v1391
    %v1395 = vsel %vm1307, 0, %v1393
    %v1396 = vcosq.f32.pop %v1394
    %v1397 = vsinq.f32.pop %v1394
    %vm1398 = vweird.f32 %v264
    %v1399 = vadd.s32 %v1395, 3
    %v1400 = vand.u32 %v1399, 3
    %vm1401 = vcmp.lt.s32.totalorder %v1400, 2
    %vm1402 = vcmp.eq.s32.totalorder %v1400, 0
    %v1403 = vxor.u32 %v1397, 2147483648
    %v1404 = vsel %vm1402, %v1396, %v1403
    %vm1405 = vcmp.eq.s32.totalorder %v1400, 2
    %v1406 = vxor.u32 %v1396, 2147483648
    %v1407 = vsel %vm1405, %v1406, %v1397
    %v1408 = vsel %vm1401, %v1404, %v1407
    %v1409 = vsel %vm1398, nan, %v1408
    %v1410 = vand.u32 2147483647, %v265
    %vm1411 = vcmp.le.f32.partialorder %v1410, 0.7853982
    %vm1412 = vcmp.lt.s32.totalorder %v265, 0
    %v1413 = vand.u32 %v265, 2139095040
    %v1414 = vshrl.u32 %v1413, 23
    %v1415 = vsub.s32 %v1414, 127
    %v1416 = vand.u32 2147483647, %v265
    %v1417 = vand.u32 %v1416, 8388607
    %v1418 = vor.u32 %v1417, 8388608
    %v1419 = vsub.s32 0, %v1418
    %v1420 = vadd.s32 %v1415, 1
    %vm1421 = vcmp.gt.s32.totalorder %v1420, 0
    %v1422 = vsel %vm1421, %v1420, 0
    %v1423 = vshrl.u32 %v1422, 5
    %v1424 = vand.u32 %v1422, 31
    %v1425 = vsub.s32 32, %v1424
    %v1426 = vshrl.u32 683565275, %v1425
    %v1427 = vshll.u32 683565275, %v1424
    %v1428 = vshrl.u32 2475754826, %v1425
    %v1429 = vor.u32 %v1427, %v1428
    %v1430 = vshll.u32 2475754826, %v1424
    %v1431 = vshrl.u32 2131351028, %v1425
    %v1432 = vor.u32 %v1430, %v1431
    %v1433 = vshll.u32 2131351028, %v1424
    %v1434 = vshrl.u32 2102212464, %v1425
    %v1435 = vor.u32 %v1433, %v1434
    %v1436 = vshll.u32 2102212464, %v1424
    %v1437 = vshrl.u32 920167782, %v1425
    %v1438 = vor.u32 %v1436, %v1437
    %v1439 = vshll.u32 920167782, %v1424
    %v1440 = vshrl.u32 1326507024, %v1425
    %v1441 = vor.u32 %v1439, %v1440
    %vm1442 = vcmp.lt.s32.totalorder %v1423, 1
    %vm1443 = vcmp.lt.s32.totalorder %v1423, 2
    %vm1444 = vcmp.lt.s32.totalorder %v1423, 3
    %vm1445 = vcmp.lt.s32.totalorder %v1423, 4
    %v1446 = vsel %vm1442, %v1426, %v1429
    %v1447 = vsel %vm1445, %v1435, 2102212464
    %v1448 = vsel %vm1444, %v1432, %v1447
    %v1449 = vsel %vm1443, %v1446, %v1448
    %v1450 = vsel %vm1442, %v1429, %v1432
    %v1451 = vsel %vm1445, %v1438, 920167782
    %v1452 = vsel %vm1444, %v1435, %v1451
    %v1453 = vsel %vm1443, %v1450, %v1452
    %v1454 = vsel %vm1442, %v1432, %v1435
    %v1455 = vsel %vm1445, %v1441, 1326507024
    %v1456 = vsel %vm1444, %v1438, %v1455
    %v1457 = vsel %vm1443, %v1454, %v1456
    %v1458 = vshll.u32 %v1418, 8
    %v1459 = vmul.u32.u64.compose %v1458, %v1457
    %v1460 = vextract.low.u32 %v1459
    %v1461 = vextract.high.u32 %v1459
    %v1462 = vmul.u32.u64.compose %v1458, %v1453
    %v1463 = vextract.low.u32 %v1462
    %v1464 = vextract.high.u32 %v1462
    %v1465 = vmul.u32 %v1458, %v1449
    %v1466 = vadd.s32 %v1461, %v1463
    %vm1467 = vc.u32 %v1461, %v1463
    %v1468 = vadd.s32 %v1464, 1
    %v1469 = vsel %vm1467, %v1468, %v1464
    %v1470 = vadd.s32 %v1465, %v1469
    %v1471 = vadd.s32 %v1470, 536870912
    %v1472 = vshrl.u32 %v1471, 30
    %v1473 = vshll.u32 %v1472, 30
    %v1474 = vsub.s32 %v1470, %v1473
    %vm1475 = vcmp.lt.s32.totalorder %v1474, 0
    %v1476 = vsub.s32 0, %v1474
    %v1477 = vsel %vm1475, %v1476, %v1474
    %v1478 = vclz %v1477
    %v1479 = vsub.s32 %v1478, 2
    %vm1480 = vcmp.gt.s32.totalorder 0, %v1479
    %v1481 = vsel %vm1480, 0, %v1479
    %v1482 = vsub.s32 32, %v1481
    %v1483 = vshll.u32 %v1474, %v1481
    %v1484 = vshrl.u32 %v1466, %v1482
    %v1485 = vor.u32 %v1483, %v1484
    %v1486 = vsub.s32 4294967266, %v1481
    %v1487 = vadd.s32 %v1486, 127
    %v1488 = vshll.u32 %v1487, 23
    %v1489 = vor.u32 4788187, %v1488
    %v1490 = vand.u32 2147483647, %v1489
    %v1492 = vcvt.s32.f32 %v1485
    %v1493 = vmul.f32 %v1492, %v1490
    %v1494 = vxor.u32 %v1493, 2147483648
    %v1495 = vsel %vm1412, %v1494, %v1493
    %v1496 = vsub.s32 4, %v1472
    %v1497 = vsel %vm1412, %v1496, %v1472
    %v1498 = vsel %vm1411, %v265, %v1495
    %v1499 = vsel %vm1411, 0, %v1497
    %v1500 = vcosq.f32.pop %v1498
    %v1501 = vsinq.f32.pop %v1498
    %vm1502 = vweird.f32 %v265
    %v1503 = vadd.s32 %v1499, 3
    %v1504 = vand.u32 %v1503, 3
    %vm1505 = vcmp.lt.s32.totalorder %v1504, 2
    %vm1506 = vcmp.eq.s32.totalorder %v1504, 0
    %v1507 = vxor.u32 %v1501, 2147483648
    %v1508 = vsel %vm1506, %v1500, %v1507
    %vm1509 = vcmp.eq.s32.totalorder %v1504, 2
    %v1510 = vxor.u32 %v1500, 2147483648
    %v1511 = vsel %vm1509, %v1510, %v1501
    %v1512 = vsel %vm1505, %v1508, %v1511
    %v1513 = vsel %vm1502, nan, %v1512
    %v1514 = vsub.f32 %v237, %v123
    %v1515 = vsub.f32 %v237, %v125
    %v1516 = vsub.f32 %v237, %v212
    %v1517 = vsub.f32 %v242, %v129
    %v1518 = vsub.f32 %v242, %v131
    %v1519 = vsub.f32 %v242, %v217
    %v1520 = vsub.f32 %v247, %v135
    %v1521 = vsub.f32 %v247, %v137
    %v1522 = vsub.f32 %v247, %v222
    %v1523 = vsub.f32 %v252, %v141
    %v1524 = vsub.f32 %v252, %v143
    %v1525 = vsub.f32 %v252, %v227
    %v1526 = vand.u32 2147483647, %v1514
    %vm1527 = vcmp.le.f32.partialorder %v1526, 0.7853982
    %vm1528 = vcmp.lt.s32.totalorder %v1514, 0
    %v1529 = vand.u32 %v1514, 2139095040
    %v1530 = vshrl.u32 %v1529, 23
    %v1531 = vsub.s32 %v1530, 127
    %v1532 = vand.u32 2147483647, %v1514
    %v1533 = vand.u32 %v1532, 8388607
    %v1534 = vor.u32 %v1533, 8388608
    %v1535 = vsub.s32 0, %v1534
    %v1536 = vadd.s32 %v1531, 1
    %vm1537 = vcmp.gt.s32.totalorder %v1536, 0
    %v1538 = vsel %vm1537, %v1536, 0
    %v1539 = vshrl.u32 %v1538, 5
    %v1540 = vand.u32 %v1538, 31
    %v1541 = vsub.s32 32, %v1540
    %v1542 = vshrl.u32 683565275, %v1541
    %v1543 = vshll.u32 683565275, %v1540
    %v1544 = vshrl.u32 2475754826, %v1541
    %v1545 = vor.u32 %v1543, %v1544
    %v1546 = vshll.u32 2475754826, %v1540
    %v1547 = vshrl.u32 2131351028, %v1541
    %v1548 = vor.u32 %v1546, %v1547
    %v1549 = vshll.u32 2131351028, %v1540
    %v1550 = vshrl.u32 2102212464, %v1541
    %v1551 = vor.u32 %v1549, %v1550
    %v1552 = vshll.u32 2102212464, %v1540
    %v1553 = vshrl.u32 920167782, %v1541
    %v1554 = vor.u32 %v1552, %v1553
    %v1555 = vshll.u32 920167782, %v1540
    %v1556 = vshrl.u32 1326507024, %v1541
    %v1557 = vor.u32 %v1555, %v1556
    %vm1558 = vcmp.lt.s32.totalorder %v1539, 1
    %vm1559 = vcmp.lt.s32.totalorder %v1539, 2
    %vm1560 = vcmp.lt.s32.totalorder %v1539, 3
    %vm1561 = vcmp.lt.s32.totalorder %v1539, 4
    %v1562 = vsel %vm1558, %v1542, %v1545
    %v1563 = vsel %vm1561, %v1551, 2102212464
    %v1564 = vsel %vm1560, %v1548, %v1563
    %v1565 = vsel %vm1559, %v1562, %v1564
    %v1566 = vsel %vm1558, %v1545, %v1548
    %v1567 = vsel %vm1561, %v1554, 920167782
    %v1568 = vsel %vm1560, %v1551, %v1567
    %v1569 = vsel %vm1559, %v1566, %v1568
    %v1570 = vsel %vm1558, %v1548, %v1551
    %v1571 = vsel %vm1561, %v1557, 1326507024
    %v1572 = vsel %vm1560, %v1554, %v1571
    %v1573 = vsel %vm1559, %v1570, %v1572
    %v1574 = vshll.u32 %v1534, 8
    %v1575 = vmul.u32.u64.compose %v1574, %v1573
    %v1576 = vextract.low.u32 %v1575
    %v1577 = vextract.high.u32 %v1575
    %v1578 = vmul.u32.u64.compose %v1574, %v1569
    %v1579 = vextract.low.u32 %v1578
    %v1580 = vextract.high.u32 %v1578
    %v1581 = vmul.u32 %v1574, %v1565
    %v1582 = vadd.s32 %v1577, %v1579
    %vm1583 = vc.u32 %v1577, %v1579
    %v1584 = vadd.s32 %v1580, 1
    %v1585 = vsel %vm1583, %v1584, %v1580
    %v1586 = vadd.s32 %v1581, %v1585
    %v1587 = vadd.s32 %v1586, 536870912
    %v1588 = vshrl.u32 %v1587, 30
    %v1589 = vshll.u32 %v1588, 30
    %v1590 = vsub.s32 %v1586, %v1589
    %vm1591 = vcmp.lt.s32.totalorder %v1590, 0
    %v1592 = vsub.s32 0, %v1590
    %v1593 = vsel %vm1591, %v1592, %v1590
    %v1594 = vclz %v1593
    %v1595 = vsub.s32 %v1594, 2
    %vm1596 = vcmp.gt.s32.totalorder 0, %v1595
    %v1597 = vsel %vm1596, 0, %v1595
    %v1598 = vsub.s32 32, %v1597
    %v1599 = vshll.u32 %v1590, %v1597
    %v1600 = vshrl.u32 %v1582, %v1598
    %v1601 = vor.u32 %v1599, %v1600
    %v1602 = vsub.s32 4294967266, %v1597
    %v1603 = vadd.s32 %v1602, 127
    %v1604 = vshll.u32 %v1603, 23
    %v1605 = vor.u32 4788187, %v1604
    %v1606 = vand.u32 2147483647, %v1605
    %v1608 = vcvt.s32.f32 %v1601
    %v1609 = vmul.f32 %v1608, %v1606
    %v1610 = vxor.u32 %v1609, 2147483648
    %v1611 = vsel %vm1528, %v1610, %v1609
    %v1612 = vsub.s32 4, %v1588
    %v1613 = vsel %vm1528, %v1612, %v1588
    %v1614 = vsel %vm1527, %v1514, %v1611
    %v1615 = vsel %vm1527, 0, %v1613
    %v1616 = vcosq.f32.pop %v1614
    %v1617 = vsinq.f32.pop %v1614
    %vm1618 = vweird.f32 %v1514
    %v1619 = vadd.s32 %v1615, 3
    %v1620 = vand.u32 %v1619, 3
    %vm1621 = vcmp.lt.s32.totalorder %v1620, 2
    %vm1622 = vcmp.eq.s32.totalorder %v1620, 0
    %v1623 = vxor.u32 %v1617, 2147483648
    %v1624 = vsel %vm1622, %v1616, %v1623
    %vm1625 = vcmp.eq.s32.totalorder %v1620, 2
    %v1626 = vxor.u32 %v1616, 2147483648
    %v1627 = vsel %vm1625, %v1626, %v1617
    %v1628 = vsel %vm1621, %v1624, %v1627
    %v1629 = vsel %vm1618, nan, %v1628
    %v1630 = vand.u32 2147483647, %v1515
    %vm1631 = vcmp.le.f32.partialorder %v1630, 0.7853982
    %vm1632 = vcmp.lt.s32.totalorder %v1515, 0
    %v1633 = vand.u32 %v1515, 2139095040
    %v1634 = vshrl.u32 %v1633, 23
    %v1635 = vsub.s32 %v1634, 127
    %v1636 = vand.u32 2147483647, %v1515
    %v1637 = vand.u32 %v1636, 8388607
    %v1638 = vor.u32 %v1637, 8388608
    %v1639 = vsub.s32 0, %v1638
    %v1640 = vadd.s32 %v1635, 1
    %vm1641 = vcmp.gt.s32.totalorder %v1640, 0
    %v1642 = vsel %vm1641, %v1640, 0
    %v1643 = vshrl.u32 %v1642, 5
    %v1644 = vand.u32 %v1642, 31
    %v1645 = vsub.s32 32, %v1644
    %v1646 = vshrl.u32 683565275, %v1645
    %v1647 = vshll.u32 683565275, %v1644
    %v1648 = vshrl.u32 2475754826, %v1645
    %v1649 = vor.u32 %v1647, %v1648
    %v1650 = vshll.u32 2475754826, %v1644
    %v1651 = vshrl.u32 2131351028, %v1645
    %v1652 = vor.u32 %v1650, %v1651
    %v1653 = vshll.u32 2131351028, %v1644
    %v1654 = vshrl.u32 2102212464, %v1645
    %v1655 = vor.u32 %v1653, %v1654
    %v1656 = vshll.u32 2102212464, %v1644
    %v1657 = vshrl.u32 920167782, %v1645
    %v1658 = vor.u32 %v1656, %v1657
    %v1659 = vshll.u32 920167782, %v1644
    %v1660 = vshrl.u32 1326507024, %v1645
    %v1661 = vor.u32 %v1659, %v1660
    %vm1662 = vcmp.lt.s32.totalorder %v1643, 1
    %vm1663 = vcmp.lt.s32.totalorder %v1643, 2
    %vm1664 = vcmp.lt.s32.totalorder %v1643, 3
    %vm1665 = vcmp.lt.s32.totalorder %v1643, 4
    %v1666 = vsel %vm1662, %v1646, %v1649
    %v1667 = vsel %vm1665, %v1655, 2102212464
    %v1668 = vsel %vm1664, %v1652, %v1667
    %v1669 = vsel %vm1663, %v1666, %v1668
    %v1670 = vsel %vm1662, %v1649, %v1652
    %v1671 = vsel %vm1665, %v1658, 920167782
    %v1672 = vsel %vm1664, %v1655, %v1671
    %v1673 = vsel %vm1663, %v1670, %v1672
    %v1674 = vsel %vm1662, %v1652, %v1655
    %v1675 = vsel %vm1665, %v1661, 1326507024
    %v1676 = vsel %vm1664, %v1658, %v1675
    %v1677 = vsel %vm1663, %v1674, %v1676
    %v1678 = vshll.u32 %v1638, 8
    %v1679 = vmul.u32.u64.compose %v1678, %v1677
    %v1680 = vextract.low.u32 %v1679
    %v1681 = vextract.high.u32 %v1679
    %v1682 = vmul.u32.u64.compose %v1678, %v1673
    %v1683 = vextract.low.u32 %v1682
    %v1684 = vextract.high.u32 %v1682
    %v1685 = vmul.u32 %v1678, %v1669
    %v1686 = vadd.s32 %v1681, %v1683
    %vm1687 = vc.u32 %v1681, %v1683
    %v1688 = vadd.s32 %v1684, 1
    %v1689 = vsel %vm1687, %v1688, %v1684
    %v1690 = vadd.s32 %v1685, %v1689
    %v1691 = vadd.s32 %v1690, 536870912
    %v1692 = vshrl.u32 %v1691, 30
    %v1693 = vshll.u32 %v1692, 30
    %v1694 = vsub.s32 %v1690, %v1693
    %vm1695 = vcmp.lt.s32.totalorder %v1694, 0
    %v1696 = vsub.s32 0, %v1694
    %v1697 = vsel %vm1695, %v1696, %v1694
    %v1698 = vclz %v1697
    %v1699 = vsub.s32 %v1698, 2
    %vm1700 = vcmp.gt.s32.totalorder 0, %v1699
    %v1701 = vsel %vm1700, 0, %v1699
    %v1702 = vsub.s32 32, %v1701
    %v1703 = vshll.u32 %v1694, %v1701
    %v1704 = vshrl.u32 %v1686, %v1702
    %v1705 = vor.u32 %v1703, %v1704
    %v1706 = vsub.s32 4294967266, %v1701
    %v1707 = vadd.s32 %v1706, 127
    %v1708 = vshll.u32 %v1707, 23
    %v1709 = vor.u32 4788187, %v1708
    %v1710 = vand.u32 2147483647, %v1709
    %v1712 = vcvt.s32.f32 %v1705
    %v1713 = vmul.f32 %v1712, %v1710
    %v1714 = vxor.u32 %v1713, 2147483648
    %v1715 = vsel %vm1632, %v1714, %v1713
    %v1716 = vsub.s32 4, %v1692
    %v1717 = vsel %vm1632, %v1716, %v1692
    %v1718 = vsel %vm1631, %v1515, %v1715
    %v1719 = vsel %vm1631, 0, %v1717
    %v1720 = vcosq.f32.pop %v1718
    %v1721 = vsinq.f32.pop %v1718
    %vm1722 = vweird.f32 %v1515
    %v1723 = vadd.s32 %v1719, 3
    %v1724 = vand.u32 %v1723, 3
    %vm1725 = vcmp.lt.s32.totalorder %v1724, 2
    %vm1726 = vcmp.eq.s32.totalorder %v1724, 0
    %v1727 = vxor.u32 %v1721, 2147483648
    %v1728 = vsel %vm1726, %v1720, %v1727
    %vm1729 = vcmp.eq.s32.totalorder %v1724, 2
    %v1730 = vxor.u32 %v1720, 2147483648
    %v1731 = vsel %vm1729, %v1730, %v1721
    %v1732 = vsel %vm1725, %v1728, %v1731
    %v1733 = vsel %vm1722, nan, %v1732
    %v1734 = vand.u32 2147483647, %v1516
    %vm1735 = vcmp.le.f32.partialorder %v1734, 0.7853982
    %vm1736 = vcmp.lt.s32.totalorder %v1516, 0
    %v1737 = vand.u32 %v1516, 2139095040
    %v1738 = vshrl.u32 %v1737, 23
    %v1739 = vsub.s32 %v1738, 127
    %v1740 = vand.u32 2147483647, %v1516
    %v1741 = vand.u32 %v1740, 8388607
    %v1742 = vor.u32 %v1741, 8388608
    %v1743 = vsub.s32 0, %v1742
    %v1744 = vadd.s32 %v1739, 1
    %vm1745 = vcmp.gt.s32.totalorder %v1744, 0
    %v1746 = vsel %vm1745, %v1744, 0
    %v1747 = vshrl.u32 %v1746, 5
    %v1748 = vand.u32 %v1746, 31
    %v1749 = vsub.s32 32, %v1748
    %v1750 = vshrl.u32 683565275, %v1749
    %v1751 = vshll.u32 683565275, %v1748
    %v1752 = vshrl.u32 2475754826, %v1749
    %v1753 = vor.u32 %v1751, %v1752
    %v1754 = vshll.u32 2475754826, %v1748
    %v1755 = vshrl.u32 2131351028, %v1749
    %v1756 = vor.u32 %v1754, %v1755
    %v1757 = vshll.u32 2131351028, %v1748
    %v1758 = vshrl.u32 2102212464, %v1749
    %v1759 = vor.u32 %v1757, %v1758
    %v1760 = vshll.u32 2102212464, %v1748
    %v1761 = vshrl.u32 920167782, %v1749
    %v1762 = vor.u32 %v1760, %v1761
    %v1763 = vshll.u32 920167782, %v1748
    %v1764 = vshrl.u32 1326507024, %v1749
    %v1765 = vor.u32 %v1763, %v1764
    %vm1766 = vcmp.lt.s32.totalorder %v1747, 1
    %vm1767 = vcmp.lt.s32.totalorder %v1747, 2
    %vm1768 = vcmp.lt.s32.totalorder %v1747, 3
    %vm1769 = vcmp.lt.s32.totalorder %v1747, 4
    %v1770 = vsel %vm1766, %v1750, %v1753
    %v1771 = vsel %vm1769, %v1759, 2102212464
    %v1772 = vsel %vm1768, %v1756, %v1771
    %v1773 = vsel %vm1767, %v1770, %v1772
    %v1774 = vsel %vm1766, %v1753, %v1756
    %v1775 = vsel %vm1769, %v1762, 920167782
    %v1776 = vsel %vm1768, %v1759, %v1775
    %v1777 = vsel %vm1767, %v1774, %v1776
    %v1778 = vsel %vm1766, %v1756, %v1759
    %v1779 = vsel %vm1769, %v1765, 1326507024
    %v1780 = vsel %vm1768, %v1762, %v1779
    %v1781 = vsel %vm1767, %v1778, %v1780
    %v1782 = vshll.u32 %v1742, 8
    %v1783 = vmul.u32.u64.compose %v1782, %v1781
    %v1784 = vextract.low.u32 %v1783
    %v1785 = vextract.high.u32 %v1783
    %v1786 = vmul.u32.u64.compose %v1782, %v1777
    %v1787 = vextract.low.u32 %v1786
    %v1788 = vextract.high.u32 %v1786
    %v1789 = vmul.u32 %v1782, %v1773
    %v1790 = vadd.s32 %v1785, %v1787
    %vm1791 = vc.u32 %v1785, %v1787
    %v1792 = vadd.s32 %v1788, 1
    %v1793 = vsel %vm1791, %v1792, %v1788
    %v1794 = vadd.s32 %v1789, %v1793
    %v1795 = vadd.s32 %v1794, 536870912
    %v1796 = vshrl.u32 %v1795, 30
    %v1797 = vshll.u32 %v1796, 30
    %v1798 = vsub.s32 %v1794, %v1797
    %vm1799 = vcmp.lt.s32.totalorder %v1798, 0
    %v1800 = vsub.s32 0, %v1798
    %v1801 = vsel %vm1799, %v1800, %v1798
    %v1802 = vclz %v1801
    %v1803 = vsub.s32 %v1802, 2
    %vm1804 = vcmp.gt.s32.totalorder 0, %v1803
    %v1805 = vsel %vm1804, 0, %v1803
    %v1806 = vsub.s32 32, %v1805
    %v1807 = vshll.u32 %v1798, %v1805
    %v1808 = vshrl.u32 %v1790, %v1806
    %v1809 = vor.u32 %v1807, %v1808
    %v1810 = vsub.s32 4294967266, %v1805
    %v1811 = vadd.s32 %v1810, 127
    %v1812 = vshll.u32 %v1811, 23
    %v1813 = vor.u32 4788187, %v1812
    %v1814 = vand.u32 2147483647, %v1813
    %v1816 = vcvt.s32.f32 %v1809
    %v1817 = vmul.f32 %v1816, %v1814
    %v1818 = vxor.u32 %v1817, 2147483648
    %v1819 = vsel %vm1736, %v1818, %v1817
    %v1820 = vsub.s32 4, %v1796
    %v1821 = vsel %vm1736, %v1820, %v1796
    %v1822 = vsel %vm1735, %v1516, %v1819
    %v1823 = vsel %vm1735, 0, %v1821
    %v1824 = vcosq.f32.pop %v1822
    %v1825 = vsinq.f32.pop %v1822
    %vm1826 = vweird.f32 %v1516
    %v1827 = vadd.s32 %v1823, 3
    %v1828 = vand.u32 %v1827, 3
    %vm1829 = vcmp.lt.s32.totalorder %v1828, 2
    %vm1830 = vcmp.eq.s32.totalorder %v1828, 0
    %v1831 = vxor.u32 %v1825, 2147483648
    %v1832 = vsel %vm1830, %v1824, %v1831
    %vm1833 = vcmp.eq.s32.totalorder %v1828, 2
    %v1834 = vxor.u32 %v1824, 2147483648
    %v1835 = vsel %vm1833, %v1834, %v1825
    %v1836 = vsel %vm1829, %v1832, %v1835
    %v1837 = vsel %vm1826, nan, %v1836
    %v1838 = vand.u32 2147483647, %v1517
    %vm1839 = vcmp.le.f32.partialorder %v1838, 0.7853982
    %vm1840 = vcmp.lt.s32.totalorder %v1517, 0
    %v1841 = vand.u32 %v1517, 2139095040
    %v1842 = vshrl.u32 %v1841, 23
    %v1843 = vsub.s32 %v1842, 127
    %v1844 = vand.u32 2147483647, %v1517
    %v1845 = vand.u32 %v1844, 8388607
    %v1846 = vor.u32 %v1845, 8388608
    %v1847 = vsub.s32 0, %v1846
    %v1848 = vadd.s32 %v1843, 1
    %vm1849 = vcmp.gt.s32.totalorder %v1848, 0
    %v1850 = vsel %vm1849, %v1848, 0
    %v1851 = vshrl.u32 %v1850, 5
    %v1852 = vand.u32 %v1850, 31
    %v1853 = vsub.s32 32, %v1852
    %v1854 = vshrl.u32 683565275, %v1853
    %v1855 = vshll.u32 683565275, %v1852
    %v1856 = vshrl.u32 2475754826, %v1853
    %v1857 = vor.u32 %v1855, %v1856
    %v1858 = vshll.u32 2475754826, %v1852
    %v1859 = vshrl.u32 2131351028, %v1853
    %v1860 = vor.u32 %v1858, %v1859
    %v1861 = vshll.u32 2131351028, %v1852
    %v1862 = vshrl.u32 2102212464, %v1853
    %v1863 = vor.u32 %v1861, %v1862
    %v1864 = vshll.u32 2102212464, %v1852
    %v1865 = vshrl.u32 920167782, %v1853
    %v1866 = vor.u32 %v1864, %v1865
    %v1867 = vshll.u32 920167782, %v1852
    %v1868 = vshrl.u32 1326507024, %v1853
    %v1869 = vor.u32 %v1867, %v1868
    %vm1870 = vcmp.lt.s32.totalorder %v1851, 1
    %vm1871 = vcmp.lt.s32.totalorder %v1851, 2
    %vm1872 = vcmp.lt.s32.totalorder %v1851, 3
    %vm1873 = vcmp.lt.s32.totalorder %v1851, 4
    %v1874 = vsel %vm1870, %v1854, %v1857
    %v1875 = vsel %vm1873, %v1863, 2102212464
    %v1876 = vsel %vm1872, %v1860, %v1875
    %v1877 = vsel %vm1871, %v1874, %v1876
    %v1878 = vsel %vm1870, %v1857, %v1860
    %v1879 = vsel %vm1873, %v1866, 920167782
    %v1880 = vsel %vm1872, %v1863, %v1879
    %v1881 = vsel %vm1871, %v1878, %v1880
    %v1882 = vsel %vm1870, %v1860, %v1863
    %v1883 = vsel %vm1873, %v1869, 1326507024
    %v1884 = vsel %vm1872, %v1866, %v1883
    %v1885 = vsel %vm1871, %v1882, %v1884
    %v1886 = vshll.u32 %v1846, 8
    %v1887 = vmul.u32.u64.compose %v1886, %v1885
    %v1888 = vextract.low.u32 %v1887
    %v1889 = vextract.high.u32 %v1887
    %v1890 = vmul.u32.u64.compose %v1886, %v1881
    %v1891 = vextract.low.u32 %v1890
    %v1892 = vextract.high.u32 %v1890
    %v1893 = vmul.u32 %v1886, %v1877
    %v1894 = vadd.s32 %v1889, %v1891
    %vm1895 = vc.u32 %v1889, %v1891
    %v1896 = vadd.s32 %v1892, 1
    %v1897 = vsel %vm1895, %v1896, %v1892
    %v1898 = vadd.s32 %v1893, %v1897
    %v1899 = vadd.s32 %v1898, 536870912
    %v1900 = vshrl.u32 %v1899, 30
    %v1901 = vshll.u32 %v1900, 30
    %v1902 = vsub.s32 %v1898, %v1901
    %vm1903 = vcmp.lt.s32.totalorder %v1902, 0
    %v1904 = vsub.s32 0, %v1902
    %v1905 = vsel %vm1903, %v1904, %v1902
    %v1906 = vclz %v1905
    %v1907 = vsub.s32 %v1906, 2
    %vm1908 = vcmp.gt.s32.totalorder 0, %v1907
    %v1909 = vsel %vm1908, 0, %v1907
    %v1910 = vsub.s32 32, %v1909
    %v1911 = vshll.u32 %v1902, %v1909
    %v1912 = vshrl.u32 %v1894, %v1910
    %v1913 = vor.u32 %v1911, %v1912
    %v1914 = vsub.s32 4294967266, %v1909
    %v1915 = vadd.s32 %v1914, 127
    %v1916 = vshll.u32 %v1915, 23
    %v1917 = vor.u32 4788187, %v1916
    %v1918 = vand.u32 2147483647, %v1917
    %v1920 = vcvt.s32.f32 %v1913
    %v1921 = vmul.f32 %v1920, %v1918
    %v1922 = vxor.u32 %v1921, 2147483648
    %v1923 = vsel %vm1840, %v1922, %v1921
    %v1924 = vsub.s32 4, %v1900
    %v1925 = vsel %vm1840, %v1924, %v1900
    %v1926 = vsel %vm1839, %v1517, %v1923
    %v1927 = vsel %vm1839, 0, %v1925
    %v1928 = vcosq.f32.pop %v1926
    %v1929 = vsinq.f32.pop %v1926
    %vm1930 = vweird.f32 %v1517
    %v1931 = vadd.s32 %v1927, 3
    %v1932 = vand.u32 %v1931, 3
    %vm1933 = vcmp.lt.s32.totalorder %v1932, 2
    %vm1934 = vcmp.eq.s32.totalorder %v1932, 0
    %v1935 = vxor.u32 %v1929, 2147483648
    %v1936 = vsel %vm1934, %v1928, %v1935
    %vm1937 = vcmp.eq.s32.totalorder %v1932, 2
    %v1938 = vxor.u32 %v1928, 2147483648
    %v1939 = vsel %vm1937, %v1938, %v1929
    %v1940 = vsel %vm1933, %v1936, %v1939
    %v1941 = vsel %vm1930, nan, %v1940
    %v1942 = vand.u32 2147483647, %v1518
    %vm1943 = vcmp.le.f32.partialorder %v1942, 0.7853982
    %vm1944 = vcmp.lt.s32.totalorder %v1518, 0
    %v1945 = vand.u32 %v1518, 2139095040
    %v1946 = vshrl.u32 %v1945, 23
    %v1947 = vsub.s32 %v1946, 127
    %v1948 = vand.u32 2147483647, %v1518
    %v1949 = vand.u32 %v1948, 8388607
    %v1950 = vor.u32 %v1949, 8388608
    %v1951 = vsub.s32 0, %v1950
    %v1952 = vadd.s32 %v1947, 1
    %vm1953 = vcmp.gt.s32.totalorder %v1952, 0
    %v1954 = vsel %vm1953, %v1952, 0
    %v1955 = vshrl.u32 %v1954, 5
    %v1956 = vand.u32 %v1954, 31
    %v1957 = vsub.s32 32, %v1956
    %v1958 = vshrl.u32 683565275, %v1957
    %v1959 = vshll.u32 683565275, %v1956
    %v1960 = vshrl.u32 2475754826, %v1957
    %v1961 = vor.u32 %v1959, %v1960
    %v1962 = vshll.u32 2475754826, %v1956
    %v1963 = vshrl.u32 2131351028, %v1957
    %v1964 = vor.u32 %v1962, %v1963
    %v1965 = vshll.u32 2131351028, %v1956
    %v1966 = vshrl.u32 2102212464, %v1957
    %v1967 = vor.u32 %v1965, %v1966
    %v1968 = vshll.u32 2102212464, %v1956
    %v1969 = vshrl.u32 920167782, %v1957
    %v1970 = vor.u32 %v1968, %v1969
    %v1971 = vshll.u32 920167782, %v1956
    %v1972 = vshrl.u32 1326507024, %v1957
    %v1973 = vor.u32 %v1971, %v1972
    %vm1974 = vcmp.lt.s32.totalorder %v1955, 1
    %vm1975 = vcmp.lt.s32.totalorder %v1955, 2
    %vm1976 = vcmp.lt.s32.totalorder %v1955, 3
    %vm1977 = vcmp.lt.s32.totalorder %v1955, 4
    %v1978 = vsel %vm1974, %v1958, %v1961
    %v1979 = vsel %vm1977, %v1967, 2102212464
    %v1980 = vsel %vm1976, %v1964, %v1979
    %v1981 = vsel %vm1975, %v1978, %v1980
    %v1982 = vsel %vm1974, %v1961, %v1964
    %v1983 = vsel %vm1977, %v1970, 920167782
    %v1984 = vsel %vm1976, %v1967, %v1983
    %v1985 = vsel %vm1975, %v1982, %v1984
    %v1986 = vsel %vm1974, %v1964, %v1967
    %v1987 = vsel %vm1977, %v1973, 1326507024
    %v1988 = vsel %vm1976, %v1970, %v1987
    %v1989 = vsel %vm1975, %v1986, %v1988
    %v1990 = vshll.u32 %v1950, 8
    %v1991 = vmul.u32.u64.compose %v1990, %v1989
    %v1992 = vextract.low.u32 %v1991
    %v1993 = vextract.high.u32 %v1991
    %v1994 = vmul.u32.u64.compose %v1990, %v1985
    %v1995 = vextract.low.u32 %v1994
    %v1996 = vextract.high.u32 %v1994
    %v1997 = vmul.u32 %v1990, %v1981
    %v1998 = vadd.s32 %v1993, %v1995
    %vm1999 = vc.u32 %v1993, %v1995
    %v2000 = vadd.s32 %v1996, 1
    %v2001 = vsel %vm1999, %v2000, %v1996
    %v2002 = vadd.s32 %v1997, %v2001
    %v2003 = vadd.s32 %v2002, 536870912
    %v2004 = vshrl.u32 %v2003, 30
    %v2005 = vshll.u32 %v2004, 30
    %v2006 = vsub.s32 %v2002, %v2005
    %vm2007 = vcmp.lt.s32.totalorder %v2006, 0
    %v2008 = vsub.s32 0, %v2006
    %v2009 = vsel %vm2007, %v2008, %v2006
    %v2010 = vclz %v2009
    %v2011 = vsub.s32 %v2010, 2
    %vm2012 = vcmp.gt.s32.totalorder 0, %v2011
    %v2013 = vsel %vm2012, 0, %v2011
    %v2014 = vsub.s32 32, %v2013
    %v2015 = vshll.u32 %v2006, %v2013
    %v2016 = vshrl.u32 %v1998, %v2014
    %v2017 = vor.u32 %v2015, %v2016
    %v2018 = vsub.s32 4294967266, %v2013
    %v2019 = vadd.s32 %v2018, 127
    %v2020 = vshll.u32 %v2019, 23
    %v2021 = vor.u32 4788187, %v2020
    %v2022 = vand.u32 2147483647, %v2021
    %v2024 = vcvt.s32.f32 %v2017
    %v2025 = vmul.f32 %v2024, %v2022
    %v2026 = vxor.u32 %v2025, 2147483648
    %v2027 = vsel %vm1944, %v2026, %v2025
    %v2028 = vsub.s32 4, %v2004
    %v2029 = vsel %vm1944, %v2028, %v2004
    %v2030 = vsel %vm1943, %v1518, %v2027
    %v2031 = vsel %vm1943, 0, %v2029
    %v2032 = vcosq.f32.pop %v2030
    %v2033 = vsinq.f32.pop %v2030
    %vm2034 = vweird.f32 %v1518
    %v2035 = vadd.s32 %v2031, 3
    %v2036 = vand.u32 %v2035, 3
    %vm2037 = vcmp.lt.s32.totalorder %v2036, 2
    %vm2038 = vcmp.eq.s32.totalorder %v2036, 0
    %v2039 = vxor.u32 %v2033, 2147483648
    %v2040 = vsel %vm2038, %v2032, %v2039
    %vm2041 = vcmp.eq.s32.totalorder %v2036, 2
    %v2042 = vxor.u32 %v2032, 2147483648
    %v2043 = vsel %vm2041, %v2042, %v2033
    %v2044 = vsel %vm2037, %v2040, %v2043
    %v2045 = vsel %vm2034, nan, %v2044
    %v2046 = vand.u32 2147483647, %v1519
    %vm2047 = vcmp.le.f32.partialorder %v2046, 0.7853982
    %vm2048 = vcmp.lt.s32.totalorder %v1519, 0
    %v2049 = vand.u32 %v1519, 2139095040
    %v2050 = vshrl.u32 %v2049, 23
    %v2051 = vsub.s32 %v2050, 127
    %v2052 = vand.u32 2147483647, %v1519
    %v2053 = vand.u32 %v2052, 8388607
    %v2054 = vor.u32 %v2053, 8388608
    %v2055 = vsub.s32 0, %v2054
    %v2056 = vadd.s32 %v2051, 1
    %vm2057 = vcmp.gt.s32.totalorder %v2056, 0
    %v2058 = vsel %vm2057, %v2056, 0
    %v2059 = vshrl.u32 %v2058, 5
    %v2060 = vand.u32 %v2058, 31
    %v2061 = vsub.s32 32, %v2060
    %v2062 = vshrl.u32 683565275, %v2061
    %v2063 = vshll.u32 683565275, %v2060
    %v2064 = vshrl.u32 2475754826, %v2061
    %v2065 = vor.u32 %v2063, %v2064
    %v2066 = vshll.u32 2475754826, %v2060
    %v2067 = vshrl.u32 2131351028, %v2061
    %v2068 = vor.u32 %v2066, %v2067
    %v2069 = vshll.u32 2131351028, %v2060
    %v2070 = vshrl.u32 2102212464, %v2061
    %v2071 = vor.u32 %v2069, %v2070
    %v2072 = vshll.u32 2102212464, %v2060
    %v2073 = vshrl.u32 920167782, %v2061
    %v2074 = vor.u32 %v2072, %v2073
    %v2075 = vshll.u32 920167782, %v2060
    %v2076 = vshrl.u32 1326507024, %v2061
    %v2077 = vor.u32 %v2075, %v2076
    %vm2078 = vcmp.lt.s32.totalorder %v2059, 1
    %vm2079 = vcmp.lt.s32.totalorder %v2059, 2
    %vm2080 = vcmp.lt.s32.totalorder %v2059, 3
    %vm2081 = vcmp.lt.s32.totalorder %v2059, 4
    %v2082 = vsel %vm2078, %v2062, %v2065
    %v2083 = vsel %vm2081, %v2071, 2102212464
    %v2084 = vsel %vm2080, %v2068, %v2083
    %v2085 = vsel %vm2079, %v2082, %v2084
    %v2086 = vsel %vm2078, %v2065, %v2068
    %v2087 = vsel %vm2081, %v2074, 920167782
    %v2088 = vsel %vm2080, %v2071, %v2087
    %v2089 = vsel %vm2079, %v2086, %v2088
    %v2090 = vsel %vm2078, %v2068, %v2071
    %v2091 = vsel %vm2081, %v2077, 1326507024
    %v2092 = vsel %vm2080, %v2074, %v2091
    %v2093 = vsel %vm2079, %v2090, %v2092
    %v2094 = vshll.u32 %v2054, 8
    %v2095 = vmul.u32.u64.compose %v2094, %v2093
    %v2096 = vextract.low.u32 %v2095
    %v2097 = vextract.high.u32 %v2095
    %v2098 = vmul.u32.u64.compose %v2094, %v2089
    %v2099 = vextract.low.u32 %v2098
    %v2100 = vextract.high.u32 %v2098
    %v2101 = vmul.u32 %v2094, %v2085
    %v2102 = vadd.s32 %v2097, %v2099
    %vm2103 = vc.u32 %v2097, %v2099
    %v2104 = vadd.s32 %v2100, 1
    %v2105 = vsel %vm2103, %v2104, %v2100
    %v2106 = vadd.s32 %v2101, %v2105
    %v2107 = vadd.s32 %v2106, 536870912
    %v2108 = vshrl.u32 %v2107, 30
    %v2109 = vshll.u32 %v2108, 30
    %v2110 = vsub.s32 %v2106, %v2109
    %vm2111 = vcmp.lt.s32.totalorder %v2110, 0
    %v2112 = vsub.s32 0, %v2110
    %v2113 = vsel %vm2111, %v2112, %v2110
    %v2114 = vclz %v2113
    %v2115 = vsub.s32 %v2114, 2
    %vm2116 = vcmp.gt.s32.totalorder 0, %v2115
    %v2117 = vsel %vm2116, 0, %v2115
    %v2118 = vsub.s32 32, %v2117
    %v2119 = vshll.u32 %v2110, %v2117
    %v2120 = vshrl.u32 %v2102, %v2118
    %v2121 = vor.u32 %v2119, %v2120
    %v2122 = vsub.s32 4294967266, %v2117
    %v2123 = vadd.s32 %v2122, 127
    %v2124 = vshll.u32 %v2123, 23
    %v2125 = vor.u32 4788187, %v2124
    %v2126 = vand.u32 2147483647, %v2125
    %v2128 = vcvt.s32.f32 %v2121
    %v2129 = vmul.f32 %v2128, %v2126
    %v2130 = vxor.u32 %v2129, 2147483648
    %v2131 = vsel %vm2048, %v2130, %v2129
    %v2132 = vsub.s32 4, %v2108
    %v2133 = vsel %vm2048, %v2132, %v2108
    %v2134 = vsel %vm2047, %v1519, %v2131
    %v2135 = vsel %vm2047, 0, %v2133
    %v2136 = vcosq.f32.pop %v2134
    %v2137 = vsinq.f32.pop %v2134
    %vm2138 = vweird.f32 %v1519
    %v2139 = vadd.s32 %v2135, 3
    %v2140 = vand.u32 %v2139, 3
    %vm2141 = vcmp.lt.s32.totalorder %v2140, 2
    %vm2142 = vcmp.eq.s32.totalorder %v2140, 0
    %v2143 = vxor.u32 %v2137, 2147483648
    %v2144 = vsel %vm2142, %v2136, %v2143
    %vm2145 = vcmp.eq.s32.totalorder %v2140, 2
    %v2146 = vxor.u32 %v2136, 2147483648
    %v2147 = vsel %vm2145, %v2146, %v2137
    %v2148 = vsel %vm2141, %v2144, %v2147
    %v2149 = vsel %vm2138, nan, %v2148
    %v2150 = vand.u32 2147483647, %v1520
    %vm2151 = vcmp.le.f32.partialorder %v2150, 0.7853982
    %vm2152 = vcmp.lt.s32.totalorder %v1520, 0
    %v2153 = vand.u32 %v1520, 2139095040
    %v2154 = vshrl.u32 %v2153, 23
    %v2155 = vsub.s32 %v2154, 127
    %v2156 = vand.u32 2147483647, %v1520
    %v2157 = vand.u32 %v2156, 8388607
    %v2158 = vor.u32 %v2157, 8388608
    %v2159 = vsub.s32 0, %v2158
    %v2160 = vadd.s32 %v2155, 1
    %vm2161 = vcmp.gt.s32.totalorder %v2160, 0
    %v2162 = vsel %vm2161, %v2160, 0
    %v2163 = vshrl.u32 %v2162, 5
    %v2164 = vand.u32 %v2162, 31
    %v2165 = vsub.s32 32, %v2164
    %v2166 = vshrl.u32 683565275, %v2165
    %v2167 = vshll.u32 683565275, %v2164
    %v2168 = vshrl.u32 2475754826, %v2165
    %v2169 = vor.u32 %v2167, %v2168
    %v2170 = vshll.u32 2475754826, %v2164
    %v2171 = vshrl.u32 2131351028, %v2165
    %v2172 = vor.u32 %v2170, %v2171
    %v2173 = vshll.u32 2131351028, %v2164
    %v2174 = vshrl.u32 2102212464, %v2165
    %v2175 = vor.u32 %v2173, %v2174
    %v2176 = vshll.u32 2102212464, %v2164
    %v2177 = vshrl.u32 920167782, %v2165
    %v2178 = vor.u32 %v2176, %v2177
    %v2179 = vshll.u32 920167782, %v2164
    %v2180 = vshrl.u32 1326507024, %v2165
    %v2181 = vor.u32 %v2179, %v2180
    %vm2182 = vcmp.lt.s32.totalorder %v2163, 1
    %vm2183 = vcmp.lt.s32.totalorder %v2163, 2
    %vm2184 = vcmp.lt.s32.totalorder %v2163, 3
    %vm2185 = vcmp.lt.s32.totalorder %v2163, 4
    %v2186 = vsel %vm2182, %v2166, %v2169
    %v2187 = vsel %vm2185, %v2175, 2102212464
    %v2188 = vsel %vm2184, %v2172, %v2187
    %v2189 = vsel %vm2183, %v2186, %v2188
    %v2190 = vsel %vm2182, %v2169, %v2172
    %v2191 = vsel %vm2185, %v2178, 920167782
    %v2192 = vsel %vm2184, %v2175, %v2191
    %v2193 = vsel %vm2183, %v2190, %v2192
    %v2194 = vsel %vm2182, %v2172, %v2175
    %v2195 = vsel %vm2185, %v2181, 1326507024
    %v2196 = vsel %vm2184, %v2178, %v2195
    %v2197 = vsel %vm2183, %v2194, %v2196
    %v2198 = vshll.u32 %v2158, 8
    %v2199 = vmul.u32.u64.compose %v2198, %v2197
    %v2200 = vextract.low.u32 %v2199
    %v2201 = vextract.high.u32 %v2199
    %v2202 = vmul.u32.u64.compose %v2198, %v2193
    %v2203 = vextract.low.u32 %v2202
    %v2204 = vextract.high.u32 %v2202
    %v2205 = vmul.u32 %v2198, %v2189
    %v2206 = vadd.s32 %v2201, %v2203
    %vm2207 = vc.u32 %v2201, %v2203
    %v2208 = vadd.s32 %v2204, 1
    %v2209 = vsel %vm2207, %v2208, %v2204
    %v2210 = vadd.s32 %v2205, %v2209
    %v2211 = vadd.s32 %v2210, 536870912
    %v2212 = vshrl.u32 %v2211, 30
    %v2213 = vshll.u32 %v2212, 30
    %v2214 = vsub.s32 %v2210, %v2213
    %vm2215 = vcmp.lt.s32.totalorder %v2214, 0
    %v2216 = vsub.s32 0, %v2214
    %v2217 = vsel %vm2215, %v2216, %v2214
    %v2218 = vclz %v2217
    %v2219 = vsub.s32 %v2218, 2
    %vm2220 = vcmp.gt.s32.totalorder 0, %v2219
    %v2221 = vsel %vm2220, 0, %v2219
    %v2222 = vsub.s32 32, %v2221
    %v2223 = vshll.u32 %v2214, %v2221
    %v2224 = vshrl.u32 %v2206, %v2222
    %v2225 = vor.u32 %v2223, %v2224
    %v2226 = vsub.s32 4294967266, %v2221
    %v2227 = vadd.s32 %v2226, 127
    %v2228 = vshll.u32 %v2227, 23
    %v2229 = vor.u32 4788187, %v2228
    %v2230 = vand.u32 2147483647, %v2229
    %v2232 = vcvt.s32.f32 %v2225
    %v2233 = vmul.f32 %v2232, %v2230
    %v2234 = vxor.u32 %v2233, 2147483648
    %v2235 = vsel %vm2152, %v2234, %v2233
    %v2236 = vsub.s32 4, %v2212
    %v2237 = vsel %vm2152, %v2236, %v2212
    %v2238 = vsel %vm2151, %v1520, %v2235
    %v2239 = vsel %vm2151, 0, %v2237
    %v2240 = vcosq.f32.pop %v2238
    %v2241 = vsinq.f32.pop %v2238
    %vm2242 = vweird.f32 %v1520
    %v2243 = vadd.s32 %v2239, 3
    %v2244 = vand.u32 %v2243, 3
    %vm2245 = vcmp.lt.s32.totalorder %v2244, 2
    %vm2246 = vcmp.eq.s32.totalorder %v2244, 0
    %v2247 = vxor.u32 %v2241, 2147483648
    %v2248 = vsel %vm2246, %v2240, %v2247
    %vm2249 = vcmp.eq.s32.totalorder %v2244, 2
    %v2250 = vxor.u32 %v2240, 2147483648
    %v2251 = vsel %vm2249, %v2250, %v2241
    %v2252 = vsel %vm2245, %v2248, %v2251
    %v2253 = vsel %vm2242, nan, %v2252
    %v2254 = vand.u32 2147483647, %v1521
    %vm2255 = vcmp.le.f32.partialorder %v2254, 0.7853982
    %vm2256 = vcmp.lt.s32.totalorder %v1521, 0
    %v2257 = vand.u32 %v1521, 2139095040
    %v2258 = vshrl.u32 %v2257, 23
    %v2259 = vsub.s32 %v2258, 127
    %v2260 = vand.u32 2147483647, %v1521
    %v2261 = vand.u32 %v2260, 8388607
    %v2262 = vor.u32 %v2261, 8388608
    %v2263 = vsub.s32 0, %v2262
    %v2264 = vadd.s32 %v2259, 1
    %vm2265 = vcmp.gt.s32.totalorder %v2264, 0
    %v2266 = vsel %vm2265, %v2264, 0
    %v2267 = vshrl.u32 %v2266, 5
    %v2268 = vand.u32 %v2266, 31
    %v2269 = vsub.s32 32, %v2268
    %v2270 = vshrl.u32 683565275, %v2269
    %v2271 = vshll.u32 683565275, %v2268
    %v2272 = vshrl.u32 2475754826, %v2269
    %v2273 = vor.u32 %v2271, %v2272
    %v2274 = vshll.u32 2475754826, %v2268
    %v2275 = vshrl.u32 2131351028, %v2269
    %v2276 = vor.u32 %v2274, %v2275
    %v2277 = vshll.u32 2131351028, %v2268
    %v2278 = vshrl.u32 2102212464, %v2269
    %v2279 = vor.u32 %v2277, %v2278
    %v2280 = vshll.u32 2102212464, %v2268
    %v2281 = vshrl.u32 920167782, %v2269
    %v2282 = vor.u32 %v2280, %v2281
    %v2283 = vshll.u32 920167782, %v2268
    %v2284 = vshrl.u32 1326507024, %v2269
    %v2285 = vor.u32 %v2283, %v2284
    %vm2286 = vcmp.lt.s32.totalorder %v2267, 1
    %vm2287 = vcmp.lt.s32.totalorder %v2267, 2
    %vm2288 = vcmp.lt.s32.totalorder %v2267, 3
    %vm2289 = vcmp.lt.s32.totalorder %v2267, 4
    %v2290 = vsel %vm2286, %v2270, %v2273
    %v2291 = vsel %vm2289, %v2279, 2102212464
    %v2292 = vsel %vm2288, %v2276, %v2291
    %v2293 = vsel %vm2287, %v2290, %v2292
    %v2294 = vsel %vm2286, %v2273, %v2276
    %v2295 = vsel %vm2289, %v2282, 920167782
    %v2296 = vsel %vm2288, %v2279, %v2295
    %v2297 = vsel %vm2287, %v2294, %v2296
    %v2298 = vsel %vm2286, %v2276, %v2279
    %v2299 = vsel %vm2289, %v2285, 1326507024
    %v2300 = vsel %vm2288, %v2282, %v2299
    %v2301 = vsel %vm2287, %v2298, %v2300
    %v2302 = vshll.u32 %v2262, 8
    %v2303 = vmul.u32.u64.compose %v2302, %v2301
    %v2304 = vextract.low.u32 %v2303
    %v2305 = vextract.high.u32 %v2303
    %v2306 = vmul.u32.u64.compose %v2302, %v2297
    %v2307 = vextract.low.u32 %v2306
    %v2308 = vextract.high.u32 %v2306
    %v2309 = vmul.u32 %v2302, %v2293
    %v2310 = vadd.s32 %v2305, %v2307
    %vm2311 = vc.u32 %v2305, %v2307
    %v2312 = vadd.s32 %v2308, 1
    %v2313 = vsel %vm2311, %v2312, %v2308
    %v2314 = vadd.s32 %v2309, %v2313
    %v2315 = vadd.s32 %v2314, 536870912
    %v2316 = vshrl.u32 %v2315, 30
    %v2317 = vshll.u32 %v2316, 30
    %v2318 = vsub.s32 %v2314, %v2317
    %vm2319 = vcmp.lt.s32.totalorder %v2318, 0
    %v2320 = vsub.s32 0, %v2318
    %v2321 = vsel %vm2319, %v2320, %v2318
    %v2322 = vclz %v2321
    %v2323 = vsub.s32 %v2322, 2
    %vm2324 = vcmp.gt.s32.totalorder 0, %v2323
    %v2325 = vsel %vm2324, 0, %v2323
    %v2326 = vsub.s32 32, %v2325
    %v2327 = vshll.u32 %v2318, %v2325
    %v2328 = vshrl.u32 %v2310, %v2326
    %v2329 = vor.u32 %v2327, %v2328
    %v2330 = vsub.s32 4294967266, %v2325
    %v2331 = vadd.s32 %v2330, 127
    %v2332 = vshll.u32 %v2331, 23
    %v2333 = vor.u32 4788187, %v2332
    %v2334 = vand.u32 2147483647, %v2333
    %v2336 = vcvt.s32.f32 %v2329
    %v2337 = vmul.f32 %v2336, %v2334
    %v2338 = vxor.u32 %v2337, 2147483648
    %v2339 = vsel %vm2256, %v2338, %v2337
    %v2340 = vsub.s32 4, %v2316
    %v2341 = vsel %vm2256, %v2340, %v2316
    %v2342 = vsel %vm2255, %v1521, %v2339
    %v2343 = vsel %vm2255, 0, %v2341
    %v2344 = vcosq.f32.pop %v2342
    %v2345 = vsinq.f32.pop %v2342
    %vm2346 = vweird.f32 %v1521
    %v2347 = vadd.s32 %v2343, 3
    %v2348 = vand.u32 %v2347, 3
    %vm2349 = vcmp.lt.s32.totalorder %v2348, 2
    %vm2350 = vcmp.eq.s32.totalorder %v2348, 0
    %v2351 = vxor.u32 %v2345, 2147483648
    %v2352 = vsel %vm2350, %v2344, %v2351
    %vm2353 = vcmp.eq.s32.totalorder %v2348, 2
    %v2354 = vxor.u32 %v2344, 2147483648
    %v2355 = vsel %vm2353, %v2354, %v2345
    %v2356 = vsel %vm2349, %v2352, %v2355
    %v2357 = vsel %vm2346, nan, %v2356
    %v2358 = vand.u32 2147483647, %v1522
    %vm2359 = vcmp.le.f32.partialorder %v2358, 0.7853982
    %vm2360 = vcmp.lt.s32.totalorder %v1522, 0
    %v2361 = vand.u32 %v1522, 2139095040
    %v2362 = vshrl.u32 %v2361, 23
    %v2363 = vsub.s32 %v2362, 127
    %v2364 = vand.u32 2147483647, %v1522
    %v2365 = vand.u32 %v2364, 8388607
    %v2366 = vor.u32 %v2365, 8388608
    %v2367 = vsub.s32 0, %v2366
    %v2368 = vadd.s32 %v2363, 1
    %vm2369 = vcmp.gt.s32.totalorder %v2368, 0
    %v2370 = vsel %vm2369, %v2368, 0
    %v2371 = vshrl.u32 %v2370, 5
    %v2372 = vand.u32 %v2370, 31
    %v2373 = vsub.s32 32, %v2372
    %v2374 = vshrl.u32 683565275, %v2373
    %v2375 = vshll.u32 683565275, %v2372
    %v2376 = vshrl.u32 2475754826, %v2373
    %v2377 = vor.u32 %v2375, %v2376
    %v2378 = vshll.u32 2475754826, %v2372
    %v2379 = vshrl.u32 2131351028, %v2373
    %v2380 = vor.u32 %v2378, %v2379
    %v2381 = vshll.u32 2131351028, %v2372
    %v2382 = vshrl.u32 2102212464, %v2373
    %v2383 = vor.u32 %v2381, %v2382
    %v2384 = vshll.u32 2102212464, %v2372
    %v2385 = vshrl.u32 920167782, %v2373
    %v2386 = vor.u32 %v2384, %v2385
    %v2387 = vshll.u32 920167782, %v2372
    %v2388 = vshrl.u32 1326507024, %v2373
    %v2389 = vor.u32 %v2387, %v2388
    %vm2390 = vcmp.lt.s32.totalorder %v2371, 1
    %vm2391 = vcmp.lt.s32.totalorder %v2371, 2
    %vm2392 = vcmp.lt.s32.totalorder %v2371, 3
    %vm2393 = vcmp.lt.s32.totalorder %v2371, 4
    %v2394 = vsel %vm2390, %v2374, %v2377
    %v2395 = vsel %vm2393, %v2383, 2102212464
    %v2396 = vsel %vm2392, %v2380, %v2395
    %v2397 = vsel %vm2391, %v2394, %v2396
    %v2398 = vsel %vm2390, %v2377, %v2380
    %v2399 = vsel %vm2393, %v2386, 920167782
    %v2400 = vsel %vm2392, %v2383, %v2399
    %v2401 = vsel %vm2391, %v2398, %v2400
    %v2402 = vsel %vm2390, %v2380, %v2383
    %v2403 = vsel %vm2393, %v2389, 1326507024
    %v2404 = vsel %vm2392, %v2386, %v2403
    %v2405 = vsel %vm2391, %v2402, %v2404
    %v2406 = vshll.u32 %v2366, 8
    %v2407 = vmul.u32.u64.compose %v2406, %v2405
    %v2408 = vextract.low.u32 %v2407
    %v2409 = vextract.high.u32 %v2407
    %v2410 = vmul.u32.u64.compose %v2406, %v2401
    %v2411 = vextract.low.u32 %v2410
    %v2412 = vextract.high.u32 %v2410
    %v2413 = vmul.u32 %v2406, %v2397
    %v2414 = vadd.s32 %v2409, %v2411
    %vm2415 = vc.u32 %v2409, %v2411
    %v2416 = vadd.s32 %v2412, 1
    %v2417 = vsel %vm2415, %v2416, %v2412
    %v2418 = vadd.s32 %v2413, %v2417
    %v2419 = vadd.s32 %v2418, 536870912
    %v2420 = vshrl.u32 %v2419, 30
    %v2421 = vshll.u32 %v2420, 30
    %v2422 = vsub.s32 %v2418, %v2421
    %vm2423 = vcmp.lt.s32.totalorder %v2422, 0
    %v2424 = vsub.s32 0, %v2422
    %v2425 = vsel %vm2423, %v2424, %v2422
    %v2426 = vclz %v2425
    %v2427 = vsub.s32 %v2426, 2
    %vm2428 = vcmp.gt.s32.totalorder 0, %v2427
    %v2429 = vsel %vm2428, 0, %v2427
    %v2430 = vsub.s32 32, %v2429
    %v2431 = vshll.u32 %v2422, %v2429
    %v2432 = vshrl.u32 %v2414, %v2430
    %v2433 = vor.u32 %v2431, %v2432
    %v2434 = vsub.s32 4294967266, %v2429
    %v2435 = vadd.s32 %v2434, 127
    %v2436 = vshll.u32 %v2435, 23
    %v2437 = vor.u32 4788187, %v2436
    %v2438 = vand.u32 2147483647, %v2437
    %v2440 = vcvt.s32.f32 %v2433
    %v2441 = vmul.f32 %v2440, %v2438
    %v2442 = vxor.u32 %v2441, 2147483648
    %v2443 = vsel %vm2360, %v2442, %v2441
    %v2444 = vsub.s32 4, %v2420
    %v2445 = vsel %vm2360, %v2444, %v2420
    %v2446 = vsel %vm2359, %v1522, %v2443
    %v2447 = vsel %vm2359, 0, %v2445
    %v2448 = vcosq.f32.pop %v2446
    %v2449 = vsinq.f32.pop %v2446
    %vm2450 = vweird.f32 %v1522
    %v2451 = vadd.s32 %v2447, 3
    %v2452 = vand.u32 %v2451, 3
    %vm2453 = vcmp.lt.s32.totalorder %v2452, 2
    %vm2454 = vcmp.eq.s32.totalorder %v2452, 0
    %v2455 = vxor.u32 %v2449, 2147483648
    %v2456 = vsel %vm2454, %v2448, %v2455
    %vm2457 = vcmp.eq.s32.totalorder %v2452, 2
    %v2458 = vxor.u32 %v2448, 2147483648
    %v2459 = vsel %vm2457, %v2458, %v2449
    %v2460 = vsel %vm2453, %v2456, %v2459
    %v2461 = vsel %vm2450, nan, %v2460
    %v2462 = vand.u32 2147483647, %v1523
    %vm2463 = vcmp.le.f32.partialorder %v2462, 0.7853982
    %vm2464 = vcmp.lt.s32.totalorder %v1523, 0
    %v2465 = vand.u32 %v1523, 2139095040
    %v2466 = vshrl.u32 %v2465, 23
    %v2467 = vsub.s32 %v2466, 127
    %v2468 = vand.u32 2147483647, %v1523
    %v2469 = vand.u32 %v2468, 8388607
    %v2470 = vor.u32 %v2469, 8388608
    %v2471 = vsub.s32 0, %v2470
    %v2472 = vadd.s32 %v2467, 1
    %vm2473 = vcmp.gt.s32.totalorder %v2472, 0
    %v2474 = vsel %vm2473, %v2472, 0
    %v2475 = vshrl.u32 %v2474, 5
    %v2476 = vand.u32 %v2474, 31
    %v2477 = vsub.s32 32, %v2476
    %v2478 = vshrl.u32 683565275, %v2477
    %v2479 = vshll.u32 683565275, %v2476
    %v2480 = vshrl.u32 2475754826, %v2477
    %v2481 = vor.u32 %v2479, %v2480
    %v2482 = vshll.u32 2475754826, %v2476
    %v2483 = vshrl.u32 2131351028, %v2477
    %v2484 = vor.u32 %v2482, %v2483
    %v2485 = vshll.u32 2131351028, %v2476
    %v2486 = vshrl.u32 2102212464, %v2477
    %v2487 = vor.u32 %v2485, %v2486
    %v2488 = vshll.u32 2102212464, %v2476
    %v2489 = vshrl.u32 920167782, %v2477
    %v2490 = vor.u32 %v2488, %v2489
    %v2491 = vshll.u32 920167782, %v2476
    %v2492 = vshrl.u32 1326507024, %v2477
    %v2493 = vor.u32 %v2491, %v2492
    %vm2494 = vcmp.lt.s32.totalorder %v2475, 1
    %vm2495 = vcmp.lt.s32.totalorder %v2475, 2
    %vm2496 = vcmp.lt.s32.totalorder %v2475, 3
    %vm2497 = vcmp.lt.s32.totalorder %v2475, 4
    %v2498 = vsel %vm2494, %v2478, %v2481
    %v2499 = vsel %vm2497, %v2487, 2102212464
    %v2500 = vsel %vm2496, %v2484, %v2499
    %v2501 = vsel %vm2495, %v2498, %v2500
    %v2502 = vsel %vm2494, %v2481, %v2484
    %v2503 = vsel %vm2497, %v2490, 920167782
    %v2504 = vsel %vm2496, %v2487, %v2503
    %v2505 = vsel %vm2495, %v2502, %v2504
    %v2506 = vsel %vm2494, %v2484, %v2487
    %v2507 = vsel %vm2497, %v2493, 1326507024
    %v2508 = vsel %vm2496, %v2490, %v2507
    %v2509 = vsel %vm2495, %v2506, %v2508
    %v2510 = vshll.u32 %v2470, 8
    %v2511 = vmul.u32.u64.compose %v2510, %v2509
    %v2512 = vextract.low.u32 %v2511
    %v2513 = vextract.high.u32 %v2511
    %v2514 = vmul.u32.u64.compose %v2510, %v2505
    %v2515 = vextract.low.u32 %v2514
    %v2516 = vextract.high.u32 %v2514
    %v2517 = vmul.u32 %v2510, %v2501
    %v2518 = vadd.s32 %v2513, %v2515
    %vm2519 = vc.u32 %v2513, %v2515
    %v2520 = vadd.s32 %v2516, 1
    %v2521 = vsel %vm2519, %v2520, %v2516
    %v2522 = vadd.s32 %v2517, %v2521
    %v2523 = vadd.s32 %v2522, 536870912
    %v2524 = vshrl.u32 %v2523, 30
    %v2525 = vshll.u32 %v2524, 30
    %v2526 = vsub.s32 %v2522, %v2525
    %vm2527 = vcmp.lt.s32.totalorder %v2526, 0
    %v2528 = vsub.s32 0, %v2526
    %v2529 = vsel %vm2527, %v2528, %v2526
    %v2530 = vclz %v2529
    %v2531 = vsub.s32 %v2530, 2
    %vm2532 = vcmp.gt.s32.totalorder 0, %v2531
    %v2533 = vsel %vm2532, 0, %v2531
    %v2534 = vsub.s32 32, %v2533
    %v2535 = vshll.u32 %v2526, %v2533
    %v2536 = vshrl.u32 %v2518, %v2534
    %v2537 = vor.u32 %v2535, %v2536
    %v2538 = vsub.s32 4294967266, %v2533
    %v2539 = vadd.s32 %v2538, 127
    %v2540 = vshll.u32 %v2539, 23
    %v2541 = vor.u32 4788187, %v2540
    %v2542 = vand.u32 2147483647, %v2541
    %v2544 = vcvt.s32.f32 %v2537
    %v2545 = vmul.f32 %v2544, %v2542
    %v2546 = vxor.u32 %v2545, 2147483648
    %v2547 = vsel %vm2464, %v2546, %v2545
    %v2548 = vsub.s32 4, %v2524
    %v2549 = vsel %vm2464, %v2548, %v2524
    %v2550 = vsel %vm2463, %v1523, %v2547
    %v2551 = vsel %vm2463, 0, %v2549
    %v2552 = vcosq.f32.pop %v2550
    %v2553 = vsinq.f32.pop %v2550
    %vm2554 = vweird.f32 %v1523
    %v2555 = vadd.s32 %v2551, 3
    %v2556 = vand.u32 %v2555, 3
    %vm2557 = vcmp.lt.s32.totalorder %v2556, 2
    %vm2558 = vcmp.eq.s32.totalorder %v2556, 0
    %v2559 = vxor.u32 %v2553, 2147483648
    %v2560 = vsel %vm2558, %v2552, %v2559
    %vm2561 = vcmp.eq.s32.totalorder %v2556, 2
    %v2562 = vxor.u32 %v2552, 2147483648
    %v2563 = vsel %vm2561, %v2562, %v2553
    %v2564 = vsel %vm2557, %v2560, %v2563
    %v2565 = vsel %vm2554, nan, %v2564
    %v2566 = vand.u32 2147483647, %v1524
    %vm2567 = vcmp.le.f32.partialorder %v2566, 0.7853982
    %vm2568 = vcmp.lt.s32.totalorder %v1524, 0
    %v2569 = vand.u32 %v1524, 2139095040
    %v2570 = vshrl.u32 %v2569, 23
    %v2571 = vsub.s32 %v2570, 127
    %v2572 = vand.u32 2147483647, %v1524
    %v2573 = vand.u32 %v2572, 8388607
    %v2574 = vor.u32 %v2573, 8388608
    %v2575 = vsub.s32 0, %v2574
    %v2576 = vadd.s32 %v2571, 1
    %vm2577 = vcmp.gt.s32.totalorder %v2576, 0
    %v2578 = vsel %vm2577, %v2576, 0
    %v2579 = vshrl.u32 %v2578, 5
    %v2580 = vand.u32 %v2578, 31
    %v2581 = vsub.s32 32, %v2580
    %v2582 = vshrl.u32 683565275, %v2581
    %v2583 = vshll.u32 683565275, %v2580
    %v2584 = vshrl.u32 2475754826, %v2581
    %v2585 = vor.u32 %v2583, %v2584
    %v2586 = vshll.u32 2475754826, %v2580
    %v2587 = vshrl.u32 2131351028, %v2581
    %v2588 = vor.u32 %v2586, %v2587
    %v2589 = vshll.u32 2131351028, %v2580
    %v2590 = vshrl.u32 2102212464, %v2581
    %v2591 = vor.u32 %v2589, %v2590
    %v2592 = vshll.u32 2102212464, %v2580
    %v2593 = vshrl.u32 920167782, %v2581
    %v2594 = vor.u32 %v2592, %v2593
    %v2595 = vshll.u32 920167782, %v2580
    %v2596 = vshrl.u32 1326507024, %v2581
    %v2597 = vor.u32 %v2595, %v2596
    %vm2598 = vcmp.lt.s32.totalorder %v2579, 1
    %vm2599 = vcmp.lt.s32.totalorder %v2579, 2
    %vm2600 = vcmp.lt.s32.totalorder %v2579, 3
    %vm2601 = vcmp.lt.s32.totalorder %v2579, 4
    %v2602 = vsel %vm2598, %v2582, %v2585
    %v2603 = vsel %vm2601, %v2591, 2102212464
    %v2604 = vsel %vm2600, %v2588, %v2603
    %v2605 = vsel %vm2599, %v2602, %v2604
    %v2606 = vsel %vm2598, %v2585, %v2588
    %v2607 = vsel %vm2601, %v2594, 920167782
    %v2608 = vsel %vm2600, %v2591, %v2607
    %v2609 = vsel %vm2599, %v2606, %v2608
    %v2610 = vsel %vm2598, %v2588, %v2591
    %v2611 = vsel %vm2601, %v2597, 1326507024
    %v2612 = vsel %vm2600, %v2594, %v2611
    %v2613 = vsel %vm2599, %v2610, %v2612
    %v2614 = vshll.u32 %v2574, 8
    %v2615 = vmul.u32.u64.compose %v2614, %v2613
    %v2616 = vextract.low.u32 %v2615
    %v2617 = vextract.high.u32 %v2615
    %v2618 = vmul.u32.u64.compose %v2614, %v2609
    %v2619 = vextract.low.u32 %v2618
    %v2620 = vextract.high.u32 %v2618
    %v2621 = vmul.u32 %v2614, %v2605
    %v2622 = vadd.s32 %v2617, %v2619
    %vm2623 = vc.u32 %v2617, %v2619
    %v2624 = vadd.s32 %v2620, 1
    %v2625 = vsel %vm2623, %v2624, %v2620
    %v2626 = vadd.s32 %v2621, %v2625
    %v2627 = vadd.s32 %v2626, 536870912
    %v2628 = vshrl.u32 %v2627, 30
    %v2629 = vshll.u32 %v2628, 30
    %v2630 = vsub.s32 %v2626, %v2629
    %vm2631 = vcmp.lt.s32.totalorder %v2630, 0
    %v2632 = vsub.s32 0, %v2630
    %v2633 = vsel %vm2631, %v2632, %v2630
    %v2634 = vclz %v2633
    %v2635 = vsub.s32 %v2634, 2
    %vm2636 = vcmp.gt.s32.totalorder 0, %v2635
    %v2637 = vsel %vm2636, 0, %v2635
    %v2638 = vsub.s32 32, %v2637
    %v2639 = vshll.u32 %v2630, %v2637
    %v2640 = vshrl.u32 %v2622, %v2638
    %v2641 = vor.u32 %v2639, %v2640
    %v2642 = vsub.s32 4294967266, %v2637
    %v2643 = vadd.s32 %v2642, 127
    %v2644 = vshll.u32 %v2643, 23
    %v2645 = vor.u32 4788187, %v2644
    %v2646 = vand.u32 2147483647, %v2645
    %v2648 = vcvt.s32.f32 %v2641
    %v2649 = vmul.f32 %v2648, %v2646
    %v2650 = vxor.u32 %v2649, 2147483648
    %v2651 = vsel %vm2568, %v2650, %v2649
    %v2652 = vsub.s32 4, %v2628
    %v2653 = vsel %vm2568, %v2652, %v2628
    %v2654 = vsel %vm2567, %v1524, %v2651
    %v2655 = vsel %vm2567, 0, %v2653
    %v2656 = vcosq.f32.pop %v2654
    %v2657 = vsinq.f32.pop %v2654
    %vm2658 = vweird.f32 %v1524
    %v2659 = vadd.s32 %v2655, 3
    %v2660 = vand.u32 %v2659, 3
    %vm2661 = vcmp.lt.s32.totalorder %v2660, 2
    %vm2662 = vcmp.eq.s32.totalorder %v2660, 0
    %v2663 = vxor.u32 %v2657, 2147483648
    %v2664 = vsel %vm2662, %v2656, %v2663
    %vm2665 = vcmp.eq.s32.totalorder %v2660, 2
    %v2666 = vxor.u32 %v2656, 2147483648
    %v2667 = vsel %vm2665, %v2666, %v2657
    %v2668 = vsel %vm2661, %v2664, %v2667
    %v2669 = vsel %vm2658, nan, %v2668
    %v2670 = vand.u32 2147483647, %v1525
    %vm2671 = vcmp.le.f32.partialorder %v2670, 0.7853982
    %vm2672 = vcmp.lt.s32.totalorder %v1525, 0
    %v2673 = vand.u32 %v1525, 2139095040
    %v2674 = vshrl.u32 %v2673, 23
    %v2675 = vsub.s32 %v2674, 127
    %v2676 = vand.u32 2147483647, %v1525
    %v2677 = vand.u32 %v2676, 8388607
    %v2678 = vor.u32 %v2677, 8388608
    %v2679 = vsub.s32 0, %v2678
    %v2680 = vadd.s32 %v2675, 1
    %vm2681 = vcmp.gt.s32.totalorder %v2680, 0
    %v2682 = vsel %vm2681, %v2680, 0
    %v2683 = vshrl.u32 %v2682, 5
    %v2684 = vand.u32 %v2682, 31
    %v2685 = vsub.s32 32, %v2684
    %v2686 = vshrl.u32 683565275, %v2685
    %v2687 = vshll.u32 683565275, %v2684
    %v2688 = vshrl.u32 2475754826, %v2685
    %v2689 = vor.u32 %v2687, %v2688
    %v2690 = vshll.u32 2475754826, %v2684
    %v2691 = vshrl.u32 2131351028, %v2685
    %v2692 = vor.u32 %v2690, %v2691
    %v2693 = vshll.u32 2131351028, %v2684
    %v2694 = vshrl.u32 2102212464, %v2685
    %v2695 = vor.u32 %v2693, %v2694
    %v2696 = vshll.u32 2102212464, %v2684
    %v2697 = vshrl.u32 920167782, %v2685
    %v2698 = vor.u32 %v2696, %v2697
    %v2699 = vshll.u32 920167782, %v2684
    %v2700 = vshrl.u32 1326507024, %v2685
    %v2701 = vor.u32 %v2699, %v2700
    %vm2702 = vcmp.lt.s32.totalorder %v2683, 1
    %vm2703 = vcmp.lt.s32.totalorder %v2683, 2
    %vm2704 = vcmp.lt.s32.totalorder %v2683, 3
    %vm2705 = vcmp.lt.s32.totalorder %v2683, 4
    %v2706 = vsel %vm2702, %v2686, %v2689
    %v2707 = vsel %vm2705, %v2695, 2102212464
    %v2708 = vsel %vm2704, %v2692, %v2707
    %v2709 = vsel %vm2703, %v2706, %v2708
    %v2710 = vsel %vm2702, %v2689, %v2692
    %v2711 = vsel %vm2705, %v2698, 920167782
    %v2712 = vsel %vm2704, %v2695, %v2711
    %v2713 = vsel %vm2703, %v2710, %v2712
    %v2714 = vsel %vm2702, %v2692, %v2695
    %v2715 = vsel %vm2705, %v2701, 1326507024
    %v2716 = vsel %vm2704, %v2698, %v2715
    %v2717 = vsel %vm2703, %v2714, %v2716
    %v2718 = vshll.u32 %v2678, 8
    %v2719 = vmul.u32.u64.compose %v2718, %v2717
    %v2720 = vextract.low.u32 %v2719
    %v2721 = vextract.high.u32 %v2719
    %v2722 = vmul.u32.u64.compose %v2718, %v2713
    %v2723 = vextract.low.u32 %v2722
    %v2724 = vextract.high.u32 %v2722
    %v2725 = vmul.u32 %v2718, %v2709
    %v2726 = vadd.s32 %v2721, %v2723
    %vm2727 = vc.u32 %v2721, %v2723
    %v2728 = vadd.s32 %v2724, 1
    %v2729 = vsel %vm2727, %v2728, %v2724
    %v2730 = vadd.s32 %v2725, %v2729
    %v2731 = vadd.s32 %v2730, 536870912
    %v2732 = vshrl.u32 %v2731, 30
    %v2733 = vshll.u32 %v2732, 30
    %v2734 = vsub.s32 %v2730, %v2733
    %vm2735 = vcmp.lt.s32.totalorder %v2734, 0
    %v2736 = vsub.s32 0, %v2734
    %v2737 = vsel %vm2735, %v2736, %v2734
    %v2738 = vclz %v2737
    %v2739 = vsub.s32 %v2738, 2
    %vm2740 = vcmp.gt.s32.totalorder 0, %v2739
    %v2741 = vsel %vm2740, 0, %v2739
    %v2742 = vsub.s32 32, %v2741
    %v2743 = vshll.u32 %v2734, %v2741
    %v2744 = vshrl.u32 %v2726, %v2742
    %v2745 = vor.u32 %v2743, %v2744
    %v2746 = vsub.s32 4294967266, %v2741
    %v2747 = vadd.s32 %v2746, 127
    %v2748 = vshll.u32 %v2747, 23
    %v2749 = vor.u32 4788187, %v2748
    %v2750 = vand.u32 2147483647, %v2749
    %v2752 = vcvt.s32.f32 %v2745
    %v2753 = vmul.f32 %v2752, %v2750
    %v2754 = vxor.u32 %v2753, 2147483648
    %v2755 = vsel %vm2672, %v2754, %v2753
    %v2756 = vsub.s32 4, %v2732
    %v2757 = vsel %vm2672, %v2756, %v2732
    %v2758 = vsel %vm2671, %v1525, %v2755
    %v2759 = vsel %vm2671, 0, %v2757
    %v2760 = vcosq.f32.pop %v2758
    %v2761 = vsinq.f32.pop %v2758
    %vm2762 = vweird.f32 %v1525
    %v2763 = vadd.s32 %v2759, 3
    %v2764 = vand.u32 %v2763, 3
    %vm2765 = vcmp.lt.s32.totalorder %v2764, 2
    %vm2766 = vcmp.eq.s32.totalorder %v2764, 0
    %v2767 = vxor.u32 %v2761, 2147483648
    %v2768 = vsel %vm2766, %v2760, %v2767
    %vm2769 = vcmp.eq.s32.totalorder %v2764, 2
    %v2770 = vxor.u32 %v2760, 2147483648
    %v2771 = vsel %vm2769, %v2770, %v2761
    %v2772 = vsel %vm2765, %v2768, %v2771
    %v2773 = vsel %vm2762, nan, %v2772
    %v2774 = vld [vmem:[%s2] sm:$0xf]
    %v2775 = vld [vmem:[%s2 + $0x4] sm:$0xf]
    %v2776 = vld [vmem:[%s2 + $0x8] sm:$0xf]
    %v2777 = vld [vmem:[%s2 + $0xc] sm:$0xf]
    %v2778 = vld [vmem:[%s6] sm:$0xff]
    %v2779 = vld [vmem:[%s6 + $0x8] sm:$0xff]
    %v2780 = vld [vmem:[%s6 + $0x10] sm:$0xff]
    %v2781 = vld [vmem:[%s6 + $0x18] sm:$0xff]
    %v2782 = vpack.c.bf16 %v681, %v369
    %v2783 = vpack.c.bf16 %v785, %v473
    %v2784 = vpack.c.bf16 %v889, %v577
    %v2785 = vpack.c.bf16 %v1305, %v993
    %v2786 = vpack.c.bf16 %v1409, %v1097
    %v2787 = vpack.c.bf16 %v1513, %v1201
    %2789 = vset.pattern.permute.xlu0 0
    %2790 = vperm.xlu0 %2789, %v2778
    %v2791 = vpop.permute.xlu0 %2790
    %2794 = vset.pattern.permute.xlu0 0
    %2795 = vperm.xlu0 %2794, %v2779
    %v2796 = vpop.permute.xlu0 %2795
    %2799 = vset.pattern.permute.xlu0 0
    %2800 = vperm.xlu0 %2799, %v2780
    %v2801 = vpop.permute.xlu0 %2800
    %2804 = vset.pattern.permute.xlu0 0
    %2805 = vperm.xlu0 %2804, %v2781
    %v2806 = vpop.permute.xlu0 %2805
    %v2812 = vunpack.c.l.b16 %v2774
    %v2813 = vunpack.c.l.b16 %v2775
    %v2814 = vunpack.c.l.b16 %v2776
    %v2815 = vunpack.c.l.b16 %v2777
    %v2816 = vpack.c.b16 %v2813, %v2812
    %v2817 = vpack.c.b16 %v2815, %v2814
    %vm2818 = vcmask 261120
    %v2820 = vsel %vm2818, %v2816, 0
    %v2823 = vsel %vm2818, %v2817, 0
    %2825 = vmatprep.subr.bf16.mxu0 %v2783
    %2826 = vmatpush1.bf16.msra.mxu0 %v2782
    %2827 = vmatprep.subr.bf16.mxu0 %v2786
    %2828 = vmatpush1.bf16.msra.mxu0 %v2785
    %2829 = vmatprep.subr.bf16.mxu0 0
    %2830 = vmatpush1.bf16.msra.mxu0 0
    %2831 = vmatprep.subr.bf16.mxu0 0
    %2832 = vmatpush1.bf16.msra.mxu0 0
    %2833 = vmatprep.subr.bf16.mxu0 0
    %2834 = vmatpush1.bf16.msra.mxu0 0
    %2835 = vmatprep.subr.bf16.mxu0 0
    %2836 = vmatpush1.bf16.msra.mxu0 0
    %2837 = vmatprep.subr.bf16.mxu0 0
    %2838 = vmatpush1.bf16.msra.mxu0 0
    %2839 = vmatprep.subr.bf16.mxu0 0
    %2840 = vmatpush1.bf16.msra.mxu0 0
    %2841 = vmatprep.subr.bf16.mxu0 0
    %2842 = vmatpush1.bf16.msra.mxu0 0
    %2843 = vmatprep.subr.bf16.mxu0 0
    %2844 = vmatpush1.bf16.msra.mxu0 0
    %2845 = vmatprep.subr.bf16.mxu0 0
    %2846 = vmatpush1.bf16.msra.mxu0 0
    %2847 = vmatprep.subr.bf16.mxu0 0
    %2848 = vmatpush1.bf16.msra.mxu0 0
    %2849 = vmatprep.subr.bf16.mxu0 0
    %2850 = vmatpush1.bf16.msra.mxu0 0
    %2851 = vmatprep.subr.bf16.mxu0 0
    %2852 = vmatpush1.bf16.msra.mxu0 0
    %2853 = vmatprep.subr.bf16.mxu0 0
    %2854 = vmatpush1.bf16.msra.mxu0 0
    %2855 = vmatprep.subr.bf16.mxu0 0
    %2856 = vmatpush1.bf16.msra.mxu0 0
    %2857 = vmatprep.mubr.bf16.mxu0 0
    %2858 = vmatmul.mubr.bf16.gmra.mrb[0].mxu0 %v2820
    %v2859 = vpop.f32.mrb[0].mxu0
    %v2860 = vadd.f32 %v2791, %v2859
    %v2861 = vpop.f32.mrb[0].mxu0
    %v2862 = vadd.f32 %v2791, %v2861
    %v2863 = vpop.f32.mrb[0].mxu0
    %v2864 = vadd.f32 %v2796, %v2863
    %v2865 = vpop.f32.mrb[0].mxu0
    %v2866 = vadd.f32 %v2796, %v2865
    %2867 = vmatprep.mubr.bf16.mxu0 0
    %2868 = vmatmul.mubr.bf16.gmra.mrb[0].mxu0 %v2823
    %v2869 = vpop.f32.mrb[0].mxu0
    %v2870 = vadd.f32 %v2801, %v2869
    %v2871 = vpop.f32.mrb[0].mxu0
    %v2872 = vadd.f32 %v2801, %v2871
    %v2873 = vpop.f32.mrb[0].mxu0
    %v2874 = vadd.f32 %v2806, %v2873
    %v2875 = vpop.f32.mrb[0].mxu0
    %v2876 = vadd.f32 %v2806, %v2875
    %2877 = vdwg.mxu0
    %2878 = vmatprep.subr.bf16.mxu0 0
    %2879 = vmatpush1.bf16.msra.mxu0 %v2784
    %2880 = vmatprep.subr.bf16.mxu0 0
    %2881 = vmatpush1.bf16.msra.mxu0 %v2787
    %2882 = vmatprep.subr.bf16.mxu0 0
    %2883 = vmatpush1.bf16.msra.mxu0 0
    %2884 = vmatprep.subr.bf16.mxu0 0
    %2885 = vmatpush1.bf16.msra.mxu0 0
    %2886 = vmatprep.subr.bf16.mxu0 0
    %2887 = vmatpush1.bf16.msra.mxu0 0
    %2888 = vmatprep.subr.bf16.mxu0 0
    %2889 = vmatpush1.bf16.msra.mxu0 0
    %2890 = vmatprep.subr.bf16.mxu0 0
    %2891 = vmatpush1.bf16.msra.mxu0 0
    %2892 = vmatprep.subr.bf16.mxu0 0
    %2893 = vmatpush1.bf16.msra.mxu0 0
    %2894 = vmatprep.subr.bf16.mxu0 0
    %2895 = vmatpush1.bf16.msra.mxu0 0
    %2896 = vmatprep.subr.bf16.mxu0 0
    %2897 = vmatpush1.bf16.msra.mxu0 0
    %2898 = vmatprep.subr.bf16.mxu0 0
    %2899 = vmatpush1.bf16.msra.mxu0 0
    %2900 = vmatprep.subr.bf16.mxu0 0
    %2901 = vmatpush1.bf16.msra.mxu0 0
    %2902 = vmatprep.subr.bf16.mxu0 0
    %2903 = vmatpush1.bf16.msra.mxu0 0
    %2904 = vmatprep.subr.bf16.mxu0 0
    %2905 = vmatpush1.bf16.msra.mxu0 0
    %2906 = vmatprep.subr.bf16.mxu0 0
    %2907 = vmatpush1.bf16.msra.mxu0 0
    %2908 = vmatprep.subr.bf16.mxu0 0
    %2909 = vmatpush1.bf16.msra.mxu0 0
    %2910 = vmatprep.mubr.bf16.mxu0 0
    %2911 = vmatmul.mubr.bf16.gmra.mrb[0].mxu0 %v2820
    %v2912 = vpop.f32.mrb[0].mxu0
    %v2913 = vadd.f32 %v2791, %v2912
    %v2914 = vpop.f32.mrb[0].mxu0
    %v2915 = vpop.f32.mrb[0].mxu0
    %v2916 = vadd.f32 %v2796, %v2915
    %v2917 = vpop.f32.mrb[0].mxu0
    %2918 = vmatprep.mubr.bf16.mxu0 0
    %2919 = vmatmul.mubr.bf16.gmra.mrb[0].mxu0 %v2823
    %v2920 = vpop.f32.mrb[0].mxu0
    %v2921 = vadd.f32 %v2801, %v2920
    %v2922 = vpop.f32.mrb[0].mxu0
    %v2923 = vpop.f32.mrb[0].mxu0
    %v2924 = vadd.f32 %v2806, %v2923
    %v2925 = vpop.f32.mrb[0].mxu0
    %2926 = vdwg.mxu0
    %v2927 = vand.u32 2147483647, %v2860
    %vm2928 = vcmp.le.f32.partialorder %v2927, 0.7853982
    %vm2929 = vcmp.lt.s32.totalorder %v2860, 0
    %v2930 = vand.u32 %v2860, 2139095040
    %v2931 = vshrl.u32 %v2930, 23
    %v2932 = vsub.s32 %v2931, 127
    %v2933 = vand.u32 2147483647, %v2860
    %v2934 = vand.u32 %v2933, 8388607
    %v2935 = vor.u32 %v2934, 8388608
    %v2936 = vsub.s32 0, %v2935
    %v2937 = vadd.s32 %v2932, 1
    %vm2938 = vcmp.gt.s32.totalorder %v2937, 0
    %v2939 = vsel %vm2938, %v2937, 0
    %v2940 = vshrl.u32 %v2939, 5
    %v2941 = vand.u32 %v2939, 31
    %v2942 = vsub.s32 32, %v2941
    %v2943 = vshrl.u32 683565275, %v2942
    %v2944 = vshll.u32 683565275, %v2941
    %v2945 = vshrl.u32 2475754826, %v2942
    %v2946 = vor.u32 %v2944, %v2945
    %v2947 = vshll.u32 2475754826, %v2941
    %v2948 = vshrl.u32 2131351028, %v2942
    %v2949 = vor.u32 %v2947, %v2948
    %v2950 = vshll.u32 2131351028, %v2941
    %v2951 = vshrl.u32 2102212464, %v2942
    %v2952 = vor.u32 %v2950, %v2951
    %v2953 = vshll.u32 2102212464, %v2941
    %v2954 = vshrl.u32 920167782, %v2942
    %v2955 = vor.u32 %v2953, %v2954
    %v2956 = vshll.u32 920167782, %v2941
    %v2957 = vshrl.u32 1326507024, %v2942
    %v2958 = vor.u32 %v2956, %v2957
    %vm2959 = vcmp.lt.s32.totalorder %v2940, 1
    %vm2960 = vcmp.lt.s32.totalorder %v2940, 2
    %vm2961 = vcmp.lt.s32.totalorder %v2940, 3
    %vm2962 = vcmp.lt.s32.totalorder %v2940, 4
    %v2963 = vsel %vm2959, %v2943, %v2946
    %v2964 = vsel %vm2962, %v2952, 2102212464
    %v2965 = vsel %vm2961, %v2949, %v2964
    %v2966 = vsel %vm2960, %v2963, %v2965
    %v2967 = vsel %vm2959, %v2946, %v2949
    %v2968 = vsel %vm2962, %v2955, 920167782
    %v2969 = vsel %vm2961, %v2952, %v2968
    %v2970 = vsel %vm2960, %v2967, %v2969
    %v2971 = vsel %vm2959, %v2949, %v2952
    %v2972 = vsel %vm2962, %v2958, 1326507024
    %v2973 = vsel %vm2961, %v2955, %v2972
    %v2974 = vsel %vm2960, %v2971, %v2973
    %v2975 = vshll.u32 %v2935, 8
    %v2976 = vmul.u32.u64.compose %v2975, %v2974
    %v2977 = vextract.low.u32 %v2976
    %v2978 = vextract.high.u32 %v2976
    %v2979 = vmul.u32.u64.compose %v2975, %v2970
    %v2980 = vextract.low.u32 %v2979
    %v2981 = vextract.high.u32 %v2979
    %v2982 = vmul.u32 %v2975, %v2966
    %v2983 = vadd.s32 %v2978, %v2980
    %vm2984 = vc.u32 %v2978, %v2980
    %v2985 = vadd.s32 %v2981, 1
    %v2986 = vsel %vm2984, %v2985, %v2981
    %v2987 = vadd.s32 %v2982, %v2986
    %v2988 = vadd.s32 %v2987, 536870912
    %v2989 = vshrl.u32 %v2988, 30
    %v2990 = vshll.u32 %v2989, 30
    %v2991 = vsub.s32 %v2987, %v2990
    %vm2992 = vcmp.lt.s32.totalorder %v2991, 0
    %v2993 = vsub.s32 0, %v2991
    %v2994 = vsel %vm2992, %v2993, %v2991
    %v2995 = vclz %v2994
    %v2996 = vsub.s32 %v2995, 2
    %vm2997 = vcmp.gt.s32.totalorder 0, %v2996
    %v2998 = vsel %vm2997, 0, %v2996
    %v2999 = vsub.s32 32, %v2998
    %v3000 = vshll.u32 %v2991, %v2998
    %v3001 = vshrl.u32 %v2983, %v2999
    %v3002 = vor.u32 %v3000, %v3001
    %v3003 = vsub.s32 4294967266, %v2998
    %v3004 = vadd.s32 %v3003, 127
    %v3005 = vshll.u32 %v3004, 23
    %v3006 = vor.u32 4788187, %v3005
    %v3007 = vand.u32 2147483647, %v3006
    %v3009 = vcvt.s32.f32 %v3002
    %v3010 = vmul.f32 %v3009, %v3007
    %v3011 = vxor.u32 %v3010, 2147483648
    %v3012 = vsel %vm2929, %v3011, %v3010
    %v3013 = vsub.s32 4, %v2989
    %v3014 = vsel %vm2929, %v3013, %v2989
    %v3015 = vsel %vm2928, %v2860, %v3012
    %v3016 = vsel %vm2928, 0, %v3014
    %v3017 = vcosq.f32.pop %v3015
    %v3018 = vsinq.f32.pop %v3015
    %vm3019 = vweird.f32 %v2860
    %v3020 = vadd.s32 %v3016, 3
    %v3021 = vand.u32 %v3020, 3
    %vm3022 = vcmp.lt.s32.totalorder %v3021, 2
    %vm3023 = vcmp.eq.s32.totalorder %v3021, 0
    %v3024 = vxor.u32 %v3018, 2147483648
    %v3025 = vsel %vm3023, %v3017, %v3024
    %vm3026 = vcmp.eq.s32.totalorder %v3021, 2
    %v3027 = vxor.u32 %v3017, 2147483648
    %v3028 = vsel %vm3026, %v3027, %v3018
    %v3029 = vsel %vm3022, %v3025, %v3028
    %v3030 = vsel %vm3019, nan, %v3029
    %v3031 = vand.u32 2147483647, %v2862
    %vm3032 = vcmp.le.f32.partialorder %v3031, 0.7853982
    %vm3033 = vcmp.lt.s32.totalorder %v2862, 0
    %v3034 = vand.u32 %v2862, 2139095040
    %v3035 = vshrl.u32 %v3034, 23
    %v3036 = vsub.s32 %v3035, 127
    %v3037 = vand.u32 2147483647, %v2862
    %v3038 = vand.u32 %v3037, 8388607
    %v3039 = vor.u32 %v3038, 8388608
    %v3040 = vsub.s32 0, %v3039
    %v3041 = vadd.s32 %v3036, 1
    %vm3042 = vcmp.gt.s32.totalorder %v3041, 0
    %v3043 = vsel %vm3042, %v3041, 0
    %v3044 = vshrl.u32 %v3043, 5
    %v3045 = vand.u32 %v3043, 31
    %v3046 = vsub.s32 32, %v3045
    %v3047 = vshrl.u32 683565275, %v3046
    %v3048 = vshll.u32 683565275, %v3045
    %v3049 = vshrl.u32 2475754826, %v3046
    %v3050 = vor.u32 %v3048, %v3049
    %v3051 = vshll.u32 2475754826, %v3045
    %v3052 = vshrl.u32 2131351028, %v3046
    %v3053 = vor.u32 %v3051, %v3052
    %v3054 = vshll.u32 2131351028, %v3045
    %v3055 = vshrl.u32 2102212464, %v3046
    %v3056 = vor.u32 %v3054, %v3055
    %v3057 = vshll.u32 2102212464, %v3045
    %v3058 = vshrl.u32 920167782, %v3046
    %v3059 = vor.u32 %v3057, %v3058
    %v3060 = vshll.u32 920167782, %v3045
    %v3061 = vshrl.u32 1326507024, %v3046
    %v3062 = vor.u32 %v3060, %v3061
    %vm3063 = vcmp.lt.s32.totalorder %v3044, 1
    %vm3064 = vcmp.lt.s32.totalorder %v3044, 2
    %vm3065 = vcmp.lt.s32.totalorder %v3044, 3
    %vm3066 = vcmp.lt.s32.totalorder %v3044, 4
    %v3067 = vsel %vm3063, %v3047, %v3050
    %v3068 = vsel %vm3066, %v3056, 2102212464
    %v3069 = vsel %vm3065, %v3053, %v3068
    %v3070 = vsel %vm3064, %v3067, %v3069
    %v3071 = vsel %vm3063, %v3050, %v3053
    %v3072 = vsel %vm3066, %v3059, 920167782
    %v3073 = vsel %vm3065, %v3056, %v3072
    %v3074 = vsel %vm3064, %v3071, %v3073
    %v3075 = vsel %vm3063, %v3053, %v3056
    %v3076 = vsel %vm3066, %v3062, 1326507024
    %v3077 = vsel %vm3065, %v3059, %v3076
    %v3078 = vsel %vm3064, %v3075, %v3077
    %v3079 = vshll.u32 %v3039, 8
    %v3080 = vmul.u32.u64.compose %v3079, %v3078
    %v3081 = vextract.low.u32 %v3080
    %v3082 = vextract.high.u32 %v3080
    %v3083 = vmul.u32.u64.compose %v3079, %v3074
    %v3084 = vextract.low.u32 %v3083
    %v3085 = vextract.high.u32 %v3083
    %v3086 = vmul.u32 %v3079, %v3070
    %v3087 = vadd.s32 %v3082, %v3084
    %vm3088 = vc.u32 %v3082, %v3084
    %v3089 = vadd.s32 %v3085, 1
    %v3090 = vsel %vm3088, %v3089, %v3085
    %v3091 = vadd.s32 %v3086, %v3090
    %v3092 = vadd.s32 %v3091, 536870912
    %v3093 = vshrl.u32 %v3092, 30
    %v3094 = vshll.u32 %v3093, 30
    %v3095 = vsub.s32 %v3091, %v3094
    %vm3096 = vcmp.lt.s32.totalorder %v3095, 0
    %v3097 = vsub.s32 0, %v3095
    %v3098 = vsel %vm3096, %v3097, %v3095
    %v3099 = vclz %v3098
    %v3100 = vsub.s32 %v3099, 2
    %vm3101 = vcmp.gt.s32.totalorder 0, %v3100
    %v3102 = vsel %vm3101, 0, %v3100
    %v3103 = vsub.s32 32, %v3102
    %v3104 = vshll.u32 %v3095, %v3102
    %v3105 = vshrl.u32 %v3087, %v3103
    %v3106 = vor.u32 %v3104, %v3105
    %v3107 = vsub.s32 4294967266, %v3102
    %v3108 = vadd.s32 %v3107, 127
    %v3109 = vshll.u32 %v3108, 23
    %v3110 = vor.u32 4788187, %v3109
    %v3111 = vand.u32 2147483647, %v3110
    %v3113 = vcvt.s32.f32 %v3106
    %v3114 = vmul.f32 %v3113, %v3111
    %v3115 = vxor.u32 %v3114, 2147483648
    %v3116 = vsel %vm3033, %v3115, %v3114
    %v3117 = vsub.s32 4, %v3093
    %v3118 = vsel %vm3033, %v3117, %v3093
    %v3119 = vsel %vm3032, %v2862, %v3116
    %v3120 = vsel %vm3032, 0, %v3118
    %v3121 = vcosq.f32.pop %v3119
    %v3122 = vsinq.f32.pop %v3119
    %vm3123 = vweird.f32 %v2862
    %v3124 = vadd.s32 %v3120, 3
    %v3125 = vand.u32 %v3124, 3
    %vm3126 = vcmp.lt.s32.totalorder %v3125, 2
    %vm3127 = vcmp.eq.s32.totalorder %v3125, 0
    %v3128 = vxor.u32 %v3122, 2147483648
    %v3129 = vsel %vm3127, %v3121, %v3128
    %vm3130 = vcmp.eq.s32.totalorder %v3125, 2
    %v3131 = vxor.u32 %v3121, 2147483648
    %v3132 = vsel %vm3130, %v3131, %v3122
    %v3133 = vsel %vm3126, %v3129, %v3132
    %v3134 = vsel %vm3123, nan, %v3133
    %v3135 = vand.u32 2147483647, %v2913
    %vm3136 = vcmp.le.f32.partialorder %v3135, 0.7853982
    %vm3137 = vcmp.lt.s32.totalorder %v2913, 0
    %v3138 = vand.u32 %v2913, 2139095040
    %v3139 = vshrl.u32 %v3138, 23
    %v3140 = vsub.s32 %v3139, 127
    %v3141 = vand.u32 2147483647, %v2913
    %v3142 = vand.u32 %v3141, 8388607
    %v3143 = vor.u32 %v3142, 8388608
    %v3144 = vsub.s32 0, %v3143
    %v3145 = vadd.s32 %v3140, 1
    %vm3146 = vcmp.gt.s32.totalorder %v3145, 0
    %v3147 = vsel %vm3146, %v3145, 0
    %v3148 = vshrl.u32 %v3147, 5
    %v3149 = vand.u32 %v3147, 31
    %v3150 = vsub.s32 32, %v3149
    %v3151 = vshrl.u32 683565275, %v3150
    %v3152 = vshll.u32 683565275, %v3149
    %v3153 = vshrl.u32 2475754826, %v3150
    %v3154 = vor.u32 %v3152, %v3153
    %v3155 = vshll.u32 2475754826, %v3149
    %v3156 = vshrl.u32 2131351028, %v3150
    %v3157 = vor.u32 %v3155, %v3156
    %v3158 = vshll.u32 2131351028, %v3149
    %v3159 = vshrl.u32 2102212464, %v3150
    %v3160 = vor.u32 %v3158, %v3159
    %v3161 = vshll.u32 2102212464, %v3149
    %v3162 = vshrl.u32 920167782, %v3150
    %v3163 = vor.u32 %v3161, %v3162
    %v3164 = vshll.u32 920167782, %v3149
    %v3165 = vshrl.u32 1326507024, %v3150
    %v3166 = vor.u32 %v3164, %v3165
    %vm3167 = vcmp.lt.s32.totalorder %v3148, 1
    %vm3168 = vcmp.lt.s32.totalorder %v3148, 2
    %vm3169 = vcmp.lt.s32.totalorder %v3148, 3
    %vm3170 = vcmp.lt.s32.totalorder %v3148, 4
    %v3171 = vsel %vm3167, %v3151, %v3154
    %v3172 = vsel %vm3170, %v3160, 2102212464
    %v3173 = vsel %vm3169, %v3157, %v3172
    %v3174 = vsel %vm3168, %v3171, %v3173
    %v3175 = vsel %vm3167, %v3154, %v3157
    %v3176 = vsel %vm3170, %v3163, 920167782
    %v3177 = vsel %vm3169, %v3160, %v3176
    %v3178 = vsel %vm3168, %v3175, %v3177
    %v3179 = vsel %vm3167, %v3157, %v3160
    %v3180 = vsel %vm3170, %v3166, 1326507024
    %v3181 = vsel %vm3169, %v3163, %v3180
    %v3182 = vsel %vm3168, %v3179, %v3181
    %v3183 = vshll.u32 %v3143, 8
    %v3184 = vmul.u32.u64.compose %v3183, %v3182
    %v3185 = vextract.low.u32 %v3184
    %v3186 = vextract.high.u32 %v3184
    %v3187 = vmul.u32.u64.compose %v3183, %v3178
    %v3188 = vextract.low.u32 %v3187
    %v3189 = vextract.high.u32 %v3187
    %v3190 = vmul.u32 %v3183, %v3174
    %v3191 = vadd.s32 %v3186, %v3188
    %vm3192 = vc.u32 %v3186, %v3188
    %v3193 = vadd.s32 %v3189, 1
    %v3194 = vsel %vm3192, %v3193, %v3189
    %v3195 = vadd.s32 %v3190, %v3194
    %v3196 = vadd.s32 %v3195, 536870912
    %v3197 = vshrl.u32 %v3196, 30
    %v3198 = vshll.u32 %v3197, 30
    %v3199 = vsub.s32 %v3195, %v3198
    %vm3200 = vcmp.lt.s32.totalorder %v3199, 0
    %v3201 = vsub.s32 0, %v3199
    %v3202 = vsel %vm3200, %v3201, %v3199
    %v3203 = vclz %v3202
    %v3204 = vsub.s32 %v3203, 2
    %vm3205 = vcmp.gt.s32.totalorder 0, %v3204
    %v3206 = vsel %vm3205, 0, %v3204
    %v3207 = vsub.s32 32, %v3206
    %v3208 = vshll.u32 %v3199, %v3206
    %v3209 = vshrl.u32 %v3191, %v3207
    %v3210 = vor.u32 %v3208, %v3209
    %v3211 = vsub.s32 4294967266, %v3206
    %v3212 = vadd.s32 %v3211, 127
    %v3213 = vshll.u32 %v3212, 23
    %v3214 = vor.u32 4788187, %v3213
    %v3215 = vand.u32 2147483647, %v3214
    %v3217 = vcvt.s32.f32 %v3210
    %v3218 = vmul.f32 %v3217, %v3215
    %v3219 = vxor.u32 %v3218, 2147483648
    %v3220 = vsel %vm3137, %v3219, %v3218
    %v3221 = vsub.s32 4, %v3197
    %v3222 = vsel %vm3137, %v3221, %v3197
    %v3223 = vsel %vm3136, %v2913, %v3220
    %v3224 = vsel %vm3136, 0, %v3222
    %v3225 = vcosq.f32.pop %v3223
    %v3226 = vsinq.f32.pop %v3223
    %vm3227 = vweird.f32 %v2913
    %v3228 = vadd.s32 %v3224, 3
    %v3229 = vand.u32 %v3228, 3
    %vm3230 = vcmp.lt.s32.totalorder %v3229, 2
    %vm3231 = vcmp.eq.s32.totalorder %v3229, 0
    %v3232 = vxor.u32 %v3226, 2147483648
    %v3233 = vsel %vm3231, %v3225, %v3232
    %vm3234 = vcmp.eq.s32.totalorder %v3229, 2
    %v3235 = vxor.u32 %v3225, 2147483648
    %v3236 = vsel %vm3234, %v3235, %v3226
    %v3237 = vsel %vm3230, %v3233, %v3236
    %v3238 = vsel %vm3227, nan, %v3237
    %v3239 = vand.u32 2147483647, %v2864
    %vm3240 = vcmp.le.f32.partialorder %v3239, 0.7853982
    %vm3241 = vcmp.lt.s32.totalorder %v2864, 0
    %v3242 = vand.u32 %v2864, 2139095040
    %v3243 = vshrl.u32 %v3242, 23
    %v3244 = vsub.s32 %v3243, 127
    %v3245 = vand.u32 2147483647, %v2864
    %v3246 = vand.u32 %v3245, 8388607
    %v3247 = vor.u32 %v3246, 8388608
    %v3248 = vsub.s32 0, %v3247
    %v3249 = vadd.s32 %v3244, 1
    %vm3250 = vcmp.gt.s32.totalorder %v3249, 0
    %v3251 = vsel %vm3250, %v3249, 0
    %v3252 = vshrl.u32 %v3251, 5
    %v3253 = vand.u32 %v3251, 31
    %v3254 = vsub.s32 32, %v3253
    %v3255 = vshrl.u32 683565275, %v3254
    %v3256 = vshll.u32 683565275, %v3253
    %v3257 = vshrl.u32 2475754826, %v3254
    %v3258 = vor.u32 %v3256, %v3257
    %v3259 = vshll.u32 2475754826, %v3253
    %v3260 = vshrl.u32 2131351028, %v3254
    %v3261 = vor.u32 %v3259, %v3260
    %v3262 = vshll.u32 2131351028, %v3253
    %v3263 = vshrl.u32 2102212464, %v3254
    %v3264 = vor.u32 %v3262, %v3263
    %v3265 = vshll.u32 2102212464, %v3253
    %v3266 = vshrl.u32 920167782, %v3254
    %v3267 = vor.u32 %v3265, %v3266
    %v3268 = vshll.u32 920167782, %v3253
    %v3269 = vshrl.u32 1326507024, %v3254
    %v3270 = vor.u32 %v3268, %v3269
    %vm3271 = vcmp.lt.s32.totalorder %v3252, 1
    %vm3272 = vcmp.lt.s32.totalorder %v3252, 2
    %vm3273 = vcmp.lt.s32.totalorder %v3252, 3
    %vm3274 = vcmp.lt.s32.totalorder %v3252, 4
    %v3275 = vsel %vm3271, %v3255, %v3258
    %v3276 = vsel %vm3274, %v3264, 2102212464
    %v3277 = vsel %vm3273, %v3261, %v3276
    %v3278 = vsel %vm3272, %v3275, %v3277
    %v3279 = vsel %vm3271, %v3258, %v3261
    %v3280 = vsel %vm3274, %v3267, 920167782
    %v3281 = vsel %vm3273, %v3264, %v3280
    %v3282 = vsel %vm3272, %v3279, %v3281
    %v3283 = vsel %vm3271, %v3261, %v3264
    %v3284 = vsel %vm3274, %v3270, 1326507024
    %v3285 = vsel %vm3273, %v3267, %v3284
    %v3286 = vsel %vm3272, %v3283, %v3285
    %v3287 = vshll.u32 %v3247, 8
    %v3288 = vmul.u32.u64.compose %v3287, %v3286
    %v3289 = vextract.low.u32 %v3288
    %v3290 = vextract.high.u32 %v3288
    %v3291 = vmul.u32.u64.compose %v3287, %v3282
    %v3292 = vextract.low.u32 %v3291
    %v3293 = vextract.high.u32 %v3291
    %v3294 = vmul.u32 %v3287, %v3278
    %v3295 = vadd.s32 %v3290, %v3292
    %vm3296 = vc.u32 %v3290, %v3292
    %v3297 = vadd.s32 %v3293, 1
    %v3298 = vsel %vm3296, %v3297, %v3293
    %v3299 = vadd.s32 %v3294, %v3298
    %v3300 = vadd.s32 %v3299, 536870912
    %v3301 = vshrl.u32 %v3300, 30
    %v3302 = vshll.u32 %v3301, 30
    %v3303 = vsub.s32 %v3299, %v3302
    %vm3304 = vcmp.lt.s32.totalorder %v3303, 0
    %v3305 = vsub.s32 0, %v3303
    %v3306 = vsel %vm3304, %v3305, %v3303
    %v3307 = vclz %v3306
    %v3308 = vsub.s32 %v3307, 2
    %vm3309 = vcmp.gt.s32.totalorder 0, %v3308
    %v3310 = vsel %vm3309, 0, %v3308
    %v3311 = vsub.s32 32, %v3310
    %v3312 = vshll.u32 %v3303, %v3310
    %v3313 = vshrl.u32 %v3295, %v3311
    %v3314 = vor.u32 %v3312, %v3313
    %v3315 = vsub.s32 4294967266, %v3310
    %v3316 = vadd.s32 %v3315, 127
    %v3317 = vshll.u32 %v3316, 23
    %v3318 = vor.u32 4788187, %v3317
    %v3319 = vand.u32 2147483647, %v3318
    %v3321 = vcvt.s32.f32 %v3314
    %v3322 = vmul.f32 %v3321, %v3319
    %v3323 = vxor.u32 %v3322, 2147483648
    %v3324 = vsel %vm3241, %v3323, %v3322
    %v3325 = vsub.s32 4, %v3301
    %v3326 = vsel %vm3241, %v3325, %v3301
    %v3327 = vsel %vm3240, %v2864, %v3324
    %v3328 = vsel %vm3240, 0, %v3326
    %v3329 = vcosq.f32.pop %v3327
    %v3330 = vsinq.f32.pop %v3327
    %vm3331 = vweird.f32 %v2864
    %v3332 = vadd.s32 %v3328, 3
    %v3333 = vand.u32 %v3332, 3
    %vm3334 = vcmp.lt.s32.totalorder %v3333, 2
    %vm3335 = vcmp.eq.s32.totalorder %v3333, 0
    %v3336 = vxor.u32 %v3330, 2147483648
    %v3337 = vsel %vm3335, %v3329, %v3336
    %vm3338 = vcmp.eq.s32.totalorder %v3333, 2
    %v3339 = vxor.u32 %v3329, 2147483648
    %v3340 = vsel %vm3338, %v3339, %v3330
    %v3341 = vsel %vm3334, %v3337, %v3340
    %v3342 = vsel %vm3331, nan, %v3341
    %v3343 = vand.u32 2147483647, %v2866
    %vm3344 = vcmp.le.f32.partialorder %v3343, 0.7853982
    %vm3345 = vcmp.lt.s32.totalorder %v2866, 0
    %v3346 = vand.u32 %v2866, 2139095040
    %v3347 = vshrl.u32 %v3346, 23
    %v3348 = vsub.s32 %v3347, 127
    %v3349 = vand.u32 2147483647, %v2866
    %v3350 = vand.u32 %v3349, 8388607
    %v3351 = vor.u32 %v3350, 8388608
    %v3352 = vsub.s32 0, %v3351
    %v3353 = vadd.s32 %v3348, 1
    %vm3354 = vcmp.gt.s32.totalorder %v3353, 0
    %v3355 = vsel %vm3354, %v3353, 0
    %v3356 = vshrl.u32 %v3355, 5
    %v3357 = vand.u32 %v3355, 31
    %v3358 = vsub.s32 32, %v3357
    %v3359 = vshrl.u32 683565275, %v3358
    %v3360 = vshll.u32 683565275, %v3357
    %v3361 = vshrl.u32 2475754826, %v3358
    %v3362 = vor.u32 %v3360, %v3361
    %v3363 = vshll.u32 2475754826, %v3357
    %v3364 = vshrl.u32 2131351028, %v3358
    %v3365 = vor.u32 %v3363, %v3364
    %v3366 = vshll.u32 2131351028, %v3357
    %v3367 = vshrl.u32 2102212464, %v3358
    %v3368 = vor.u32 %v3366, %v3367
    %v3369 = vshll.u32 2102212464, %v3357
    %v3370 = vshrl.u32 920167782, %v3358
    %v3371 = vor.u32 %v3369, %v3370
    %v3372 = vshll.u32 920167782, %v3357
    %v3373 = vshrl.u32 1326507024, %v3358
    %v3374 = vor.u32 %v3372, %v3373
    %vm3375 = vcmp.lt.s32.totalorder %v3356, 1
    %vm3376 = vcmp.lt.s32.totalorder %v3356, 2
    %vm3377 = vcmp.lt.s32.totalorder %v3356, 3
    %vm3378 = vcmp.lt.s32.totalorder %v3356, 4
    %v3379 = vsel %vm3375, %v3359, %v3362
    %v3380 = vsel %vm3378, %v3368, 2102212464
    %v3381 = vsel %vm3377, %v3365, %v3380
    %v3382 = vsel %vm3376, %v3379, %v3381
    %v3383 = vsel %vm3375, %v3362, %v3365
    %v3384 = vsel %vm3378, %v3371, 920167782
    %v3385 = vsel %vm3377, %v3368, %v3384
    %v3386 = vsel %vm3376, %v3383, %v3385
    %v3387 = vsel %vm3375, %v3365, %v3368
    %v3388 = vsel %vm3378, %v3374, 1326507024
    %v3389 = vsel %vm3377, %v3371, %v3388
    %v3390 = vsel %vm3376, %v3387, %v3389
    %v3391 = vshll.u32 %v3351, 8
    %v3392 = vmul.u32.u64.compose %v3391, %v3390
    %v3393 = vextract.low.u32 %v3392
    %v3394 = vextract.high.u32 %v3392
    %v3395 = vmul.u32.u64.compose %v3391, %v3386
    %v3396 = vextract.low.u32 %v3395
    %v3397 = vextract.high.u32 %v3395
    %v3398 = vmul.u32 %v3391, %v3382
    %v3399 = vadd.s32 %v3394, %v3396
    %vm3400 = vc.u32 %v3394, %v3396
    %v3401 = vadd.s32 %v3397, 1
    %v3402 = vsel %vm3400, %v3401, %v3397
    %v3403 = vadd.s32 %v3398, %v3402
    %v3404 = vadd.s32 %v3403, 536870912
    %v3405 = vshrl.u32 %v3404, 30
    %v3406 = vshll.u32 %v3405, 30
    %v3407 = vsub.s32 %v3403, %v3406
    %vm3408 = vcmp.lt.s32.totalorder %v3407, 0
    %v3409 = vsub.s32 0, %v3407
    %v3410 = vsel %vm3408, %v3409, %v3407
    %v3411 = vclz %v3410
    %v3412 = vsub.s32 %v3411, 2
    %vm3413 = vcmp.gt.s32.totalorder 0, %v3412
    %v3414 = vsel %vm3413, 0, %v3412
    %v3415 = vsub.s32 32, %v3414
    %v3416 = vshll.u32 %v3407, %v3414
    %v3417 = vshrl.u32 %v3399, %v3415
    %v3418 = vor.u32 %v3416, %v3417
    %v3419 = vsub.s32 4294967266, %v3414
    %v3420 = vadd.s32 %v3419, 127
    %v3421 = vshll.u32 %v3420, 23
    %v3422 = vor.u32 4788187, %v3421
    %v3423 = vand.u32 2147483647, %v3422
    %v3425 = vcvt.s32.f32 %v3418
    %v3426 = vmul.f32 %v3425, %v3423
    %v3427 = vxor.u32 %v3426, 2147483648
    %v3428 = vsel %vm3345, %v3427, %v3426
    %v3429 = vsub.s32 4, %v3405
    %v3430 = vsel %vm3345, %v3429, %v3405
    %v3431 = vsel %vm3344, %v2866, %v3428
    %v3432 = vsel %vm3344, 0, %v3430
    %v3433 = vcosq.f32.pop %v3431
    %v3434 = vsinq.f32.pop %v3431
    %vm3435 = vweird.f32 %v2866
    %v3436 = vadd.s32 %v3432, 3
    %v3437 = vand.u32 %v3436, 3
    %vm3438 = vcmp.lt.s32.totalorder %v3437, 2
    %vm3439 = vcmp.eq.s32.totalorder %v3437, 0
    %v3440 = vxor.u32 %v3434, 2147483648
    %v3441 = vsel %vm3439, %v3433, %v3440
    %vm3442 = vcmp.eq.s32.totalorder %v3437, 2
    %v3443 = vxor.u32 %v3433, 2147483648
    %v3444 = vsel %vm3442, %v3443, %v3434
    %v3445 = vsel %vm3438, %v3441, %v3444
    %v3446 = vsel %vm3435, nan, %v3445
    %v3447 = vand.u32 2147483647, %v2916
    %vm3448 = vcmp.le.f32.partialorder %v3447, 0.7853982
    %vm3449 = vcmp.lt.s32.totalorder %v2916, 0
    %v3450 = vand.u32 %v2916, 2139095040
    %v3451 = vshrl.u32 %v3450, 23
    %v3452 = vsub.s32 %v3451, 127
    %v3453 = vand.u32 2147483647, %v2916
    %v3454 = vand.u32 %v3453, 8388607
    %v3455 = vor.u32 %v3454, 8388608
    %v3456 = vsub.s32 0, %v3455
    %v3457 = vadd.s32 %v3452, 1
    %vm3458 = vcmp.gt.s32.totalorder %v3457, 0
    %v3459 = vsel %vm3458, %v3457, 0
    %v3460 = vshrl.u32 %v3459, 5
    %v3461 = vand.u32 %v3459, 31
    %v3462 = vsub.s32 32, %v3461
    %v3463 = vshrl.u32 683565275, %v3462
    %v3464 = vshll.u32 683565275, %v3461
    %v3465 = vshrl.u32 2475754826, %v3462
    %v3466 = vor.u32 %v3464, %v3465
    %v3467 = vshll.u32 2475754826, %v3461
    %v3468 = vshrl.u32 2131351028, %v3462
    %v3469 = vor.u32 %v3467, %v3468
    %v3470 = vshll.u32 2131351028, %v3461
    %v3471 = vshrl.u32 2102212464, %v3462
    %v3472 = vor.u32 %v3470, %v3471
    %v3473 = vshll.u32 2102212464, %v3461
    %v3474 = vshrl.u32 920167782, %v3462
    %v3475 = vor.u32 %v3473, %v3474
    %v3476 = vshll.u32 920167782, %v3461
    %v3477 = vshrl.u32 1326507024, %v3462
    %v3478 = vor.u32 %v3476, %v3477
    %vm3479 = vcmp.lt.s32.totalorder %v3460, 1
    %vm3480 = vcmp.lt.s32.totalorder %v3460, 2
    %vm3481 = vcmp.lt.s32.totalorder %v3460, 3
    %vm3482 = vcmp.lt.s32.totalorder %v3460, 4
    %v3483 = vsel %vm3479, %v3463, %v3466
    %v3484 = vsel %vm3482, %v3472, 2102212464
    %v3485 = vsel %vm3481, %v3469, %v3484
    %v3486 = vsel %vm3480, %v3483, %v3485
    %v3487 = vsel %vm3479, %v3466, %v3469
    %v3488 = vsel %vm3482, %v3475, 920167782
    %v3489 = vsel %vm3481, %v3472, %v3488
    %v3490 = vsel %vm3480, %v3487, %v3489
    %v3491 = vsel %vm3479, %v3469, %v3472
    %v3492 = vsel %vm3482, %v3478, 1326507024
    %v3493 = vsel %vm3481, %v3475, %v3492
    %v3494 = vsel %vm3480, %v3491, %v3493
    %v3495 = vshll.u32 %v3455, 8
    %v3496 = vmul.u32.u64.compose %v3495, %v3494
    %v3497 = vextract.low.u32 %v3496
    %v3498 = vextract.high.u32 %v3496
    %v3499 = vmul.u32.u64.compose %v3495, %v3490
    %v3500 = vextract.low.u32 %v3499
    %v3501 = vextract.high.u32 %v3499
    %v3502 = vmul.u32 %v3495, %v3486
    %v3503 = vadd.s32 %v3498, %v3500
    %vm3504 = vc.u32 %v3498, %v3500
    %v3505 = vadd.s32 %v3501, 1
    %v3506 = vsel %vm3504, %v3505, %v3501
    %v3507 = vadd.s32 %v3502, %v3506
    %v3508 = vadd.s32 %v3507, 536870912
    %v3509 = vshrl.u32 %v3508, 30
    %v3510 = vshll.u32 %v3509, 30
    %v3511 = vsub.s32 %v3507, %v3510
    %vm3512 = vcmp.lt.s32.totalorder %v3511, 0
    %v3513 = vsub.s32 0, %v3511
    %v3514 = vsel %vm3512, %v3513, %v3511
    %v3515 = vclz %v3514
    %v3516 = vsub.s32 %v3515, 2
    %vm3517 = vcmp.gt.s32.totalorder 0, %v3516
    %v3518 = vsel %vm3517, 0, %v3516
    %v3519 = vsub.s32 32, %v3518
    %v3520 = vshll.u32 %v3511, %v3518
    %v3521 = vshrl.u32 %v3503, %v3519
    %v3522 = vor.u32 %v3520, %v3521
    %v3523 = vsub.s32 4294967266, %v3518
    %v3524 = vadd.s32 %v3523, 127
    %v3525 = vshll.u32 %v3524, 23
    %v3526 = vor.u32 4788187, %v3525
    %v3527 = vand.u32 2147483647, %v3526
    %v3529 = vcvt.s32.f32 %v3522
    %v3530 = vmul.f32 %v3529, %v3527
    %v3531 = vxor.u32 %v3530, 2147483648
    %v3532 = vsel %vm3449, %v3531, %v3530
    %v3533 = vsub.s32 4, %v3509
    %v3534 = vsel %vm3449, %v3533, %v3509
    %v3535 = vsel %vm3448, %v2916, %v3532
    %v3536 = vsel %vm3448, 0, %v3534
    %v3537 = vcosq.f32.pop %v3535
    %v3538 = vsinq.f32.pop %v3535
    %vm3539 = vweird.f32 %v2916
    %v3540 = vadd.s32 %v3536, 3
    %v3541 = vand.u32 %v3540, 3
    %vm3542 = vcmp.lt.s32.totalorder %v3541, 2
    %vm3543 = vcmp.eq.s32.totalorder %v3541, 0
    %v3544 = vxor.u32 %v3538, 2147483648
    %v3545 = vsel %vm3543, %v3537, %v3544
    %vm3546 = vcmp.eq.s32.totalorder %v3541, 2
    %v3547 = vxor.u32 %v3537, 2147483648
    %v3548 = vsel %vm3546, %v3547, %v3538
    %v3549 = vsel %vm3542, %v3545, %v3548
    %v3550 = vsel %vm3539, nan, %v3549
    %v3551 = vand.u32 2147483647, %v2870
    %vm3552 = vcmp.le.f32.partialorder %v3551, 0.7853982
    %vm3553 = vcmp.lt.s32.totalorder %v2870, 0
    %v3554 = vand.u32 %v2870, 2139095040
    %v3555 = vshrl.u32 %v3554, 23
    %v3556 = vsub.s32 %v3555, 127
    %v3557 = vand.u32 2147483647, %v2870
    %v3558 = vand.u32 %v3557, 8388607
    %v3559 = vor.u32 %v3558, 8388608
    %v3560 = vsub.s32 0, %v3559
    %v3561 = vadd.s32 %v3556, 1
    %vm3562 = vcmp.gt.s32.totalorder %v3561, 0
    %v3563 = vsel %vm3562, %v3561, 0
    %v3564 = vshrl.u32 %v3563, 5
    %v3565 = vand.u32 %v3563, 31
    %v3566 = vsub.s32 32, %v3565
    %v3567 = vshrl.u32 683565275, %v3566
    %v3568 = vshll.u32 683565275, %v3565
    %v3569 = vshrl.u32 2475754826, %v3566
    %v3570 = vor.u32 %v3568, %v3569
    %v3571 = vshll.u32 2475754826, %v3565
    %v3572 = vshrl.u32 2131351028, %v3566
    %v3573 = vor.u32 %v3571, %v3572
    %v3574 = vshll.u32 2131351028, %v3565
    %v3575 = vshrl.u32 2102212464, %v3566
    %v3576 = vor.u32 %v3574, %v3575
    %v3577 = vshll.u32 2102212464, %v3565
    %v3578 = vshrl.u32 920167782, %v3566
    %v3579 = vor.u32 %v3577, %v3578
    %v3580 = vshll.u32 920167782, %v3565
    %v3581 = vshrl.u32 1326507024, %v3566
    %v3582 = vor.u32 %v3580, %v3581
    %vm3583 = vcmp.lt.s32.totalorder %v3564, 1
    %vm3584 = vcmp.lt.s32.totalorder %v3564, 2
    %vm3585 = vcmp.lt.s32.totalorder %v3564, 3
    %vm3586 = vcmp.lt.s32.totalorder %v3564, 4
    %v3587 = vsel %vm3583, %v3567, %v3570
    %v3588 = vsel %vm3586, %v3576, 2102212464
    %v3589 = vsel %vm3585, %v3573, %v3588
    %v3590 = vsel %vm3584, %v3587, %v3589
    %v3591 = vsel %vm3583, %v3570, %v3573
    %v3592 = vsel %vm3586, %v3579, 920167782
    %v3593 = vsel %vm3585, %v3576, %v3592
    %v3594 = vsel %vm3584, %v3591, %v3593
    %v3595 = vsel %vm3583, %v3573, %v3576
    %v3596 = vsel %vm3586, %v3582, 1326507024
    %v3597 = vsel %vm3585, %v3579, %v3596
    %v3598 = vsel %vm3584, %v3595, %v3597
    %v3599 = vshll.u32 %v3559, 8
    %v3600 = vmul.u32.u64.compose %v3599, %v3598
    %v3601 = vextract.low.u32 %v3600
    %v3602 = vextract.high.u32 %v3600
    %v3603 = vmul.u32.u64.compose %v3599, %v3594
    %v3604 = vextract.low.u32 %v3603
    %v3605 = vextract.high.u32 %v3603
    %v3606 = vmul.u32 %v3599, %v3590
    %v3607 = vadd.s32 %v3602, %v3604
    %vm3608 = vc.u32 %v3602, %v3604
    %v3609 = vadd.s32 %v3605, 1
    %v3610 = vsel %vm3608, %v3609, %v3605
    %v3611 = vadd.s32 %v3606, %v3610
    %v3612 = vadd.s32 %v3611, 536870912
    %v3613 = vshrl.u32 %v3612, 30
    %v3614 = vshll.u32 %v3613, 30
    %v3615 = vsub.s32 %v3611, %v3614
    %vm3616 = vcmp.lt.s32.totalorder %v3615, 0
    %v3617 = vsub.s32 0, %v3615
    %v3618 = vsel %vm3616, %v3617, %v3615
    %v3619 = vclz %v3618
    %v3620 = vsub.s32 %v3619, 2
    %vm3621 = vcmp.gt.s32.totalorder 0, %v3620
    %v3622 = vsel %vm3621, 0, %v3620
    %v3623 = vsub.s32 32, %v3622
    %v3624 = vshll.u32 %v3615, %v3622
    %v3625 = vshrl.u32 %v3607, %v3623
    %v3626 = vor.u32 %v3624, %v3625
    %v3627 = vsub.s32 4294967266, %v3622
    %v3628 = vadd.s32 %v3627, 127
    %v3629 = vshll.u32 %v3628, 23
    %v3630 = vor.u32 4788187, %v3629
    %v3631 = vand.u32 2147483647, %v3630
    %v3633 = vcvt.s32.f32 %v3626
    %v3634 = vmul.f32 %v3633, %v3631
    %v3635 = vxor.u32 %v3634, 2147483648
    %v3636 = vsel %vm3553, %v3635, %v3634
    %v3637 = vsub.s32 4, %v3613
    %v3638 = vsel %vm3553, %v3637, %v3613
    %v3639 = vsel %vm3552, %v2870, %v3636
    %v3640 = vsel %vm3552, 0, %v3638
    %v3641 = vcosq.f32.pop %v3639
    %v3642 = vsinq.f32.pop %v3639
    %vm3643 = vweird.f32 %v2870
    %v3644 = vadd.s32 %v3640, 3
    %v3645 = vand.u32 %v3644, 3
    %vm3646 = vcmp.lt.s32.totalorder %v3645, 2
    %vm3647 = vcmp.eq.s32.totalorder %v3645, 0
    %v3648 = vxor.u32 %v3642, 2147483648
    %v3649 = vsel %vm3647, %v3641, %v3648
    %vm3650 = vcmp.eq.s32.totalorder %v3645, 2
    %v3651 = vxor.u32 %v3641, 2147483648
    %v3652 = vsel %vm3650, %v3651, %v3642
    %v3653 = vsel %vm3646, %v3649, %v3652
    %v3654 = vsel %vm3643, nan, %v3653
    %v3655 = vand.u32 2147483647, %v2872
    %vm3656 = vcmp.le.f32.partialorder %v3655, 0.7853982
    %vm3657 = vcmp.lt.s32.totalorder %v2872, 0
    %v3658 = vand.u32 %v2872, 2139095040
    %v3659 = vshrl.u32 %v3658, 23
    %v3660 = vsub.s32 %v3659, 127
    %v3661 = vand.u32 2147483647, %v2872
    %v3662 = vand.u32 %v3661, 8388607
    %v3663 = vor.u32 %v3662, 8388608
    %v3664 = vsub.s32 0, %v3663
    %v3665 = vadd.s32 %v3660, 1
    %vm3666 = vcmp.gt.s32.totalorder %v3665, 0
    %v3667 = vsel %vm3666, %v3665, 0
    %v3668 = vshrl.u32 %v3667, 5
    %v3669 = vand.u32 %v3667, 31
    %v3670 = vsub.s32 32, %v3669
    %v3671 = vshrl.u32 683565275, %v3670
    %v3672 = vshll.u32 683565275, %v3669
    %v3673 = vshrl.u32 2475754826, %v3670
    %v3674 = vor.u32 %v3672, %v3673
    %v3675 = vshll.u32 2475754826, %v3669
    %v3676 = vshrl.u32 2131351028, %v3670
    %v3677 = vor.u32 %v3675, %v3676
    %v3678 = vshll.u32 2131351028, %v3669
    %v3679 = vshrl.u32 2102212464, %v3670
    %v3680 = vor.u32 %v3678, %v3679
    %v3681 = vshll.u32 2102212464, %v3669
    %v3682 = vshrl.u32 920167782, %v3670
    %v3683 = vor.u32 %v3681, %v3682
    %v3684 = vshll.u32 920167782, %v3669
    %v3685 = vshrl.u32 1326507024, %v3670
    %v3686 = vor.u32 %v3684, %v3685
    %vm3687 = vcmp.lt.s32.totalorder %v3668, 1
    %vm3688 = vcmp.lt.s32.totalorder %v3668, 2
    %vm3689 = vcmp.lt.s32.totalorder %v3668, 3
    %vm3690 = vcmp.lt.s32.totalorder %v3668, 4
    %v3691 = vsel %vm3687, %v3671, %v3674
    %v3692 = vsel %vm3690, %v3680, 2102212464
    %v3693 = vsel %vm3689, %v3677, %v3692
    %v3694 = vsel %vm3688, %v3691, %v3693
    %v3695 = vsel %vm3687, %v3674, %v3677
    %v3696 = vsel %vm3690, %v3683, 920167782
    %v3697 = vsel %vm3689, %v3680, %v3696
    %v3698 = vsel %vm3688, %v3695, %v3697
    %v3699 = vsel %vm3687, %v3677, %v3680
    %v3700 = vsel %vm3690, %v3686, 1326507024
    %v3701 = vsel %vm3689, %v3683, %v3700
    %v3702 = vsel %vm3688, %v3699, %v3701
    %v3703 = vshll.u32 %v3663, 8
    %v3704 = vmul.u32.u64.compose %v3703, %v3702
    %v3705 = vextract.low.u32 %v3704
    %v3706 = vextract.high.u32 %v3704
    %v3707 = vmul.u32.u64.compose %v3703, %v3698
    %v3708 = vextract.low.u32 %v3707
    %v3709 = vextract.high.u32 %v3707
    %v3710 = vmul.u32 %v3703, %v3694
    %v3711 = vadd.s32 %v3706, %v3708
    %vm3712 = vc.u32 %v3706, %v3708
    %v3713 = vadd.s32 %v3709, 1
    %v3714 = vsel %vm3712, %v3713, %v3709
    %v3715 = vadd.s32 %v3710, %v3714
    %v3716 = vadd.s32 %v3715, 536870912
    %v3717 = vshrl.u32 %v3716, 30
    %v3718 = vshll.u32 %v3717, 30
    %v3719 = vsub.s32 %v3715, %v3718
    %vm3720 = vcmp.lt.s32.totalorder %v3719, 0
    %v3721 = vsub.s32 0, %v3719
    %v3722 = vsel %vm3720, %v3721, %v3719
    %v3723 = vclz %v3722
    %v3724 = vsub.s32 %v3723, 2
    %vm3725 = vcmp.gt.s32.totalorder 0, %v3724
    %v3726 = vsel %vm3725, 0, %v3724
    %v3727 = vsub.s32 32, %v3726
    %v3728 = vshll.u32 %v3719, %v3726
    %v3729 = vshrl.u32 %v3711, %v3727
    %v3730 = vor.u32 %v3728, %v3729
    %v3731 = vsub.s32 4294967266, %v3726
    %v3732 = vadd.s32 %v3731, 127
    %v3733 = vshll.u32 %v3732, 23
    %v3734 = vor.u32 4788187, %v3733
    %v3735 = vand.u32 2147483647, %v3734
    %v3737 = vcvt.s32.f32 %v3730
    %v3738 = vmul.f32 %v3737, %v3735
    %v3739 = vxor.u32 %v3738, 2147483648
    %v3740 = vsel %vm3657, %v3739, %v3738
    %v3741 = vsub.s32 4, %v3717
    %v3742 = vsel %vm3657, %v3741, %v3717
    %v3743 = vsel %vm3656, %v2872, %v3740
    %v3744 = vsel %vm3656, 0, %v3742
    %v3745 = vcosq.f32.pop %v3743
    %v3746 = vsinq.f32.pop %v3743
    %vm3747 = vweird.f32 %v2872
    %v3748 = vadd.s32 %v3744, 3
    %v3749 = vand.u32 %v3748, 3
    %vm3750 = vcmp.lt.s32.totalorder %v3749, 2
    %vm3751 = vcmp.eq.s32.totalorder %v3749, 0
    %v3752 = vxor.u32 %v3746, 2147483648
    %v3753 = vsel %vm3751, %v3745, %v3752
    %vm3754 = vcmp.eq.s32.totalorder %v3749, 2
    %v3755 = vxor.u32 %v3745, 2147483648
    %v3756 = vsel %vm3754, %v3755, %v3746
    %v3757 = vsel %vm3750, %v3753, %v3756
    %v3758 = vsel %vm3747, nan, %v3757
    %v3759 = vand.u32 2147483647, %v2921
    %vm3760 = vcmp.le.f32.partialorder %v3759, 0.7853982
    %vm3761 = vcmp.lt.s32.totalorder %v2921, 0
    %v3762 = vand.u32 %v2921, 2139095040
    %v3763 = vshrl.u32 %v3762, 23
    %v3764 = vsub.s32 %v3763, 127
    %v3765 = vand.u32 2147483647, %v2921
    %v3766 = vand.u32 %v3765, 8388607
    %v3767 = vor.u32 %v3766, 8388608
    %v3768 = vsub.s32 0, %v3767
    %v3769 = vadd.s32 %v3764, 1
    %vm3770 = vcmp.gt.s32.totalorder %v3769, 0
    %v3771 = vsel %vm3770, %v3769, 0
    %v3772 = vshrl.u32 %v3771, 5
    %v3773 = vand.u32 %v3771, 31
    %v3774 = vsub.s32 32, %v3773
    %v3775 = vshrl.u32 683565275, %v3774
    %v3776 = vshll.u32 683565275, %v3773
    %v3777 = vshrl.u32 2475754826, %v3774
    %v3778 = vor.u32 %v3776, %v3777
    %v3779 = vshll.u32 2475754826, %v3773
    %v3780 = vshrl.u32 2131351028, %v3774
    %v3781 = vor.u32 %v3779, %v3780
    %v3782 = vshll.u32 2131351028, %v3773
    %v3783 = vshrl.u32 2102212464, %v3774
    %v3784 = vor.u32 %v3782, %v3783
    %v3785 = vshll.u32 2102212464, %v3773
    %v3786 = vshrl.u32 920167782, %v3774
    %v3787 = vor.u32 %v3785, %v3786
    %v3788 = vshll.u32 920167782, %v3773
    %v3789 = vshrl.u32 1326507024, %v3774
    %v3790 = vor.u32 %v3788, %v3789
    %vm3791 = vcmp.lt.s32.totalorder %v3772, 1
    %vm3792 = vcmp.lt.s32.totalorder %v3772, 2
    %vm3793 = vcmp.lt.s32.totalorder %v3772, 3
    %vm3794 = vcmp.lt.s32.totalorder %v3772, 4
    %v3795 = vsel %vm3791, %v3775, %v3778
    %v3796 = vsel %vm3794, %v3784, 2102212464
    %v3797 = vsel %vm3793, %v3781, %v3796
    %v3798 = vsel %vm3792, %v3795, %v3797
    %v3799 = vsel %vm3791, %v3778, %v3781
    %v3800 = vsel %vm3794, %v3787, 920167782
    %v3801 = vsel %vm3793, %v3784, %v3800
    %v3802 = vsel %vm3792, %v3799, %v3801
    %v3803 = vsel %vm3791, %v3781, %v3784
    %v3804 = vsel %vm3794, %v3790, 1326507024
    %v3805 = vsel %vm3793, %v3787, %v3804
    %v3806 = vsel %vm3792, %v3803, %v3805
    %v3807 = vshll.u32 %v3767, 8
    %v3808 = vmul.u32.u64.compose %v3807, %v3806
    %v3809 = vextract.low.u32 %v3808
    %v3810 = vextract.high.u32 %v3808
    %v3811 = vmul.u32.u64.compose %v3807, %v3802
    %v3812 = vextract.low.u32 %v3811
    %v3813 = vextract.high.u32 %v3811
    %v3814 = vmul.u32 %v3807, %v3798
    %v3815 = vadd.s32 %v3810, %v3812
    %vm3816 = vc.u32 %v3810, %v3812
    %v3817 = vadd.s32 %v3813, 1
    %v3818 = vsel %vm3816, %v3817, %v3813
    %v3819 = vadd.s32 %v3814, %v3818
    %v3820 = vadd.s32 %v3819, 536870912
    %v3821 = vshrl.u32 %v3820, 30
    %v3822 = vshll.u32 %v3821, 30
    %v3823 = vsub.s32 %v3819, %v3822
    %vm3824 = vcmp.lt.s32.totalorder %v3823, 0
    %v3825 = vsub.s32 0, %v3823
    %v3826 = vsel %vm3824, %v3825, %v3823
    %v3827 = vclz %v3826
    %v3828 = vsub.s32 %v3827, 2
    %vm3829 = vcmp.gt.s32.totalorder 0, %v3828
    %v3830 = vsel %vm3829, 0, %v3828
    %v3831 = vsub.s32 32, %v3830
    %v3832 = vshll.u32 %v3823, %v3830
    %v3833 = vshrl.u32 %v3815, %v3831
    %v3834 = vor.u32 %v3832, %v3833
    %v3835 = vsub.s32 4294967266, %v3830
    %v3836 = vadd.s32 %v3835, 127
    %v3837 = vshll.u32 %v3836, 23
    %v3838 = vor.u32 4788187, %v3837
    %v3839 = vand.u32 2147483647, %v3838
    %v3841 = vcvt.s32.f32 %v3834
    %v3842 = vmul.f32 %v3841, %v3839
    %v3843 = vxor.u32 %v3842, 2147483648
    %v3844 = vsel %vm3761, %v3843, %v3842
    %v3845 = vsub.s32 4, %v3821
    %v3846 = vsel %vm3761, %v3845, %v3821
    %v3847 = vsel %vm3760, %v2921, %v3844
    %v3848 = vsel %vm3760, 0, %v3846
    %v3849 = vcosq.f32.pop %v3847
    %v3850 = vsinq.f32.pop %v3847
    %vm3851 = vweird.f32 %v2921
    %v3852 = vadd.s32 %v3848, 3
    %v3853 = vand.u32 %v3852, 3
    %vm3854 = vcmp.lt.s32.totalorder %v3853, 2
    %vm3855 = vcmp.eq.s32.totalorder %v3853, 0
    %v3856 = vxor.u32 %v3850, 2147483648
    %v3857 = vsel %vm3855, %v3849, %v3856
    %vm3858 = vcmp.eq.s32.totalorder %v3853, 2
    %v3859 = vxor.u32 %v3849, 2147483648
    %v3860 = vsel %vm3858, %v3859, %v3850
    %v3861 = vsel %vm3854, %v3857, %v3860
    %v3862 = vsel %vm3851, nan, %v3861
    %v3863 = vand.u32 2147483647, %v2874
    %vm3864 = vcmp.le.f32.partialorder %v3863, 0.7853982
    %vm3865 = vcmp.lt.s32.totalorder %v2874, 0
    %v3866 = vand.u32 %v2874, 2139095040
    %v3867 = vshrl.u32 %v3866, 23
    %v3868 = vsub.s32 %v3867, 127
    %v3869 = vand.u32 2147483647, %v2874
    %v3870 = vand.u32 %v3869, 8388607
    %v3871 = vor.u32 %v3870, 8388608
    %v3872 = vsub.s32 0, %v3871
    %v3873 = vadd.s32 %v3868, 1
    %vm3874 = vcmp.gt.s32.totalorder %v3873, 0
    %v3875 = vsel %vm3874, %v3873, 0
    %v3876 = vshrl.u32 %v3875, 5
    %v3877 = vand.u32 %v3875, 31
    %v3878 = vsub.s32 32, %v3877
    %v3879 = vshrl.u32 683565275, %v3878
    %v3880 = vshll.u32 683565275, %v3877
    %v3881 = vshrl.u32 2475754826, %v3878
    %v3882 = vor.u32 %v3880, %v3881
    %v3883 = vshll.u32 2475754826, %v3877
    %v3884 = vshrl.u32 2131351028, %v3878
    %v3885 = vor.u32 %v3883, %v3884
    %v3886 = vshll.u32 2131351028, %v3877
    %v3887 = vshrl.u32 2102212464, %v3878
    %v3888 = vor.u32 %v3886, %v3887
    %v3889 = vshll.u32 2102212464, %v3877
    %v3890 = vshrl.u32 920167782, %v3878
    %v3891 = vor.u32 %v3889, %v3890
    %v3892 = vshll.u32 920167782, %v3877
    %v3893 = vshrl.u32 1326507024, %v3878
    %v3894 = vor.u32 %v3892, %v3893
    %vm3895 = vcmp.lt.s32.totalorder %v3876, 1
    %vm3896 = vcmp.lt.s32.totalorder %v3876, 2
    %vm3897 = vcmp.lt.s32.totalorder %v3876, 3
    %vm3898 = vcmp.lt.s32.totalorder %v3876, 4
    %v3899 = vsel %vm3895, %v3879, %v3882
    %v3900 = vsel %vm3898, %v3888, 2102212464
    %v3901 = vsel %vm3897, %v3885, %v3900
    %v3902 = vsel %vm3896, %v3899, %v3901
    %v3903 = vsel %vm3895, %v3882, %v3885
    %v3904 = vsel %vm3898, %v3891, 920167782
    %v3905 = vsel %vm3897, %v3888, %v3904
    %v3906 = vsel %vm3896, %v3903, %v3905
    %v3907 = vsel %vm3895, %v3885, %v3888
    %v3908 = vsel %vm3898, %v3894, 1326507024
    %v3909 = vsel %vm3897, %v3891, %v3908
    %v3910 = vsel %vm3896, %v3907, %v3909
    %v3911 = vshll.u32 %v3871, 8
    %v3912 = vmul.u32.u64.compose %v3911, %v3910
    %v3913 = vextract.low.u32 %v3912
    %v3914 = vextract.high.u32 %v3912
    %v3915 = vmul.u32.u64.compose %v3911, %v3906
    %v3916 = vextract.low.u32 %v3915
    %v3917 = vextract.high.u32 %v3915
    %v3918 = vmul.u32 %v3911, %v3902
    %v3919 = vadd.s32 %v3914, %v3916
    %vm3920 = vc.u32 %v3914, %v3916
    %v3921 = vadd.s32 %v3917, 1
    %v3922 = vsel %vm3920, %v3921, %v3917
    %v3923 = vadd.s32 %v3918, %v3922
    %v3924 = vadd.s32 %v3923, 536870912
    %v3925 = vshrl.u32 %v3924, 30
    %v3926 = vshll.u32 %v3925, 30
    %v3927 = vsub.s32 %v3923, %v3926
    %vm3928 = vcmp.lt.s32.totalorder %v3927, 0
    %v3929 = vsub.s32 0, %v3927
    %v3930 = vsel %vm3928, %v3929, %v3927
    %v3931 = vclz %v3930
    %v3932 = vsub.s32 %v3931, 2
    %vm3933 = vcmp.gt.s32.totalorder 0, %v3932
    %v3934 = vsel %vm3933, 0, %v3932
    %v3935 = vsub.s32 32, %v3934
    %v3936 = vshll.u32 %v3927, %v3934
    %v3937 = vshrl.u32 %v3919, %v3935
    %v3938 = vor.u32 %v3936, %v3937
    %v3939 = vsub.s32 4294967266, %v3934
    %v3940 = vadd.s32 %v3939, 127
    %v3941 = vshll.u32 %v3940, 23
    %v3942 = vor.u32 4788187, %v3941
    %v3943 = vand.u32 2147483647, %v3942
    %v3945 = vcvt.s32.f32 %v3938
    %v3946 = vmul.f32 %v3945, %v3943
    %v3947 = vxor.u32 %v3946, 2147483648
    %v3948 = vsel %vm3865, %v3947, %v3946
    %v3949 = vsub.s32 4, %v3925
    %v3950 = vsel %vm3865, %v3949, %v3925
    %v3951 = vsel %vm3864, %v2874, %v3948
    %v3952 = vsel %vm3864, 0, %v3950
    %v3953 = vcosq.f32.pop %v3951
    %v3954 = vsinq.f32.pop %v3951
    %vm3955 = vweird.f32 %v2874
    %v3956 = vadd.s32 %v3952, 3
    %v3957 = vand.u32 %v3956, 3
    %vm3958 = vcmp.lt.s32.totalorder %v3957, 2
    %vm3959 = vcmp.eq.s32.totalorder %v3957, 0
    %v3960 = vxor.u32 %v3954, 2147483648
    %v3961 = vsel %vm3959, %v3953, %v3960
    %vm3962 = vcmp.eq.s32.totalorder %v3957, 2
    %v3963 = vxor.u32 %v3953, 2147483648
    %v3964 = vsel %vm3962, %v3963, %v3954
    %v3965 = vsel %vm3958, %v3961, %v3964
    %v3966 = vsel %vm3955, nan, %v3965
    %v3967 = vand.u32 2147483647, %v2876
    %vm3968 = vcmp.le.f32.partialorder %v3967, 0.7853982
    %vm3969 = vcmp.lt.s32.totalorder %v2876, 0
    %v3970 = vand.u32 %v2876, 2139095040
    %v3971 = vshrl.u32 %v3970, 23
    %v3972 = vsub.s32 %v3971, 127
    %v3973 = vand.u32 2147483647, %v2876
    %v3974 = vand.u32 %v3973, 8388607
    %v3975 = vor.u32 %v3974, 8388608
    %v3976 = vsub.s32 0, %v3975
    %v3977 = vadd.s32 %v3972, 1
    %vm3978 = vcmp.gt.s32.totalorder %v3977, 0
    %v3979 = vsel %vm3978, %v3977, 0
    %v3980 = vshrl.u32 %v3979, 5
    %v3981 = vand.u32 %v3979, 31
    %v3982 = vsub.s32 32, %v3981
    %v3983 = vshrl.u32 683565275, %v3982
    %v3984 = vshll.u32 683565275, %v3981
    %v3985 = vshrl.u32 2475754826, %v3982
    %v3986 = vor.u32 %v3984, %v3985
    %v3987 = vshll.u32 2475754826, %v3981
    %v3988 = vshrl.u32 2131351028, %v3982
    %v3989 = vor.u32 %v3987, %v3988
    %v3990 = vshll.u32 2131351028, %v3981
    %v3991 = vshrl.u32 2102212464, %v3982
    %v3992 = vor.u32 %v3990, %v3991
    %v3993 = vshll.u32 2102212464, %v3981
    %v3994 = vshrl.u32 920167782, %v3982
    %v3995 = vor.u32 %v3993, %v3994
    %v3996 = vshll.u32 920167782, %v3981
    %v3997 = vshrl.u32 1326507024, %v3982
    %v3998 = vor.u32 %v3996, %v3997
    %vm3999 = vcmp.lt.s32.totalorder %v3980, 1
    %vm4000 = vcmp.lt.s32.totalorder %v3980, 2
    %vm4001 = vcmp.lt.s32.totalorder %v3980, 3
    %vm4002 = vcmp.lt.s32.totalorder %v3980, 4
    %v4003 = vsel %vm3999, %v3983, %v3986
    %v4004 = vsel %vm4002, %v3992, 2102212464
    %v4005 = vsel %vm4001, %v3989, %v4004
    %v4006 = vsel %vm4000, %v4003, %v4005
    %v4007 = vsel %vm3999, %v3986, %v3989
    %v4008 = vsel %vm4002, %v3995, 920167782
    %v4009 = vsel %vm4001, %v3992, %v4008
    %v4010 = vsel %vm4000, %v4007, %v4009
    %v4011 = vsel %vm3999, %v3989, %v3992
    %v4012 = vsel %vm4002, %v3998, 1326507024
    %v4013 = vsel %vm4001, %v3995, %v4012
    %v4014 = vsel %vm4000, %v4011, %v4013
    %v4015 = vshll.u32 %v3975, 8
    %v4016 = vmul.u32.u64.compose %v4015, %v4014
    %v4017 = vextract.low.u32 %v4016
    %v4018 = vextract.high.u32 %v4016
    %v4019 = vmul.u32.u64.compose %v4015, %v4010
    %v4020 = vextract.low.u32 %v4019
    %v4021 = vextract.high.u32 %v4019
    %v4022 = vmul.u32 %v4015, %v4006
    %v4023 = vadd.s32 %v4018, %v4020
    %vm4024 = vc.u32 %v4018, %v4020
    %v4025 = vadd.s32 %v4021, 1
    %v4026 = vsel %vm4024, %v4025, %v4021
    %v4027 = vadd.s32 %v4022, %v4026
    %v4028 = vadd.s32 %v4027, 536870912
    %v4029 = vshrl.u32 %v4028, 30
    %v4030 = vshll.u32 %v4029, 30
    %v4031 = vsub.s32 %v4027, %v4030
    %vm4032 = vcmp.lt.s32.totalorder %v4031, 0
    %v4033 = vsub.s32 0, %v4031
    %v4034 = vsel %vm4032, %v4033, %v4031
    %v4035 = vclz %v4034
    %v4036 = vsub.s32 %v4035, 2
    %vm4037 = vcmp.gt.s32.totalorder 0, %v4036
    %v4038 = vsel %vm4037, 0, %v4036
    %v4039 = vsub.s32 32, %v4038
    %v4040 = vshll.u32 %v4031, %v4038
    %v4041 = vshrl.u32 %v4023, %v4039
    %v4042 = vor.u32 %v4040, %v4041
    %v4043 = vsub.s32 4294967266, %v4038
    %v4044 = vadd.s32 %v4043, 127
    %v4045 = vshll.u32 %v4044, 23
    %v4046 = vor.u32 4788187, %v4045
    %v4047 = vand.u32 2147483647, %v4046
    %v4049 = vcvt.s32.f32 %v4042
    %v4050 = vmul.f32 %v4049, %v4047
    %v4051 = vxor.u32 %v4050, 2147483648
    %v4052 = vsel %vm3969, %v4051, %v4050
    %v4053 = vsub.s32 4, %v4029
    %v4054 = vsel %vm3969, %v4053, %v4029
    %v4055 = vsel %vm3968, %v2876, %v4052
    %v4056 = vsel %vm3968, 0, %v4054
    %v4057 = vcosq.f32.pop %v4055
    %v4058 = vsinq.f32.pop %v4055
    %vm4059 = vweird.f32 %v2876
    %v4060 = vadd.s32 %v4056, 3
    %v4061 = vand.u32 %v4060, 3
    %vm4062 = vcmp.lt.s32.totalorder %v4061, 2
    %vm4063 = vcmp.eq.s32.totalorder %v4061, 0
    %v4064 = vxor.u32 %v4058, 2147483648
    %v4065 = vsel %vm4063, %v4057, %v4064
    %vm4066 = vcmp.eq.s32.totalorder %v4061, 2
    %v4067 = vxor.u32 %v4057, 2147483648
    %v4068 = vsel %vm4066, %v4067, %v4058
    %v4069 = vsel %vm4062, %v4065, %v4068
    %v4070 = vsel %vm4059, nan, %v4069
    %v4071 = vand.u32 2147483647, %v2924
    %vm4072 = vcmp.le.f32.partialorder %v4071, 0.7853982
    %vm4073 = vcmp.lt.s32.totalorder %v2924, 0
    %v4074 = vand.u32 %v2924, 2139095040
    %v4075 = vshrl.u32 %v4074, 23
    %v4076 = vsub.s32 %v4075, 127
    %v4077 = vand.u32 2147483647, %v2924
    %v4078 = vand.u32 %v4077, 8388607
    %v4079 = vor.u32 %v4078, 8388608
    %v4080 = vsub.s32 0, %v4079
    %v4081 = vadd.s32 %v4076, 1
    %vm4082 = vcmp.gt.s32.totalorder %v4081, 0
    %v4083 = vsel %vm4082, %v4081, 0
    %v4084 = vshrl.u32 %v4083, 5
    %v4085 = vand.u32 %v4083, 31
    %v4086 = vsub.s32 32, %v4085
    %v4087 = vshrl.u32 683565275, %v4086
    %v4088 = vshll.u32 683565275, %v4085
    %v4089 = vshrl.u32 2475754826, %v4086
    %v4090 = vor.u32 %v4088, %v4089
    %v4091 = vshll.u32 2475754826, %v4085
    %v4092 = vshrl.u32 2131351028, %v4086
    %v4093 = vor.u32 %v4091, %v4092
    %v4094 = vshll.u32 2131351028, %v4085
    %v4095 = vshrl.u32 2102212464, %v4086
    %v4096 = vor.u32 %v4094, %v4095
    %v4097 = vshll.u32 2102212464, %v4085
    %v4098 = vshrl.u32 920167782, %v4086
    %v4099 = vor.u32 %v4097, %v4098
    %v4100 = vshll.u32 920167782, %v4085
    %v4101 = vshrl.u32 1326507024, %v4086
    %v4102 = vor.u32 %v4100, %v4101
    %vm4103 = vcmp.lt.s32.totalorder %v4084, 1
    %vm4104 = vcmp.lt.s32.totalorder %v4084, 2
    %vm4105 = vcmp.lt.s32.totalorder %v4084, 3
    %vm4106 = vcmp.lt.s32.totalorder %v4084, 4
    %v4107 = vsel %vm4103, %v4087, %v4090
    %v4108 = vsel %vm4106, %v4096, 2102212464
    %v4109 = vsel %vm4105, %v4093, %v4108
    %v4110 = vsel %vm4104, %v4107, %v4109
    %v4111 = vsel %vm4103, %v4090, %v4093
    %v4112 = vsel %vm4106, %v4099, 920167782
    %v4113 = vsel %vm4105, %v4096, %v4112
    %v4114 = vsel %vm4104, %v4111, %v4113
    %v4115 = vsel %vm4103, %v4093, %v4096
    %v4116 = vsel %vm4106, %v4102, 1326507024
    %v4117 = vsel %vm4105, %v4099, %v4116
    %v4118 = vsel %vm4104, %v4115, %v4117
    %v4119 = vshll.u32 %v4079, 8
    %v4120 = vmul.u32.u64.compose %v4119, %v4118
    %v4121 = vextract.low.u32 %v4120
    %v4122 = vextract.high.u32 %v4120
    %v4123 = vmul.u32.u64.compose %v4119, %v4114
    %v4124 = vextract.low.u32 %v4123
    %v4125 = vextract.high.u32 %v4123
    %v4126 = vmul.u32 %v4119, %v4110
    %v4127 = vadd.s32 %v4122, %v4124
    %vm4128 = vc.u32 %v4122, %v4124
    %v4129 = vadd.s32 %v4125, 1
    %v4130 = vsel %vm4128, %v4129, %v4125
    %v4131 = vadd.s32 %v4126, %v4130
    %v4132 = vadd.s32 %v4131, 536870912
    %v4133 = vshrl.u32 %v4132, 30
    %v4134 = vshll.u32 %v4133, 30
    %v4135 = vsub.s32 %v4131, %v4134
    %vm4136 = vcmp.lt.s32.totalorder %v4135, 0
    %v4137 = vsub.s32 0, %v4135
    %v4138 = vsel %vm4136, %v4137, %v4135
    %v4139 = vclz %v4138
    %v4140 = vsub.s32 %v4139, 2
    %vm4141 = vcmp.gt.s32.totalorder 0, %v4140
    %v4142 = vsel %vm4141, 0, %v4140
    %v4143 = vsub.s32 32, %v4142
    %v4144 = vshll.u32 %v4135, %v4142
    %v4145 = vshrl.u32 %v4127, %v4143
    %v4146 = vor.u32 %v4144, %v4145
    %v4147 = vsub.s32 4294967266, %v4142
    %v4148 = vadd.s32 %v4147, 127
    %v4149 = vshll.u32 %v4148, 23
    %v4150 = vor.u32 4788187, %v4149
    %v4151 = vand.u32 2147483647, %v4150
    %v4153 = vcvt.s32.f32 %v4146
    %v4154 = vmul.f32 %v4153, %v4151
    %v4155 = vxor.u32 %v4154, 2147483648
    %v4156 = vsel %vm4073, %v4155, %v4154
    %v4157 = vsub.s32 4, %v4133
    %v4158 = vsel %vm4073, %v4157, %v4133
    %v4159 = vsel %vm4072, %v2924, %v4156
    %v4160 = vsel %vm4072, 0, %v4158
    %v4161 = vcosq.f32.pop %v4159
    %v4162 = vsinq.f32.pop %v4159
    %vm4163 = vweird.f32 %v2924
    %v4164 = vadd.s32 %v4160, 3
    %v4165 = vand.u32 %v4164, 3
    %vm4166 = vcmp.lt.s32.totalorder %v4165, 2
    %vm4167 = vcmp.eq.s32.totalorder %v4165, 0
    %v4168 = vxor.u32 %v4162, 2147483648
    %v4169 = vsel %vm4167, %v4161, %v4168
    %vm4170 = vcmp.eq.s32.totalorder %v4165, 2
    %v4171 = vxor.u32 %v4161, 2147483648
    %v4172 = vsel %vm4170, %v4171, %v4162
    %v4173 = vsel %vm4166, %v4169, %v4172
    %v4174 = vsel %vm4163, nan, %v4173
    %v4175 = vpack.c.bf16 %v1941, %v1629
    %v4176 = vpack.c.bf16 %v2045, %v1733
    %v4177 = vpack.c.bf16 %v2149, %v1837
    %v4178 = vpack.c.bf16 %v2565, %v2253
    %v4179 = vpack.c.bf16 %v2669, %v2357
    %v4180 = vpack.c.bf16 %v2773, %v2461
    %4181 = vmatprep.subr.bf16.mxu0 %v4176
    %4182 = vmatpush1.bf16.msra.mxu0 %v4175
    %4183 = vmatprep.subr.bf16.mxu0 %v4179
    %4184 = vmatpush1.bf16.msra.mxu0 %v4178
    %4185 = vmatprep.subr.bf16.mxu0 0
    %4186 = vmatpush1.bf16.msra.mxu0 0
    %4187 = vmatprep.subr.bf16.mxu0 0
    %4188 = vmatpush1.bf16.msra.mxu0 0
    %4189 = vmatprep.subr.bf16.mxu0 0
    %4190 = vmatpush1.bf16.msra.mxu0 0
    %4191 = vmatprep.subr.bf16.mxu0 0
    %4192 = vmatpush1.bf16.msra.mxu0 0
    %4193 = vmatprep.subr.bf16.mxu0 0
    %4194 = vmatpush1.bf16.msra.mxu0 0
    %4195 = vmatprep.subr.bf16.mxu0 0
    %4196 = vmatpush1.bf16.msra.mxu0 0
    %4197 = vmatprep.subr.bf16.mxu0 0
    %4198 = vmatpush1.bf16.msra.mxu0 0
    %4199 = vmatprep.subr.bf16.mxu0 0
    %4200 = vmatpush1.bf16.msra.mxu0 0
    %4201 = vmatprep.subr.bf16.mxu0 0
    %4202 = vmatpush1.bf16.msra.mxu0 0
    %4203 = vmatprep.subr.bf16.mxu0 0
    %4204 = vmatpush1.bf16.msra.mxu0 0
    %4205 = vmatprep.subr.bf16.mxu0 0
    %4206 = vmatpush1.bf16.msra.mxu0 0
    %4207 = vmatprep.subr.bf16.mxu0 0
    %4208 = vmatpush1.bf16.msra.mxu0 0
    %4209 = vmatprep.subr.bf16.mxu0 0
    %4210 = vmatpush1.bf16.msra.mxu0 0
    %4211 = vmatprep.subr.bf16.mxu0 0
    %4212 = vmatpush1.bf16.msra.mxu0 0
    %4213 = vmatprep.mubr.bf16.mxu0 0
    %4214 = vmatmul.mubr.bf16.gmra.mrb[0].mxu0 %v2820
    %v4215 = vpop.f32.mrb[0].mxu0
    %v4216 = vadd.f32 %v2791, %v4215
    %v4217 = vpop.f32.mrb[0].mxu0
    %v4218 = vadd.f32 %v2791, %v4217
    %v4219 = vpop.f32.mrb[0].mxu0
    %v4220 = vadd.f32 %v2796, %v4219
    %v4221 = vpop.f32.mrb[0].mxu0
    %v4222 = vadd.f32 %v2796, %v4221
    %4223 = vmatprep.mubr.bf16.mxu0 0
    %4224 = vmatmul.mubr.bf16.gmra.mrb[0].mxu0 %v2823
    %v4225 = vpop.f32.mrb[0].mxu0
    %v4226 = vadd.f32 %v2801, %v4225
    %v4227 = vpop.f32.mrb[0].mxu0
    %v4228 = vadd.f32 %v2801, %v4227
    %v4229 = vpop.f32.mrb[0].mxu0
    %v4230 = vadd.f32 %v2806, %v4229
    %v4231 = vpop.f32.mrb[0].mxu0
    %v4232 = vadd.f32 %v2806, %v4231
    %4233 = vdwg.mxu0
    %4234 = vmatprep.subr.bf16.mxu0 0
    %4235 = vmatpush1.bf16.msra.mxu0 %v4177
    %4236 = vmatprep.subr.bf16.mxu0 0
    %4237 = vmatpush1.bf16.msra.mxu0 %v4180
    %4238 = vmatprep.subr.bf16.mxu0 0
    %4239 = vmatpush1.bf16.msra.mxu0 0
    %4240 = vmatprep.subr.bf16.mxu0 0
    %4241 = vmatpush1.bf16.msra.mxu0 0
    %4242 = vmatprep.subr.bf16.mxu0 0
    %4243 = vmatpush1.bf16.msra.mxu0 0
    %4244 = vmatprep.subr.bf16.mxu0 0
    %4245 = vmatpush1.bf16.msra.mxu0 0
    %4246 = vmatprep.subr.bf16.mxu0 0
    %4247 = vmatpush1.bf16.msra.mxu0 0
    %4248 = vmatprep.subr.bf16.mxu0 0
    %4249 = vmatpush1.bf16.msra.mxu0 0
    %4250 = vmatprep.subr.bf16.mxu0 0
    %4251 = vmatpush1.bf16.msra.mxu0 0
    %4252 = vmatprep.subr.bf16.mxu0 0
    %4253 = vmatpush1.bf16.msra.mxu0 0
    %4254 = vmatprep.subr.bf16.mxu0 0
    %4255 = vmatpush1.bf16.msra.mxu0 0
    %4256 = vmatprep.subr.bf16.mxu0 0
    %4257 = vmatpush1.bf16.msra.mxu0 0
    %4258 = vmatprep.subr.bf16.mxu0 0
    %4259 = vmatpush1.bf16.msra.mxu0 0
    %4260 = vmatprep.subr.bf16.mxu0 0
    %4261 = vmatpush1.bf16.msra.mxu0 0
    %4262 = vmatprep.subr.bf16.mxu0 0
    %4263 = vmatpush1.bf16.msra.mxu0 0
    %4264 = vmatprep.subr.bf16.mxu0 0
    %4265 = vmatpush1.bf16.msra.mxu0 0
    %4266 = vmatprep.mubr.bf16.mxu0 0
    %4267 = vmatmul.mubr.bf16.gmra.mrb[0].mxu0 %v2820
    %v4268 = vpop.f32.mrb[0].mxu0
    %v4269 = vadd.f32 %v2791, %v4268
    %v4270 = vpop.f32.mrb[0].mxu0
    %v4271 = vpop.f32.mrb[0].mxu0
    %v4272 = vadd.f32 %v2796, %v4271
    %v4273 = vpop.f32.mrb[0].mxu0
    %4274 = vmatprep.mubr.bf16.mxu0 0
    %4275 = vmatmul.mubr.bf16.gmra.mrb[0].mxu0 %v2823
    %v4276 = vpop.f32.mrb[0].mxu0
    %v4277 = vadd.f32 %v2801, %v4276
    %v4278 = vpop.f32.mrb[0].mxu0
    %v4279 = vpop.f32.mrb[0].mxu0
    %v4280 = vadd.f32 %v2806, %v4279
    %v4281 = vpop.f32.mrb[0].mxu0
    %4282 = vdwg.mxu0
    %v4283 = vand.u32 2147483647, %v4216
    %vm4284 = vcmp.le.f32.partialorder %v4283, 0.7853982
    %vm4285 = vcmp.lt.s32.totalorder %v4216, 0
    %v4286 = vand.u32 %v4216, 2139095040
    %v4287 = vshrl.u32 %v4286, 23
    %v4288 = vsub.s32 %v4287, 127
    %v4289 = vand.u32 2147483647, %v4216
    %v4290 = vand.u32 %v4289, 8388607
    %v4291 = vor.u32 %v4290, 8388608
    %v4292 = vsub.s32 0, %v4291
    %v4293 = vadd.s32 %v4288, 1
    %vm4294 = vcmp.gt.s32.totalorder %v4293, 0
    %v4295 = vsel %vm4294, %v4293, 0
    %v4296 = vshrl.u32 %v4295, 5
    %v4297 = vand.u32 %v4295, 31
    %v4298 = vsub.s32 32, %v4297
    %v4299 = vshrl.u32 683565275, %v4298
    %v4300 = vshll.u32 683565275, %v4297
    %v4301 = vshrl.u32 2475754826, %v4298
    %v4302 = vor.u32 %v4300, %v4301
    %v4303 = vshll.u32 2475754826, %v4297
    %v4304 = vshrl.u32 2131351028, %v4298
    %v4305 = vor.u32 %v4303, %v4304
    %v4306 = vshll.u32 2131351028, %v4297
    %v4307 = vshrl.u32 2102212464, %v4298
    %v4308 = vor.u32 %v4306, %v4307
    %v4309 = vshll.u32 2102212464, %v4297
    %v4310 = vshrl.u32 920167782, %v4298
    %v4311 = vor.u32 %v4309, %v4310
    %v4312 = vshll.u32 920167782, %v4297
    %v4313 = vshrl.u32 1326507024, %v4298
    %v4314 = vor.u32 %v4312, %v4313
    %vm4315 = vcmp.lt.s32.totalorder %v4296, 1
    %vm4316 = vcmp.lt.s32.totalorder %v4296, 2
    %vm4317 = vcmp.lt.s32.totalorder %v4296, 3
    %vm4318 = vcmp.lt.s32.totalorder %v4296, 4
    %v4319 = vsel %vm4315, %v4299, %v4302
    %v4320 = vsel %vm4318, %v4308, 2102212464
    %v4321 = vsel %vm4317, %v4305, %v4320
    %v4322 = vsel %vm4316, %v4319, %v4321
    %v4323 = vsel %vm4315, %v4302, %v4305
    %v4324 = vsel %vm4318, %v4311, 920167782
    %v4325 = vsel %vm4317, %v4308, %v4324
    %v4326 = vsel %vm4316, %v4323, %v4325
    %v4327 = vsel %vm4315, %v4305, %v4308
    %v4328 = vsel %vm4318, %v4314, 1326507024
    %v4329 = vsel %vm4317, %v4311, %v4328
    %v4330 = vsel %vm4316, %v4327, %v4329
    %v4331 = vshll.u32 %v4291, 8
    %v4332 = vmul.u32.u64.compose %v4331, %v4330
    %v4333 = vextract.low.u32 %v4332
    %v4334 = vextract.high.u32 %v4332
    %v4335 = vmul.u32.u64.compose %v4331, %v4326
    %v4336 = vextract.low.u32 %v4335
    %v4337 = vextract.high.u32 %v4335
    %v4338 = vmul.u32 %v4331, %v4322
    %v4339 = vadd.s32 %v4334, %v4336
    %vm4340 = vc.u32 %v4334, %v4336
    %v4341 = vadd.s32 %v4337, 1
    %v4342 = vsel %vm4340, %v4341, %v4337
    %v4343 = vadd.s32 %v4338, %v4342
    %v4344 = vadd.s32 %v4343, 536870912
    %v4345 = vshrl.u32 %v4344, 30
    %v4346 = vshll.u32 %v4345, 30
    %v4347 = vsub.s32 %v4343, %v4346
    %vm4348 = vcmp.lt.s32.totalorder %v4347, 0
    %v4349 = vsub.s32 0, %v4347
    %v4350 = vsel %vm4348, %v4349, %v4347
    %v4351 = vclz %v4350
    %v4352 = vsub.s32 %v4351, 2
    %vm4353 = vcmp.gt.s32.totalorder 0, %v4352
    %v4354 = vsel %vm4353, 0, %v4352
    %v4355 = vsub.s32 32, %v4354
    %v4356 = vshll.u32 %v4347, %v4354
    %v4357 = vshrl.u32 %v4339, %v4355
    %v4358 = vor.u32 %v4356, %v4357
    %v4359 = vsub.s32 4294967266, %v4354
    %v4360 = vadd.s32 %v4359, 127
    %v4361 = vshll.u32 %v4360, 23
    %v4362 = vor.u32 4788187, %v4361
    %v4363 = vand.u32 2147483647, %v4362
    %v4365 = vcvt.s32.f32 %v4358
    %v4366 = vmul.f32 %v4365, %v4363
    %v4367 = vxor.u32 %v4366, 2147483648
    %v4368 = vsel %vm4285, %v4367, %v4366
    %v4369 = vsub.s32 4, %v4345
    %v4370 = vsel %vm4285, %v4369, %v4345
    %v4371 = vsel %vm4284, %v4216, %v4368
    %v4372 = vsel %vm4284, 0, %v4370
    %v4373 = vcosq.f32.pop %v4371
    %v4374 = vsinq.f32.pop %v4371
    %vm4375 = vweird.f32 %v4216
    %v4376 = vadd.s32 %v4372, 3
    %v4377 = vand.u32 %v4376, 3
    %vm4378 = vcmp.lt.s32.totalorder %v4377, 2
    %vm4379 = vcmp.eq.s32.totalorder %v4377, 0
    %v4380 = vxor.u32 %v4374, 2147483648
    %v4381 = vsel %vm4379, %v4373, %v4380
    %vm4382 = vcmp.eq.s32.totalorder %v4377, 2
    %v4383 = vxor.u32 %v4373, 2147483648
    %v4384 = vsel %vm4382, %v4383, %v4374
    %v4385 = vsel %vm4378, %v4381, %v4384
    %v4386 = vsel %vm4375, nan, %v4385
    %v4387 = vand.u32 2147483647, %v4218
    %vm4388 = vcmp.le.f32.partialorder %v4387, 0.7853982
    %vm4389 = vcmp.lt.s32.totalorder %v4218, 0
    %v4390 = vand.u32 %v4218, 2139095040
    %v4391 = vshrl.u32 %v4390, 23
    %v4392 = vsub.s32 %v4391, 127
    %v4393 = vand.u32 2147483647, %v4218
    %v4394 = vand.u32 %v4393, 8388607
    %v4395 = vor.u32 %v4394, 8388608
    %v4396 = vsub.s32 0, %v4395
    %v4397 = vadd.s32 %v4392, 1
    %vm4398 = vcmp.gt.s32.totalorder %v4397, 0
    %v4399 = vsel %vm4398, %v4397, 0
    %v4400 = vshrl.u32 %v4399, 5
    %v4401 = vand.u32 %v4399, 31
    %v4402 = vsub.s32 32, %v4401
    %v4403 = vshrl.u32 683565275, %v4402
    %v4404 = vshll.u32 683565275, %v4401
    %v4405 = vshrl.u32 2475754826, %v4402
    %v4406 = vor.u32 %v4404, %v4405
    %v4407 = vshll.u32 2475754826, %v4401
    %v4408 = vshrl.u32 2131351028, %v4402
    %v4409 = vor.u32 %v4407, %v4408
    %v4410 = vshll.u32 2131351028, %v4401
    %v4411 = vshrl.u32 2102212464, %v4402
    %v4412 = vor.u32 %v4410, %v4411
    %v4413 = vshll.u32 2102212464, %v4401
    %v4414 = vshrl.u32 920167782, %v4402
    %v4415 = vor.u32 %v4413, %v4414
    %v4416 = vshll.u32 920167782, %v4401
    %v4417 = vshrl.u32 1326507024, %v4402
    %v4418 = vor.u32 %v4416, %v4417
    %vm4419 = vcmp.lt.s32.totalorder %v4400, 1
    %vm4420 = vcmp.lt.s32.totalorder %v4400, 2
    %vm4421 = vcmp.lt.s32.totalorder %v4400, 3
    %vm4422 = vcmp.lt.s32.totalorder %v4400, 4
    %v4423 = vsel %vm4419, %v4403, %v4406
    %v4424 = vsel %vm4422, %v4412, 2102212464
    %v4425 = vsel %vm4421, %v4409, %v4424
    %v4426 = vsel %vm4420, %v4423, %v4425
    %v4427 = vsel %vm4419, %v4406, %v4409
    %v4428 = vsel %vm4422, %v4415, 920167782
    %v4429 = vsel %vm4421, %v4412, %v4428
    %v4430 = vsel %vm4420, %v4427, %v4429
    %v4431 = vsel %vm4419, %v4409, %v4412
    %v4432 = vsel %vm4422, %v4418, 1326507024
    %v4433 = vsel %vm4421, %v4415, %v4432
    %v4434 = vsel %vm4420, %v4431, %v4433
    %v4435 = vshll.u32 %v4395, 8
    %v4436 = vmul.u32.u64.compose %v4435, %v4434
    %v4437 = vextract.low.u32 %v4436
    %v4438 = vextract.high.u32 %v4436
    %v4439 = vmul.u32.u64.compose %v4435, %v4430
    %v4440 = vextract.low.u32 %v4439
    %v4441 = vextract.high.u32 %v4439
    %v4442 = vmul.u32 %v4435, %v4426
    %v4443 = vadd.s32 %v4438, %v4440
    %vm4444 = vc.u32 %v4438, %v4440
    %v4445 = vadd.s32 %v4441, 1
    %v4446 = vsel %vm4444, %v4445, %v4441
    %v4447 = vadd.s32 %v4442, %v4446
    %v4448 = vadd.s32 %v4447, 536870912
    %v4449 = vshrl.u32 %v4448, 30
    %v4450 = vshll.u32 %v4449, 30
    %v4451 = vsub.s32 %v4447, %v4450
    %vm4452 = vcmp.lt.s32.totalorder %v4451, 0
    %v4453 = vsub.s32 0, %v4451
    %v4454 = vsel %vm4452, %v4453, %v4451
    %v4455 = vclz %v4454
    %v4456 = vsub.s32 %v4455, 2
    %vm4457 = vcmp.gt.s32.totalorder 0, %v4456
    %v4458 = vsel %vm4457, 0, %v4456
    %v4459 = vsub.s32 32, %v4458
    %v4460 = vshll.u32 %v4451, %v4458
    %v4461 = vshrl.u32 %v4443, %v4459
    %v4462 = vor.u32 %v4460, %v4461
    %v4463 = vsub.s32 4294967266, %v4458
    %v4464 = vadd.s32 %v4463, 127
    %v4465 = vshll.u32 %v4464, 23
    %v4466 = vor.u32 4788187, %v4465
    %v4467 = vand.u32 2147483647, %v4466
    %v4469 = vcvt.s32.f32 %v4462
    %v4470 = vmul.f32 %v4469, %v4467
    %v4471 = vxor.u32 %v4470, 2147483648
    %v4472 = vsel %vm4389, %v4471, %v4470
    %v4473 = vsub.s32 4, %v4449
    %v4474 = vsel %vm4389, %v4473, %v4449
    %v4475 = vsel %vm4388, %v4218, %v4472
    %v4476 = vsel %vm4388, 0, %v4474
    %v4477 = vcosq.f32.pop %v4475
    %v4478 = vsinq.f32.pop %v4475
    %vm4479 = vweird.f32 %v4218
    %v4480 = vadd.s32 %v4476, 3
    %v4481 = vand.u32 %v4480, 3
    %vm4482 = vcmp.lt.s32.totalorder %v4481, 2
    %vm4483 = vcmp.eq.s32.totalorder %v4481, 0
    %v4484 = vxor.u32 %v4478, 2147483648
    %v4485 = vsel %vm4483, %v4477, %v4484
    %vm4486 = vcmp.eq.s32.totalorder %v4481, 2
    %v4487 = vxor.u32 %v4477, 2147483648
    %v4488 = vsel %vm4486, %v4487, %v4478
    %v4489 = vsel %vm4482, %v4485, %v4488
    %v4490 = vsel %vm4479, nan, %v4489
    %v4491 = vand.u32 2147483647, %v4269
    %vm4492 = vcmp.le.f32.partialorder %v4491, 0.7853982
    %vm4493 = vcmp.lt.s32.totalorder %v4269, 0
    %v4494 = vand.u32 %v4269, 2139095040
    %v4495 = vshrl.u32 %v4494, 23
    %v4496 = vsub.s32 %v4495, 127
    %v4497 = vand.u32 2147483647, %v4269
    %v4498 = vand.u32 %v4497, 8388607
    %v4499 = vor.u32 %v4498, 8388608
    %v4500 = vsub.s32 0, %v4499
    %v4501 = vadd.s32 %v4496, 1
    %vm4502 = vcmp.gt.s32.totalorder %v4501, 0
    %v4503 = vsel %vm4502, %v4501, 0
    %v4504 = vshrl.u32 %v4503, 5
    %v4505 = vand.u32 %v4503, 31
    %v4506 = vsub.s32 32, %v4505
    %v4507 = vshrl.u32 683565275, %v4506
    %v4508 = vshll.u32 683565275, %v4505
    %v4509 = vshrl.u32 2475754826, %v4506
    %v4510 = vor.u32 %v4508, %v4509
    %v4511 = vshll.u32 2475754826, %v4505
    %v4512 = vshrl.u32 2131351028, %v4506
    %v4513 = vor.u32 %v4511, %v4512
    %v4514 = vshll.u32 2131351028, %v4505
    %v4515 = vshrl.u32 2102212464, %v4506
    %v4516 = vor.u32 %v4514, %v4515
    %v4517 = vshll.u32 2102212464, %v4505
    %v4518 = vshrl.u32 920167782, %v4506
    %v4519 = vor.u32 %v4517, %v4518
    %v4520 = vshll.u32 920167782, %v4505
    %v4521 = vshrl.u32 1326507024, %v4506
    %v4522 = vor.u32 %v4520, %v4521
    %vm4523 = vcmp.lt.s32.totalorder %v4504, 1
    %vm4524 = vcmp.lt.s32.totalorder %v4504, 2
    %vm4525 = vcmp.lt.s32.totalorder %v4504, 3
    %vm4526 = vcmp.lt.s32.totalorder %v4504, 4
    %v4527 = vsel %vm4523, %v4507, %v4510
    %v4528 = vsel %vm4526, %v4516, 2102212464
    %v4529 = vsel %vm4525, %v4513, %v4528
    %v4530 = vsel %vm4524, %v4527, %v4529
    %v4531 = vsel %vm4523, %v4510, %v4513
    %v4532 = vsel %vm4526, %v4519, 920167782
    %v4533 = vsel %vm4525, %v4516, %v4532
    %v4534 = vsel %vm4524, %v4531, %v4533
    %v4535 = vsel %vm4523, %v4513, %v4516
    %v4536 = vsel %vm4526, %v4522, 1326507024
    %v4537 = vsel %vm4525, %v4519, %v4536
    %v4538 = vsel %vm4524, %v4535, %v4537
    %v4539 = vshll.u32 %v4499, 8
    %v4540 = vmul.u32.u64.compose %v4539, %v4538
    %v4541 = vextract.low.u32 %v4540
    %v4542 = vextract.high.u32 %v4540
    %v4543 = vmul.u32.u64.compose %v4539, %v4534
    %v4544 = vextract.low.u32 %v4543
    %v4545 = vextract.high.u32 %v4543
    %v4546 = vmul.u32 %v4539, %v4530
    %v4547 = vadd.s32 %v4542, %v4544
    %vm4548 = vc.u32 %v4542, %v4544
    %v4549 = vadd.s32 %v4545, 1
    %v4550 = vsel %vm4548, %v4549, %v4545
    %v4551 = vadd.s32 %v4546, %v4550
    %v4552 = vadd.s32 %v4551, 536870912
    %v4553 = vshrl.u32 %v4552, 30
    %v4554 = vshll.u32 %v4553, 30
    %v4555 = vsub.s32 %v4551, %v4554
    %vm4556 = vcmp.lt.s32.totalorder %v4555, 0
    %v4557 = vsub.s32 0, %v4555
    %v4558 = vsel %vm4556, %v4557, %v4555
    %v4559 = vclz %v4558
    %v4560 = vsub.s32 %v4559, 2
    %vm4561 = vcmp.gt.s32.totalorder 0, %v4560
    %v4562 = vsel %vm4561, 0, %v4560
    %v4563 = vsub.s32 32, %v4562
    %v4564 = vshll.u32 %v4555, %v4562
    %v4565 = vshrl.u32 %v4547, %v4563
    %v4566 = vor.u32 %v4564, %v4565
    %v4567 = vsub.s32 4294967266, %v4562
    %v4568 = vadd.s32 %v4567, 127
    %v4569 = vshll.u32 %v4568, 23
    %v4570 = vor.u32 4788187, %v4569
    %v4571 = vand.u32 2147483647, %v4570
    %v4573 = vcvt.s32.f32 %v4566
    %v4574 = vmul.f32 %v4573, %v4571
    %v4575 = vxor.u32 %v4574, 2147483648
    %v4576 = vsel %vm4493, %v4575, %v4574
    %v4577 = vsub.s32 4, %v4553
    %v4578 = vsel %vm4493, %v4577, %v4553
    %v4579 = vsel %vm4492, %v4269, %v4576
    %v4580 = vsel %vm4492, 0, %v4578
    %v4581 = vcosq.f32.pop %v4579
    %v4582 = vsinq.f32.pop %v4579
    %vm4583 = vweird.f32 %v4269
    %v4584 = vadd.s32 %v4580, 3
    %v4585 = vand.u32 %v4584, 3
    %vm4586 = vcmp.lt.s32.totalorder %v4585, 2
    %vm4587 = vcmp.eq.s32.totalorder %v4585, 0
    %v4588 = vxor.u32 %v4582, 2147483648
    %v4589 = vsel %vm4587, %v4581, %v4588
    %vm4590 = vcmp.eq.s32.totalorder %v4585, 2
    %v4591 = vxor.u32 %v4581, 2147483648
    %v4592 = vsel %vm4590, %v4591, %v4582
    %v4593 = vsel %vm4586, %v4589, %v4592
    %v4594 = vsel %vm4583, nan, %v4593
    %v4595 = vand.u32 2147483647, %v4220
    %vm4596 = vcmp.le.f32.partialorder %v4595, 0.7853982
    %vm4597 = vcmp.lt.s32.totalorder %v4220, 0
    %v4598 = vand.u32 %v4220, 2139095040
    %v4599 = vshrl.u32 %v4598, 23
    %v4600 = vsub.s32 %v4599, 127
    %v4601 = vand.u32 2147483647, %v4220
    %v4602 = vand.u32 %v4601, 8388607
    %v4603 = vor.u32 %v4602, 8388608
    %v4604 = vsub.s32 0, %v4603
    %v4605 = vadd.s32 %v4600, 1
    %vm4606 = vcmp.gt.s32.totalorder %v4605, 0
    %v4607 = vsel %vm4606, %v4605, 0
    %v4608 = vshrl.u32 %v4607, 5
    %v4609 = vand.u32 %v4607, 31
    %v4610 = vsub.s32 32, %v4609
    %v4611 = vshrl.u32 683565275, %v4610
    %v4612 = vshll.u32 683565275, %v4609
    %v4613 = vshrl.u32 2475754826, %v4610
    %v4614 = vor.u32 %v4612, %v4613
    %v4615 = vshll.u32 2475754826, %v4609
    %v4616 = vshrl.u32 2131351028, %v4610
    %v4617 = vor.u32 %v4615, %v4616
    %v4618 = vshll.u32 2131351028, %v4609
    %v4619 = vshrl.u32 2102212464, %v4610
    %v4620 = vor.u32 %v4618, %v4619
    %v4621 = vshll.u32 2102212464, %v4609
    %v4622 = vshrl.u32 920167782, %v4610
    %v4623 = vor.u32 %v4621, %v4622
    %v4624 = vshll.u32 920167782, %v4609
    %v4625 = vshrl.u32 1326507024, %v4610
    %v4626 = vor.u32 %v4624, %v4625
    %vm4627 = vcmp.lt.s32.totalorder %v4608, 1
    %vm4628 = vcmp.lt.s32.totalorder %v4608, 2
    %vm4629 = vcmp.lt.s32.totalorder %v4608, 3
    %vm4630 = vcmp.lt.s32.totalorder %v4608, 4
    %v4631 = vsel %vm4627, %v4611, %v4614
    %v4632 = vsel %vm4630, %v4620, 2102212464
    %v4633 = vsel %vm4629, %v4617, %v4632
    %v4634 = vsel %vm4628, %v4631, %v4633
    %v4635 = vsel %vm4627, %v4614, %v4617
    %v4636 = vsel %vm4630, %v4623, 920167782
    %v4637 = vsel %vm4629, %v4620, %v4636
    %v4638 = vsel %vm4628, %v4635, %v4637
    %v4639 = vsel %vm4627, %v4617, %v4620
    %v4640 = vsel %vm4630, %v4626, 1326507024
    %v4641 = vsel %vm4629, %v4623, %v4640
    %v4642 = vsel %vm4628, %v4639, %v4641
    %v4643 = vshll.u32 %v4603, 8
    %v4644 = vmul.u32.u64.compose %v4643, %v4642
    %v4645 = vextract.low.u32 %v4644
    %v4646 = vextract.high.u32 %v4644
    %v4647 = vmul.u32.u64.compose %v4643, %v4638
    %v4648 = vextract.low.u32 %v4647
    %v4649 = vextract.high.u32 %v4647
    %v4650 = vmul.u32 %v4643, %v4634
    %v4651 = vadd.s32 %v4646, %v4648
    %vm4652 = vc.u32 %v4646, %v4648
    %v4653 = vadd.s32 %v4649, 1
    %v4654 = vsel %vm4652, %v4653, %v4649
    %v4655 = vadd.s32 %v4650, %v4654
    %v4656 = vadd.s32 %v4655, 536870912
    %v4657 = vshrl.u32 %v4656, 30
    %v4658 = vshll.u32 %v4657, 30
    %v4659 = vsub.s32 %v4655, %v4658
    %vm4660 = vcmp.lt.s32.totalorder %v4659, 0
    %v4661 = vsub.s32 0, %v4659
    %v4662 = vsel %vm4660, %v4661, %v4659
    %v4663 = vclz %v4662
    %v4664 = vsub.s32 %v4663, 2
    %vm4665 = vcmp.gt.s32.totalorder 0, %v4664
    %v4666 = vsel %vm4665, 0, %v4664
    %v4667 = vsub.s32 32, %v4666
    %v4668 = vshll.u32 %v4659, %v4666
    %v4669 = vshrl.u32 %v4651, %v4667
    %v4670 = vor.u32 %v4668, %v4669
    %v4671 = vsub.s32 4294967266, %v4666
    %v4672 = vadd.s32 %v4671, 127
    %v4673 = vshll.u32 %v4672, 23
    %v4674 = vor.u32 4788187, %v4673
    %v4675 = vand.u32 2147483647, %v4674
    %v4677 = vcvt.s32.f32 %v4670
    %v4678 = vmul.f32 %v4677, %v4675
    %v4679 = vxor.u32 %v4678, 2147483648
    %v4680 = vsel %vm4597, %v4679, %v4678
    %v4681 = vsub.s32 4, %v4657
    %v4682 = vsel %vm4597, %v4681, %v4657
    %v4683 = vsel %vm4596, %v4220, %v4680
    %v4684 = vsel %vm4596, 0, %v4682
    %v4685 = vcosq.f32.pop %v4683
    %v4686 = vsinq.f32.pop %v4683
    %vm4687 = vweird.f32 %v4220
    %v4688 = vadd.s32 %v4684, 3
    %v4689 = vand.u32 %v4688, 3
    %vm4690 = vcmp.lt.s32.totalorder %v4689, 2
    %vm4691 = vcmp.eq.s32.totalorder %v4689, 0
    %v4692 = vxor.u32 %v4686, 2147483648
    %v4693 = vsel %vm4691, %v4685, %v4692
    %vm4694 = vcmp.eq.s32.totalorder %v4689, 2
    %v4695 = vxor.u32 %v4685, 2147483648
    %v4696 = vsel %vm4694, %v4695, %v4686
    %v4697 = vsel %vm4690, %v4693, %v4696
    %v4698 = vsel %vm4687, nan, %v4697
    %v4699 = vand.u32 2147483647, %v4222
    %vm4700 = vcmp.le.f32.partialorder %v4699, 0.7853982
    %vm4701 = vcmp.lt.s32.totalorder %v4222, 0
    %v4702 = vand.u32 %v4222, 2139095040
    %v4703 = vshrl.u32 %v4702, 23
    %v4704 = vsub.s32 %v4703, 127
    %v4705 = vand.u32 2147483647, %v4222
    %v4706 = vand.u32 %v4705, 8388607
    %v4707 = vor.u32 %v4706, 8388608
    %v4708 = vsub.s32 0, %v4707
    %v4709 = vadd.s32 %v4704, 1
    %vm4710 = vcmp.gt.s32.totalorder %v4709, 0
    %v4711 = vsel %vm4710, %v4709, 0
    %v4712 = vshrl.u32 %v4711, 5
    %v4713 = vand.u32 %v4711, 31
    %v4714 = vsub.s32 32, %v4713
    %v4715 = vshrl.u32 683565275, %v4714
    %v4716 = vshll.u32 683565275, %v4713
    %v4717 = vshrl.u32 2475754826, %v4714
    %v4718 = vor.u32 %v4716, %v4717
    %v4719 = vshll.u32 2475754826, %v4713
    %v4720 = vshrl.u32 2131351028, %v4714
    %v4721 = vor.u32 %v4719, %v4720
    %v4722 = vshll.u32 2131351028, %v4713
    %v4723 = vshrl.u32 2102212464, %v4714
    %v4724 = vor.u32 %v4722, %v4723
    %v4725 = vshll.u32 2102212464, %v4713
    %v4726 = vshrl.u32 920167782, %v4714
    %v4727 = vor.u32 %v4725, %v4726
    %v4728 = vshll.u32 920167782, %v4713
    %v4729 = vshrl.u32 1326507024, %v4714
    %v4730 = vor.u32 %v4728, %v4729
    %vm4731 = vcmp.lt.s32.totalorder %v4712, 1
    %vm4732 = vcmp.lt.s32.totalorder %v4712, 2
    %vm4733 = vcmp.lt.s32.totalorder %v4712, 3
    %vm4734 = vcmp.lt.s32.totalorder %v4712, 4
    %v4735 = vsel %vm4731, %v4715, %v4718
    %v4736 = vsel %vm4734, %v4724, 2102212464
    %v4737 = vsel %vm4733, %v4721, %v4736
    %v4738 = vsel %vm4732, %v4735, %v4737
    %v4739 = vsel %vm4731, %v4718, %v4721
    %v4740 = vsel %vm4734, %v4727, 920167782
    %v4741 = vsel %vm4733, %v4724, %v4740
    %v4742 = vsel %vm4732, %v4739, %v4741
    %v4743 = vsel %vm4731, %v4721, %v4724
    %v4744 = vsel %vm4734, %v4730, 1326507024
    %v4745 = vsel %vm4733, %v4727, %v4744
    %v4746 = vsel %vm4732, %v4743, %v4745
    %v4747 = vshll.u32 %v4707, 8
    %v4748 = vmul.u32.u64.compose %v4747, %v4746
    %v4749 = vextract.low.u32 %v4748
    %v4750 = vextract.high.u32 %v4748
    %v4751 = vmul.u32.u64.compose %v4747, %v4742
    %v4752 = vextract.low.u32 %v4751
    %v4753 = vextract.high.u32 %v4751
    %v4754 = vmul.u32 %v4747, %v4738
    %v4755 = vadd.s32 %v4750, %v4752
    %vm4756 = vc.u32 %v4750, %v4752
    %v4757 = vadd.s32 %v4753, 1
    %v4758 = vsel %vm4756, %v4757, %v4753
    %v4759 = vadd.s32 %v4754, %v4758
    %v4760 = vadd.s32 %v4759, 536870912
    %v4761 = vshrl.u32 %v4760, 30
    %v4762 = vshll.u32 %v4761, 30
    %v4763 = vsub.s32 %v4759, %v4762
    %vm4764 = vcmp.lt.s32.totalorder %v4763, 0
    %v4765 = vsub.s32 0, %v4763
    %v4766 = vsel %vm4764, %v4765, %v4763
    %v4767 = vclz %v4766
    %v4768 = vsub.s32 %v4767, 2
    %vm4769 = vcmp.gt.s32.totalorder 0, %v4768
    %v4770 = vsel %vm4769, 0, %v4768
    %v4771 = vsub.s32 32, %v4770
    %v4772 = vshll.u32 %v4763, %v4770
    %v4773 = vshrl.u32 %v4755, %v4771
    %v4774 = vor.u32 %v4772, %v4773
    %v4775 = vsub.s32 4294967266, %v4770
    %v4776 = vadd.s32 %v4775, 127
    %v4777 = vshll.u32 %v4776, 23
    %v4778 = vor.u32 4788187, %v4777
    %v4779 = vand.u32 2147483647, %v4778
    %v4781 = vcvt.s32.f32 %v4774
    %v4782 = vmul.f32 %v4781, %v4779
    %v4783 = vxor.u32 %v4782, 2147483648
    %v4784 = vsel %vm4701, %v4783, %v4782
    %v4785 = vsub.s32 4, %v4761
    %v4786 = vsel %vm4701, %v4785, %v4761
    %v4787 = vsel %vm4700, %v4222, %v4784
    %v4788 = vsel %vm4700, 0, %v4786
    %v4789 = vcosq.f32.pop %v4787
    %v4790 = vsinq.f32.pop %v4787
    %vm4791 = vweird.f32 %v4222
    %v4792 = vadd.s32 %v4788, 3
    %v4793 = vand.u32 %v4792, 3
    %vm4794 = vcmp.lt.s32.totalorder %v4793, 2
    %vm4795 = vcmp.eq.s32.totalorder %v4793, 0
    %v4796 = vxor.u32 %v4790, 2147483648
    %v4797 = vsel %vm4795, %v4789, %v4796
    %vm4798 = vcmp.eq.s32.totalorder %v4793, 2
    %v4799 = vxor.u32 %v4789, 2147483648
    %v4800 = vsel %vm4798, %v4799, %v4790
    %v4801 = vsel %vm4794, %v4797, %v4800
    %v4802 = vsel %vm4791, nan, %v4801
    %v4803 = vand.u32 2147483647, %v4272
    %vm4804 = vcmp.le.f32.partialorder %v4803, 0.7853982
    %vm4805 = vcmp.lt.s32.totalorder %v4272, 0
    %v4806 = vand.u32 %v4272, 2139095040
    %v4807 = vshrl.u32 %v4806, 23
    %v4808 = vsub.s32 %v4807, 127
    %v4809 = vand.u32 2147483647, %v4272
    %v4810 = vand.u32 %v4809, 8388607
    %v4811 = vor.u32 %v4810, 8388608
    %v4812 = vsub.s32 0, %v4811
    %v4813 = vadd.s32 %v4808, 1
    %vm4814 = vcmp.gt.s32.totalorder %v4813, 0
    %v4815 = vsel %vm4814, %v4813, 0
    %v4816 = vshrl.u32 %v4815, 5
    %v4817 = vand.u32 %v4815, 31
    %v4818 = vsub.s32 32, %v4817
    %v4819 = vshrl.u32 683565275, %v4818
    %v4820 = vshll.u32 683565275, %v4817
    %v4821 = vshrl.u32 2475754826, %v4818
    %v4822 = vor.u32 %v4820, %v4821
    %v4823 = vshll.u32 2475754826, %v4817
    %v4824 = vshrl.u32 2131351028, %v4818
    %v4825 = vor.u32 %v4823, %v4824
    %v4826 = vshll.u32 2131351028, %v4817
    %v4827 = vshrl.u32 2102212464, %v4818
    %v4828 = vor.u32 %v4826, %v4827
    %v4829 = vshll.u32 2102212464, %v4817
    %v4830 = vshrl.u32 920167782, %v4818
    %v4831 = vor.u32 %v4829, %v4830
    %v4832 = vshll.u32 920167782, %v4817
    %v4833 = vshrl.u32 1326507024, %v4818
    %v4834 = vor.u32 %v4832, %v4833
    %vm4835 = vcmp.lt.s32.totalorder %v4816, 1
    %vm4836 = vcmp.lt.s32.totalorder %v4816, 2
    %vm4837 = vcmp.lt.s32.totalorder %v4816, 3
    %vm4838 = vcmp.lt.s32.totalorder %v4816, 4
    %v4839 = vsel %vm4835, %v4819, %v4822
    %v4840 = vsel %vm4838, %v4828, 2102212464
    %v4841 = vsel %vm4837, %v4825, %v4840
    %v4842 = vsel %vm4836, %v4839, %v4841
    %v4843 = vsel %vm4835, %v4822, %v4825
    %v4844 = vsel %vm4838, %v4831, 920167782
    %v4845 = vsel %vm4837, %v4828, %v4844
    %v4846 = vsel %vm4836, %v4843, %v4845
    %v4847 = vsel %vm4835, %v4825, %v4828
    %v4848 = vsel %vm4838, %v4834, 1326507024
    %v4849 = vsel %vm4837, %v4831, %v4848
    %v4850 = vsel %vm4836, %v4847, %v4849
    %v4851 = vshll.u32 %v4811, 8
    %v4852 = vmul.u32.u64.compose %v4851, %v4850
    %v4853 = vextract.low.u32 %v4852
    %v4854 = vextract.high.u32 %v4852
    %v4855 = vmul.u32.u64.compose %v4851, %v4846
    %v4856 = vextract.low.u32 %v4855
    %v4857 = vextract.high.u32 %v4855
    %v4858 = vmul.u32 %v4851, %v4842
    %v4859 = vadd.s32 %v4854, %v4856
    %vm4860 = vc.u32 %v4854, %v4856
    %v4861 = vadd.s32 %v4857, 1
    %v4862 = vsel %vm4860, %v4861, %v4857
    %v4863 = vadd.s32 %v4858, %v4862
    %v4864 = vadd.s32 %v4863, 536870912
    %v4865 = vshrl.u32 %v4864, 30
    %v4866 = vshll.u32 %v4865, 30
    %v4867 = vsub.s32 %v4863, %v4866
    %vm4868 = vcmp.lt.s32.totalorder %v4867, 0
    %v4869 = vsub.s32 0, %v4867
    %v4870 = vsel %vm4868, %v4869, %v4867
    %v4871 = vclz %v4870
    %v4872 = vsub.s32 %v4871, 2
    %vm4873 = vcmp.gt.s32.totalorder 0, %v4872
    %v4874 = vsel %vm4873, 0, %v4872
    %v4875 = vsub.s32 32, %v4874
    %v4876 = vshll.u32 %v4867, %v4874
    %v4877 = vshrl.u32 %v4859, %v4875
    %v4878 = vor.u32 %v4876, %v4877
    %v4879 = vsub.s32 4294967266, %v4874
    %v4880 = vadd.s32 %v4879, 127
    %v4881 = vshll.u32 %v4880, 23
    %v4882 = vor.u32 4788187, %v4881
    %v4883 = vand.u32 2147483647, %v4882
    %v4885 = vcvt.s32.f32 %v4878
    %v4886 = vmul.f32 %v4885, %v4883
    %v4887 = vxor.u32 %v4886, 2147483648
    %v4888 = vsel %vm4805, %v4887, %v4886
    %v4889 = vsub.s32 4, %v4865
    %v4890 = vsel %vm4805, %v4889, %v4865
    %v4891 = vsel %vm4804, %v4272, %v4888
    %v4892 = vsel %vm4804, 0, %v4890
    %v4893 = vcosq.f32.pop %v4891
    %v4894 = vsinq.f32.pop %v4891
    %vm4895 = vweird.f32 %v4272
    %v4896 = vadd.s32 %v4892, 3
    %v4897 = vand.u32 %v4896, 3
    %vm4898 = vcmp.lt.s32.totalorder %v4897, 2
    %vm4899 = vcmp.eq.s32.totalorder %v4897, 0
    %v4900 = vxor.u32 %v4894, 2147483648
    %v4901 = vsel %vm4899, %v4893, %v4900
    %vm4902 = vcmp.eq.s32.totalorder %v4897, 2
    %v4903 = vxor.u32 %v4893, 2147483648
    %v4904 = vsel %vm4902, %v4903, %v4894
    %v4905 = vsel %vm4898, %v4901, %v4904
    %v4906 = vsel %vm4895, nan, %v4905
    %v4907 = vand.u32 2147483647, %v4226
    %vm4908 = vcmp.le.f32.partialorder %v4907, 0.7853982
    %vm4909 = vcmp.lt.s32.totalorder %v4226, 0
    %v4910 = vand.u32 %v4226, 2139095040
    %v4911 = vshrl.u32 %v4910, 23
    %v4912 = vsub.s32 %v4911, 127
    %v4913 = vand.u32 2147483647, %v4226
    %v4914 = vand.u32 %v4913, 8388607
    %v4915 = vor.u32 %v4914, 8388608
    %v4916 = vsub.s32 0, %v4915
    %v4917 = vadd.s32 %v4912, 1
    %vm4918 = vcmp.gt.s32.totalorder %v4917, 0
    %v4919 = vsel %vm4918, %v4917, 0
    %v4920 = vshrl.u32 %v4919, 5
    %v4921 = vand.u32 %v4919, 31
    %v4922 = vsub.s32 32, %v4921
    %v4923 = vshrl.u32 683565275, %v4922
    %v4924 = vshll.u32 683565275, %v4921
    %v4925 = vshrl.u32 2475754826, %v4922
    %v4926 = vor.u32 %v4924, %v4925
    %v4927 = vshll.u32 2475754826, %v4921
    %v4928 = vshrl.u32 2131351028, %v4922
    %v4929 = vor.u32 %v4927, %v4928
    %v4930 = vshll.u32 2131351028, %v4921
    %v4931 = vshrl.u32 2102212464, %v4922
    %v4932 = vor.u32 %v4930, %v4931
    %v4933 = vshll.u32 2102212464, %v4921
    %v4934 = vshrl.u32 920167782, %v4922
    %v4935 = vor.u32 %v4933, %v4934
    %v4936 = vshll.u32 920167782, %v4921
    %v4937 = vshrl.u32 1326507024, %v4922
    %v4938 = vor.u32 %v4936, %v4937
    %vm4939 = vcmp.lt.s32.totalorder %v4920, 1
    %vm4940 = vcmp.lt.s32.totalorder %v4920, 2
    %vm4941 = vcmp.lt.s32.totalorder %v4920, 3
    %vm4942 = vcmp.lt.s32.totalorder %v4920, 4
    %v4943 = vsel %vm4939, %v4923, %v4926
    %v4944 = vsel %vm4942, %v4932, 2102212464
    %v4945 = vsel %vm4941, %v4929, %v4944
    %v4946 = vsel %vm4940, %v4943, %v4945
    %v4947 = vsel %vm4939, %v4926, %v4929
    %v4948 = vsel %vm4942, %v4935, 920167782
    %v4949 = vsel %vm4941, %v4932, %v4948
    %v4950 = vsel %vm4940, %v4947, %v4949
    %v4951 = vsel %vm4939, %v4929, %v4932
    %v4952 = vsel %vm4942, %v4938, 1326507024
    %v4953 = vsel %vm4941, %v4935, %v4952
    %v4954 = vsel %vm4940, %v4951, %v4953
    %v4955 = vshll.u32 %v4915, 8
    %v4956 = vmul.u32.u64.compose %v4955, %v4954
    %v4957 = vextract.low.u32 %v4956
    %v4958 = vextract.high.u32 %v4956
    %v4959 = vmul.u32.u64.compose %v4955, %v4950
    %v4960 = vextract.low.u32 %v4959
    %v4961 = vextract.high.u32 %v4959
    %v4962 = vmul.u32 %v4955, %v4946
    %v4963 = vadd.s32 %v4958, %v4960
    %vm4964 = vc.u32 %v4958, %v4960
    %v4965 = vadd.s32 %v4961, 1
    %v4966 = vsel %vm4964, %v4965, %v4961
    %v4967 = vadd.s32 %v4962, %v4966
    %v4968 = vadd.s32 %v4967, 536870912
    %v4969 = vshrl.u32 %v4968, 30
    %v4970 = vshll.u32 %v4969, 30
    %v4971 = vsub.s32 %v4967, %v4970
    %vm4972 = vcmp.lt.s32.totalorder %v4971, 0
    %v4973 = vsub.s32 0, %v4971
    %v4974 = vsel %vm4972, %v4973, %v4971
    %v4975 = vclz %v4974
    %v4976 = vsub.s32 %v4975, 2
    %vm4977 = vcmp.gt.s32.totalorder 0, %v4976
    %v4978 = vsel %vm4977, 0, %v4976
    %v4979 = vsub.s32 32, %v4978
    %v4980 = vshll.u32 %v4971, %v4978
    %v4981 = vshrl.u32 %v4963, %v4979
    %v4982 = vor.u32 %v4980, %v4981
    %v4983 = vsub.s32 4294967266, %v4978
    %v4984 = vadd.s32 %v4983, 127
    %v4985 = vshll.u32 %v4984, 23
    %v4986 = vor.u32 4788187, %v4985
    %v4987 = vand.u32 2147483647, %v4986
    %v4989 = vcvt.s32.f32 %v4982
    %v4990 = vmul.f32 %v4989, %v4987
    %v4991 = vxor.u32 %v4990, 2147483648
    %v4992 = vsel %vm4909, %v4991, %v4990
    %v4993 = vsub.s32 4, %v4969
    %v4994 = vsel %vm4909, %v4993, %v4969
    %v4995 = vsel %vm4908, %v4226, %v4992
    %v4996 = vsel %vm4908, 0, %v4994
    %v4997 = vcosq.f32.pop %v4995
    %v4998 = vsinq.f32.pop %v4995
    %vm4999 = vweird.f32 %v4226
    %v5000 = vadd.s32 %v4996, 3
    %v5001 = vand.u32 %v5000, 3
    %vm5002 = vcmp.lt.s32.totalorder %v5001, 2
    %vm5003 = vcmp.eq.s32.totalorder %v5001, 0
    %v5004 = vxor.u32 %v4998, 2147483648
    %v5005 = vsel %vm5003, %v4997, %v5004
    %vm5006 = vcmp.eq.s32.totalorder %v5001, 2
    %v5007 = vxor.u32 %v4997, 2147483648
    %v5008 = vsel %vm5006, %v5007, %v4998
    %v5009 = vsel %vm5002, %v5005, %v5008
    %v5010 = vsel %vm4999, nan, %v5009
    %v5011 = vand.u32 2147483647, %v4228
    %vm5012 = vcmp.le.f32.partialorder %v5011, 0.7853982
    %vm5013 = vcmp.lt.s32.totalorder %v4228, 0
    %v5014 = vand.u32 %v4228, 2139095040
    %v5015 = vshrl.u32 %v5014, 23
    %v5016 = vsub.s32 %v5015, 127
    %v5017 = vand.u32 2147483647, %v4228
    %v5018 = vand.u32 %v5017, 8388607
    %v5019 = vor.u32 %v5018, 8388608
    %v5020 = vsub.s32 0, %v5019
    %v5021 = vadd.s32 %v5016, 1
    %vm5022 = vcmp.gt.s32.totalorder %v5021, 0
    %v5023 = vsel %vm5022, %v5021, 0
    %v5024 = vshrl.u32 %v5023, 5
    %v5025 = vand.u32 %v5023, 31
    %v5026 = vsub.s32 32, %v5025
    %v5027 = vshrl.u32 683565275, %v5026
    %v5028 = vshll.u32 683565275, %v5025
    %v5029 = vshrl.u32 2475754826, %v5026
    %v5030 = vor.u32 %v5028, %v5029
    %v5031 = vshll.u32 2475754826, %v5025
    %v5032 = vshrl.u32 2131351028, %v5026
    %v5033 = vor.u32 %v5031, %v5032
    %v5034 = vshll.u32 2131351028, %v5025
    %v5035 = vshrl.u32 2102212464, %v5026
    %v5036 = vor.u32 %v5034, %v5035
    %v5037 = vshll.u32 2102212464, %v5025
    %v5038 = vshrl.u32 920167782, %v5026
    %v5039 = vor.u32 %v5037, %v5038
    %v5040 = vshll.u32 920167782, %v5025
    %v5041 = vshrl.u32 1326507024, %v5026
    %v5042 = vor.u32 %v5040, %v5041
    %vm5043 = vcmp.lt.s32.totalorder %v5024, 1
    %vm5044 = vcmp.lt.s32.totalorder %v5024, 2
    %vm5045 = vcmp.lt.s32.totalorder %v5024, 3
    %vm5046 = vcmp.lt.s32.totalorder %v5024, 4
    %v5047 = vsel %vm5043, %v5027, %v5030
    %v5048 = vsel %vm5046, %v5036, 2102212464
    %v5049 = vsel %vm5045, %v5033, %v5048
    %v5050 = vsel %vm5044, %v5047, %v5049
    %v5051 = vsel %vm5043, %v5030, %v5033
    %v5052 = vsel %vm5046, %v5039, 920167782
    %v5053 = vsel %vm5045, %v5036, %v5052
    %v5054 = vsel %vm5044, %v5051, %v5053
    %v5055 = vsel %vm5043, %v5033, %v5036
    %v5056 = vsel %vm5046, %v5042, 1326507024
    %v5057 = vsel %vm5045, %v5039, %v5056
    %v5058 = vsel %vm5044, %v5055, %v5057
    %v5059 = vshll.u32 %v5019, 8
    %v5060 = vmul.u32.u64.compose %v5059, %v5058
    %v5061 = vextract.low.u32 %v5060
    %v5062 = vextract.high.u32 %v5060
    %v5063 = vmul.u32.u64.compose %v5059, %v5054
    %v5064 = vextract.low.u32 %v5063
    %v5065 = vextract.high.u32 %v5063
    %v5066 = vmul.u32 %v5059, %v5050
    %v5067 = vadd.s32 %v5062, %v5064
    %vm5068 = vc.u32 %v5062, %v5064
    %v5069 = vadd.s32 %v5065, 1
    %v5070 = vsel %vm5068, %v5069, %v5065
    %v5071 = vadd.s32 %v5066, %v5070
    %v5072 = vadd.s32 %v5071, 536870912
    %v5073 = vshrl.u32 %v5072, 30
    %v5074 = vshll.u32 %v5073, 30
    %v5075 = vsub.s32 %v5071, %v5074
    %vm5076 = vcmp.lt.s32.totalorder %v5075, 0
    %v5077 = vsub.s32 0, %v5075
    %v5078 = vsel %vm5076, %v5077, %v5075
    %v5079 = vclz %v5078
    %v5080 = vsub.s32 %v5079, 2
    %vm5081 = vcmp.gt.s32.totalorder 0, %v5080
    %v5082 = vsel %vm5081, 0, %v5080
    %v5083 = vsub.s32 32, %v5082
    %v5084 = vshll.u32 %v5075, %v5082
    %v5085 = vshrl.u32 %v5067, %v5083
    %v5086 = vor.u32 %v5084, %v5085
    %v5087 = vsub.s32 4294967266, %v5082
    %v5088 = vadd.s32 %v5087, 127
    %v5089 = vshll.u32 %v5088, 23
    %v5090 = vor.u32 4788187, %v5089
    %v5091 = vand.u32 2147483647, %v5090
    %v5093 = vcvt.s32.f32 %v5086
    %v5094 = vmul.f32 %v5093, %v5091
    %v5095 = vxor.u32 %v5094, 2147483648
    %v5096 = vsel %vm5013, %v5095, %v5094
    %v5097 = vsub.s32 4, %v5073
    %v5098 = vsel %vm5013, %v5097, %v5073
    %v5099 = vsel %vm5012, %v4228, %v5096
    %v5100 = vsel %vm5012, 0, %v5098
    %v5101 = vcosq.f32.pop %v5099
    %v5102 = vsinq.f32.pop %v5099
    %vm5103 = vweird.f32 %v4228
    %v5104 = vadd.s32 %v5100, 3
    %v5105 = vand.u32 %v5104, 3
    %vm5106 = vcmp.lt.s32.totalorder %v5105, 2
    %vm5107 = vcmp.eq.s32.totalorder %v5105, 0
    %v5108 = vxor.u32 %v5102, 2147483648
    %v5109 = vsel %vm5107, %v5101, %v5108
    %vm5110 = vcmp.eq.s32.totalorder %v5105, 2
    %v5111 = vxor.u32 %v5101, 2147483648
    %v5112 = vsel %vm5110, %v5111, %v5102
    %v5113 = vsel %vm5106, %v5109, %v5112
    %v5114 = vsel %vm5103, nan, %v5113
    %v5115 = vand.u32 2147483647, %v4277
    %vm5116 = vcmp.le.f32.partialorder %v5115, 0.7853982
    %vm5117 = vcmp.lt.s32.totalorder %v4277, 0
    %v5118 = vand.u32 %v4277, 2139095040
    %v5119 = vshrl.u32 %v5118, 23
    %v5120 = vsub.s32 %v5119, 127
    %v5121 = vand.u32 2147483647, %v4277
    %v5122 = vand.u32 %v5121, 8388607
    %v5123 = vor.u32 %v5122, 8388608
    %v5124 = vsub.s32 0, %v5123
    %v5125 = vadd.s32 %v5120, 1
    %vm5126 = vcmp.gt.s32.totalorder %v5125, 0
    %v5127 = vsel %vm5126, %v5125, 0
    %v5128 = vshrl.u32 %v5127, 5
    %v5129 = vand.u32 %v5127, 31
    %v5130 = vsub.s32 32, %v5129
    %v5131 = vshrl.u32 683565275, %v5130
    %v5132 = vshll.u32 683565275, %v5129
    %v5133 = vshrl.u32 2475754826, %v5130
    %v5134 = vor.u32 %v5132, %v5133
    %v5135 = vshll.u32 2475754826, %v5129
    %v5136 = vshrl.u32 2131351028, %v5130
    %v5137 = vor.u32 %v5135, %v5136
    %v5138 = vshll.u32 2131351028, %v5129
    %v5139 = vshrl.u32 2102212464, %v5130
    %v5140 = vor.u32 %v5138, %v5139
    %v5141 = vshll.u32 2102212464, %v5129
    %v5142 = vshrl.u32 920167782, %v5130
    %v5143 = vor.u32 %v5141, %v5142
    %v5144 = vshll.u32 920167782, %v5129
    %v5145 = vshrl.u32 1326507024, %v5130
    %v5146 = vor.u32 %v5144, %v5145
    %vm5147 = vcmp.lt.s32.totalorder %v5128, 1
    %vm5148 = vcmp.lt.s32.totalorder %v5128, 2
    %vm5149 = vcmp.lt.s32.totalorder %v5128, 3
    %vm5150 = vcmp.lt.s32.totalorder %v5128, 4
    %v5151 = vsel %vm5147, %v5131, %v5134
    %v5152 = vsel %vm5150, %v5140, 2102212464
    %v5153 = vsel %vm5149, %v5137, %v5152
    %v5154 = vsel %vm5148, %v5151, %v5153
    %v5155 = vsel %vm5147, %v5134, %v5137
    %v5156 = vsel %vm5150, %v5143, 920167782
    %v5157 = vsel %vm5149, %v5140, %v5156
    %v5158 = vsel %vm5148, %v5155, %v5157
    %v5159 = vsel %vm5147, %v5137, %v5140
    %v5160 = vsel %vm5150, %v5146, 1326507024
    %v5161 = vsel %vm5149, %v5143, %v5160
    %v5162 = vsel %vm5148, %v5159, %v5161
    %v5163 = vshll.u32 %v5123, 8
    %v5164 = vmul.u32.u64.compose %v5163, %v5162
    %v5165 = vextract.low.u32 %v5164
    %v5166 = vextract.high.u32 %v5164
    %v5167 = vmul.u32.u64.compose %v5163, %v5158
    %v5168 = vextract.low.u32 %v5167
    %v5169 = vextract.high.u32 %v5167
    %v5170 = vmul.u32 %v5163, %v5154
    %v5171 = vadd.s32 %v5166, %v5168
    %vm5172 = vc.u32 %v5166, %v5168
    %v5173 = vadd.s32 %v5169, 1
    %v5174 = vsel %vm5172, %v5173, %v5169
    %v5175 = vadd.s32 %v5170, %v5174
    %v5176 = vadd.s32 %v5175, 536870912
    %v5177 = vshrl.u32 %v5176, 30
    %v5178 = vshll.u32 %v5177, 30
    %v5179 = vsub.s32 %v5175, %v5178
    %vm5180 = vcmp.lt.s32.totalorder %v5179, 0
    %v5181 = vsub.s32 0, %v5179
    %v5182 = vsel %vm5180, %v5181, %v5179
    %v5183 = vclz %v5182
    %v5184 = vsub.s32 %v5183, 2
    %vm5185 = vcmp.gt.s32.totalorder 0, %v5184
    %v5186 = vsel %vm5185, 0, %v5184
    %v5187 = vsub.s32 32, %v5186
    %v5188 = vshll.u32 %v5179, %v5186
    %v5189 = vshrl.u32 %v5171, %v5187
    %v5190 = vor.u32 %v5188, %v5189
    %v5191 = vsub.s32 4294967266, %v5186
    %v5192 = vadd.s32 %v5191, 127
    %v5193 = vshll.u32 %v5192, 23
    %v5194 = vor.u32 4788187, %v5193
    %v5195 = vand.u32 2147483647, %v5194
    %v5197 = vcvt.s32.f32 %v5190
    %v5198 = vmul.f32 %v5197, %v5195
    %v5199 = vxor.u32 %v5198, 2147483648
    %v5200 = vsel %vm5117, %v5199, %v5198
    %v5201 = vsub.s32 4, %v5177
    %v5202 = vsel %vm5117, %v5201, %v5177
    %v5203 = vsel %vm5116, %v4277, %v5200
    %v5204 = vsel %vm5116, 0, %v5202
    %v5205 = vcosq.f32.pop %v5203
    %v5206 = vsinq.f32.pop %v5203
    %vm5207 = vweird.f32 %v4277
    %v5208 = vadd.s32 %v5204, 3
    %v5209 = vand.u32 %v5208, 3
    %vm5210 = vcmp.lt.s32.totalorder %v5209, 2
    %vm5211 = vcmp.eq.s32.totalorder %v5209, 0
    %v5212 = vxor.u32 %v5206, 2147483648
    %v5213 = vsel %vm5211, %v5205, %v5212
    %vm5214 = vcmp.eq.s32.totalorder %v5209, 2
    %v5215 = vxor.u32 %v5205, 2147483648
    %v5216 = vsel %vm5214, %v5215, %v5206
    %v5217 = vsel %vm5210, %v5213, %v5216
    %v5218 = vsel %vm5207, nan, %v5217
    %v5219 = vand.u32 2147483647, %v4230
    %vm5220 = vcmp.le.f32.partialorder %v5219, 0.7853982
    %vm5221 = vcmp.lt.s32.totalorder %v4230, 0
    %v5222 = vand.u32 %v4230, 2139095040
    %v5223 = vshrl.u32 %v5222, 23
    %v5224 = vsub.s32 %v5223, 127
    %v5225 = vand.u32 2147483647, %v4230
    %v5226 = vand.u32 %v5225, 8388607
    %v5227 = vor.u32 %v5226, 8388608
    %v5228 = vsub.s32 0, %v5227
    %v5229 = vadd.s32 %v5224, 1
    %vm5230 = vcmp.gt.s32.totalorder %v5229, 0
    %v5231 = vsel %vm5230, %v5229, 0
    %v5232 = vshrl.u32 %v5231, 5
    %v5233 = vand.u32 %v5231, 31
    %v5234 = vsub.s32 32, %v5233
    %v5235 = vshrl.u32 683565275, %v5234
    %v5236 = vshll.u32 683565275, %v5233
    %v5237 = vshrl.u32 2475754826, %v5234
    %v5238 = vor.u32 %v5236, %v5237
    %v5239 = vshll.u32 2475754826, %v5233
    %v5240 = vshrl.u32 2131351028, %v5234
    %v5241 = vor.u32 %v5239, %v5240
    %v5242 = vshll.u32 2131351028, %v5233
    %v5243 = vshrl.u32 2102212464, %v5234
    %v5244 = vor.u32 %v5242, %v5243
    %v5245 = vshll.u32 2102212464, %v5233
    %v5246 = vshrl.u32 920167782, %v5234
    %v5247 = vor.u32 %v5245, %v5246
    %v5248 = vshll.u32 920167782, %v5233
    %v5249 = vshrl.u32 1326507024, %v5234
    %v5250 = vor.u32 %v5248, %v5249
    %vm5251 = vcmp.lt.s32.totalorder %v5232, 1
    %vm5252 = vcmp.lt.s32.totalorder %v5232, 2
    %vm5253 = vcmp.lt.s32.totalorder %v5232, 3
    %vm5254 = vcmp.lt.s32.totalorder %v5232, 4
    %v5255 = vsel %vm5251, %v5235, %v5238
    %v5256 = vsel %vm5254, %v5244, 2102212464
    %v5257 = vsel %vm5253, %v5241, %v5256
    %v5258 = vsel %vm5252, %v5255, %v5257
    %v5259 = vsel %vm5251, %v5238, %v5241
    %v5260 = vsel %vm5254, %v5247, 920167782
    %v5261 = vsel %vm5253, %v5244, %v5260
    %v5262 = vsel %vm5252, %v5259, %v5261
    %v5263 = vsel %vm5251, %v5241, %v5244
    %v5264 = vsel %vm5254, %v5250, 1326507024
    %v5265 = vsel %vm5253, %v5247, %v5264
    %v5266 = vsel %vm5252, %v5263, %v5265
    %v5267 = vshll.u32 %v5227, 8
    %v5268 = vmul.u32.u64.compose %v5267, %v5266
    %v5269 = vextract.low.u32 %v5268
    %v5270 = vextract.high.u32 %v5268
    %v5271 = vmul.u32.u64.compose %v5267, %v5262
    %v5272 = vextract.low.u32 %v5271
    %v5273 = vextract.high.u32 %v5271
    %v5274 = vmul.u32 %v5267, %v5258
    %v5275 = vadd.s32 %v5270, %v5272
    %vm5276 = vc.u32 %v5270, %v5272
    %v5277 = vadd.s32 %v5273, 1
    %v5278 = vsel %vm5276, %v5277, %v5273
    %v5279 = vadd.s32 %v5274, %v5278
    %v5280 = vadd.s32 %v5279, 536870912
    %v5281 = vshrl.u32 %v5280, 30
    %v5282 = vshll.u32 %v5281, 30
    %v5283 = vsub.s32 %v5279, %v5282
    %vm5284 = vcmp.lt.s32.totalorder %v5283, 0
    %v5285 = vsub.s32 0, %v5283
    %v5286 = vsel %vm5284, %v5285, %v5283
    %v5287 = vclz %v5286
    %v5288 = vsub.s32 %v5287, 2
    %vm5289 = vcmp.gt.s32.totalorder 0, %v5288
    %v5290 = vsel %vm5289, 0, %v5288
    %v5291 = vsub.s32 32, %v5290
    %v5292 = vshll.u32 %v5283, %v5290
    %v5293 = vshrl.u32 %v5275, %v5291
    %v5294 = vor.u32 %v5292, %v5293
    %v5295 = vsub.s32 4294967266, %v5290
    %v5296 = vadd.s32 %v5295, 127
    %v5297 = vshll.u32 %v5296, 23
    %v5298 = vor.u32 4788187, %v5297
    %v5299 = vand.u32 2147483647, %v5298
    %v5301 = vcvt.s32.f32 %v5294
    %v5302 = vmul.f32 %v5301, %v5299
    %v5303 = vxor.u32 %v5302, 2147483648
    %v5304 = vsel %vm5221, %v5303, %v5302
    %v5305 = vsub.s32 4, %v5281
    %v5306 = vsel %vm5221, %v5305, %v5281
    %v5307 = vsel %vm5220, %v4230, %v5304
    %v5308 = vsel %vm5220, 0, %v5306
    %v5309 = vcosq.f32.pop %v5307
    %v5310 = vsinq.f32.pop %v5307
    %vm5311 = vweird.f32 %v4230
    %v5312 = vadd.s32 %v5308, 3
    %v5313 = vand.u32 %v5312, 3
    %vm5314 = vcmp.lt.s32.totalorder %v5313, 2
    %vm5315 = vcmp.eq.s32.totalorder %v5313, 0
    %v5316 = vxor.u32 %v5310, 2147483648
    %v5317 = vsel %vm5315, %v5309, %v5316
    %vm5318 = vcmp.eq.s32.totalorder %v5313, 2
    %v5319 = vxor.u32 %v5309, 2147483648
    %v5320 = vsel %vm5318, %v5319, %v5310
    %v5321 = vsel %vm5314, %v5317, %v5320
    %v5322 = vsel %vm5311, nan, %v5321
    %v5323 = vand.u32 2147483647, %v4232
    %vm5324 = vcmp.le.f32.partialorder %v5323, 0.7853982
    %vm5325 = vcmp.lt.s32.totalorder %v4232, 0
    %v5326 = vand.u32 %v4232, 2139095040
    %v5327 = vshrl.u32 %v5326, 23
    %v5328 = vsub.s32 %v5327, 127
    %v5329 = vand.u32 2147483647, %v4232
    %v5330 = vand.u32 %v5329, 8388607
    %v5331 = vor.u32 %v5330, 8388608
    %v5332 = vsub.s32 0, %v5331
    %v5333 = vadd.s32 %v5328, 1
    %vm5334 = vcmp.gt.s32.totalorder %v5333, 0
    %v5335 = vsel %vm5334, %v5333, 0
    %v5336 = vshrl.u32 %v5335, 5
    %v5337 = vand.u32 %v5335, 31
    %v5338 = vsub.s32 32, %v5337
    %v5339 = vshrl.u32 683565275, %v5338
    %v5340 = vshll.u32 683565275, %v5337
    %v5341 = vshrl.u32 2475754826, %v5338
    %v5342 = vor.u32 %v5340, %v5341
    %v5343 = vshll.u32 2475754826, %v5337
    %v5344 = vshrl.u32 2131351028, %v5338
    %v5345 = vor.u32 %v5343, %v5344
    %v5346 = vshll.u32 2131351028, %v5337
    %v5347 = vshrl.u32 2102212464, %v5338
    %v5348 = vor.u32 %v5346, %v5347
    %v5349 = vshll.u32 2102212464, %v5337
    %v5350 = vshrl.u32 920167782, %v5338
    %v5351 = vor.u32 %v5349, %v5350
    %v5352 = vshll.u32 920167782, %v5337
    %v5353 = vshrl.u32 1326507024, %v5338
    %v5354 = vor.u32 %v5352, %v5353
    %vm5355 = vcmp.lt.s32.totalorder %v5336, 1
    %vm5356 = vcmp.lt.s32.totalorder %v5336, 2
    %vm5357 = vcmp.lt.s32.totalorder %v5336, 3
    %vm5358 = vcmp.lt.s32.totalorder %v5336, 4
    %v5359 = vsel %vm5355, %v5339, %v5342
    %v5360 = vsel %vm5358, %v5348, 2102212464
    %v5361 = vsel %vm5357, %v5345, %v5360
    %v5362 = vsel %vm5356, %v5359, %v5361
    %v5363 = vsel %vm5355, %v5342, %v5345
    %v5364 = vsel %vm5358, %v5351, 920167782
    %v5365 = vsel %vm5357, %v5348, %v5364
    %v5366 = vsel %vm5356, %v5363, %v5365
    %v5367 = vsel %vm5355, %v5345, %v5348
    %v5368 = vsel %vm5358, %v5354, 1326507024
    %v5369 = vsel %vm5357, %v5351, %v5368
    %v5370 = vsel %vm5356, %v5367, %v5369
    %v5371 = vshll.u32 %v5331, 8
    %v5372 = vmul.u32.u64.compose %v5371, %v5370
    %v5373 = vextract.low.u32 %v5372
    %v5374 = vextract.high.u32 %v5372
    %v5375 = vmul.u32.u64.compose %v5371, %v5366
    %v5376 = vextract.low.u32 %v5375
    %v5377 = vextract.high.u32 %v5375
    %v5378 = vmul.u32 %v5371, %v5362
    %v5379 = vadd.s32 %v5374, %v5376
    %vm5380 = vc.u32 %v5374, %v5376
    %v5381 = vadd.s32 %v5377, 1
    %v5382 = vsel %vm5380, %v5381, %v5377
    %v5383 = vadd.s32 %v5378, %v5382
    %v5384 = vadd.s32 %v5383, 536870912
    %v5385 = vshrl.u32 %v5384, 30
    %v5386 = vshll.u32 %v5385, 30
    %v5387 = vsub.s32 %v5383, %v5386
    %vm5388 = vcmp.lt.s32.totalorder %v5387, 0
    %v5389 = vsub.s32 0, %v5387
    %v5390 = vsel %vm5388, %v5389, %v5387
    %v5391 = vclz %v5390
    %v5392 = vsub.s32 %v5391, 2
    %vm5393 = vcmp.gt.s32.totalorder 0, %v5392
    %v5394 = vsel %vm5393, 0, %v5392
    %v5395 = vsub.s32 32, %v5394
    %v5396 = vshll.u32 %v5387, %v5394
    %v5397 = vshrl.u32 %v5379, %v5395
    %v5398 = vor.u32 %v5396, %v5397
    %v5399 = vsub.s32 4294967266, %v5394
    %v5400 = vadd.s32 %v5399, 127
    %v5401 = vshll.u32 %v5400, 23
    %v5402 = vor.u32 4788187, %v5401
    %v5403 = vand.u32 2147483647, %v5402
    %v5405 = vcvt.s32.f32 %v5398
    %v5406 = vmul.f32 %v5405, %v5403
    %v5407 = vxor.u32 %v5406, 2147483648
    %v5408 = vsel %vm5325, %v5407, %v5406
    %v5409 = vsub.s32 4, %v5385
    %v5410 = vsel %vm5325, %v5409, %v5385
    %v5411 = vsel %vm5324, %v4232, %v5408
    %v5412 = vsel %vm5324, 0, %v5410
    %v5413 = vcosq.f32.pop %v5411
    %v5414 = vsinq.f32.pop %v5411
    %vm5415 = vweird.f32 %v4232
    %v5416 = vadd.s32 %v5412, 3
    %v5417 = vand.u32 %v5416, 3
    %vm5418 = vcmp.lt.s32.totalorder %v5417, 2
    %vm5419 = vcmp.eq.s32.totalorder %v5417, 0
    %v5420 = vxor.u32 %v5414, 2147483648
    %v5421 = vsel %vm5419, %v5413, %v5420
    %vm5422 = vcmp.eq.s32.totalorder %v5417, 2
    %v5423 = vxor.u32 %v5413, 2147483648
    %v5424 = vsel %vm5422, %v5423, %v5414
    %v5425 = vsel %vm5418, %v5421, %v5424
    %v5426 = vsel %vm5415, nan, %v5425
    %v5427 = vand.u32 2147483647, %v4280
    %vm5428 = vcmp.le.f32.partialorder %v5427, 0.7853982
    %vm5429 = vcmp.lt.s32.totalorder %v4280, 0
    %v5430 = vand.u32 %v4280, 2139095040
    %v5431 = vshrl.u32 %v5430, 23
    %v5432 = vsub.s32 %v5431, 127
    %v5433 = vand.u32 2147483647, %v4280
    %v5434 = vand.u32 %v5433, 8388607
    %v5435 = vor.u32 %v5434, 8388608
    %v5436 = vsub.s32 0, %v5435
    %v5437 = vadd.s32 %v5432, 1
    %vm5438 = vcmp.gt.s32.totalorder %v5437, 0
    %v5439 = vsel %vm5438, %v5437, 0
    %v5440 = vshrl.u32 %v5439, 5
    %v5441 = vand.u32 %v5439, 31
    %v5442 = vsub.s32 32, %v5441
    %v5443 = vshrl.u32 683565275, %v5442
    %v5444 = vshll.u32 683565275, %v5441
    %v5445 = vshrl.u32 2475754826, %v5442
    %v5446 = vor.u32 %v5444, %v5445
    %v5447 = vshll.u32 2475754826, %v5441
    %v5448 = vshrl.u32 2131351028, %v5442
    %v5449 = vor.u32 %v5447, %v5448
    %v5450 = vshll.u32 2131351028, %v5441
    %v5451 = vshrl.u32 2102212464, %v5442
    %v5452 = vor.u32 %v5450, %v5451
    %v5453 = vshll.u32 2102212464, %v5441
    %v5454 = vshrl.u32 920167782, %v5442
    %v5455 = vor.u32 %v5453, %v5454
    %v5456 = vshll.u32 920167782, %v5441
    %v5457 = vshrl.u32 1326507024, %v5442
    %v5458 = vor.u32 %v5456, %v5457
    %vm5459 = vcmp.lt.s32.totalorder %v5440, 1
    %vm5460 = vcmp.lt.s32.totalorder %v5440, 2
    %vm5461 = vcmp.lt.s32.totalorder %v5440, 3
    %vm5462 = vcmp.lt.s32.totalorder %v5440, 4
    %v5463 = vsel %vm5459, %v5443, %v5446
    %v5464 = vsel %vm5462, %v5452, 2102212464
    %v5465 = vsel %vm5461, %v5449, %v5464
    %v5466 = vsel %vm5460, %v5463, %v5465
    %v5467 = vsel %vm5459, %v5446, %v5449
    %v5468 = vsel %vm5462, %v5455, 920167782
    %v5469 = vsel %vm5461, %v5452, %v5468
    %v5470 = vsel %vm5460, %v5467, %v5469
    %v5471 = vsel %vm5459, %v5449, %v5452
    %v5472 = vsel %vm5462, %v5458, 1326507024
    %v5473 = vsel %vm5461, %v5455, %v5472
    %v5474 = vsel %vm5460, %v5471, %v5473
    %v5475 = vshll.u32 %v5435, 8
    %v5476 = vmul.u32.u64.compose %v5475, %v5474
    %v5477 = vextract.low.u32 %v5476
    %v5478 = vextract.high.u32 %v5476
    %v5479 = vmul.u32.u64.compose %v5475, %v5470
    %v5480 = vextract.low.u32 %v5479
    %v5481 = vextract.high.u32 %v5479
    %v5482 = vmul.u32 %v5475, %v5466
    %v5483 = vadd.s32 %v5478, %v5480
    %vm5484 = vc.u32 %v5478, %v5480
    %v5485 = vadd.s32 %v5481, 1
    %v5486 = vsel %vm5484, %v5485, %v5481
    %v5487 = vadd.s32 %v5482, %v5486
    %v5488 = vadd.s32 %v5487, 536870912
    %v5489 = vshrl.u32 %v5488, 30
    %v5490 = vshll.u32 %v5489, 30
    %v5491 = vsub.s32 %v5487, %v5490
    %vm5492 = vcmp.lt.s32.totalorder %v5491, 0
    %v5493 = vsub.s32 0, %v5491
    %v5494 = vsel %vm5492, %v5493, %v5491
    %v5495 = vclz %v5494
    %v5496 = vsub.s32 %v5495, 2
    %vm5497 = vcmp.gt.s32.totalorder 0, %v5496
    %v5498 = vsel %vm5497, 0, %v5496
    %v5499 = vsub.s32 32, %v5498
    %v5500 = vshll.u32 %v5491, %v5498
    %v5501 = vshrl.u32 %v5483, %v5499
    %v5502 = vor.u32 %v5500, %v5501
    %v5503 = vsub.s32 4294967266, %v5498
    %v5504 = vadd.s32 %v5503, 127
    %v5505 = vshll.u32 %v5504, 23
    %v5506 = vor.u32 4788187, %v5505
    %v5507 = vand.u32 2147483647, %v5506
    %v5509 = vcvt.s32.f32 %v5502
    %v5510 = vmul.f32 %v5509, %v5507
    %v5511 = vxor.u32 %v5510, 2147483648
    %v5512 = vsel %vm5429, %v5511, %v5510
    %v5513 = vsub.s32 4, %v5489
    %v5514 = vsel %vm5429, %v5513, %v5489
    %v5515 = vsel %vm5428, %v4280, %v5512
    %v5516 = vsel %vm5428, 0, %v5514
    %v5517 = vcosq.f32.pop %v5515
    %v5518 = vsinq.f32.pop %v5515
    %vm5519 = vweird.f32 %v4280
    %v5520 = vadd.s32 %v5516, 3
    %v5521 = vand.u32 %v5520, 3
    %vm5522 = vcmp.lt.s32.totalorder %v5521, 2
    %vm5523 = vcmp.eq.s32.totalorder %v5521, 0
    %v5524 = vxor.u32 %v5518, 2147483648
    %v5525 = vsel %vm5523, %v5517, %v5524
    %vm5526 = vcmp.eq.s32.totalorder %v5521, 2
    %v5527 = vxor.u32 %v5517, 2147483648
    %v5528 = vsel %vm5526, %v5527, %v5518
    %v5529 = vsel %vm5522, %v5525, %v5528
    %v5530 = vsel %vm5519, nan, %v5529
    %v5531 = vld [vmem:[%s3] sm:$0xf]
    %v5532 = vld [vmem:[%s3 + $0x4] sm:$0xf]
    %v5533 = vld [vmem:[%s3 + $0x8] sm:$0xf]
    %v5534 = vld [vmem:[%s3 + $0xc] sm:$0xf]
    %v5535 = vld [vmem:[%s7] sm:$0xff]
    %v5536 = vld [vmem:[%s7 + $0x8] sm:$0xff]
    %v5537 = vld [vmem:[%s7 + $0x10] sm:$0xff]
    %v5538 = vld [vmem:[%s7 + $0x18] sm:$0xff]
    %v5539 = vpack.c.bf16 %v3342, %v3030
    %v5540 = vpack.c.bf16 %v3446, %v3134
    %v5541 = vpack.c.bf16 %v3550, %v3238
    %v5542 = vpack.c.bf16 %v3966, %v3654
    %v5543 = vpack.c.bf16 %v4070, %v3758
    %v5544 = vpack.c.bf16 %v4174, %v3862
    %5546 = vset.pattern.permute.xlu0 0
    %5547 = vperm.xlu0 %5546, %v5535
    %v5548 = vpop.permute.xlu0 %5547
    %5551 = vset.pattern.permute.xlu0 0
    %5552 = vperm.xlu0 %5551, %v5536
    %v5553 = vpop.permute.xlu0 %5552
    %5556 = vset.pattern.permute.xlu0 0
    %5557 = vperm.xlu0 %5556, %v5537
    %v5558 = vpop.permute.xlu0 %5557
    %5561 = vset.pattern.permute.xlu0 0
    %5562 = vperm.xlu0 %5561, %v5538
    %v5563 = vpop.permute.xlu0 %5562
    %v5569 = vunpack.c.l.b16 %v5531
    %v5570 = vunpack.c.l.b16 %v5532
    %v5571 = vunpack.c.l.b16 %v5533
    %v5572 = vunpack.c.l.b16 %v5534
    %v5573 = vpack.c.b16 %v5570, %v5569
    %v5574 = vpack.c.b16 %v5572, %v5571
    %v5576 = vsel %vm2818, %v5573, 0
    %v5579 = vsel %vm2818, %v5574, 0
    %5581 = vmatprep.subr.bf16.mxu0 %v5540
    %5582 = vmatpush1.bf16.msra.mxu0 %v5539
    %5583 = vmatprep.subr.bf16.mxu0 %v5543
    %5584 = vmatpush1.bf16.msra.mxu0 %v5542
    %5585 = vmatprep.subr.bf16.mxu0 0
    %5586 = vmatpush1.bf16.msra.mxu0 0
    %5587 = vmatprep.subr.bf16.mxu0 0
    %5588 = vmatpush1.bf16.msra.mxu0 0
    %5589 = vmatprep.subr.bf16.mxu0 0
    %5590 = vmatpush1.bf16.msra.mxu0 0
    %5591 = vmatprep.subr.bf16.mxu0 0
    %5592 = vmatpush1.bf16.msra.mxu0 0
    %5593 = vmatprep.subr.bf16.mxu0 0
    %5594 = vmatpush1.bf16.msra.mxu0 0
    %5595 = vmatprep.subr.bf16.mxu0 0
    %5596 = vmatpush1.bf16.msra.mxu0 0
    %5597 = vmatprep.subr.bf16.mxu0 0
    %5598 = vmatpush1.bf16.msra.mxu0 0
    %5599 = vmatprep.subr.bf16.mxu0 0
    %5600 = vmatpush1.bf16.msra.mxu0 0
    %5601 = vmatprep.subr.bf16.mxu0 0
    %5602 = vmatpush1.bf16.msra.mxu0 0
    %5603 = vmatprep.subr.bf16.mxu0 0
    %5604 = vmatpush1.bf16.msra.mxu0 0
    %5605 = vmatprep.subr.bf16.mxu0 0
    %5606 = vmatpush1.bf16.msra.mxu0 0
    %5607 = vmatprep.subr.bf16.mxu0 0
    %5608 = vmatpush1.bf16.msra.mxu0 0
    %5609 = vmatprep.subr.bf16.mxu0 0
    %5610 = vmatpush1.bf16.msra.mxu0 0
    %5611 = vmatprep.subr.bf16.mxu0 0
    %5612 = vmatpush1.bf16.msra.mxu0 0
    %5613 = vmatprep.mubr.bf16.mxu0 0
    %5614 = vmatmul.mubr.bf16.gmra.mrb[0].mxu0 %v5576
    %v5615 = vpop.f32.mrb[0].mxu0
    %v5616 = vadd.f32 %v5548, %v5615
    %v5617 = vpop.f32.mrb[0].mxu0
    %v5618 = vadd.f32 %v5548, %v5617
    %v5619 = vpop.f32.mrb[0].mxu0
    %v5620 = vadd.f32 %v5553, %v5619
    %v5621 = vpop.f32.mrb[0].mxu0
    %v5622 = vadd.f32 %v5553, %v5621
    %5623 = vmatprep.mubr.bf16.mxu0 0
    %5624 = vmatmul.mubr.bf16.gmra.mrb[0].mxu0 %v5579
    %v5625 = vpop.f32.mrb[0].mxu0
    %v5626 = vadd.f32 %v5558, %v5625
    %v5627 = vpop.f32.mrb[0].mxu0
    %v5628 = vadd.f32 %v5558, %v5627
    %v5629 = vpop.f32.mrb[0].mxu0
    %v5630 = vadd.f32 %v5563, %v5629
    %v5631 = vpop.f32.mrb[0].mxu0
    %v5632 = vadd.f32 %v5563, %v5631
    %5633 = vdwg.mxu0
    %5634 = vmatprep.subr.bf16.mxu0 0
    %5635 = vmatpush1.bf16.msra.mxu0 %v5541
    %5636 = vmatprep.subr.bf16.mxu0 0
    %5637 = vmatpush1.bf16.msra.mxu0 %v5544
    %5638 = vmatprep.subr.bf16.mxu0 0
    %5639 = vmatpush1.bf16.msra.mxu0 0
    %5640 = vmatprep.subr.bf16.mxu0 0
    %5641 = vmatpush1.bf16.msra.mxu0 0
    %5642 = vmatprep.subr.bf16.mxu0 0
    %5643 = vmatpush1.bf16.msra.mxu0 0
    %5644 = vmatprep.subr.bf16.mxu0 0
    %5645 = vmatpush1.bf16.msra.mxu0 0
    %5646 = vmatprep.subr.bf16.mxu0 0
    %5647 = vmatpush1.bf16.msra.mxu0 0
    %5648 = vmatprep.subr.bf16.mxu0 0
    %5649 = vmatpush1.bf16.msra.mxu0 0
    %5650 = vmatprep.subr.bf16.mxu0 0
    %5651 = vmatpush1.bf16.msra.mxu0 0
    %5652 = vmatprep.subr.bf16.mxu0 0
    %5653 = vmatpush1.bf16.msra.mxu0 0
    %5654 = vmatprep.subr.bf16.mxu0 0
    %5655 = vmatpush1.bf16.msra.mxu0 0
    %5656 = vmatprep.subr.bf16.mxu0 0
    %5657 = vmatpush1.bf16.msra.mxu0 0
    %5658 = vmatprep.subr.bf16.mxu0 0
    %5659 = vmatpush1.bf16.msra.mxu0 0
    %5660 = vmatprep.subr.bf16.mxu0 0
    %5661 = vmatpush1.bf16.msra.mxu0 0
    %5662 = vmatprep.subr.bf16.mxu0 0
    %5663 = vmatpush1.bf16.msra.mxu0 0
    %5664 = vmatprep.subr.bf16.mxu0 0
    %5665 = vmatpush1.bf16.msra.mxu0 0
    %5666 = vmatprep.mubr.bf16.mxu0 0
    %5667 = vmatmul.mubr.bf16.gmra.mrb[0].mxu0 %v5576
    %v5668 = vpop.f32.mrb[0].mxu0
    %v5669 = vadd.f32 %v5548, %v5668
    %v5670 = vpop.f32.mrb[0].mxu0
    %v5671 = vpop.f32.mrb[0].mxu0
    %v5672 = vadd.f32 %v5553, %v5671
    %v5673 = vpop.f32.mrb[0].mxu0
    %5674 = vmatprep.mubr.bf16.mxu0 0
    %5675 = vmatmul.mubr.bf16.gmra.mrb[0].mxu0 %v5579
    %v5676 = vpop.f32.mrb[0].mxu0
    %v5677 = vadd.f32 %v5558, %v5676
    %v5678 = vpop.f32.mrb[0].mxu0
    %v5679 = vpop.f32.mrb[0].mxu0
    %v5680 = vadd.f32 %v5563, %v5679
    %v5681 = vpop.f32.mrb[0].mxu0
    %5682 = vdwg.mxu0
    %v5683 = vand.u32 2147483647, %v5616
    %vm5684 = vcmp.le.f32.partialorder %v5683, 0.7853982
    %vm5685 = vcmp.lt.s32.totalorder %v5616, 0
    %v5686 = vand.u32 %v5616, 2139095040
    %v5687 = vshrl.u32 %v5686, 23
    %v5688 = vsub.s32 %v5687, 127
    %v5689 = vand.u32 2147483647, %v5616
    %v5690 = vand.u32 %v5689, 8388607
    %v5691 = vor.u32 %v5690, 8388608
    %v5692 = vsub.s32 0, %v5691
    %v5693 = vadd.s32 %v5688, 1
    %vm5694 = vcmp.gt.s32.totalorder %v5693, 0
    %v5695 = vsel %vm5694, %v5693, 0
    %v5696 = vshrl.u32 %v5695, 5
    %v5697 = vand.u32 %v5695, 31
    %v5698 = vsub.s32 32, %v5697
    %v5699 = vshrl.u32 683565275, %v5698
    %v5700 = vshll.u32 683565275, %v5697
    %v5701 = vshrl.u32 2475754826, %v5698
    %v5702 = vor.u32 %v5700, %v5701
    %v5703 = vshll.u32 2475754826, %v5697
    %v5704 = vshrl.u32 2131351028, %v5698
    %v5705 = vor.u32 %v5703, %v5704
    %v5706 = vshll.u32 2131351028, %v5697
    %v5707 = vshrl.u32 2102212464, %v5698
    %v5708 = vor.u32 %v5706, %v5707
    %v5709 = vshll.u32 2102212464, %v5697
    %v5710 = vshrl.u32 920167782, %v5698
    %v5711 = vor.u32 %v5709, %v5710
    %v5712 = vshll.u32 920167782, %v5697
    %v5713 = vshrl.u32 1326507024, %v5698
    %v5714 = vor.u32 %v5712, %v5713
    %vm5715 = vcmp.lt.s32.totalorder %v5696, 1
    %vm5716 = vcmp.lt.s32.totalorder %v5696, 2
    %vm5717 = vcmp.lt.s32.totalorder %v5696, 3
    %vm5718 = vcmp.lt.s32.totalorder %v5696, 4
    %v5719 = vsel %vm5715, %v5699, %v5702
    %v5720 = vsel %vm5718, %v5708, 2102212464
    %v5721 = vsel %vm5717, %v5705, %v5720
    %v5722 = vsel %vm5716, %v5719, %v5721
    %v5723 = vsel %vm5715, %v5702, %v5705
    %v5724 = vsel %vm5718, %v5711, 920167782
    %v5725 = vsel %vm5717, %v5708, %v5724
    %v5726 = vsel %vm5716, %v5723, %v5725
    %v5727 = vsel %vm5715, %v5705, %v5708
    %v5728 = vsel %vm5718, %v5714, 1326507024
    %v5729 = vsel %vm5717, %v5711, %v5728
    %v5730 = vsel %vm5716, %v5727, %v5729
    %v5731 = vshll.u32 %v5691, 8
    %v5732 = vmul.u32.u64.compose %v5731, %v5730
    %v5733 = vextract.low.u32 %v5732
    %v5734 = vextract.high.u32 %v5732
    %v5735 = vmul.u32.u64.compose %v5731, %v5726
    %v5736 = vextract.low.u32 %v5735
    %v5737 = vextract.high.u32 %v5735
    %v5738 = vmul.u32 %v5731, %v5722
    %v5739 = vadd.s32 %v5734, %v5736
    %vm5740 = vc.u32 %v5734, %v5736
    %v5741 = vadd.s32 %v5737, 1
    %v5742 = vsel %vm5740, %v5741, %v5737
    %v5743 = vadd.s32 %v5738, %v5742
    %v5744 = vadd.s32 %v5743, 536870912
    %v5745 = vshrl.u32 %v5744, 30
    %v5746 = vshll.u32 %v5745, 30
    %v5747 = vsub.s32 %v5743, %v5746
    %vm5748 = vcmp.lt.s32.totalorder %v5747, 0
    %v5749 = vsub.s32 0, %v5747
    %v5750 = vsel %vm5748, %v5749, %v5747
    %v5751 = vclz %v5750
    %v5752 = vsub.s32 %v5751, 2
    %vm5753 = vcmp.gt.s32.totalorder 0, %v5752
    %v5754 = vsel %vm5753, 0, %v5752
    %v5755 = vsub.s32 32, %v5754
    %v5756 = vshll.u32 %v5747, %v5754
    %v5757 = vshrl.u32 %v5739, %v5755
    %v5758 = vor.u32 %v5756, %v5757
    %v5759 = vsub.s32 4294967266, %v5754
    %v5760 = vadd.s32 %v5759, 127
    %v5761 = vshll.u32 %v5760, 23
    %v5762 = vor.u32 4788187, %v5761
    %v5763 = vand.u32 2147483647, %v5762
    %v5765 = vcvt.s32.f32 %v5758
    %v5766 = vmul.f32 %v5765, %v5763
    %v5767 = vxor.u32 %v5766, 2147483648
    %v5768 = vsel %vm5685, %v5767, %v5766
    %v5769 = vsub.s32 4, %v5745
    %v5770 = vsel %vm5685, %v5769, %v5745
    %v5771 = vsel %vm5684, %v5616, %v5768
    %v5772 = vsel %vm5684, 0, %v5770
    %v5773 = vcosq.f32.pop %v5771
    %v5774 = vsinq.f32.pop %v5771
    %vm5775 = vweird.f32 %v5616
    %v5776 = vadd.s32 %v5772, 3
    %v5777 = vand.u32 %v5776, 3
    %vm5778 = vcmp.lt.s32.totalorder %v5777, 2
    %vm5779 = vcmp.eq.s32.totalorder %v5777, 0
    %v5780 = vxor.u32 %v5774, 2147483648
    %v5781 = vsel %vm5779, %v5773, %v5780
    %vm5782 = vcmp.eq.s32.totalorder %v5777, 2
    %v5783 = vxor.u32 %v5773, 2147483648
    %v5784 = vsel %vm5782, %v5783, %v5774
    %v5785 = vsel %vm5778, %v5781, %v5784
    %v5786 = vsel %vm5775, nan, %v5785
    %v5787 = vand.u32 2147483647, %v5618
    %vm5788 = vcmp.le.f32.partialorder %v5787, 0.7853982
    %vm5789 = vcmp.lt.s32.totalorder %v5618, 0
    %v5790 = vand.u32 %v5618, 2139095040
    %v5791 = vshrl.u32 %v5790, 23
    %v5792 = vsub.s32 %v5791, 127
    %v5793 = vand.u32 2147483647, %v5618
    %v5794 = vand.u32 %v5793, 8388607
    %v5795 = vor.u32 %v5794, 8388608
    %v5796 = vsub.s32 0, %v5795
    %v5797 = vadd.s32 %v5792, 1
    %vm5798 = vcmp.gt.s32.totalorder %v5797, 0
    %v5799 = vsel %vm5798, %v5797, 0
    %v5800 = vshrl.u32 %v5799, 5
    %v5801 = vand.u32 %v5799, 31
    %v5802 = vsub.s32 32, %v5801
    %v5803 = vshrl.u32 683565275, %v5802
    %v5804 = vshll.u32 683565275, %v5801
    %v5805 = vshrl.u32 2475754826, %v5802
    %v5806 = vor.u32 %v5804, %v5805
    %v5807 = vshll.u32 2475754826, %v5801
    %v5808 = vshrl.u32 2131351028, %v5802
    %v5809 = vor.u32 %v5807, %v5808
    %v5810 = vshll.u32 2131351028, %v5801
    %v5811 = vshrl.u32 2102212464, %v5802
    %v5812 = vor.u32 %v5810, %v5811
    %v5813 = vshll.u32 2102212464, %v5801
    %v5814 = vshrl.u32 920167782, %v5802
    %v5815 = vor.u32 %v5813, %v5814
    %v5816 = vshll.u32 920167782, %v5801
    %v5817 = vshrl.u32 1326507024, %v5802
    %v5818 = vor.u32 %v5816, %v5817
    %vm5819 = vcmp.lt.s32.totalorder %v5800, 1
    %vm5820 = vcmp.lt.s32.totalorder %v5800, 2
    %vm5821 = vcmp.lt.s32.totalorder %v5800, 3
    %vm5822 = vcmp.lt.s32.totalorder %v5800, 4
    %v5823 = vsel %vm5819, %v5803, %v5806
    %v5824 = vsel %vm5822, %v5812, 2102212464
    %v5825 = vsel %vm5821, %v5809, %v5824
    %v5826 = vsel %vm5820, %v5823, %v5825
    %v5827 = vsel %vm5819, %v5806, %v5809
    %v5828 = vsel %vm5822, %v5815, 920167782
    %v5829 = vsel %vm5821, %v5812, %v5828
    %v5830 = vsel %vm5820, %v5827, %v5829
    %v5831 = vsel %vm5819, %v5809, %v5812
    %v5832 = vsel %vm5822, %v5818, 1326507024
    %v5833 = vsel %vm5821, %v5815, %v5832
    %v5834 = vsel %vm5820, %v5831, %v5833
    %v5835 = vshll.u32 %v5795, 8
    %v5836 = vmul.u32.u64.compose %v5835, %v5834
    %v5837 = vextract.low.u32 %v5836
    %v5838 = vextract.high.u32 %v5836
    %v5839 = vmul.u32.u64.compose %v5835, %v5830
    %v5840 = vextract.low.u32 %v5839
    %v5841 = vextract.high.u32 %v5839
    %v5842 = vmul.u32 %v5835, %v5826
    %v5843 = vadd.s32 %v5838, %v5840
    %vm5844 = vc.u32 %v5838, %v5840
    %v5845 = vadd.s32 %v5841, 1
    %v5846 = vsel %vm5844, %v5845, %v5841
    %v5847 = vadd.s32 %v5842, %v5846
    %v5848 = vadd.s32 %v5847, 536870912
    %v5849 = vshrl.u32 %v5848, 30
    %v5850 = vshll.u32 %v5849, 30
    %v5851 = vsub.s32 %v5847, %v5850
    %vm5852 = vcmp.lt.s32.totalorder %v5851, 0
    %v5853 = vsub.s32 0, %v5851
    %v5854 = vsel %vm5852, %v5853, %v5851
    %v5855 = vclz %v5854
    %v5856 = vsub.s32 %v5855, 2
    %vm5857 = vcmp.gt.s32.totalorder 0, %v5856
    %v5858 = vsel %vm5857, 0, %v5856
    %v5859 = vsub.s32 32, %v5858
    %v5860 = vshll.u32 %v5851, %v5858
    %v5861 = vshrl.u32 %v5843, %v5859
    %v5862 = vor.u32 %v5860, %v5861
    %v5863 = vsub.s32 4294967266, %v5858
    %v5864 = vadd.s32 %v5863, 127
    %v5865 = vshll.u32 %v5864, 23
    %v5866 = vor.u32 4788187, %v5865
    %v5867 = vand.u32 2147483647, %v5866
    %v5869 = vcvt.s32.f32 %v5862
    %v5870 = vmul.f32 %v5869, %v5867
    %v5871 = vxor.u32 %v5870, 2147483648
    %v5872 = vsel %vm5789, %v5871, %v5870
    %v5873 = vsub.s32 4, %v5849
    %v5874 = vsel %vm5789, %v5873, %v5849
    %v5875 = vsel %vm5788, %v5618, %v5872
    %v5876 = vsel %vm5788, 0, %v5874
    %v5877 = vcosq.f32.pop %v5875
    %v5878 = vsinq.f32.pop %v5875
    %vm5879 = vweird.f32 %v5618
    %v5880 = vadd.s32 %v5876, 3
    %v5881 = vand.u32 %v5880, 3
    %vm5882 = vcmp.lt.s32.totalorder %v5881, 2
    %vm5883 = vcmp.eq.s32.totalorder %v5881, 0
    %v5884 = vxor.u32 %v5878, 2147483648
    %v5885 = vsel %vm5883, %v5877, %v5884
    %vm5886 = vcmp.eq.s32.totalorder %v5881, 2
    %v5887 = vxor.u32 %v5877, 2147483648
    %v5888 = vsel %vm5886, %v5887, %v5878
    %v5889 = vsel %vm5882, %v5885, %v5888
    %v5890 = vsel %vm5879, nan, %v5889
    %v5891 = vand.u32 2147483647, %v5669
    %vm5892 = vcmp.le.f32.partialorder %v5891, 0.7853982
    %vm5893 = vcmp.lt.s32.totalorder %v5669, 0
    %v5894 = vand.u32 %v5669, 2139095040
    %v5895 = vshrl.u32 %v5894, 23
    %v5896 = vsub.s32 %v5895, 127
    %v5897 = vand.u32 2147483647, %v5669
    %v5898 = vand.u32 %v5897, 8388607
    %v5899 = vor.u32 %v5898, 8388608
    %v5900 = vsub.s32 0, %v5899
    %v5901 = vadd.s32 %v5896, 1
    %vm5902 = vcmp.gt.s32.totalorder %v5901, 0
    %v5903 = vsel %vm5902, %v5901, 0
    %v5904 = vshrl.u32 %v5903, 5
    %v5905 = vand.u32 %v5903, 31
    %v5906 = vsub.s32 32, %v5905
    %v5907 = vshrl.u32 683565275, %v5906
    %v5908 = vshll.u32 683565275, %v5905
    %v5909 = vshrl.u32 2475754826, %v5906
    %v5910 = vor.u32 %v5908, %v5909
    %v5911 = vshll.u32 2475754826, %v5905
    %v5912 = vshrl.u32 2131351028, %v5906
    %v5913 = vor.u32 %v5911, %v5912
    %v5914 = vshll.u32 2131351028, %v5905
    %v5915 = vshrl.u32 2102212464, %v5906
    %v5916 = vor.u32 %v5914, %v5915
    %v5917 = vshll.u32 2102212464, %v5905
    %v5918 = vshrl.u32 920167782, %v5906
    %v5919 = vor.u32 %v5917, %v5918
    %v5920 = vshll.u32 920167782, %v5905
    %v5921 = vshrl.u32 1326507024, %v5906
    %v5922 = vor.u32 %v5920, %v5921
    %vm5923 = vcmp.lt.s32.totalorder %v5904, 1
    %vm5924 = vcmp.lt.s32.totalorder %v5904, 2
    %vm5925 = vcmp.lt.s32.totalorder %v5904, 3
    %vm5926 = vcmp.lt.s32.totalorder %v5904, 4
    %v5927 = vsel %vm5923, %v5907, %v5910
    %v5928 = vsel %vm5926, %v5916, 2102212464
    %v5929 = vsel %vm5925, %v5913, %v5928
    %v5930 = vsel %vm5924, %v5927, %v5929
    %v5931 = vsel %vm5923, %v5910, %v5913
    %v5932 = vsel %vm5926, %v5919, 920167782
    %v5933 = vsel %vm5925, %v5916, %v5932
    %v5934 = vsel %vm5924, %v5931, %v5933
    %v5935 = vsel %vm5923, %v5913, %v5916
    %v5936 = vsel %vm5926, %v5922, 1326507024
    %v5937 = vsel %vm5925, %v5919, %v5936
    %v5938 = vsel %vm5924, %v5935, %v5937
    %v5939 = vshll.u32 %v5899, 8
    %v5940 = vmul.u32.u64.compose %v5939, %v5938
    %v5941 = vextract.low.u32 %v5940
    %v5942 = vextract.high.u32 %v5940
    %v5943 = vmul.u32.u64.compose %v5939, %v5934
    %v5944 = vextract.low.u32 %v5943
    %v5945 = vextract.high.u32 %v5943
    %v5946 = vmul.u32 %v5939, %v5930
    %v5947 = vadd.s32 %v5942, %v5944
    %vm5948 = vc.u32 %v5942, %v5944
    %v5949 = vadd.s32 %v5945, 1
    %v5950 = vsel %vm5948, %v5949, %v5945
    %v5951 = vadd.s32 %v5946, %v5950
    %v5952 = vadd.s32 %v5951, 536870912
    %v5953 = vshrl.u32 %v5952, 30
    %v5954 = vshll.u32 %v5953, 30
    %v5955 = vsub.s32 %v5951, %v5954
    %vm5956 = vcmp.lt.s32.totalorder %v5955, 0
    %v5957 = vsub.s32 0, %v5955
    %v5958 = vsel %vm5956, %v5957, %v5955
    %v5959 = vclz %v5958
    %v5960 = vsub.s32 %v5959, 2
    %vm5961 = vcmp.gt.s32.totalorder 0, %v5960
    %v5962 = vsel %vm5961, 0, %v5960
    %v5963 = vsub.s32 32, %v5962
    %v5964 = vshll.u32 %v5955, %v5962
    %v5965 = vshrl.u32 %v5947, %v5963
    %v5966 = vor.u32 %v5964, %v5965
    %v5967 = vsub.s32 4294967266, %v5962
    %v5968 = vadd.s32 %v5967, 127
    %v5969 = vshll.u32 %v5968, 23
    %v5970 = vor.u32 4788187, %v5969
    %v5971 = vand.u32 2147483647, %v5970
    %v5973 = vcvt.s32.f32 %v5966
    %v5974 = vmul.f32 %v5973, %v5971
    %v5975 = vxor.u32 %v5974, 2147483648
    %v5976 = vsel %vm5893, %v5975, %v5974
    %v5977 = vsub.s32 4, %v5953
    %v5978 = vsel %vm5893, %v5977, %v5953
    %v5979 = vsel %vm5892, %v5669, %v5976
    %v5980 = vsel %vm5892, 0, %v5978
    %v5981 = vcosq.f32.pop %v5979
    %v5982 = vsinq.f32.pop %v5979
    %vm5983 = vweird.f32 %v5669
    %v5984 = vadd.s32 %v5980, 3
    %v5985 = vand.u32 %v5984, 3
    %vm5986 = vcmp.lt.s32.totalorder %v5985, 2
    %vm5987 = vcmp.eq.s32.totalorder %v5985, 0
    %v5988 = vxor.u32 %v5982, 2147483648
    %v5989 = vsel %vm5987, %v5981, %v5988
    %vm5990 = vcmp.eq.s32.totalorder %v5985, 2
    %v5991 = vxor.u32 %v5981, 2147483648
    %v5992 = vsel %vm5990, %v5991, %v5982
    %v5993 = vsel %vm5986, %v5989, %v5992
    %v5994 = vsel %vm5983, nan, %v5993
    %v5995 = vand.u32 2147483647, %v5620
    %vm5996 = vcmp.le.f32.partialorder %v5995, 0.7853982
    %vm5997 = vcmp.lt.s32.totalorder %v5620, 0
    %v5998 = vand.u32 %v5620, 2139095040
    %v5999 = vshrl.u32 %v5998, 23
    %v6000 = vsub.s32 %v5999, 127
    %v6001 = vand.u32 2147483647, %v5620
    %v6002 = vand.u32 %v6001, 8388607
    %v6003 = vor.u32 %v6002, 8388608
    %v6004 = vsub.s32 0, %v6003
    %v6005 = vadd.s32 %v6000, 1
    %vm6006 = vcmp.gt.s32.totalorder %v6005, 0
    %v6007 = vsel %vm6006, %v6005, 0
    %v6008 = vshrl.u32 %v6007, 5
    %v6009 = vand.u32 %v6007, 31
    %v6010 = vsub.s32 32, %v6009
    %v6011 = vshrl.u32 683565275, %v6010
    %v6012 = vshll.u32 683565275, %v6009
    %v6013 = vshrl.u32 2475754826, %v6010
    %v6014 = vor.u32 %v6012, %v6013
    %v6015 = vshll.u32 2475754826, %v6009
    %v6016 = vshrl.u32 2131351028, %v6010
    %v6017 = vor.u32 %v6015, %v6016
    %v6018 = vshll.u32 2131351028, %v6009
    %v6019 = vshrl.u32 2102212464, %v6010
    %v6020 = vor.u32 %v6018, %v6019
    %v6021 = vshll.u32 2102212464, %v6009
    %v6022 = vshrl.u32 920167782, %v6010
    %v6023 = vor.u32 %v6021, %v6022
    %v6024 = vshll.u32 920167782, %v6009
    %v6025 = vshrl.u32 1326507024, %v6010
    %v6026 = vor.u32 %v6024, %v6025
    %vm6027 = vcmp.lt.s32.totalorder %v6008, 1
    %vm6028 = vcmp.lt.s32.totalorder %v6008, 2
    %vm6029 = vcmp.lt.s32.totalorder %v6008, 3
    %vm6030 = vcmp.lt.s32.totalorder %v6008, 4
    %v6031 = vsel %vm6027, %v6011, %v6014
    %v6032 = vsel %vm6030, %v6020, 2102212464
    %v6033 = vsel %vm6029, %v6017, %v6032
    %v6034 = vsel %vm6028, %v6031, %v6033
    %v6035 = vsel %vm6027, %v6014, %v6017
    %v6036 = vsel %vm6030, %v6023, 920167782
    %v6037 = vsel %vm6029, %v6020, %v6036
    %v6038 = vsel %vm6028, %v6035, %v6037
    %v6039 = vsel %vm6027, %v6017, %v6020
    %v6040 = vsel %vm6030, %v6026, 1326507024
    %v6041 = vsel %vm6029, %v6023, %v6040
    %v6042 = vsel %vm6028, %v6039, %v6041
    %v6043 = vshll.u32 %v6003, 8
    %v6044 = vmul.u32.u64.compose %v6043, %v6042
    %v6045 = vextract.low.u32 %v6044
    %v6046 = vextract.high.u32 %v6044
    %v6047 = vmul.u32.u64.compose %v6043, %v6038
    %v6048 = vextract.low.u32 %v6047
    %v6049 = vextract.high.u32 %v6047
    %v6050 = vmul.u32 %v6043, %v6034
    %v6051 = vadd.s32 %v6046, %v6048
    %vm6052 = vc.u32 %v6046, %v6048
    %v6053 = vadd.s32 %v6049, 1
    %v6054 = vsel %vm6052, %v6053, %v6049
    %v6055 = vadd.s32 %v6050, %v6054
    %v6056 = vadd.s32 %v6055, 536870912
    %v6057 = vshrl.u32 %v6056, 30
    %v6058 = vshll.u32 %v6057, 30
    %v6059 = vsub.s32 %v6055, %v6058
    %vm6060 = vcmp.lt.s32.totalorder %v6059, 0
    %v6061 = vsub.s32 0, %v6059
    %v6062 = vsel %vm6060, %v6061, %v6059
    %v6063 = vclz %v6062
    %v6064 = vsub.s32 %v6063, 2
    %vm6065 = vcmp.gt.s32.totalorder 0, %v6064
    %v6066 = vsel %vm6065, 0, %v6064
    %v6067 = vsub.s32 32, %v6066
    %v6068 = vshll.u32 %v6059, %v6066
    %v6069 = vshrl.u32 %v6051, %v6067
    %v6070 = vor.u32 %v6068, %v6069
    %v6071 = vsub.s32 4294967266, %v6066
    %v6072 = vadd.s32 %v6071, 127
    %v6073 = vshll.u32 %v6072, 23
    %v6074 = vor.u32 4788187, %v6073
    %v6075 = vand.u32 2147483647, %v6074
    %v6077 = vcvt.s32.f32 %v6070
    %v6078 = vmul.f32 %v6077, %v6075
    %v6079 = vxor.u32 %v6078, 2147483648
    %v6080 = vsel %vm5997, %v6079, %v6078
    %v6081 = vsub.s32 4, %v6057
    %v6082 = vsel %vm5997, %v6081, %v6057
    %v6083 = vsel %vm5996, %v5620, %v6080
    %v6084 = vsel %vm5996, 0, %v6082
    %v6085 = vcosq.f32.pop %v6083
    %v6086 = vsinq.f32.pop %v6083
    %vm6087 = vweird.f32 %v5620
    %v6088 = vadd.s32 %v6084, 3
    %v6089 = vand.u32 %v6088, 3
    %vm6090 = vcmp.lt.s32.totalorder %v6089, 2
    %vm6091 = vcmp.eq.s32.totalorder %v6089, 0
    %v6092 = vxor.u32 %v6086, 2147483648
    %v6093 = vsel %vm6091, %v6085, %v6092
    %vm6094 = vcmp.eq.s32.totalorder %v6089, 2
    %v6095 = vxor.u32 %v6085, 2147483648
    %v6096 = vsel %vm6094, %v6095, %v6086
    %v6097 = vsel %vm6090, %v6093, %v6096
    %v6098 = vsel %vm6087, nan, %v6097
    %v6099 = vand.u32 2147483647, %v5622
    %vm6100 = vcmp.le.f32.partialorder %v6099, 0.7853982
    %vm6101 = vcmp.lt.s32.totalorder %v5622, 0
    %v6102 = vand.u32 %v5622, 2139095040
    %v6103 = vshrl.u32 %v6102, 23
    %v6104 = vsub.s32 %v6103, 127
    %v6105 = vand.u32 2147483647, %v5622
    %v6106 = vand.u32 %v6105, 8388607
    %v6107 = vor.u32 %v6106, 8388608
    %v6108 = vsub.s32 0, %v6107
    %v6109 = vadd.s32 %v6104, 1
    %vm6110 = vcmp.gt.s32.totalorder %v6109, 0
    %v6111 = vsel %vm6110, %v6109, 0
    %v6112 = vshrl.u32 %v6111, 5
    %v6113 = vand.u32 %v6111, 31
    %v6114 = vsub.s32 32, %v6113
    %v6115 = vshrl.u32 683565275, %v6114
    %v6116 = vshll.u32 683565275, %v6113
    %v6117 = vshrl.u32 2475754826, %v6114
    %v6118 = vor.u32 %v6116, %v6117
    %v6119 = vshll.u32 2475754826, %v6113
    %v6120 = vshrl.u32 2131351028, %v6114
    %v6121 = vor.u32 %v6119, %v6120
    %v6122 = vshll.u32 2131351028, %v6113
    %v6123 = vshrl.u32 2102212464, %v6114
    %v6124 = vor.u32 %v6122, %v6123
    %v6125 = vshll.u32 2102212464, %v6113
    %v6126 = vshrl.u32 920167782, %v6114
    %v6127 = vor.u32 %v6125, %v6126
    %v6128 = vshll.u32 920167782, %v6113
    %v6129 = vshrl.u32 1326507024, %v6114
    %v6130 = vor.u32 %v6128, %v6129
    %vm6131 = vcmp.lt.s32.totalorder %v6112, 1
    %vm6132 = vcmp.lt.s32.totalorder %v6112, 2
    %vm6133 = vcmp.lt.s32.totalorder %v6112, 3
    %vm6134 = vcmp.lt.s32.totalorder %v6112, 4
    %v6135 = vsel %vm6131, %v6115, %v6118
    %v6136 = vsel %vm6134, %v6124, 2102212464
    %v6137 = vsel %vm6133, %v6121, %v6136
    %v6138 = vsel %vm6132, %v6135, %v6137
    %v6139 = vsel %vm6131, %v6118, %v6121
    %v6140 = vsel %vm6134, %v6127, 920167782
    %v6141 = vsel %vm6133, %v6124, %v6140
    %v6142 = vsel %vm6132, %v6139, %v6141
    %v6143 = vsel %vm6131, %v6121, %v6124
    %v6144 = vsel %vm6134, %v6130, 1326507024
    %v6145 = vsel %vm6133, %v6127, %v6144
    %v6146 = vsel %vm6132, %v6143, %v6145
    %v6147 = vshll.u32 %v6107, 8
    %v6148 = vmul.u32.u64.compose %v6147, %v6146
    %v6149 = vextract.low.u32 %v6148
    %v6150 = vextract.high.u32 %v6148
    %v6151 = vmul.u32.u64.compose %v6147, %v6142
    %v6152 = vextract.low.u32 %v6151
    %v6153 = vextract.high.u32 %v6151
    %v6154 = vmul.u32 %v6147, %v6138
    %v6155 = vadd.s32 %v6150, %v6152
    %vm6156 = vc.u32 %v6150, %v6152
    %v6157 = vadd.s32 %v6153, 1
    %v6158 = vsel %vm6156, %v6157, %v6153
    %v6159 = vadd.s32 %v6154, %v6158
    %v6160 = vadd.s32 %v6159, 536870912
    %v6161 = vshrl.u32 %v6160, 30
    %v6162 = vshll.u32 %v6161, 30
    %v6163 = vsub.s32 %v6159, %v6162
    %vm6164 = vcmp.lt.s32.totalorder %v6163, 0
    %v6165 = vsub.s32 0, %v6163
    %v6166 = vsel %vm6164, %v6165, %v6163
    %v6167 = vclz %v6166
    %v6168 = vsub.s32 %v6167, 2
    %vm6169 = vcmp.gt.s32.totalorder 0, %v6168
    %v6170 = vsel %vm6169, 0, %v6168
    %v6171 = vsub.s32 32, %v6170
    %v6172 = vshll.u32 %v6163, %v6170
    %v6173 = vshrl.u32 %v6155, %v6171
    %v6174 = vor.u32 %v6172, %v6173
    %v6175 = vsub.s32 4294967266, %v6170
    %v6176 = vadd.s32 %v6175, 127
    %v6177 = vshll.u32 %v6176, 23
    %v6178 = vor.u32 4788187, %v6177
    %v6179 = vand.u32 2147483647, %v6178
    %v6181 = vcvt.s32.f32 %v6174
    %v6182 = vmul.f32 %v6181, %v6179
    %v6183 = vxor.u32 %v6182, 2147483648
    %v6184 = vsel %vm6101, %v6183, %v6182
    %v6185 = vsub.s32 4, %v6161
    %v6186 = vsel %vm6101, %v6185, %v6161
    %v6187 = vsel %vm6100, %v5622, %v6184
    %v6188 = vsel %vm6100, 0, %v6186
    %v6189 = vcosq.f32.pop %v6187
    %v6190 = vsinq.f32.pop %v6187
    %vm6191 = vweird.f32 %v5622
    %v6192 = vadd.s32 %v6188, 3
    %v6193 = vand.u32 %v6192, 3
    %vm6194 = vcmp.lt.s32.totalorder %v6193, 2
    %vm6195 = vcmp.eq.s32.totalorder %v6193, 0
    %v6196 = vxor.u32 %v6190, 2147483648
    %v6197 = vsel %vm6195, %v6189, %v6196
    %vm6198 = vcmp.eq.s32.totalorder %v6193, 2
    %v6199 = vxor.u32 %v6189, 2147483648
    %v6200 = vsel %vm6198, %v6199, %v6190
    %v6201 = vsel %vm6194, %v6197, %v6200
    %v6202 = vsel %vm6191, nan, %v6201
    %v6203 = vand.u32 2147483647, %v5672
    %vm6204 = vcmp.le.f32.partialorder %v6203, 0.7853982
    %vm6205 = vcmp.lt.s32.totalorder %v5672, 0
    %v6206 = vand.u32 %v5672, 2139095040
    %v6207 = vshrl.u32 %v6206, 23
    %v6208 = vsub.s32 %v6207, 127
    %v6209 = vand.u32 2147483647, %v5672
    %v6210 = vand.u32 %v6209, 8388607
    %v6211 = vor.u32 %v6210, 8388608
    %v6212 = vsub.s32 0, %v6211
    %v6213 = vadd.s32 %v6208, 1
    %vm6214 = vcmp.gt.s32.totalorder %v6213, 0
    %v6215 = vsel %vm6214, %v6213, 0
    %v6216 = vshrl.u32 %v6215, 5
    %v6217 = vand.u32 %v6215, 31
    %v6218 = vsub.s32 32, %v6217
    %v6219 = vshrl.u32 683565275, %v6218
    %v6220 = vshll.u32 683565275, %v6217
    %v6221 = vshrl.u32 2475754826, %v6218
    %v6222 = vor.u32 %v6220, %v6221
    %v6223 = vshll.u32 2475754826, %v6217
    %v6224 = vshrl.u32 2131351028, %v6218
    %v6225 = vor.u32 %v6223, %v6224
    %v6226 = vshll.u32 2131351028, %v6217
    %v6227 = vshrl.u32 2102212464, %v6218
    %v6228 = vor.u32 %v6226, %v6227
    %v6229 = vshll.u32 2102212464, %v6217
    %v6230 = vshrl.u32 920167782, %v6218
    %v6231 = vor.u32 %v6229, %v6230
    %v6232 = vshll.u32 920167782, %v6217
    %v6233 = vshrl.u32 1326507024, %v6218
    %v6234 = vor.u32 %v6232, %v6233
    %vm6235 = vcmp.lt.s32.totalorder %v6216, 1
    %vm6236 = vcmp.lt.s32.totalorder %v6216, 2
    %vm6237 = vcmp.lt.s32.totalorder %v6216, 3
    %vm6238 = vcmp.lt.s32.totalorder %v6216, 4
    %v6239 = vsel %vm6235, %v6219, %v6222
    %v6240 = vsel %vm6238, %v6228, 2102212464
    %v6241 = vsel %vm6237, %v6225, %v6240
    %v6242 = vsel %vm6236, %v6239, %v6241
    %v6243 = vsel %vm6235, %v6222, %v6225
    %v6244 = vsel %vm6238, %v6231, 920167782
    %v6245 = vsel %vm6237, %v6228, %v6244
    %v6246 = vsel %vm6236, %v6243, %v6245
    %v6247 = vsel %vm6235, %v6225, %v6228
    %v6248 = vsel %vm6238, %v6234, 1326507024
    %v6249 = vsel %vm6237, %v6231, %v6248
    %v6250 = vsel %vm6236, %v6247, %v6249
    %v6251 = vshll.u32 %v6211, 8
    %v6252 = vmul.u32.u64.compose %v6251, %v6250
    %v6253 = vextract.low.u32 %v6252
    %v6254 = vextract.high.u32 %v6252
    %v6255 = vmul.u32.u64.compose %v6251, %v6246
    %v6256 = vextract.low.u32 %v6255
    %v6257 = vextract.high.u32 %v6255
    %v6258 = vmul.u32 %v6251, %v6242
    %v6259 = vadd.s32 %v6254, %v6256
    %vm6260 = vc.u32 %v6254, %v6256
    %v6261 = vadd.s32 %v6257, 1
    %v6262 = vsel %vm6260, %v6261, %v6257
    %v6263 = vadd.s32 %v6258, %v6262
    %v6264 = vadd.s32 %v6263, 536870912
    %v6265 = vshrl.u32 %v6264, 30
    %v6266 = vshll.u32 %v6265, 30
    %v6267 = vsub.s32 %v6263, %v6266
    %vm6268 = vcmp.lt.s32.totalorder %v6267, 0
    %v6269 = vsub.s32 0, %v6267
    %v6270 = vsel %vm6268, %v6269, %v6267
    %v6271 = vclz %v6270
    %v6272 = vsub.s32 %v6271, 2
    %vm6273 = vcmp.gt.s32.totalorder 0, %v6272
    %v6274 = vsel %vm6273, 0, %v6272
    %v6275 = vsub.s32 32, %v6274
    %v6276 = vshll.u32 %v6267, %v6274
    %v6277 = vshrl.u32 %v6259, %v6275
    %v6278 = vor.u32 %v6276, %v6277
    %v6279 = vsub.s32 4294967266, %v6274
    %v6280 = vadd.s32 %v6279, 127
    %v6281 = vshll.u32 %v6280, 23
    %v6282 = vor.u32 4788187, %v6281
    %v6283 = vand.u32 2147483647, %v6282
    %v6285 = vcvt.s32.f32 %v6278
    %v6286 = vmul.f32 %v6285, %v6283
    %v6287 = vxor.u32 %v6286, 2147483648
    %v6288 = vsel %vm6205, %v6287, %v6286
    %v6289 = vsub.s32 4, %v6265
    %v6290 = vsel %vm6205, %v6289, %v6265
    %v6291 = vsel %vm6204, %v5672, %v6288
    %v6292 = vsel %vm6204, 0, %v6290
    %v6293 = vcosq.f32.pop %v6291
    %v6294 = vsinq.f32.pop %v6291
    %vm6295 = vweird.f32 %v5672
    %v6296 = vadd.s32 %v6292, 3
    %v6297 = vand.u32 %v6296, 3
    %vm6298 = vcmp.lt.s32.totalorder %v6297, 2
    %vm6299 = vcmp.eq.s32.totalorder %v6297, 0
    %v6300 = vxor.u32 %v6294, 2147483648
    %v6301 = vsel %vm6299, %v6293, %v6300
    %vm6302 = vcmp.eq.s32.totalorder %v6297, 2
    %v6303 = vxor.u32 %v6293, 2147483648
    %v6304 = vsel %vm6302, %v6303, %v6294
    %v6305 = vsel %vm6298, %v6301, %v6304
    %v6306 = vsel %vm6295, nan, %v6305
    %v6307 = vand.u32 2147483647, %v5626
    %vm6308 = vcmp.le.f32.partialorder %v6307, 0.7853982
    %vm6309 = vcmp.lt.s32.totalorder %v5626, 0
    %v6310 = vand.u32 %v5626, 2139095040
    %v6311 = vshrl.u32 %v6310, 23
    %v6312 = vsub.s32 %v6311, 127
    %v6313 = vand.u32 2147483647, %v5626
    %v6314 = vand.u32 %v6313, 8388607
    %v6315 = vor.u32 %v6314, 8388608
    %v6316 = vsub.s32 0, %v6315
    %v6317 = vadd.s32 %v6312, 1
    %vm6318 = vcmp.gt.s32.totalorder %v6317, 0
    %v6319 = vsel %vm6318, %v6317, 0
    %v6320 = vshrl.u32 %v6319, 5
    %v6321 = vand.u32 %v6319, 31
    %v6322 = vsub.s32 32, %v6321
    %v6323 = vshrl.u32 683565275, %v6322
    %v6324 = vshll.u32 683565275, %v6321
    %v6325 = vshrl.u32 2475754826, %v6322
    %v6326 = vor.u32 %v6324, %v6325
    %v6327 = vshll.u32 2475754826, %v6321
    %v6328 = vshrl.u32 2131351028, %v6322
    %v6329 = vor.u32 %v6327, %v6328
    %v6330 = vshll.u32 2131351028, %v6321
    %v6331 = vshrl.u32 2102212464, %v6322
    %v6332 = vor.u32 %v6330, %v6331
    %v6333 = vshll.u32 2102212464, %v6321
    %v6334 = vshrl.u32 920167782, %v6322
    %v6335 = vor.u32 %v6333, %v6334
    %v6336 = vshll.u32 920167782, %v6321
    %v6337 = vshrl.u32 1326507024, %v6322
    %v6338 = vor.u32 %v6336, %v6337
    %vm6339 = vcmp.lt.s32.totalorder %v6320, 1
    %vm6340 = vcmp.lt.s32.totalorder %v6320, 2
    %vm6341 = vcmp.lt.s32.totalorder %v6320, 3
    %vm6342 = vcmp.lt.s32.totalorder %v6320, 4
    %v6343 = vsel %vm6339, %v6323, %v6326
    %v6344 = vsel %vm6342, %v6332, 2102212464
    %v6345 = vsel %vm6341, %v6329, %v6344
    %v6346 = vsel %vm6340, %v6343, %v6345
    %v6347 = vsel %vm6339, %v6326, %v6329
    %v6348 = vsel %vm6342, %v6335, 920167782
    %v6349 = vsel %vm6341, %v6332, %v6348
    %v6350 = vsel %vm6340, %v6347, %v6349
    %v6351 = vsel %vm6339, %v6329, %v6332
    %v6352 = vsel %vm6342, %v6338, 1326507024
    %v6353 = vsel %vm6341, %v6335, %v6352
    %v6354 = vsel %vm6340, %v6351, %v6353
    %v6355 = vshll.u32 %v6315, 8
    %v6356 = vmul.u32.u64.compose %v6355, %v6354
    %v6357 = vextract.low.u32 %v6356
    %v6358 = vextract.high.u32 %v6356
    %v6359 = vmul.u32.u64.compose %v6355, %v6350
    %v6360 = vextract.low.u32 %v6359
    %v6361 = vextract.high.u32 %v6359
    %v6362 = vmul.u32 %v6355, %v6346
    %v6363 = vadd.s32 %v6358, %v6360
    %vm6364 = vc.u32 %v6358, %v6360
    %v6365 = vadd.s32 %v6361, 1
    %v6366 = vsel %vm6364, %v6365, %v6361
    %v6367 = vadd.s32 %v6362, %v6366
    %v6368 = vadd.s32 %v6367, 536870912
    %v6369 = vshrl.u32 %v6368, 30
    %v6370 = vshll.u32 %v6369, 30
    %v6371 = vsub.s32 %v6367, %v6370
    %vm6372 = vcmp.lt.s32.totalorder %v6371, 0
    %v6373 = vsub.s32 0, %v6371
    %v6374 = vsel %vm6372, %v6373, %v6371
    %v6375 = vclz %v6374
    %v6376 = vsub.s32 %v6375, 2
    %vm6377 = vcmp.gt.s32.totalorder 0, %v6376
    %v6378 = vsel %vm6377, 0, %v6376
    %v6379 = vsub.s32 32, %v6378
    %v6380 = vshll.u32 %v6371, %v6378
    %v6381 = vshrl.u32 %v6363, %v6379
    %v6382 = vor.u32 %v6380, %v6381
    %v6383 = vsub.s32 4294967266, %v6378
    %v6384 = vadd.s32 %v6383, 127
    %v6385 = vshll.u32 %v6384, 23
    %v6386 = vor.u32 4788187, %v6385
    %v6387 = vand.u32 2147483647, %v6386
    %v6389 = vcvt.s32.f32 %v6382
    %v6390 = vmul.f32 %v6389, %v6387
    %v6391 = vxor.u32 %v6390, 2147483648
    %v6392 = vsel %vm6309, %v6391, %v6390
    %v6393 = vsub.s32 4, %v6369
    %v6394 = vsel %vm6309, %v6393, %v6369
    %v6395 = vsel %vm6308, %v5626, %v6392
    %v6396 = vsel %vm6308, 0, %v6394
    %v6397 = vcosq.f32.pop %v6395
    %v6398 = vsinq.f32.pop %v6395
    %vm6399 = vweird.f32 %v5626
    %v6400 = vadd.s32 %v6396, 3
    %v6401 = vand.u32 %v6400, 3
    %vm6402 = vcmp.lt.s32.totalorder %v6401, 2
    %vm6403 = vcmp.eq.s32.totalorder %v6401, 0
    %v6404 = vxor.u32 %v6398, 2147483648
    %v6405 = vsel %vm6403, %v6397, %v6404
    %vm6406 = vcmp.eq.s32.totalorder %v6401, 2
    %v6407 = vxor.u32 %v6397, 2147483648
    %v6408 = vsel %vm6406, %v6407, %v6398
    %v6409 = vsel %vm6402, %v6405, %v6408
    %v6410 = vsel %vm6399, nan, %v6409
    %v6411 = vand.u32 2147483647, %v5628
    %vm6412 = vcmp.le.f32.partialorder %v6411, 0.7853982
    %vm6413 = vcmp.lt.s32.totalorder %v5628, 0
    %v6414 = vand.u32 %v5628, 2139095040
    %v6415 = vshrl.u32 %v6414, 23
    %v6416 = vsub.s32 %v6415, 127
    %v6417 = vand.u32 2147483647, %v5628
    %v6418 = vand.u32 %v6417, 8388607
    %v6419 = vor.u32 %v6418, 8388608
    %v6420 = vsub.s32 0, %v6419
    %v6421 = vadd.s32 %v6416, 1
    %vm6422 = vcmp.gt.s32.totalorder %v6421, 0
    %v6423 = vsel %vm6422, %v6421, 0
    %v6424 = vshrl.u32 %v6423, 5
    %v6425 = vand.u32 %v6423, 31
    %v6426 = vsub.s32 32, %v6425
    %v6427 = vshrl.u32 683565275, %v6426
    %v6428 = vshll.u32 683565275, %v6425
    %v6429 = vshrl.u32 2475754826, %v6426
    %v6430 = vor.u32 %v6428, %v6429
    %v6431 = vshll.u32 2475754826, %v6425
    %v6432 = vshrl.u32 2131351028, %v6426
    %v6433 = vor.u32 %v6431, %v6432
    %v6434 = vshll.u32 2131351028, %v6425
    %v6435 = vshrl.u32 2102212464, %v6426
    %v6436 = vor.u32 %v6434, %v6435
    %v6437 = vshll.u32 2102212464, %v6425
    %v6438 = vshrl.u32 920167782, %v6426
    %v6439 = vor.u32 %v6437, %v6438
    %v6440 = vshll.u32 920167782, %v6425
    %v6441 = vshrl.u32 1326507024, %v6426
    %v6442 = vor.u32 %v6440, %v6441
    %vm6443 = vcmp.lt.s32.totalorder %v6424, 1
    %vm6444 = vcmp.lt.s32.totalorder %v6424, 2
    %vm6445 = vcmp.lt.s32.totalorder %v6424, 3
    %vm6446 = vcmp.lt.s32.totalorder %v6424, 4
    %v6447 = vsel %vm6443, %v6427, %v6430
    %v6448 = vsel %vm6446, %v6436, 2102212464
    %v6449 = vsel %vm6445, %v6433, %v6448
    %v6450 = vsel %vm6444, %v6447, %v6449
    %v6451 = vsel %vm6443, %v6430, %v6433
    %v6452 = vsel %vm6446, %v6439, 920167782
    %v6453 = vsel %vm6445, %v6436, %v6452
    %v6454 = vsel %vm6444, %v6451, %v6453
    %v6455 = vsel %vm6443, %v6433, %v6436
    %v6456 = vsel %vm6446, %v6442, 1326507024
    %v6457 = vsel %vm6445, %v6439, %v6456
    %v6458 = vsel %vm6444, %v6455, %v6457
    %v6459 = vshll.u32 %v6419, 8
    %v6460 = vmul.u32.u64.compose %v6459, %v6458
    %v6461 = vextract.low.u32 %v6460
    %v6462 = vextract.high.u32 %v6460
    %v6463 = vmul.u32.u64.compose %v6459, %v6454
    %v6464 = vextract.low.u32 %v6463
    %v6465 = vextract.high.u32 %v6463
    %v6466 = vmul.u32 %v6459, %v6450
    %v6467 = vadd.s32 %v6462, %v6464
    %vm6468 = vc.u32 %v6462, %v6464
    %v6469 = vadd.s32 %v6465, 1
    %v6470 = vsel %vm6468, %v6469, %v6465
    %v6471 = vadd.s32 %v6466, %v6470
    %v6472 = vadd.s32 %v6471, 536870912
    %v6473 = vshrl.u32 %v6472, 30
    %v6474 = vshll.u32 %v6473, 30
    %v6475 = vsub.s32 %v6471, %v6474
    %vm6476 = vcmp.lt.s32.totalorder %v6475, 0
    %v6477 = vsub.s32 0, %v6475
    %v6478 = vsel %vm6476, %v6477, %v6475
    %v6479 = vclz %v6478
    %v6480 = vsub.s32 %v6479, 2
    %vm6481 = vcmp.gt.s32.totalorder 0, %v6480
    %v6482 = vsel %vm6481, 0, %v6480
    %v6483 = vsub.s32 32, %v6482
    %v6484 = vshll.u32 %v6475, %v6482
    %v6485 = vshrl.u32 %v6467, %v6483
    %v6486 = vor.u32 %v6484, %v6485
    %v6487 = vsub.s32 4294967266, %v6482
    %v6488 = vadd.s32 %v6487, 127
    %v6489 = vshll.u32 %v6488, 23
    %v6490 = vor.u32 4788187, %v6489
    %v6491 = vand.u32 2147483647, %v6490
    %v6493 = vcvt.s32.f32 %v6486
    %v6494 = vmul.f32 %v6493, %v6491
    %v6495 = vxor.u32 %v6494, 2147483648
    %v6496 = vsel %vm6413, %v6495, %v6494
    %v6497 = vsub.s32 4, %v6473
    %v6498 = vsel %vm6413, %v6497, %v6473
    %v6499 = vsel %vm6412, %v5628, %v6496
    %v6500 = vsel %vm6412, 0, %v6498
    %v6501 = vcosq.f32.pop %v6499
    %v6502 = vsinq.f32.pop %v6499
    %vm6503 = vweird.f32 %v5628
    %v6504 = vadd.s32 %v6500, 3
    %v6505 = vand.u32 %v6504, 3
    %vm6506 = vcmp.lt.s32.totalorder %v6505, 2
    %vm6507 = vcmp.eq.s32.totalorder %v6505, 0
    %v6508 = vxor.u32 %v6502, 2147483648
    %v6509 = vsel %vm6507, %v6501, %v6508
    %vm6510 = vcmp.eq.s32.totalorder %v6505, 2
    %v6511 = vxor.u32 %v6501, 2147483648
    %v6512 = vsel %vm6510, %v6511, %v6502
    %v6513 = vsel %vm6506, %v6509, %v6512
    %v6514 = vsel %vm6503, nan, %v6513
    %v6515 = vand.u32 2147483647, %v5677
    %vm6516 = vcmp.le.f32.partialorder %v6515, 0.7853982
    %vm6517 = vcmp.lt.s32.totalorder %v5677, 0
    %v6518 = vand.u32 %v5677, 2139095040
    %v6519 = vshrl.u32 %v6518, 23
    %v6520 = vsub.s32 %v6519, 127
    %v6521 = vand.u32 2147483647, %v5677
    %v6522 = vand.u32 %v6521, 8388607
    %v6523 = vor.u32 %v6522, 8388608
    %v6524 = vsub.s32 0, %v6523
    %v6525 = vadd.s32 %v6520, 1
    %vm6526 = vcmp.gt.s32.totalorder %v6525, 0
    %v6527 = vsel %vm6526, %v6525, 0
    %v6528 = vshrl.u32 %v6527, 5
    %v6529 = vand.u32 %v6527, 31
    %v6530 = vsub.s32 32, %v6529
    %v6531 = vshrl.u32 683565275, %v6530
    %v6532 = vshll.u32 683565275, %v6529
    %v6533 = vshrl.u32 2475754826, %v6530
    %v6534 = vor.u32 %v6532, %v6533
    %v6535 = vshll.u32 2475754826, %v6529
    %v6536 = vshrl.u32 2131351028, %v6530
    %v6537 = vor.u32 %v6535, %v6536
    %v6538 = vshll.u32 2131351028, %v6529
    %v6539 = vshrl.u32 2102212464, %v6530
    %v6540 = vor.u32 %v6538, %v6539
    %v6541 = vshll.u32 2102212464, %v6529
    %v6542 = vshrl.u32 920167782, %v6530
    %v6543 = vor.u32 %v6541, %v6542
    %v6544 = vshll.u32 920167782, %v6529
    %v6545 = vshrl.u32 1326507024, %v6530
    %v6546 = vor.u32 %v6544, %v6545
    %vm6547 = vcmp.lt.s32.totalorder %v6528, 1
    %vm6548 = vcmp.lt.s32.totalorder %v6528, 2
    %vm6549 = vcmp.lt.s32.totalorder %v6528, 3
    %vm6550 = vcmp.lt.s32.totalorder %v6528, 4
    %v6551 = vsel %vm6547, %v6531, %v6534
    %v6552 = vsel %vm6550, %v6540, 2102212464
    %v6553 = vsel %vm6549, %v6537, %v6552
    %v6554 = vsel %vm6548, %v6551, %v6553
    %v6555 = vsel %vm6547, %v6534, %v6537
    %v6556 = vsel %vm6550, %v6543, 920167782
    %v6557 = vsel %vm6549, %v6540, %v6556
    %v6558 = vsel %vm6548, %v6555, %v6557
    %v6559 = vsel %vm6547, %v6537, %v6540
    %v6560 = vsel %vm6550, %v6546, 1326507024
    %v6561 = vsel %vm6549, %v6543, %v6560
    %v6562 = vsel %vm6548, %v6559, %v6561
    %v6563 = vshll.u32 %v6523, 8
    %v6564 = vmul.u32.u64.compose %v6563, %v6562
    %v6565 = vextract.low.u32 %v6564
    %v6566 = vextract.high.u32 %v6564
    %v6567 = vmul.u32.u64.compose %v6563, %v6558
    %v6568 = vextract.low.u32 %v6567
    %v6569 = vextract.high.u32 %v6567
    %v6570 = vmul.u32 %v6563, %v6554
    %v6571 = vadd.s32 %v6566, %v6568
    %vm6572 = vc.u32 %v6566, %v6568
    %v6573 = vadd.s32 %v6569, 1
    %v6574 = vsel %vm6572, %v6573, %v6569
    %v6575 = vadd.s32 %v6570, %v6574
    %v6576 = vadd.s32 %v6575, 536870912
    %v6577 = vshrl.u32 %v6576, 30
    %v6578 = vshll.u32 %v6577, 30
    %v6579 = vsub.s32 %v6575, %v6578
    %vm6580 = vcmp.lt.s32.totalorder %v6579, 0
    %v6581 = vsub.s32 0, %v6579
    %v6582 = vsel %vm6580, %v6581, %v6579
    %v6583 = vclz %v6582
    %v6584 = vsub.s32 %v6583, 2
    %vm6585 = vcmp.gt.s32.totalorder 0, %v6584
    %v6586 = vsel %vm6585, 0, %v6584
    %v6587 = vsub.s32 32, %v6586
    %v6588 = vshll.u32 %v6579, %v6586
    %v6589 = vshrl.u32 %v6571, %v6587
    %v6590 = vor.u32 %v6588, %v6589
    %v6591 = vsub.s32 4294967266, %v6586
    %v6592 = vadd.s32 %v6591, 127
    %v6593 = vshll.u32 %v6592, 23
    %v6594 = vor.u32 4788187, %v6593
    %v6595 = vand.u32 2147483647, %v6594
    %v6597 = vcvt.s32.f32 %v6590
    %v6598 = vmul.f32 %v6597, %v6595
    %v6599 = vxor.u32 %v6598, 2147483648
    %v6600 = vsel %vm6517, %v6599, %v6598
    %v6601 = vsub.s32 4, %v6577
    %v6602 = vsel %vm6517, %v6601, %v6577
    %v6603 = vsel %vm6516, %v5677, %v6600
    %v6604 = vsel %vm6516, 0, %v6602
    %v6605 = vcosq.f32.pop %v6603
    %v6606 = vsinq.f32.pop %v6603
    %vm6607 = vweird.f32 %v5677
    %v6608 = vadd.s32 %v6604, 3
    %v6609 = vand.u32 %v6608, 3
    %vm6610 = vcmp.lt.s32.totalorder %v6609, 2
    %vm6611 = vcmp.eq.s32.totalorder %v6609, 0
    %v6612 = vxor.u32 %v6606, 2147483648
    %v6613 = vsel %vm6611, %v6605, %v6612
    %vm6614 = vcmp.eq.s32.totalorder %v6609, 2
    %v6615 = vxor.u32 %v6605, 2147483648
    %v6616 = vsel %vm6614, %v6615, %v6606
    %v6617 = vsel %vm6610, %v6613, %v6616
    %v6618 = vsel %vm6607, nan, %v6617
    %v6619 = vand.u32 2147483647, %v5630
    %vm6620 = vcmp.le.f32.partialorder %v6619, 0.7853982
    %vm6621 = vcmp.lt.s32.totalorder %v5630, 0
    %v6622 = vand.u32 %v5630, 2139095040
    %v6623 = vshrl.u32 %v6622, 23
    %v6624 = vsub.s32 %v6623, 127
    %v6625 = vand.u32 2147483647, %v5630
    %v6626 = vand.u32 %v6625, 8388607
    %v6627 = vor.u32 %v6626, 8388608
    %v6628 = vsub.s32 0, %v6627
    %v6629 = vadd.s32 %v6624, 1
    %vm6630 = vcmp.gt.s32.totalorder %v6629, 0
    %v6631 = vsel %vm6630, %v6629, 0
    %v6632 = vshrl.u32 %v6631, 5
    %v6633 = vand.u32 %v6631, 31
    %v6634 = vsub.s32 32, %v6633
    %v6635 = vshrl.u32 683565275, %v6634
    %v6636 = vshll.u32 683565275, %v6633
    %v6637 = vshrl.u32 2475754826, %v6634
    %v6638 = vor.u32 %v6636, %v6637
    %v6639 = vshll.u32 2475754826, %v6633
    %v6640 = vshrl.u32 2131351028, %v6634
    %v6641 = vor.u32 %v6639, %v6640
    %v6642 = vshll.u32 2131351028, %v6633
    %v6643 = vshrl.u32 2102212464, %v6634
    %v6644 = vor.u32 %v6642, %v6643
    %v6645 = vshll.u32 2102212464, %v6633
    %v6646 = vshrl.u32 920167782, %v6634
    %v6647 = vor.u32 %v6645, %v6646
    %v6648 = vshll.u32 920167782, %v6633
    %v6649 = vshrl.u32 1326507024, %v6634
    %v6650 = vor.u32 %v6648, %v6649
    %vm6651 = vcmp.lt.s32.totalorder %v6632, 1
    %vm6652 = vcmp.lt.s32.totalorder %v6632, 2
    %vm6653 = vcmp.lt.s32.totalorder %v6632, 3
    %vm6654 = vcmp.lt.s32.totalorder %v6632, 4
    %v6655 = vsel %vm6651, %v6635, %v6638
    %v6656 = vsel %vm6654, %v6644, 2102212464
    %v6657 = vsel %vm6653, %v6641, %v6656
    %v6658 = vsel %vm6652, %v6655, %v6657
    %v6659 = vsel %vm6651, %v6638, %v6641
    %v6660 = vsel %vm6654, %v6647, 920167782
    %v6661 = vsel %vm6653, %v6644, %v6660
    %v6662 = vsel %vm6652, %v6659, %v6661
    %v6663 = vsel %vm6651, %v6641, %v6644
    %v6664 = vsel %vm6654, %v6650, 1326507024
    %v6665 = vsel %vm6653, %v6647, %v6664
    %v6666 = vsel %vm6652, %v6663, %v6665
    %v6667 = vshll.u32 %v6627, 8
    %v6668 = vmul.u32.u64.compose %v6667, %v6666
    %v6669 = vextract.low.u32 %v6668
    %v6670 = vextract.high.u32 %v6668
    %v6671 = vmul.u32.u64.compose %v6667, %v6662
    %v6672 = vextract.low.u32 %v6671
    %v6673 = vextract.high.u32 %v6671
    %v6674 = vmul.u32 %v6667, %v6658
    %v6675 = vadd.s32 %v6670, %v6672
    %vm6676 = vc.u32 %v6670, %v6672
    %v6677 = vadd.s32 %v6673, 1
    %v6678 = vsel %vm6676, %v6677, %v6673
    %v6679 = vadd.s32 %v6674, %v6678
    %v6680 = vadd.s32 %v6679, 536870912
    %v6681 = vshrl.u32 %v6680, 30
    %v6682 = vshll.u32 %v6681, 30
    %v6683 = vsub.s32 %v6679, %v6682
    %vm6684 = vcmp.lt.s32.totalorder %v6683, 0
    %v6685 = vsub.s32 0, %v6683
    %v6686 = vsel %vm6684, %v6685, %v6683
    %v6687 = vclz %v6686
    %v6688 = vsub.s32 %v6687, 2
    %vm6689 = vcmp.gt.s32.totalorder 0, %v6688
    %v6690 = vsel %vm6689, 0, %v6688
    %v6691 = vsub.s32 32, %v6690
    %v6692 = vshll.u32 %v6683, %v6690
    %v6693 = vshrl.u32 %v6675, %v6691
    %v6694 = vor.u32 %v6692, %v6693
    %v6695 = vsub.s32 4294967266, %v6690
    %v6696 = vadd.s32 %v6695, 127
    %v6697 = vshll.u32 %v6696, 23
    %v6698 = vor.u32 4788187, %v6697
    %v6699 = vand.u32 2147483647, %v6698
    %v6701 = vcvt.s32.f32 %v6694
    %v6702 = vmul.f32 %v6701, %v6699
    %v6703 = vxor.u32 %v6702, 2147483648
    %v6704 = vsel %vm6621, %v6703, %v6702
    %v6705 = vsub.s32 4, %v6681
    %v6706 = vsel %vm6621, %v6705, %v6681
    %v6707 = vsel %vm6620, %v5630, %v6704
    %v6708 = vsel %vm6620, 0, %v6706
    %v6709 = vcosq.f32.pop %v6707
    %v6710 = vsinq.f32.pop %v6707
    %vm6711 = vweird.f32 %v5630
    %v6712 = vadd.s32 %v6708, 3
    %v6713 = vand.u32 %v6712, 3
    %vm6714 = vcmp.lt.s32.totalorder %v6713, 2
    %vm6715 = vcmp.eq.s32.totalorder %v6713, 0
    %v6716 = vxor.u32 %v6710, 2147483648
    %v6717 = vsel %vm6715, %v6709, %v6716
    %vm6718 = vcmp.eq.s32.totalorder %v6713, 2
    %v6719 = vxor.u32 %v6709, 2147483648
    %v6720 = vsel %vm6718, %v6719, %v6710
    %v6721 = vsel %vm6714, %v6717, %v6720
    %v6722 = vsel %vm6711, nan, %v6721
    %v6723 = vand.u32 2147483647, %v5632
    %vm6724 = vcmp.le.f32.partialorder %v6723, 0.7853982
    %vm6725 = vcmp.lt.s32.totalorder %v5632, 0
    %v6726 = vand.u32 %v5632, 2139095040
    %v6727 = vshrl.u32 %v6726, 23
    %v6728 = vsub.s32 %v6727, 127
    %v6729 = vand.u32 2147483647, %v5632
    %v6730 = vand.u32 %v6729, 8388607
    %v6731 = vor.u32 %v6730, 8388608
    %v6732 = vsub.s32 0, %v6731
    %v6733 = vadd.s32 %v6728, 1
    %vm6734 = vcmp.gt.s32.totalorder %v6733, 0
    %v6735 = vsel %vm6734, %v6733, 0
    %v6736 = vshrl.u32 %v6735, 5
    %v6737 = vand.u32 %v6735, 31
    %v6738 = vsub.s32 32, %v6737
    %v6739 = vshrl.u32 683565275, %v6738
    %v6740 = vshll.u32 683565275, %v6737
    %v6741 = vshrl.u32 2475754826, %v6738
    %v6742 = vor.u32 %v6740, %v6741
    %v6743 = vshll.u32 2475754826, %v6737
    %v6744 = vshrl.u32 2131351028, %v6738
    %v6745 = vor.u32 %v6743, %v6744
    %v6746 = vshll.u32 2131351028, %v6737
    %v6747 = vshrl.u32 2102212464, %v6738
    %v6748 = vor.u32 %v6746, %v6747
    %v6749 = vshll.u32 2102212464, %v6737
    %v6750 = vshrl.u32 920167782, %v6738
    %v6751 = vor.u32 %v6749, %v6750
    %v6752 = vshll.u32 920167782, %v6737
    %v6753 = vshrl.u32 1326507024, %v6738
    %v6754 = vor.u32 %v6752, %v6753
    %vm6755 = vcmp.lt.s32.totalorder %v6736, 1
    %vm6756 = vcmp.lt.s32.totalorder %v6736, 2
    %vm6757 = vcmp.lt.s32.totalorder %v6736, 3
    %vm6758 = vcmp.lt.s32.totalorder %v6736, 4
    %v6759 = vsel %vm6755, %v6739, %v6742
    %v6760 = vsel %vm6758, %v6748, 2102212464
    %v6761 = vsel %vm6757, %v6745, %v6760
    %v6762 = vsel %vm6756, %v6759, %v6761
    %v6763 = vsel %vm6755, %v6742, %v6745
    %v6764 = vsel %vm6758, %v6751, 920167782
    %v6765 = vsel %vm6757, %v6748, %v6764
    %v6766 = vsel %vm6756, %v6763, %v6765
    %v6767 = vsel %vm6755, %v6745, %v6748
    %v6768 = vsel %vm6758, %v6754, 1326507024
    %v6769 = vsel %vm6757, %v6751, %v6768
    %v6770 = vsel %vm6756, %v6767, %v6769
    %v6771 = vshll.u32 %v6731, 8
    %v6772 = vmul.u32.u64.compose %v6771, %v6770
    %v6773 = vextract.low.u32 %v6772
    %v6774 = vextract.high.u32 %v6772
    %v6775 = vmul.u32.u64.compose %v6771, %v6766
    %v6776 = vextract.low.u32 %v6775
    %v6777 = vextract.high.u32 %v6775
    %v6778 = vmul.u32 %v6771, %v6762
    %v6779 = vadd.s32 %v6774, %v6776
    %vm6780 = vc.u32 %v6774, %v6776
    %v6781 = vadd.s32 %v6777, 1
    %v6782 = vsel %vm6780, %v6781, %v6777
    %v6783 = vadd.s32 %v6778, %v6782
    %v6784 = vadd.s32 %v6783, 536870912
    %v6785 = vshrl.u32 %v6784, 30
    %v6786 = vshll.u32 %v6785, 30
    %v6787 = vsub.s32 %v6783, %v6786
    %vm6788 = vcmp.lt.s32.totalorder %v6787, 0
    %v6789 = vsub.s32 0, %v6787
    %v6790 = vsel %vm6788, %v6789, %v6787
    %v6791 = vclz %v6790
    %v6792 = vsub.s32 %v6791, 2
    %vm6793 = vcmp.gt.s32.totalorder 0, %v6792
    %v6794 = vsel %vm6793, 0, %v6792
    %v6795 = vsub.s32 32, %v6794
    %v6796 = vshll.u32 %v6787, %v6794
    %v6797 = vshrl.u32 %v6779, %v6795
    %v6798 = vor.u32 %v6796, %v6797
    %v6799 = vsub.s32 4294967266, %v6794
    %v6800 = vadd.s32 %v6799, 127
    %v6801 = vshll.u32 %v6800, 23
    %v6802 = vor.u32 4788187, %v6801
    %v6803 = vand.u32 2147483647, %v6802
    %v6805 = vcvt.s32.f32 %v6798
    %v6806 = vmul.f32 %v6805, %v6803
    %v6807 = vxor.u32 %v6806, 2147483648
    %v6808 = vsel %vm6725, %v6807, %v6806
    %v6809 = vsub.s32 4, %v6785
    %v6810 = vsel %vm6725, %v6809, %v6785
    %v6811 = vsel %vm6724, %v5632, %v6808
    %v6812 = vsel %vm6724, 0, %v6810
    %v6813 = vcosq.f32.pop %v6811
    %v6814 = vsinq.f32.pop %v6811
    %vm6815 = vweird.f32 %v5632
    %v6816 = vadd.s32 %v6812, 3
    %v6817 = vand.u32 %v6816, 3
    %vm6818 = vcmp.lt.s32.totalorder %v6817, 2
    %vm6819 = vcmp.eq.s32.totalorder %v6817, 0
    %v6820 = vxor.u32 %v6814, 2147483648
    %v6821 = vsel %vm6819, %v6813, %v6820
    %vm6822 = vcmp.eq.s32.totalorder %v6817, 2
    %v6823 = vxor.u32 %v6813, 2147483648
    %v6824 = vsel %vm6822, %v6823, %v6814
    %v6825 = vsel %vm6818, %v6821, %v6824
    %v6826 = vsel %vm6815, nan, %v6825
    %v6827 = vand.u32 2147483647, %v5680
    %vm6828 = vcmp.le.f32.partialorder %v6827, 0.7853982
    %vm6829 = vcmp.lt.s32.totalorder %v5680, 0
    %v6830 = vand.u32 %v5680, 2139095040
    %v6831 = vshrl.u32 %v6830, 23
    %v6832 = vsub.s32 %v6831, 127
    %v6833 = vand.u32 2147483647, %v5680
    %v6834 = vand.u32 %v6833, 8388607
    %v6835 = vor.u32 %v6834, 8388608
    %v6836 = vsub.s32 0, %v6835
    %v6837 = vadd.s32 %v6832, 1
    %vm6838 = vcmp.gt.s32.totalorder %v6837, 0
    %v6839 = vsel %vm6838, %v6837, 0
    %v6840 = vshrl.u32 %v6839, 5
    %v6841 = vand.u32 %v6839, 31
    %v6842 = vsub.s32 32, %v6841
    %v6843 = vshrl.u32 683565275, %v6842
    %v6844 = vshll.u32 683565275, %v6841
    %v6845 = vshrl.u32 2475754826, %v6842
    %v6846 = vor.u32 %v6844, %v6845
    %v6847 = vshll.u32 2475754826, %v6841
    %v6848 = vshrl.u32 2131351028, %v6842
    %v6849 = vor.u32 %v6847, %v6848
    %v6850 = vshll.u32 2131351028, %v6841
    %v6851 = vshrl.u32 2102212464, %v6842
    %v6852 = vor.u32 %v6850, %v6851
    %v6853 = vshll.u32 2102212464, %v6841
    %v6854 = vshrl.u32 920167782, %v6842
    %v6855 = vor.u32 %v6853, %v6854
    %v6856 = vshll.u32 920167782, %v6841
    %v6857 = vshrl.u32 1326507024, %v6842
    %v6858 = vor.u32 %v6856, %v6857
    %vm6859 = vcmp.lt.s32.totalorder %v6840, 1
    %vm6860 = vcmp.lt.s32.totalorder %v6840, 2
    %vm6861 = vcmp.lt.s32.totalorder %v6840, 3
    %vm6862 = vcmp.lt.s32.totalorder %v6840, 4
    %v6863 = vsel %vm6859, %v6843, %v6846
    %v6864 = vsel %vm6862, %v6852, 2102212464
    %v6865 = vsel %vm6861, %v6849, %v6864
    %v6866 = vsel %vm6860, %v6863, %v6865
    %v6867 = vsel %vm6859, %v6846, %v6849
    %v6868 = vsel %vm6862, %v6855, 920167782
    %v6869 = vsel %vm6861, %v6852, %v6868
    %v6870 = vsel %vm6860, %v6867, %v6869
    %v6871 = vsel %vm6859, %v6849, %v6852
    %v6872 = vsel %vm6862, %v6858, 1326507024
    %v6873 = vsel %vm6861, %v6855, %v6872
    %v6874 = vsel %vm6860, %v6871, %v6873
    %v6875 = vshll.u32 %v6835, 8
    %v6876 = vmul.u32.u64.compose %v6875, %v6874
    %v6877 = vextract.low.u32 %v6876
    %v6878 = vextract.high.u32 %v6876
    %v6879 = vmul.u32.u64.compose %v6875, %v6870
    %v6880 = vextract.low.u32 %v6879
    %v6881 = vextract.high.u32 %v6879
    %v6882 = vmul.u32 %v6875, %v6866
    %v6883 = vadd.s32 %v6878, %v6880
    %vm6884 = vc.u32 %v6878, %v6880
    %v6885 = vadd.s32 %v6881, 1
    %v6886 = vsel %vm6884, %v6885, %v6881
    %v6887 = vadd.s32 %v6882, %v6886
    %v6888 = vadd.s32 %v6887, 536870912
    %v6889 = vshrl.u32 %v6888, 30
    %v6890 = vshll.u32 %v6889, 30
    %v6891 = vsub.s32 %v6887, %v6890
    %vm6892 = vcmp.lt.s32.totalorder %v6891, 0
    %v6893 = vsub.s32 0, %v6891
    %v6894 = vsel %vm6892, %v6893, %v6891
    %v6895 = vclz %v6894
    %v6896 = vsub.s32 %v6895, 2
    %vm6897 = vcmp.gt.s32.totalorder 0, %v6896
    %v6898 = vsel %vm6897, 0, %v6896
    %v6899 = vsub.s32 32, %v6898
    %v6900 = vshll.u32 %v6891, %v6898
    %v6901 = vshrl.u32 %v6883, %v6899
    %v6902 = vor.u32 %v6900, %v6901
    %v6903 = vsub.s32 4294967266, %v6898
    %v6904 = vadd.s32 %v6903, 127
    %v6905 = vshll.u32 %v6904, 23
    %v6906 = vor.u32 4788187, %v6905
    %v6907 = vand.u32 2147483647, %v6906
    %v6909 = vcvt.s32.f32 %v6902
    %v6910 = vmul.f32 %v6909, %v6907
    %v6911 = vxor.u32 %v6910, 2147483648
    %v6912 = vsel %vm6829, %v6911, %v6910
    %v6913 = vsub.s32 4, %v6889
    %v6914 = vsel %vm6829, %v6913, %v6889
    %v6915 = vsel %vm6828, %v5680, %v6912
    %v6916 = vsel %vm6828, 0, %v6914
    %v6917 = vcosq.f32.pop %v6915
    %v6918 = vsinq.f32.pop %v6915
    %vm6919 = vweird.f32 %v5680
    %v6920 = vadd.s32 %v6916, 3
    %v6921 = vand.u32 %v6920, 3
    %vm6922 = vcmp.lt.s32.totalorder %v6921, 2
    %vm6923 = vcmp.eq.s32.totalorder %v6921, 0
    %v6924 = vxor.u32 %v6918, 2147483648
    %v6925 = vsel %vm6923, %v6917, %v6924
    %vm6926 = vcmp.eq.s32.totalorder %v6921, 2
    %v6927 = vxor.u32 %v6917, 2147483648
    %v6928 = vsel %vm6926, %v6927, %v6918
    %v6929 = vsel %vm6922, %v6925, %v6928
    %v6930 = vsel %vm6919, nan, %v6929
    %v6931 = vpack.c.bf16 %v4698, %v4386
    %v6932 = vpack.c.bf16 %v4802, %v4490
    %v6933 = vpack.c.bf16 %v4906, %v4594
    %v6934 = vpack.c.bf16 %v5322, %v5010
    %v6935 = vpack.c.bf16 %v5426, %v5114
    %v6936 = vpack.c.bf16 %v5530, %v5218
    %6937 = vmatprep.subr.bf16.mxu0 %v6932
    %6938 = vmatpush1.bf16.msra.mxu0 %v6931
    %6939 = vmatprep.subr.bf16.mxu0 %v6935
    %6940 = vmatpush1.bf16.msra.mxu0 %v6934
    %6941 = vmatprep.subr.bf16.mxu0 0
    %6942 = vmatpush1.bf16.msra.mxu0 0
    %6943 = vmatprep.subr.bf16.mxu0 0
    %6944 = vmatpush1.bf16.msra.mxu0 0
    %6945 = vmatprep.subr.bf16.mxu0 0
    %6946 = vmatpush1.bf16.msra.mxu0 0
    %6947 = vmatprep.subr.bf16.mxu0 0
    %6948 = vmatpush1.bf16.msra.mxu0 0
    %6949 = vmatprep.subr.bf16.mxu0 0
    %6950 = vmatpush1.bf16.msra.mxu0 0
    %6951 = vmatprep.subr.bf16.mxu0 0
    %6952 = vmatpush1.bf16.msra.mxu0 0
    %6953 = vmatprep.subr.bf16.mxu0 0
    %6954 = vmatpush1.bf16.msra.mxu0 0
    %6955 = vmatprep.subr.bf16.mxu0 0
    %6956 = vmatpush1.bf16.msra.mxu0 0
    %6957 = vmatprep.subr.bf16.mxu0 0
    %6958 = vmatpush1.bf16.msra.mxu0 0
    %6959 = vmatprep.subr.bf16.mxu0 0
    %6960 = vmatpush1.bf16.msra.mxu0 0
    %6961 = vmatprep.subr.bf16.mxu0 0
    %6962 = vmatpush1.bf16.msra.mxu0 0
    %6963 = vmatprep.subr.bf16.mxu0 0
    %6964 = vmatpush1.bf16.msra.mxu0 0
    %6965 = vmatprep.subr.bf16.mxu0 0
    %6966 = vmatpush1.bf16.msra.mxu0 0
    %6967 = vmatprep.subr.bf16.mxu0 0
    %6968 = vmatpush1.bf16.msra.mxu0 0
    %6969 = vmatprep.mubr.bf16.mxu0 0
    %6970 = vmatmul.mubr.bf16.gmra.mrb[0].mxu0 %v5576
    %v6971 = vpop.f32.mrb[0].mxu0
    %v6972 = vadd.f32 %v5548, %v6971
    %v6973 = vpop.f32.mrb[0].mxu0
    %v6974 = vadd.f32 %v5548, %v6973
    %v6975 = vpop.f32.mrb[0].mxu0
    %v6976 = vadd.f32 %v5553, %v6975
    %v6977 = vpop.f32.mrb[0].mxu0
    %v6978 = vadd.f32 %v5553, %v6977
    %6979 = vmatprep.mubr.bf16.mxu0 0
    %6980 = vmatmul.mubr.bf16.gmra.mrb[0].mxu0 %v5579
    %v6981 = vpop.f32.mrb[0].mxu0
    %v6982 = vadd.f32 %v5558, %v6981
    %v6983 = vpop.f32.mrb[0].mxu0
    %v6984 = vadd.f32 %v5558, %v6983
    %v6985 = vpop.f32.mrb[0].mxu0
    %v6986 = vadd.f32 %v5563, %v6985
    %v6987 = vpop.f32.mrb[0].mxu0
    %v6988 = vadd.f32 %v5563, %v6987
    %6989 = vdwg.mxu0
    %6990 = vmatprep.subr.bf16.mxu0 0
    %6991 = vmatpush1.bf16.msra.mxu0 %v6933
    %6992 = vmatprep.subr.bf16.mxu0 0
    %6993 = vmatpush1.bf16.msra.mxu0 %v6936
    %6994 = vmatprep.subr.bf16.mxu0 0
    %6995 = vmatpush1.bf16.msra.mxu0 0
    %6996 = vmatprep.subr.bf16.mxu0 0
    %6997 = vmatpush1.bf16.msra.mxu0 0
    %6998 = vmatprep.subr.bf16.mxu0 0
    %6999 = vmatpush1.bf16.msra.mxu0 0
    %7000 = vmatprep.subr.bf16.mxu0 0
    %7001 = vmatpush1.bf16.msra.mxu0 0
    %7002 = vmatprep.subr.bf16.mxu0 0
    %7003 = vmatpush1.bf16.msra.mxu0 0
    %7004 = vmatprep.subr.bf16.mxu0 0
    %7005 = vmatpush1.bf16.msra.mxu0 0
    %7006 = vmatprep.subr.bf16.mxu0 0
    %7007 = vmatpush1.bf16.msra.mxu0 0
    %7008 = vmatprep.subr.bf16.mxu0 0
    %7009 = vmatpush1.bf16.msra.mxu0 0
    %7010 = vmatprep.subr.bf16.mxu0 0
    %7011 = vmatpush1.bf16.msra.mxu0 0
    %7012 = vmatprep.subr.bf16.mxu0 0
    %7013 = vmatpush1.bf16.msra.mxu0 0
    %7014 = vmatprep.subr.bf16.mxu0 0
    %7015 = vmatpush1.bf16.msra.mxu0 0
    %7016 = vmatprep.subr.bf16.mxu0 0
    %7017 = vmatpush1.bf16.msra.mxu0 0
    %7018 = vmatprep.subr.bf16.mxu0 0
    %7019 = vmatpush1.bf16.msra.mxu0 0
    %7020 = vmatprep.subr.bf16.mxu0 0
    %7021 = vmatpush1.bf16.msra.mxu0 0
    %7022 = vmatprep.mubr.bf16.mxu0 0
    %7023 = vmatmul.mubr.bf16.gmra.mrb[0].mxu0 %v5576
    %v7024 = vpop.f32.mrb[0].mxu0
    %v7025 = vadd.f32 %v5548, %v7024
    %v7026 = vpop.f32.mrb[0].mxu0
    %v7027 = vpop.f32.mrb[0].mxu0
    %v7028 = vadd.f32 %v5553, %v7027
    %v7029 = vpop.f32.mrb[0].mxu0
    %7030 = vmatprep.mubr.bf16.mxu0 0
    %7031 = vmatmul.mubr.bf16.gmra.mrb[0].mxu0 %v5579
    %v7032 = vpop.f32.mrb[0].mxu0
    %v7033 = vadd.f32 %v5558, %v7032
    %v7034 = vpop.f32.mrb[0].mxu0
    %v7035 = vpop.f32.mrb[0].mxu0
    %v7036 = vadd.f32 %v5563, %v7035
    %v7037 = vpop.f32.mrb[0].mxu0
    %7038 = vdwg.mxu0
    %v7039 = vand.u32 2147483647, %v6972
    %vm7040 = vcmp.le.f32.partialorder %v7039, 0.7853982
    %vm7041 = vcmp.lt.s32.totalorder %v6972, 0
    %v7042 = vand.u32 %v6972, 2139095040
    %v7043 = vshrl.u32 %v7042, 23
    %v7044 = vsub.s32 %v7043, 127
    %v7045 = vand.u32 2147483647, %v6972
    %v7046 = vand.u32 %v7045, 8388607
    %v7047 = vor.u32 %v7046, 8388608
    %v7048 = vsub.s32 0, %v7047
    %v7049 = vadd.s32 %v7044, 1
    %vm7050 = vcmp.gt.s32.totalorder %v7049, 0
    %v7051 = vsel %vm7050, %v7049, 0
    %v7052 = vshrl.u32 %v7051, 5
    %v7053 = vand.u32 %v7051, 31
    %v7054 = vsub.s32 32, %v7053
    %v7055 = vshrl.u32 683565275, %v7054
    %v7056 = vshll.u32 683565275, %v7053
    %v7057 = vshrl.u32 2475754826, %v7054
    %v7058 = vor.u32 %v7056, %v7057
    %v7059 = vshll.u32 2475754826, %v7053
    %v7060 = vshrl.u32 2131351028, %v7054
    %v7061 = vor.u32 %v7059, %v7060
    %v7062 = vshll.u32 2131351028, %v7053
    %v7063 = vshrl.u32 2102212464, %v7054
    %v7064 = vor.u32 %v7062, %v7063
    %v7065 = vshll.u32 2102212464, %v7053
    %v7066 = vshrl.u32 920167782, %v7054
    %v7067 = vor.u32 %v7065, %v7066
    %v7068 = vshll.u32 920167782, %v7053
    %v7069 = vshrl.u32 1326507024, %v7054
    %v7070 = vor.u32 %v7068, %v7069
    %vm7071 = vcmp.lt.s32.totalorder %v7052, 1
    %vm7072 = vcmp.lt.s32.totalorder %v7052, 2
    %vm7073 = vcmp.lt.s32.totalorder %v7052, 3
    %vm7074 = vcmp.lt.s32.totalorder %v7052, 4
    %v7075 = vsel %vm7071, %v7055, %v7058
    %v7076 = vsel %vm7074, %v7064, 2102212464
    %v7077 = vsel %vm7073, %v7061, %v7076
    %v7078 = vsel %vm7072, %v7075, %v7077
    %v7079 = vsel %vm7071, %v7058, %v7061
    %v7080 = vsel %vm7074, %v7067, 920167782
    %v7081 = vsel %vm7073, %v7064, %v7080
    %v7082 = vsel %vm7072, %v7079, %v7081
    %v7083 = vsel %vm7071, %v7061, %v7064
    %v7084 = vsel %vm7074, %v7070, 1326507024
    %v7085 = vsel %vm7073, %v7067, %v7084
    %v7086 = vsel %vm7072, %v7083, %v7085
    %v7087 = vshll.u32 %v7047, 8
    %v7088 = vmul.u32.u64.compose %v7087, %v7086
    %v7089 = vextract.low.u32 %v7088
    %v7090 = vextract.high.u32 %v7088
    %v7091 = vmul.u32.u64.compose %v7087, %v7082
    %v7092 = vextract.low.u32 %v7091
    %v7093 = vextract.high.u32 %v7091
    %v7094 = vmul.u32 %v7087, %v7078
    %v7095 = vadd.s32 %v7090, %v7092
    %vm7096 = vc.u32 %v7090, %v7092
    %v7097 = vadd.s32 %v7093, 1
    %v7098 = vsel %vm7096, %v7097, %v7093
    %v7099 = vadd.s32 %v7094, %v7098
    %v7100 = vadd.s32 %v7099, 536870912
    %v7101 = vshrl.u32 %v7100, 30
    %v7102 = vshll.u32 %v7101, 30
    %v7103 = vsub.s32 %v7099, %v7102
    %vm7104 = vcmp.lt.s32.totalorder %v7103, 0
    %v7105 = vsub.s32 0, %v7103
    %v7106 = vsel %vm7104, %v7105, %v7103
    %v7107 = vclz %v7106
    %v7108 = vsub.s32 %v7107, 2
    %vm7109 = vcmp.gt.s32.totalorder 0, %v7108
    %v7110 = vsel %vm7109, 0, %v7108
    %v7111 = vsub.s32 32, %v7110
    %v7112 = vshll.u32 %v7103, %v7110
    %v7113 = vshrl.u32 %v7095, %v7111
    %v7114 = vor.u32 %v7112, %v7113
    %v7115 = vsub.s32 4294967266, %v7110
    %v7116 = vadd.s32 %v7115, 127
    %v7117 = vshll.u32 %v7116, 23
    %v7118 = vor.u32 4788187, %v7117
    %v7119 = vand.u32 2147483647, %v7118
    %v7121 = vcvt.s32.f32 %v7114
    %v7122 = vmul.f32 %v7121, %v7119
    %v7123 = vxor.u32 %v7122, 2147483648
    %v7124 = vsel %vm7041, %v7123, %v7122
    %v7125 = vsub.s32 4, %v7101
    %v7126 = vsel %vm7041, %v7125, %v7101
    %v7127 = vsel %vm7040, %v6972, %v7124
    %v7128 = vsel %vm7040, 0, %v7126
    %v7129 = vcosq.f32.pop %v7127
    %v7130 = vsinq.f32.pop %v7127
    %vm7131 = vweird.f32 %v6972
    %v7132 = vadd.s32 %v7128, 3
    %v7133 = vand.u32 %v7132, 3
    %vm7134 = vcmp.lt.s32.totalorder %v7133, 2
    %vm7135 = vcmp.eq.s32.totalorder %v7133, 0
    %v7136 = vxor.u32 %v7130, 2147483648
    %v7137 = vsel %vm7135, %v7129, %v7136
    %vm7138 = vcmp.eq.s32.totalorder %v7133, 2
    %v7139 = vxor.u32 %v7129, 2147483648
    %v7140 = vsel %vm7138, %v7139, %v7130
    %v7141 = vsel %vm7134, %v7137, %v7140
    %v7142 = vsel %vm7131, nan, %v7141
    %v7143 = vand.u32 2147483647, %v6974
    %vm7144 = vcmp.le.f32.partialorder %v7143, 0.7853982
    %vm7145 = vcmp.lt.s32.totalorder %v6974, 0
    %v7146 = vand.u32 %v6974, 2139095040
    %v7147 = vshrl.u32 %v7146, 23
    %v7148 = vsub.s32 %v7147, 127
    %v7149 = vand.u32 2147483647, %v6974
    %v7150 = vand.u32 %v7149, 8388607
    %v7151 = vor.u32 %v7150, 8388608
    %v7152 = vsub.s32 0, %v7151
    %v7153 = vadd.s32 %v7148, 1
    %vm7154 = vcmp.gt.s32.totalorder %v7153, 0
    %v7155 = vsel %vm7154, %v7153, 0
    %v7156 = vshrl.u32 %v7155, 5
    %v7157 = vand.u32 %v7155, 31
    %v7158 = vsub.s32 32, %v7157
    %v7159 = vshrl.u32 683565275, %v7158
    %v7160 = vshll.u32 683565275, %v7157
    %v7161 = vshrl.u32 2475754826, %v7158
    %v7162 = vor.u32 %v7160, %v7161
    %v7163 = vshll.u32 2475754826, %v7157
    %v7164 = vshrl.u32 2131351028, %v7158
    %v7165 = vor.u32 %v7163, %v7164
    %v7166 = vshll.u32 2131351028, %v7157
    %v7167 = vshrl.u32 2102212464, %v7158
    %v7168 = vor.u32 %v7166, %v7167
    %v7169 = vshll.u32 2102212464, %v7157
    %v7170 = vshrl.u32 920167782, %v7158
    %v7171 = vor.u32 %v7169, %v7170
    %v7172 = vshll.u32 920167782, %v7157
    %v7173 = vshrl.u32 1326507024, %v7158
    %v7174 = vor.u32 %v7172, %v7173
    %vm7175 = vcmp.lt.s32.totalorder %v7156, 1
    %vm7176 = vcmp.lt.s32.totalorder %v7156, 2
    %vm7177 = vcmp.lt.s32.totalorder %v7156, 3
    %vm7178 = vcmp.lt.s32.totalorder %v7156, 4
    %v7179 = vsel %vm7175, %v7159, %v7162
    %v7180 = vsel %vm7178, %v7168, 2102212464
    %v7181 = vsel %vm7177, %v7165, %v7180
    %v7182 = vsel %vm7176, %v7179, %v7181
    %v7183 = vsel %vm7175, %v7162, %v7165
    %v7184 = vsel %vm7178, %v7171, 920167782
    %v7185 = vsel %vm7177, %v7168, %v7184
    %v7186 = vsel %vm7176, %v7183, %v7185
    %v7187 = vsel %vm7175, %v7165, %v7168
    %v7188 = vsel %vm7178, %v7174, 1326507024
    %v7189 = vsel %vm7177, %v7171, %v7188
    %v7190 = vsel %vm7176, %v7187, %v7189
    %v7191 = vshll.u32 %v7151, 8
    %v7192 = vmul.u32.u64.compose %v7191, %v7190
    %v7193 = vextract.low.u32 %v7192
    %v7194 = vextract.high.u32 %v7192
    %v7195 = vmul.u32.u64.compose %v7191, %v7186
    %v7196 = vextract.low.u32 %v7195
    %v7197 = vextract.high.u32 %v7195
    %v7198 = vmul.u32 %v7191, %v7182
    %v7199 = vadd.s32 %v7194, %v7196
    %vm7200 = vc.u32 %v7194, %v7196
    %v7201 = vadd.s32 %v7197, 1
    %v7202 = vsel %vm7200, %v7201, %v7197
    %v7203 = vadd.s32 %v7198, %v7202
    %v7204 = vadd.s32 %v7203, 536870912
    %v7205 = vshrl.u32 %v7204, 30
    %v7206 = vshll.u32 %v7205, 30
    %v7207 = vsub.s32 %v7203, %v7206
    %vm7208 = vcmp.lt.s32.totalorder %v7207, 0
    %v7209 = vsub.s32 0, %v7207
    %v7210 = vsel %vm7208, %v7209, %v7207
    %v7211 = vclz %v7210
    %v7212 = vsub.s32 %v7211, 2
    %vm7213 = vcmp.gt.s32.totalorder 0, %v7212
    %v7214 = vsel %vm7213, 0, %v7212
    %v7215 = vsub.s32 32, %v7214
    %v7216 = vshll.u32 %v7207, %v7214
    %v7217 = vshrl.u32 %v7199, %v7215
    %v7218 = vor.u32 %v7216, %v7217
    %v7219 = vsub.s32 4294967266, %v7214
    %v7220 = vadd.s32 %v7219, 127
    %v7221 = vshll.u32 %v7220, 23
    %v7222 = vor.u32 4788187, %v7221
    %v7223 = vand.u32 2147483647, %v7222
    %v7225 = vcvt.s32.f32 %v7218
    %v7226 = vmul.f32 %v7225, %v7223
    %v7227 = vxor.u32 %v7226, 2147483648
    %v7228 = vsel %vm7145, %v7227, %v7226
    %v7229 = vsub.s32 4, %v7205
    %v7230 = vsel %vm7145, %v7229, %v7205
    %v7231 = vsel %vm7144, %v6974, %v7228
    %v7232 = vsel %vm7144, 0, %v7230
    %v7233 = vcosq.f32.pop %v7231
    %v7234 = vsinq.f32.pop %v7231
    %vm7235 = vweird.f32 %v6974
    %v7236 = vadd.s32 %v7232, 3
    %v7237 = vand.u32 %v7236, 3
    %vm7238 = vcmp.lt.s32.totalorder %v7237, 2
    %vm7239 = vcmp.eq.s32.totalorder %v7237, 0
    %v7240 = vxor.u32 %v7234, 2147483648
    %v7241 = vsel %vm7239, %v7233, %v7240
    %vm7242 = vcmp.eq.s32.totalorder %v7237, 2
    %v7243 = vxor.u32 %v7233, 2147483648
    %v7244 = vsel %vm7242, %v7243, %v7234
    %v7245 = vsel %vm7238, %v7241, %v7244
    %v7246 = vsel %vm7235, nan, %v7245
    %v7247 = vand.u32 2147483647, %v7025
    %vm7248 = vcmp.le.f32.partialorder %v7247, 0.7853982
    %vm7249 = vcmp.lt.s32.totalorder %v7025, 0
    %v7250 = vand.u32 %v7025, 2139095040
    %v7251 = vshrl.u32 %v7250, 23
    %v7252 = vsub.s32 %v7251, 127
    %v7253 = vand.u32 2147483647, %v7025
    %v7254 = vand.u32 %v7253, 8388607
    %v7255 = vor.u32 %v7254, 8388608
    %v7256 = vsub.s32 0, %v7255
    %v7257 = vadd.s32 %v7252, 1
    %vm7258 = vcmp.gt.s32.totalorder %v7257, 0
    %v7259 = vsel %vm7258, %v7257, 0
    %v7260 = vshrl.u32 %v7259, 5
    %v7261 = vand.u32 %v7259, 31
    %v7262 = vsub.s32 32, %v7261
    %v7263 = vshrl.u32 683565275, %v7262
    %v7264 = vshll.u32 683565275, %v7261
    %v7265 = vshrl.u32 2475754826, %v7262
    %v7266 = vor.u32 %v7264, %v7265
    %v7267 = vshll.u32 2475754826, %v7261
    %v7268 = vshrl.u32 2131351028, %v7262
    %v7269 = vor.u32 %v7267, %v7268
    %v7270 = vshll.u32 2131351028, %v7261
    %v7271 = vshrl.u32 2102212464, %v7262
    %v7272 = vor.u32 %v7270, %v7271
    %v7273 = vshll.u32 2102212464, %v7261
    %v7274 = vshrl.u32 920167782, %v7262
    %v7275 = vor.u32 %v7273, %v7274
    %v7276 = vshll.u32 920167782, %v7261
    %v7277 = vshrl.u32 1326507024, %v7262
    %v7278 = vor.u32 %v7276, %v7277
    %vm7279 = vcmp.lt.s32.totalorder %v7260, 1
    %vm7280 = vcmp.lt.s32.totalorder %v7260, 2
    %vm7281 = vcmp.lt.s32.totalorder %v7260, 3
    %vm7282 = vcmp.lt.s32.totalorder %v7260, 4
    %v7283 = vsel %vm7279, %v7263, %v7266
    %v7284 = vsel %vm7282, %v7272, 2102212464
    %v7285 = vsel %vm7281, %v7269, %v7284
    %v7286 = vsel %vm7280, %v7283, %v7285
    %v7287 = vsel %vm7279, %v7266, %v7269
    %v7288 = vsel %vm7282, %v7275, 920167782
    %v7289 = vsel %vm7281, %v7272, %v7288
    %v7290 = vsel %vm7280, %v7287, %v7289
    %v7291 = vsel %vm7279, %v7269, %v7272
    %v7292 = vsel %vm7282, %v7278, 1326507024
    %v7293 = vsel %vm7281, %v7275, %v7292
    %v7294 = vsel %vm7280, %v7291, %v7293
    %v7295 = vshll.u32 %v7255, 8
    %v7296 = vmul.u32.u64.compose %v7295, %v7294
    %v7297 = vextract.low.u32 %v7296
    %v7298 = vextract.high.u32 %v7296
    %v7299 = vmul.u32.u64.compose %v7295, %v7290
    %v7300 = vextract.low.u32 %v7299
    %v7301 = vextract.high.u32 %v7299
    %v7302 = vmul.u32 %v7295, %v7286
    %v7303 = vadd.s32 %v7298, %v7300
    %vm7304 = vc.u32 %v7298, %v7300
    %v7305 = vadd.s32 %v7301, 1
    %v7306 = vsel %vm7304, %v7305, %v7301
    %v7307 = vadd.s32 %v7302, %v7306
    %v7308 = vadd.s32 %v7307, 536870912
    %v7309 = vshrl.u32 %v7308, 30
    %v7310 = vshll.u32 %v7309, 30
    %v7311 = vsub.s32 %v7307, %v7310
    %vm7312 = vcmp.lt.s32.totalorder %v7311, 0
    %v7313 = vsub.s32 0, %v7311
    %v7314 = vsel %vm7312, %v7313, %v7311
    %v7315 = vclz %v7314
    %v7316 = vsub.s32 %v7315, 2
    %vm7317 = vcmp.gt.s32.totalorder 0, %v7316
    %v7318 = vsel %vm7317, 0, %v7316
    %v7319 = vsub.s32 32, %v7318
    %v7320 = vshll.u32 %v7311, %v7318
    %v7321 = vshrl.u32 %v7303, %v7319
    %v7322 = vor.u32 %v7320, %v7321
    %v7323 = vsub.s32 4294967266, %v7318
    %v7324 = vadd.s32 %v7323, 127
    %v7325 = vshll.u32 %v7324, 23
    %v7326 = vor.u32 4788187, %v7325
    %v7327 = vand.u32 2147483647, %v7326
    %v7329 = vcvt.s32.f32 %v7322
    %v7330 = vmul.f32 %v7329, %v7327
    %v7331 = vxor.u32 %v7330, 2147483648
    %v7332 = vsel %vm7249, %v7331, %v7330
    %v7333 = vsub.s32 4, %v7309
    %v7334 = vsel %vm7249, %v7333, %v7309
    %v7335 = vsel %vm7248, %v7025, %v7332
    %v7336 = vsel %vm7248, 0, %v7334
    %v7337 = vcosq.f32.pop %v7335
    %v7338 = vsinq.f32.pop %v7335
    %vm7339 = vweird.f32 %v7025
    %v7340 = vadd.s32 %v7336, 3
    %v7341 = vand.u32 %v7340, 3
    %vm7342 = vcmp.lt.s32.totalorder %v7341, 2
    %vm7343 = vcmp.eq.s32.totalorder %v7341, 0
    %v7344 = vxor.u32 %v7338, 2147483648
    %v7345 = vsel %vm7343, %v7337, %v7344
    %vm7346 = vcmp.eq.s32.totalorder %v7341, 2
    %v7347 = vxor.u32 %v7337, 2147483648
    %v7348 = vsel %vm7346, %v7347, %v7338
    %v7349 = vsel %vm7342, %v7345, %v7348
    %v7350 = vsel %vm7339, nan, %v7349
    %v7351 = vand.u32 2147483647, %v6976
    %vm7352 = vcmp.le.f32.partialorder %v7351, 0.7853982
    %vm7353 = vcmp.lt.s32.totalorder %v6976, 0
    %v7354 = vand.u32 %v6976, 2139095040
    %v7355 = vshrl.u32 %v7354, 23
    %v7356 = vsub.s32 %v7355, 127
    %v7357 = vand.u32 2147483647, %v6976
    %v7358 = vand.u32 %v7357, 8388607
    %v7359 = vor.u32 %v7358, 8388608
    %v7360 = vsub.s32 0, %v7359
    %v7361 = vadd.s32 %v7356, 1
    %vm7362 = vcmp.gt.s32.totalorder %v7361, 0
    %v7363 = vsel %vm7362, %v7361, 0
    %v7364 = vshrl.u32 %v7363, 5
    %v7365 = vand.u32 %v7363, 31
    %v7366 = vsub.s32 32, %v7365
    %v7367 = vshrl.u32 683565275, %v7366
    %v7368 = vshll.u32 683565275, %v7365
    %v7369 = vshrl.u32 2475754826, %v7366
    %v7370 = vor.u32 %v7368, %v7369
    %v7371 = vshll.u32 2475754826, %v7365
    %v7372 = vshrl.u32 2131351028, %v7366
    %v7373 = vor.u32 %v7371, %v7372
    %v7374 = vshll.u32 2131351028, %v7365
    %v7375 = vshrl.u32 2102212464, %v7366
    %v7376 = vor.u32 %v7374, %v7375
    %v7377 = vshll.u32 2102212464, %v7365
    %v7378 = vshrl.u32 920167782, %v7366
    %v7379 = vor.u32 %v7377, %v7378
    %v7380 = vshll.u32 920167782, %v7365
    %v7381 = vshrl.u32 1326507024, %v7366
    %v7382 = vor.u32 %v7380, %v7381
    %vm7383 = vcmp.lt.s32.totalorder %v7364, 1
    %vm7384 = vcmp.lt.s32.totalorder %v7364, 2
    %vm7385 = vcmp.lt.s32.totalorder %v7364, 3
    %vm7386 = vcmp.lt.s32.totalorder %v7364, 4
    %v7387 = vsel %vm7383, %v7367, %v7370
    %v7388 = vsel %vm7386, %v7376, 2102212464
    %v7389 = vsel %vm7385, %v7373, %v7388
    %v7390 = vsel %vm7384, %v7387, %v7389
    %v7391 = vsel %vm7383, %v7370, %v7373
    %v7392 = vsel %vm7386, %v7379, 920167782
    %v7393 = vsel %vm7385, %v7376, %v7392
    %v7394 = vsel %vm7384, %v7391, %v7393
    %v7395 = vsel %vm7383, %v7373, %v7376
    %v7396 = vsel %vm7386, %v7382, 1326507024
    %v7397 = vsel %vm7385, %v7379, %v7396
    %v7398 = vsel %vm7384, %v7395, %v7397
    %v7399 = vshll.u32 %v7359, 8
    %v7400 = vmul.u32.u64.compose %v7399, %v7398
    %v7401 = vextract.low.u32 %v7400
    %v7402 = vextract.high.u32 %v7400
    %v7403 = vmul.u32.u64.compose %v7399, %v7394
    %v7404 = vextract.low.u32 %v7403
    %v7405 = vextract.high.u32 %v7403
    %v7406 = vmul.u32 %v7399, %v7390
    %v7407 = vadd.s32 %v7402, %v7404
    %vm7408 = vc.u32 %v7402, %v7404
    %v7409 = vadd.s32 %v7405, 1
    %v7410 = vsel %vm7408, %v7409, %v7405
    %v7411 = vadd.s32 %v7406, %v7410
    %v7412 = vadd.s32 %v7411, 536870912
    %v7413 = vshrl.u32 %v7412, 30
    %v7414 = vshll.u32 %v7413, 30
    %v7415 = vsub.s32 %v7411, %v7414
    %vm7416 = vcmp.lt.s32.totalorder %v7415, 0
    %v7417 = vsub.s32 0, %v7415
    %v7418 = vsel %vm7416, %v7417, %v7415
    %v7419 = vclz %v7418
    %v7420 = vsub.s32 %v7419, 2
    %vm7421 = vcmp.gt.s32.totalorder 0, %v7420
    %v7422 = vsel %vm7421, 0, %v7420
    %v7423 = vsub.s32 32, %v7422
    %v7424 = vshll.u32 %v7415, %v7422
    %v7425 = vshrl.u32 %v7407, %v7423
    %v7426 = vor.u32 %v7424, %v7425
    %v7427 = vsub.s32 4294967266, %v7422
    %v7428 = vadd.s32 %v7427, 127
    %v7429 = vshll.u32 %v7428, 23
    %v7430 = vor.u32 4788187, %v7429
    %v7431 = vand.u32 2147483647, %v7430
    %v7433 = vcvt.s32.f32 %v7426
    %v7434 = vmul.f32 %v7433, %v7431
    %v7435 = vxor.u32 %v7434, 2147483648
    %v7436 = vsel %vm7353, %v7435, %v7434
    %v7437 = vsub.s32 4, %v7413
    %v7438 = vsel %vm7353, %v7437, %v7413
    %v7439 = vsel %vm7352, %v6976, %v7436
    %v7440 = vsel %vm7352, 0, %v7438
    %v7441 = vcosq.f32.pop %v7439
    %v7442 = vsinq.f32.pop %v7439
    %vm7443 = vweird.f32 %v6976
    %v7444 = vadd.s32 %v7440, 3
    %v7445 = vand.u32 %v7444, 3
    %vm7446 = vcmp.lt.s32.totalorder %v7445, 2
    %vm7447 = vcmp.eq.s32.totalorder %v7445, 0
    %v7448 = vxor.u32 %v7442, 2147483648
    %v7449 = vsel %vm7447, %v7441, %v7448
    %vm7450 = vcmp.eq.s32.totalorder %v7445, 2
    %v7451 = vxor.u32 %v7441, 2147483648
    %v7452 = vsel %vm7450, %v7451, %v7442
    %v7453 = vsel %vm7446, %v7449, %v7452
    %v7454 = vsel %vm7443, nan, %v7453
    %v7455 = vand.u32 2147483647, %v6978
    %vm7456 = vcmp.le.f32.partialorder %v7455, 0.7853982
    %vm7457 = vcmp.lt.s32.totalorder %v6978, 0
    %v7458 = vand.u32 %v6978, 2139095040
    %v7459 = vshrl.u32 %v7458, 23
    %v7460 = vsub.s32 %v7459, 127
    %v7461 = vand.u32 2147483647, %v6978
    %v7462 = vand.u32 %v7461, 8388607
    %v7463 = vor.u32 %v7462, 8388608
    %v7464 = vsub.s32 0, %v7463
    %v7465 = vadd.s32 %v7460, 1
    %vm7466 = vcmp.gt.s32.totalorder %v7465, 0
    %v7467 = vsel %vm7466, %v7465, 0
    %v7468 = vshrl.u32 %v7467, 5
    %v7469 = vand.u32 %v7467, 31
    %v7470 = vsub.s32 32, %v7469
    %v7471 = vshrl.u32 683565275, %v7470
    %v7472 = vshll.u32 683565275, %v7469
    %v7473 = vshrl.u32 2475754826, %v7470
    %v7474 = vor.u32 %v7472, %v7473
    %v7475 = vshll.u32 2475754826, %v7469
    %v7476 = vshrl.u32 2131351028, %v7470
    %v7477 = vor.u32 %v7475, %v7476
    %v7478 = vshll.u32 2131351028, %v7469
    %v7479 = vshrl.u32 2102212464, %v7470
    %v7480 = vor.u32 %v7478, %v7479
    %v7481 = vshll.u32 2102212464, %v7469
    %v7482 = vshrl.u32 920167782, %v7470
    %v7483 = vor.u32 %v7481, %v7482
    %v7484 = vshll.u32 920167782, %v7469
    %v7485 = vshrl.u32 1326507024, %v7470
    %v7486 = vor.u32 %v7484, %v7485
    %vm7487 = vcmp.lt.s32.totalorder %v7468, 1
    %vm7488 = vcmp.lt.s32.totalorder %v7468, 2
    %vm7489 = vcmp.lt.s32.totalorder %v7468, 3
    %vm7490 = vcmp.lt.s32.totalorder %v7468, 4
    %v7491 = vsel %vm7487, %v7471, %v7474
    %v7492 = vsel %vm7490, %v7480, 2102212464
    %v7493 = vsel %vm7489, %v7477, %v7492
    %v7494 = vsel %vm7488, %v7491, %v7493
    %v7495 = vsel %vm7487, %v7474, %v7477
    %v7496 = vsel %vm7490, %v7483, 920167782
    %v7497 = vsel %vm7489, %v7480, %v7496
    %v7498 = vsel %vm7488, %v7495, %v7497
    %v7499 = vsel %vm7487, %v7477, %v7480
    %v7500 = vsel %vm7490, %v7486, 1326507024
    %v7501 = vsel %vm7489, %v7483, %v7500
    %v7502 = vsel %vm7488, %v7499, %v7501
    %v7503 = vshll.u32 %v7463, 8
    %v7504 = vmul.u32.u64.compose %v7503, %v7502
    %v7505 = vextract.low.u32 %v7504
    %v7506 = vextract.high.u32 %v7504
    %v7507 = vmul.u32.u64.compose %v7503, %v7498
    %v7508 = vextract.low.u32 %v7507
    %v7509 = vextract.high.u32 %v7507
    %v7510 = vmul.u32 %v7503, %v7494
    %v7511 = vadd.s32 %v7506, %v7508
    %vm7512 = vc.u32 %v7506, %v7508
    %v7513 = vadd.s32 %v7509, 1
    %v7514 = vsel %vm7512, %v7513, %v7509
    %v7515 = vadd.s32 %v7510, %v7514
    %v7516 = vadd.s32 %v7515, 536870912
    %v7517 = vshrl.u32 %v7516, 30
    %v7518 = vshll.u32 %v7517, 30
    %v7519 = vsub.s32 %v7515, %v7518
    %vm7520 = vcmp.lt.s32.totalorder %v7519, 0
    %v7521 = vsub.s32 0, %v7519
    %v7522 = vsel %vm7520, %v7521, %v7519
    %v7523 = vclz %v7522
    %v7524 = vsub.s32 %v7523, 2
    %vm7525 = vcmp.gt.s32.totalorder 0, %v7524
    %v7526 = vsel %vm7525, 0, %v7524
    %v7527 = vsub.s32 32, %v7526
    %v7528 = vshll.u32 %v7519, %v7526
    %v7529 = vshrl.u32 %v7511, %v7527
    %v7530 = vor.u32 %v7528, %v7529
    %v7531 = vsub.s32 4294967266, %v7526
    %v7532 = vadd.s32 %v7531, 127
    %v7533 = vshll.u32 %v7532, 23
    %v7534 = vor.u32 4788187, %v7533
    %v7535 = vand.u32 2147483647, %v7534
    %v7537 = vcvt.s32.f32 %v7530
    %v7538 = vmul.f32 %v7537, %v7535
    %v7539 = vxor.u32 %v7538, 2147483648
    %v7540 = vsel %vm7457, %v7539, %v7538
    %v7541 = vsub.s32 4, %v7517
    %v7542 = vsel %vm7457, %v7541, %v7517
    %v7543 = vsel %vm7456, %v6978, %v7540
    %v7544 = vsel %vm7456, 0, %v7542
    %v7545 = vcosq.f32.pop %v7543
    %v7546 = vsinq.f32.pop %v7543
    %vm7547 = vweird.f32 %v6978
    %v7548 = vadd.s32 %v7544, 3
    %v7549 = vand.u32 %v7548, 3
    %vm7550 = vcmp.lt.s32.totalorder %v7549, 2
    %vm7551 = vcmp.eq.s32.totalorder %v7549, 0
    %v7552 = vxor.u32 %v7546, 2147483648
    %v7553 = vsel %vm7551, %v7545, %v7552
    %vm7554 = vcmp.eq.s32.totalorder %v7549, 2
    %v7555 = vxor.u32 %v7545, 2147483648
    %v7556 = vsel %vm7554, %v7555, %v7546
    %v7557 = vsel %vm7550, %v7553, %v7556
    %v7558 = vsel %vm7547, nan, %v7557
    %v7559 = vand.u32 2147483647, %v7028
    %vm7560 = vcmp.le.f32.partialorder %v7559, 0.7853982
    %vm7561 = vcmp.lt.s32.totalorder %v7028, 0
    %v7562 = vand.u32 %v7028, 2139095040
    %v7563 = vshrl.u32 %v7562, 23
    %v7564 = vsub.s32 %v7563, 127
    %v7565 = vand.u32 2147483647, %v7028
    %v7566 = vand.u32 %v7565, 8388607
    %v7567 = vor.u32 %v7566, 8388608
    %v7568 = vsub.s32 0, %v7567
    %v7569 = vadd.s32 %v7564, 1
    %vm7570 = vcmp.gt.s32.totalorder %v7569, 0
    %v7571 = vsel %vm7570, %v7569, 0
    %v7572 = vshrl.u32 %v7571, 5
    %v7573 = vand.u32 %v7571, 31
    %v7574 = vsub.s32 32, %v7573
    %v7575 = vshrl.u32 683565275, %v7574
    %v7576 = vshll.u32 683565275, %v7573
    %v7577 = vshrl.u32 2475754826, %v7574
    %v7578 = vor.u32 %v7576, %v7577
    %v7579 = vshll.u32 2475754826, %v7573
    %v7580 = vshrl.u32 2131351028, %v7574
    %v7581 = vor.u32 %v7579, %v7580
    %v7582 = vshll.u32 2131351028, %v7573
    %v7583 = vshrl.u32 2102212464, %v7574
    %v7584 = vor.u32 %v7582, %v7583
    %v7585 = vshll.u32 2102212464, %v7573
    %v7586 = vshrl.u32 920167782, %v7574
    %v7587 = vor.u32 %v7585, %v7586
    %v7588 = vshll.u32 920167782, %v7573
    %v7589 = vshrl.u32 1326507024, %v7574
    %v7590 = vor.u32 %v7588, %v7589
    %vm7591 = vcmp.lt.s32.totalorder %v7572, 1
    %vm7592 = vcmp.lt.s32.totalorder %v7572, 2
    %vm7593 = vcmp.lt.s32.totalorder %v7572, 3
    %vm7594 = vcmp.lt.s32.totalorder %v7572, 4
    %v7595 = vsel %vm7591, %v7575, %v7578
    %v7596 = vsel %vm7594, %v7584, 2102212464
    %v7597 = vsel %vm7593, %v7581, %v7596
    %v7598 = vsel %vm7592, %v7595, %v7597
    %v7599 = vsel %vm7591, %v7578, %v7581
    %v7600 = vsel %vm7594, %v7587, 920167782
    %v7601 = vsel %vm7593, %v7584, %v7600
    %v7602 = vsel %vm7592, %v7599, %v7601
    %v7603 = vsel %vm7591, %v7581, %v7584
    %v7604 = vsel %vm7594, %v7590, 1326507024
    %v7605 = vsel %vm7593, %v7587, %v7604
    %v7606 = vsel %vm7592, %v7603, %v7605
    %v7607 = vshll.u32 %v7567, 8
    %v7608 = vmul.u32.u64.compose %v7607, %v7606
    %v7609 = vextract.low.u32 %v7608
    %v7610 = vextract.high.u32 %v7608
    %v7611 = vmul.u32.u64.compose %v7607, %v7602
    %v7612 = vextract.low.u32 %v7611
    %v7613 = vextract.high.u32 %v7611
    %v7614 = vmul.u32 %v7607, %v7598
    %v7615 = vadd.s32 %v7610, %v7612
    %vm7616 = vc.u32 %v7610, %v7612
    %v7617 = vadd.s32 %v7613, 1
    %v7618 = vsel %vm7616, %v7617, %v7613
    %v7619 = vadd.s32 %v7614, %v7618
    %v7620 = vadd.s32 %v7619, 536870912
    %v7621 = vshrl.u32 %v7620, 30
    %v7622 = vshll.u32 %v7621, 30
    %v7623 = vsub.s32 %v7619, %v7622
    %vm7624 = vcmp.lt.s32.totalorder %v7623, 0
    %v7625 = vsub.s32 0, %v7623
    %v7626 = vsel %vm7624, %v7625, %v7623
    %v7627 = vclz %v7626
    %v7628 = vsub.s32 %v7627, 2
    %vm7629 = vcmp.gt.s32.totalorder 0, %v7628
    %v7630 = vsel %vm7629, 0, %v7628
    %v7631 = vsub.s32 32, %v7630
    %v7632 = vshll.u32 %v7623, %v7630
    %v7633 = vshrl.u32 %v7615, %v7631
    %v7634 = vor.u32 %v7632, %v7633
    %v7635 = vsub.s32 4294967266, %v7630
    %v7636 = vadd.s32 %v7635, 127
    %v7637 = vshll.u32 %v7636, 23
    %v7638 = vor.u32 4788187, %v7637
    %v7639 = vand.u32 2147483647, %v7638
    %v7641 = vcvt.s32.f32 %v7634
    %v7642 = vmul.f32 %v7641, %v7639
    %v7643 = vxor.u32 %v7642, 2147483648
    %v7644 = vsel %vm7561, %v7643, %v7642
    %v7645 = vsub.s32 4, %v7621
    %v7646 = vsel %vm7561, %v7645, %v7621
    %v7647 = vsel %vm7560, %v7028, %v7644
    %v7648 = vsel %vm7560, 0, %v7646
    %v7649 = vcosq.f32.pop %v7647
    %v7650 = vsinq.f32.pop %v7647
    %vm7651 = vweird.f32 %v7028
    %v7652 = vadd.s32 %v7648, 3
    %v7653 = vand.u32 %v7652, 3
    %vm7654 = vcmp.lt.s32.totalorder %v7653, 2
    %vm7655 = vcmp.eq.s32.totalorder %v7653, 0
    %v7656 = vxor.u32 %v7650, 2147483648
    %v7657 = vsel %vm7655, %v7649, %v7656
    %vm7658 = vcmp.eq.s32.totalorder %v7653, 2
    %v7659 = vxor.u32 %v7649, 2147483648
    %v7660 = vsel %vm7658, %v7659, %v7650
    %v7661 = vsel %vm7654, %v7657, %v7660
    %v7662 = vsel %vm7651, nan, %v7661
    %v7663 = vand.u32 2147483647, %v6982
    %vm7664 = vcmp.le.f32.partialorder %v7663, 0.7853982
    %vm7665 = vcmp.lt.s32.totalorder %v6982, 0
    %v7666 = vand.u32 %v6982, 2139095040
    %v7667 = vshrl.u32 %v7666, 23
    %v7668 = vsub.s32 %v7667, 127
    %v7669 = vand.u32 2147483647, %v6982
    %v7670 = vand.u32 %v7669, 8388607
    %v7671 = vor.u32 %v7670, 8388608
    %v7672 = vsub.s32 0, %v7671
    %v7673 = vadd.s32 %v7668, 1
    %vm7674 = vcmp.gt.s32.totalorder %v7673, 0
    %v7675 = vsel %vm7674, %v7673, 0
    %v7676 = vshrl.u32 %v7675, 5
    %v7677 = vand.u32 %v7675, 31
    %v7678 = vsub.s32 32, %v7677
    %v7679 = vshrl.u32 683565275, %v7678
    %v7680 = vshll.u32 683565275, %v7677
    %v7681 = vshrl.u32 2475754826, %v7678
    %v7682 = vor.u32 %v7680, %v7681
    %v7683 = vshll.u32 2475754826, %v7677
    %v7684 = vshrl.u32 2131351028, %v7678
    %v7685 = vor.u32 %v7683, %v7684
    %v7686 = vshll.u32 2131351028, %v7677
    %v7687 = vshrl.u32 2102212464, %v7678
    %v7688 = vor.u32 %v7686, %v7687
    %v7689 = vshll.u32 2102212464, %v7677
    %v7690 = vshrl.u32 920167782, %v7678
    %v7691 = vor.u32 %v7689, %v7690
    %v7692 = vshll.u32 920167782, %v7677
    %v7693 = vshrl.u32 1326507024, %v7678
    %v7694 = vor.u32 %v7692, %v7693
    %vm7695 = vcmp.lt.s32.totalorder %v7676, 1
    %vm7696 = vcmp.lt.s32.totalorder %v7676, 2
    %vm7697 = vcmp.lt.s32.totalorder %v7676, 3
    %vm7698 = vcmp.lt.s32.totalorder %v7676, 4
    %v7699 = vsel %vm7695, %v7679, %v7682
    %v7700 = vsel %vm7698, %v7688, 2102212464
    %v7701 = vsel %vm7697, %v7685, %v7700
    %v7702 = vsel %vm7696, %v7699, %v7701
    %v7703 = vsel %vm7695, %v7682, %v7685
    %v7704 = vsel %vm7698, %v7691, 920167782
    %v7705 = vsel %vm7697, %v7688, %v7704
    %v7706 = vsel %vm7696, %v7703, %v7705
    %v7707 = vsel %vm7695, %v7685, %v7688
    %v7708 = vsel %vm7698, %v7694, 1326507024
    %v7709 = vsel %vm7697, %v7691, %v7708
    %v7710 = vsel %vm7696, %v7707, %v7709
    %v7711 = vshll.u32 %v7671, 8
    %v7712 = vmul.u32.u64.compose %v7711, %v7710
    %v7713 = vextract.low.u32 %v7712
    %v7714 = vextract.high.u32 %v7712
    %v7715 = vmul.u32.u64.compose %v7711, %v7706
    %v7716 = vextract.low.u32 %v7715
    %v7717 = vextract.high.u32 %v7715
    %v7718 = vmul.u32 %v7711, %v7702
    %v7719 = vadd.s32 %v7714, %v7716
    %vm7720 = vc.u32 %v7714, %v7716
    %v7721 = vadd.s32 %v7717, 1
    %v7722 = vsel %vm7720, %v7721, %v7717
    %v7723 = vadd.s32 %v7718, %v7722
    %v7724 = vadd.s32 %v7723, 536870912
    %v7725 = vshrl.u32 %v7724, 30
    %v7726 = vshll.u32 %v7725, 30
    %v7727 = vsub.s32 %v7723, %v7726
    %vm7728 = vcmp.lt.s32.totalorder %v7727, 0
    %v7729 = vsub.s32 0, %v7727
    %v7730 = vsel %vm7728, %v7729, %v7727
    %v7731 = vclz %v7730
    %v7732 = vsub.s32 %v7731, 2
    %vm7733 = vcmp.gt.s32.totalorder 0, %v7732
    %v7734 = vsel %vm7733, 0, %v7732
    %v7735 = vsub.s32 32, %v7734
    %v7736 = vshll.u32 %v7727, %v7734
    %v7737 = vshrl.u32 %v7719, %v7735
    %v7738 = vor.u32 %v7736, %v7737
    %v7739 = vsub.s32 4294967266, %v7734
    %v7740 = vadd.s32 %v7739, 127
    %v7741 = vshll.u32 %v7740, 23
    %v7742 = vor.u32 4788187, %v7741
    %v7743 = vand.u32 2147483647, %v7742
    %v7745 = vcvt.s32.f32 %v7738
    %v7746 = vmul.f32 %v7745, %v7743
    %v7747 = vxor.u32 %v7746, 2147483648
    %v7748 = vsel %vm7665, %v7747, %v7746
    %v7749 = vsub.s32 4, %v7725
    %v7750 = vsel %vm7665, %v7749, %v7725
    %v7751 = vsel %vm7664, %v6982, %v7748
    %v7752 = vsel %vm7664, 0, %v7750
    %v7753 = vcosq.f32.pop %v7751
    %v7754 = vsinq.f32.pop %v7751
    %vm7755 = vweird.f32 %v6982
    %v7756 = vadd.s32 %v7752, 3
    %v7757 = vand.u32 %v7756, 3
    %vm7758 = vcmp.lt.s32.totalorder %v7757, 2
    %vm7759 = vcmp.eq.s32.totalorder %v7757, 0
    %v7760 = vxor.u32 %v7754, 2147483648
    %v7761 = vsel %vm7759, %v7753, %v7760
    %vm7762 = vcmp.eq.s32.totalorder %v7757, 2
    %v7763 = vxor.u32 %v7753, 2147483648
    %v7764 = vsel %vm7762, %v7763, %v7754
    %v7765 = vsel %vm7758, %v7761, %v7764
    %v7766 = vsel %vm7755, nan, %v7765
    %v7767 = vand.u32 2147483647, %v6984
    %vm7768 = vcmp.le.f32.partialorder %v7767, 0.7853982
    %vm7769 = vcmp.lt.s32.totalorder %v6984, 0
    %v7770 = vand.u32 %v6984, 2139095040
    %v7771 = vshrl.u32 %v7770, 23
    %v7772 = vsub.s32 %v7771, 127
    %v7773 = vand.u32 2147483647, %v6984
    %v7774 = vand.u32 %v7773, 8388607
    %v7775 = vor.u32 %v7774, 8388608
    %v7776 = vsub.s32 0, %v7775
    %v7777 = vadd.s32 %v7772, 1
    %vm7778 = vcmp.gt.s32.totalorder %v7777, 0
    %v7779 = vsel %vm7778, %v7777, 0
    %v7780 = vshrl.u32 %v7779, 5
    %v7781 = vand.u32 %v7779, 31
    %v7782 = vsub.s32 32, %v7781
    %v7783 = vshrl.u32 683565275, %v7782
    %v7784 = vshll.u32 683565275, %v7781
    %v7785 = vshrl.u32 2475754826, %v7782
    %v7786 = vor.u32 %v7784, %v7785
    %v7787 = vshll.u32 2475754826, %v7781
    %v7788 = vshrl.u32 2131351028, %v7782
    %v7789 = vor.u32 %v7787, %v7788
    %v7790 = vshll.u32 2131351028, %v7781
    %v7791 = vshrl.u32 2102212464, %v7782
    %v7792 = vor.u32 %v7790, %v7791
    %v7793 = vshll.u32 2102212464, %v7781
    %v7794 = vshrl.u32 920167782, %v7782
    %v7795 = vor.u32 %v7793, %v7794
    %v7796 = vshll.u32 920167782, %v7781
    %v7797 = vshrl.u32 1326507024, %v7782
    %v7798 = vor.u32 %v7796, %v7797
    %vm7799 = vcmp.lt.s32.totalorder %v7780, 1
    %vm7800 = vcmp.lt.s32.totalorder %v7780, 2
    %vm7801 = vcmp.lt.s32.totalorder %v7780, 3
    %vm7802 = vcmp.lt.s32.totalorder %v7780, 4
    %v7803 = vsel %vm7799, %v7783, %v7786
    %v7804 = vsel %vm7802, %v7792, 2102212464
    %v7805 = vsel %vm7801, %v7789, %v7804
    %v7806 = vsel %vm7800, %v7803, %v7805
    %v7807 = vsel %vm7799, %v7786, %v7789
    %v7808 = vsel %vm7802, %v7795, 920167782
    %v7809 = vsel %vm7801, %v7792, %v7808
    %v7810 = vsel %vm7800, %v7807, %v7809
    %v7811 = vsel %vm7799, %v7789, %v7792
    %v7812 = vsel %vm7802, %v7798, 1326507024
    %v7813 = vsel %vm7801, %v7795, %v7812
    %v7814 = vsel %vm7800, %v7811, %v7813
    %v7815 = vshll.u32 %v7775, 8
    %v7816 = vmul.u32.u64.compose %v7815, %v7814
    %v7817 = vextract.low.u32 %v7816
    %v7818 = vextract.high.u32 %v7816
    %v7819 = vmul.u32.u64.compose %v7815, %v7810
    %v7820 = vextract.low.u32 %v7819
    %v7821 = vextract.high.u32 %v7819
    %v7822 = vmul.u32 %v7815, %v7806
    %v7823 = vadd.s32 %v7818, %v7820
    %vm7824 = vc.u32 %v7818, %v7820
    %v7825 = vadd.s32 %v7821, 1
    %v7826 = vsel %vm7824, %v7825, %v7821
    %v7827 = vadd.s32 %v7822, %v7826
    %v7828 = vadd.s32 %v7827, 536870912
    %v7829 = vshrl.u32 %v7828, 30
    %v7830 = vshll.u32 %v7829, 30
    %v7831 = vsub.s32 %v7827, %v7830
    %vm7832 = vcmp.lt.s32.totalorder %v7831, 0
    %v7833 = vsub.s32 0, %v7831
    %v7834 = vsel %vm7832, %v7833, %v7831
    %v7835 = vclz %v7834
    %v7836 = vsub.s32 %v7835, 2
    %vm7837 = vcmp.gt.s32.totalorder 0, %v7836
    %v7838 = vsel %vm7837, 0, %v7836
    %v7839 = vsub.s32 32, %v7838
    %v7840 = vshll.u32 %v7831, %v7838
    %v7841 = vshrl.u32 %v7823, %v7839
    %v7842 = vor.u32 %v7840, %v7841
    %v7843 = vsub.s32 4294967266, %v7838
    %v7844 = vadd.s32 %v7843, 127
    %v7845 = vshll.u32 %v7844, 23
    %v7846 = vor.u32 4788187, %v7845
    %v7847 = vand.u32 2147483647, %v7846
    %v7849 = vcvt.s32.f32 %v7842
    %v7850 = vmul.f32 %v7849, %v7847
    %v7851 = vxor.u32 %v7850, 2147483648
    %v7852 = vsel %vm7769, %v7851, %v7850
    %v7853 = vsub.s32 4, %v7829
    %v7854 = vsel %vm7769, %v7853, %v7829
    %v7855 = vsel %vm7768, %v6984, %v7852
    %v7856 = vsel %vm7768, 0, %v7854
    %v7857 = vcosq.f32.pop %v7855
    %v7858 = vsinq.f32.pop %v7855
    %vm7859 = vweird.f32 %v6984
    %v7860 = vadd.s32 %v7856, 3
    %v7861 = vand.u32 %v7860, 3
    %vm7862 = vcmp.lt.s32.totalorder %v7861, 2
    %vm7863 = vcmp.eq.s32.totalorder %v7861, 0
    %v7864 = vxor.u32 %v7858, 2147483648
    %v7865 = vsel %vm7863, %v7857, %v7864
    %vm7866 = vcmp.eq.s32.totalorder %v7861, 2
    %v7867 = vxor.u32 %v7857, 2147483648
    %v7868 = vsel %vm7866, %v7867, %v7858
    %v7869 = vsel %vm7862, %v7865, %v7868
    %v7870 = vsel %vm7859, nan, %v7869
    %v7871 = vand.u32 2147483647, %v7033
    %vm7872 = vcmp.le.f32.partialorder %v7871, 0.7853982
    %vm7873 = vcmp.lt.s32.totalorder %v7033, 0
    %v7874 = vand.u32 %v7033, 2139095040
    %v7875 = vshrl.u32 %v7874, 23
    %v7876 = vsub.s32 %v7875, 127
    %v7877 = vand.u32 2147483647, %v7033
    %v7878 = vand.u32 %v7877, 8388607
    %v7879 = vor.u32 %v7878, 8388608
    %v7880 = vsub.s32 0, %v7879
    %v7881 = vadd.s32 %v7876, 1
    %vm7882 = vcmp.gt.s32.totalorder %v7881, 0
    %v7883 = vsel %vm7882, %v7881, 0
    %v7884 = vshrl.u32 %v7883, 5
    %v7885 = vand.u32 %v7883, 31
    %v7886 = vsub.s32 32, %v7885
    %v7887 = vshrl.u32 683565275, %v7886
    %v7888 = vshll.u32 683565275, %v7885
    %v7889 = vshrl.u32 2475754826, %v7886
    %v7890 = vor.u32 %v7888, %v7889
    %v7891 = vshll.u32 2475754826, %v7885
    %v7892 = vshrl.u32 2131351028, %v7886
    %v7893 = vor.u32 %v7891, %v7892
    %v7894 = vshll.u32 2131351028, %v7885
    %v7895 = vshrl.u32 2102212464, %v7886
    %v7896 = vor.u32 %v7894, %v7895
    %v7897 = vshll.u32 2102212464, %v7885
    %v7898 = vshrl.u32 920167782, %v7886
    %v7899 = vor.u32 %v7897, %v7898
    %v7900 = vshll.u32 920167782, %v7885
    %v7901 = vshrl.u32 1326507024, %v7886
    %v7902 = vor.u32 %v7900, %v7901
    %vm7903 = vcmp.lt.s32.totalorder %v7884, 1
    %vm7904 = vcmp.lt.s32.totalorder %v7884, 2
    %vm7905 = vcmp.lt.s32.totalorder %v7884, 3
    %vm7906 = vcmp.lt.s32.totalorder %v7884, 4
    %v7907 = vsel %vm7903, %v7887, %v7890
    %v7908 = vsel %vm7906, %v7896, 2102212464
    %v7909 = vsel %vm7905, %v7893, %v7908
    %v7910 = vsel %vm7904, %v7907, %v7909
    %v7911 = vsel %vm7903, %v7890, %v7893
    %v7912 = vsel %vm7906, %v7899, 920167782
    %v7913 = vsel %vm7905, %v7896, %v7912
    %v7914 = vsel %vm7904, %v7911, %v7913
    %v7915 = vsel %vm7903, %v7893, %v7896
    %v7916 = vsel %vm7906, %v7902, 1326507024
    %v7917 = vsel %vm7905, %v7899, %v7916
    %v7918 = vsel %vm7904, %v7915, %v7917
    %v7919 = vshll.u32 %v7879, 8
    %v7920 = vmul.u32.u64.compose %v7919, %v7918
    %v7921 = vextract.low.u32 %v7920
    %v7922 = vextract.high.u32 %v7920
    %v7923 = vmul.u32.u64.compose %v7919, %v7914
    %v7924 = vextract.low.u32 %v7923
    %v7925 = vextract.high.u32 %v7923
    %v7926 = vmul.u32 %v7919, %v7910
    %v7927 = vadd.s32 %v7922, %v7924
    %vm7928 = vc.u32 %v7922, %v7924
    %v7929 = vadd.s32 %v7925, 1
    %v7930 = vsel %vm7928, %v7929, %v7925
    %v7931 = vadd.s32 %v7926, %v7930
    %v7932 = vadd.s32 %v7931, 536870912
    %v7933 = vshrl.u32 %v7932, 30
    %v7934 = vshll.u32 %v7933, 30
    %v7935 = vsub.s32 %v7931, %v7934
    %vm7936 = vcmp.lt.s32.totalorder %v7935, 0
    %v7937 = vsub.s32 0, %v7935
    %v7938 = vsel %vm7936, %v7937, %v7935
    %v7939 = vclz %v7938
    %v7940 = vsub.s32 %v7939, 2
    %vm7941 = vcmp.gt.s32.totalorder 0, %v7940
    %v7942 = vsel %vm7941, 0, %v7940
    %v7943 = vsub.s32 32, %v7942
    %v7944 = vshll.u32 %v7935, %v7942
    %v7945 = vshrl.u32 %v7927, %v7943
    %v7946 = vor.u32 %v7944, %v7945
    %v7947 = vsub.s32 4294967266, %v7942
    %v7948 = vadd.s32 %v7947, 127
    %v7949 = vshll.u32 %v7948, 23
    %v7950 = vor.u32 4788187, %v7949
    %v7951 = vand.u32 2147483647, %v7950
    %v7953 = vcvt.s32.f32 %v7946
    %v7954 = vmul.f32 %v7953, %v7951
    %v7955 = vxor.u32 %v7954, 2147483648
    %v7956 = vsel %vm7873, %v7955, %v7954
    %v7957 = vsub.s32 4, %v7933
    %v7958 = vsel %vm7873, %v7957, %v7933
    %v7959 = vsel %vm7872, %v7033, %v7956
    %v7960 = vsel %vm7872, 0, %v7958
    %v7961 = vcosq.f32.pop %v7959
    %v7962 = vsinq.f32.pop %v7959
    %vm7963 = vweird.f32 %v7033
    %v7964 = vadd.s32 %v7960, 3
    %v7965 = vand.u32 %v7964, 3
    %vm7966 = vcmp.lt.s32.totalorder %v7965, 2
    %vm7967 = vcmp.eq.s32.totalorder %v7965, 0
    %v7968 = vxor.u32 %v7962, 2147483648
    %v7969 = vsel %vm7967, %v7961, %v7968
    %vm7970 = vcmp.eq.s32.totalorder %v7965, 2
    %v7971 = vxor.u32 %v7961, 2147483648
    %v7972 = vsel %vm7970, %v7971, %v7962
    %v7973 = vsel %vm7966, %v7969, %v7972
    %v7974 = vsel %vm7963, nan, %v7973
    %v7975 = vand.u32 2147483647, %v6986
    %vm7976 = vcmp.le.f32.partialorder %v7975, 0.7853982
    %vm7977 = vcmp.lt.s32.totalorder %v6986, 0
    %v7978 = vand.u32 %v6986, 2139095040
    %v7979 = vshrl.u32 %v7978, 23
    %v7980 = vsub.s32 %v7979, 127
    %v7981 = vand.u32 2147483647, %v6986
    %v7982 = vand.u32 %v7981, 8388607
    %v7983 = vor.u32 %v7982, 8388608
    %v7984 = vsub.s32 0, %v7983
    %v7985 = vadd.s32 %v7980, 1
    %vm7986 = vcmp.gt.s32.totalorder %v7985, 0
    %v7987 = vsel %vm7986, %v7985, 0
    %v7988 = vshrl.u32 %v7987, 5
    %v7989 = vand.u32 %v7987, 31
    %v7990 = vsub.s32 32, %v7989
    %v7991 = vshrl.u32 683565275, %v7990
    %v7992 = vshll.u32 683565275, %v7989
    %v7993 = vshrl.u32 2475754826, %v7990
    %v7994 = vor.u32 %v7992, %v7993
    %v7995 = vshll.u32 2475754826, %v7989
    %v7996 = vshrl.u32 2131351028, %v7990
    %v7997 = vor.u32 %v7995, %v7996
    %v7998 = vshll.u32 2131351028, %v7989
    %v7999 = vshrl.u32 2102212464, %v7990
    %v8000 = vor.u32 %v7998, %v7999
    %v8001 = vshll.u32 2102212464, %v7989
    %v8002 = vshrl.u32 920167782, %v7990
    %v8003 = vor.u32 %v8001, %v8002
    %v8004 = vshll.u32 920167782, %v7989
    %v8005 = vshrl.u32 1326507024, %v7990
    %v8006 = vor.u32 %v8004, %v8005
    %vm8007 = vcmp.lt.s32.totalorder %v7988, 1
    %vm8008 = vcmp.lt.s32.totalorder %v7988, 2
    %vm8009 = vcmp.lt.s32.totalorder %v7988, 3
    %vm8010 = vcmp.lt.s32.totalorder %v7988, 4
    %v8011 = vsel %vm8007, %v7991, %v7994
    %v8012 = vsel %vm8010, %v8000, 2102212464
    %v8013 = vsel %vm8009, %v7997, %v8012
    %v8014 = vsel %vm8008, %v8011, %v8013
    %v8015 = vsel %vm8007, %v7994, %v7997
    %v8016 = vsel %vm8010, %v8003, 920167782
    %v8017 = vsel %vm8009, %v8000, %v8016
    %v8018 = vsel %vm8008, %v8015, %v8017
    %v8019 = vsel %vm8007, %v7997, %v8000
    %v8020 = vsel %vm8010, %v8006, 1326507024
    %v8021 = vsel %vm8009, %v8003, %v8020
    %v8022 = vsel %vm8008, %v8019, %v8021
    %v8023 = vshll.u32 %v7983, 8
    %v8024 = vmul.u32.u64.compose %v8023, %v8022
    %v8025 = vextract.low.u32 %v8024
    %v8026 = vextract.high.u32 %v8024
    %v8027 = vmul.u32.u64.compose %v8023, %v8018
    %v8028 = vextract.low.u32 %v8027
    %v8029 = vextract.high.u32 %v8027
    %v8030 = vmul.u32 %v8023, %v8014
    %v8031 = vadd.s32 %v8026, %v8028
    %vm8032 = vc.u32 %v8026, %v8028
    %v8033 = vadd.s32 %v8029, 1
    %v8034 = vsel %vm8032, %v8033, %v8029
    %v8035 = vadd.s32 %v8030, %v8034
    %v8036 = vadd.s32 %v8035, 536870912
    %v8037 = vshrl.u32 %v8036, 30
    %v8038 = vshll.u32 %v8037, 30
    %v8039 = vsub.s32 %v8035, %v8038
    %vm8040 = vcmp.lt.s32.totalorder %v8039, 0
    %v8041 = vsub.s32 0, %v8039
    %v8042 = vsel %vm8040, %v8041, %v8039
    %v8043 = vclz %v8042
    %v8044 = vsub.s32 %v8043, 2
    %vm8045 = vcmp.gt.s32.totalorder 0, %v8044
    %v8046 = vsel %vm8045, 0, %v8044
    %v8047 = vsub.s32 32, %v8046
    %v8048 = vshll.u32 %v8039, %v8046
    %v8049 = vshrl.u32 %v8031, %v8047
    %v8050 = vor.u32 %v8048, %v8049
    %v8051 = vsub.s32 4294967266, %v8046
    %v8052 = vadd.s32 %v8051, 127
    %v8053 = vshll.u32 %v8052, 23
    %v8054 = vor.u32 4788187, %v8053
    %v8055 = vand.u32 2147483647, %v8054
    %v8057 = vcvt.s32.f32 %v8050
    %v8058 = vmul.f32 %v8057, %v8055
    %v8059 = vxor.u32 %v8058, 2147483648
    %v8060 = vsel %vm7977, %v8059, %v8058
    %v8061 = vsub.s32 4, %v8037
    %v8062 = vsel %vm7977, %v8061, %v8037
    %v8063 = vsel %vm7976, %v6986, %v8060
    %v8064 = vsel %vm7976, 0, %v8062
    %v8065 = vcosq.f32.pop %v8063
    %v8066 = vsinq.f32.pop %v8063
    %vm8067 = vweird.f32 %v6986
    %v8068 = vadd.s32 %v8064, 3
    %v8069 = vand.u32 %v8068, 3
    %vm8070 = vcmp.lt.s32.totalorder %v8069, 2
    %vm8071 = vcmp.eq.s32.totalorder %v8069, 0
    %v8072 = vxor.u32 %v8066, 2147483648
    %v8073 = vsel %vm8071, %v8065, %v8072
    %vm8074 = vcmp.eq.s32.totalorder %v8069, 2
    %v8075 = vxor.u32 %v8065, 2147483648
    %v8076 = vsel %vm8074, %v8075, %v8066
    %v8077 = vsel %vm8070, %v8073, %v8076
    %v8078 = vsel %vm8067, nan, %v8077
    %v8079 = vand.u32 2147483647, %v6988
    %vm8080 = vcmp.le.f32.partialorder %v8079, 0.7853982
    %vm8081 = vcmp.lt.s32.totalorder %v6988, 0
    %v8082 = vand.u32 %v6988, 2139095040
    %v8083 = vshrl.u32 %v8082, 23
    %v8084 = vsub.s32 %v8083, 127
    %v8085 = vand.u32 2147483647, %v6988
    %v8086 = vand.u32 %v8085, 8388607
    %v8087 = vor.u32 %v8086, 8388608
    %v8088 = vsub.s32 0, %v8087
    %v8089 = vadd.s32 %v8084, 1
    %vm8090 = vcmp.gt.s32.totalorder %v8089, 0
    %v8091 = vsel %vm8090, %v8089, 0
    %v8092 = vshrl.u32 %v8091, 5
    %v8093 = vand.u32 %v8091, 31
    %v8094 = vsub.s32 32, %v8093
    %v8095 = vshrl.u32 683565275, %v8094
    %v8096 = vshll.u32 683565275, %v8093
    %v8097 = vshrl.u32 2475754826, %v8094
    %v8098 = vor.u32 %v8096, %v8097
    %v8099 = vshll.u32 2475754826, %v8093
    %v8100 = vshrl.u32 2131351028, %v8094
    %v8101 = vor.u32 %v8099, %v8100
    %v8102 = vshll.u32 2131351028, %v8093
    %v8103 = vshrl.u32 2102212464, %v8094
    %v8104 = vor.u32 %v8102, %v8103
    %v8105 = vshll.u32 2102212464, %v8093
    %v8106 = vshrl.u32 920167782, %v8094
    %v8107 = vor.u32 %v8105, %v8106
    %v8108 = vshll.u32 920167782, %v8093
    %v8109 = vshrl.u32 1326507024, %v8094
    %v8110 = vor.u32 %v8108, %v8109
    %vm8111 = vcmp.lt.s32.totalorder %v8092, 1
    %vm8112 = vcmp.lt.s32.totalorder %v8092, 2
    %vm8113 = vcmp.lt.s32.totalorder %v8092, 3
    %vm8114 = vcmp.lt.s32.totalorder %v8092, 4
    %v8115 = vsel %vm8111, %v8095, %v8098
    %v8116 = vsel %vm8114, %v8104, 2102212464
    %v8117 = vsel %vm8113, %v8101, %v8116
    %v8118 = vsel %vm8112, %v8115, %v8117
    %v8119 = vsel %vm8111, %v8098, %v8101
    %v8120 = vsel %vm8114, %v8107, 920167782
    %v8121 = vsel %vm8113, %v8104, %v8120
    %v8122 = vsel %vm8112, %v8119, %v8121
    %v8123 = vsel %vm8111, %v8101, %v8104
    %v8124 = vsel %vm8114, %v8110, 1326507024
    %v8125 = vsel %vm8113, %v8107, %v8124
    %v8126 = vsel %vm8112, %v8123, %v8125
    %v8127 = vshll.u32 %v8087, 8
    %v8128 = vmul.u32.u64.compose %v8127, %v8126
    %v8129 = vextract.low.u32 %v8128
    %v8130 = vextract.high.u32 %v8128
    %v8131 = vmul.u32.u64.compose %v8127, %v8122
    %v8132 = vextract.low.u32 %v8131
    %v8133 = vextract.high.u32 %v8131
    %v8134 = vmul.u32 %v8127, %v8118
    %v8135 = vadd.s32 %v8130, %v8132
    %vm8136 = vc.u32 %v8130, %v8132
    %v8137 = vadd.s32 %v8133, 1
    %v8138 = vsel %vm8136, %v8137, %v8133
    %v8139 = vadd.s32 %v8134, %v8138
    %v8140 = vadd.s32 %v8139, 536870912
    %v8141 = vshrl.u32 %v8140, 30
    %v8142 = vshll.u32 %v8141, 30
    %v8143 = vsub.s32 %v8139, %v8142
    %vm8144 = vcmp.lt.s32.totalorder %v8143, 0
    %v8145 = vsub.s32 0, %v8143
    %v8146 = vsel %vm8144, %v8145, %v8143
    %v8147 = vclz %v8146
    %v8148 = vsub.s32 %v8147, 2
    %vm8149 = vcmp.gt.s32.totalorder 0, %v8148
    %v8150 = vsel %vm8149, 0, %v8148
    %v8151 = vsub.s32 32, %v8150
    %v8152 = vshll.u32 %v8143, %v8150
    %v8153 = vshrl.u32 %v8135, %v8151
    %v8154 = vor.u32 %v8152, %v8153
    %v8155 = vsub.s32 4294967266, %v8150
    %v8156 = vadd.s32 %v8155, 127
    %v8157 = vshll.u32 %v8156, 23
    %v8158 = vor.u32 4788187, %v8157
    %v8159 = vand.u32 2147483647, %v8158
    %v8161 = vcvt.s32.f32 %v8154
    %v8162 = vmul.f32 %v8161, %v8159
    %v8163 = vxor.u32 %v8162, 2147483648
    %v8164 = vsel %vm8081, %v8163, %v8162
    %v8165 = vsub.s32 4, %v8141
    %v8166 = vsel %vm8081, %v8165, %v8141
    %v8167 = vsel %vm8080, %v6988, %v8164
    %v8168 = vsel %vm8080, 0, %v8166
    %v8169 = vcosq.f32.pop %v8167
    %v8170 = vsinq.f32.pop %v8167
    %vm8171 = vweird.f32 %v6988
    %v8172 = vadd.s32 %v8168, 3
    %v8173 = vand.u32 %v8172, 3
    %vm8174 = vcmp.lt.s32.totalorder %v8173, 2
    %vm8175 = vcmp.eq.s32.totalorder %v8173, 0
    %v8176 = vxor.u32 %v8170, 2147483648
    %v8177 = vsel %vm8175, %v8169, %v8176
    %vm8178 = vcmp.eq.s32.totalorder %v8173, 2
    %v8179 = vxor.u32 %v8169, 2147483648
    %v8180 = vsel %vm8178, %v8179, %v8170
    %v8181 = vsel %vm8174, %v8177, %v8180
    %v8182 = vsel %vm8171, nan, %v8181
    %v8183 = vand.u32 2147483647, %v7036
    %vm8184 = vcmp.le.f32.partialorder %v8183, 0.7853982
    %vm8185 = vcmp.lt.s32.totalorder %v7036, 0
    %v8186 = vand.u32 %v7036, 2139095040
    %v8187 = vshrl.u32 %v8186, 23
    %v8188 = vsub.s32 %v8187, 127
    %v8189 = vand.u32 2147483647, %v7036
    %v8190 = vand.u32 %v8189, 8388607
    %v8191 = vor.u32 %v8190, 8388608
    %v8192 = vsub.s32 0, %v8191
    %v8193 = vadd.s32 %v8188, 1
    %vm8194 = vcmp.gt.s32.totalorder %v8193, 0
    %v8195 = vsel %vm8194, %v8193, 0
    %v8196 = vshrl.u32 %v8195, 5
    %v8197 = vand.u32 %v8195, 31
    %v8198 = vsub.s32 32, %v8197
    %v8199 = vshrl.u32 683565275, %v8198
    %v8200 = vshll.u32 683565275, %v8197
    %v8201 = vshrl.u32 2475754826, %v8198
    %v8202 = vor.u32 %v8200, %v8201
    %v8203 = vshll.u32 2475754826, %v8197
    %v8204 = vshrl.u32 2131351028, %v8198
    %v8205 = vor.u32 %v8203, %v8204
    %v8206 = vshll.u32 2131351028, %v8197
    %v8207 = vshrl.u32 2102212464, %v8198
    %v8208 = vor.u32 %v8206, %v8207
    %v8209 = vshll.u32 2102212464, %v8197
    %v8210 = vshrl.u32 920167782, %v8198
    %v8211 = vor.u32 %v8209, %v8210
    %v8212 = vshll.u32 920167782, %v8197
    %v8213 = vshrl.u32 1326507024, %v8198
    %v8214 = vor.u32 %v8212, %v8213
    %vm8215 = vcmp.lt.s32.totalorder %v8196, 1
    %vm8216 = vcmp.lt.s32.totalorder %v8196, 2
    %vm8217 = vcmp.lt.s32.totalorder %v8196, 3
    %vm8218 = vcmp.lt.s32.totalorder %v8196, 4
    %v8219 = vsel %vm8215, %v8199, %v8202
    %v8220 = vsel %vm8218, %v8208, 2102212464
    %v8221 = vsel %vm8217, %v8205, %v8220
    %v8222 = vsel %vm8216, %v8219, %v8221
    %v8223 = vsel %vm8215, %v8202, %v8205
    %v8224 = vsel %vm8218, %v8211, 920167782
    %v8225 = vsel %vm8217, %v8208, %v8224
    %v8226 = vsel %vm8216, %v8223, %v8225
    %v8227 = vsel %vm8215, %v8205, %v8208
    %v8228 = vsel %vm8218, %v8214, 1326507024
    %v8229 = vsel %vm8217, %v8211, %v8228
    %v8230 = vsel %vm8216, %v8227, %v8229
    %v8231 = vshll.u32 %v8191, 8
    %v8232 = vmul.u32.u64.compose %v8231, %v8230
    %v8233 = vextract.low.u32 %v8232
    %v8234 = vextract.high.u32 %v8232
    %v8235 = vmul.u32.u64.compose %v8231, %v8226
    %v8236 = vextract.low.u32 %v8235
    %v8237 = vextract.high.u32 %v8235
    %v8238 = vmul.u32 %v8231, %v8222
    %v8239 = vadd.s32 %v8234, %v8236
    %vm8240 = vc.u32 %v8234, %v8236
    %v8241 = vadd.s32 %v8237, 1
    %v8242 = vsel %vm8240, %v8241, %v8237
    %v8243 = vadd.s32 %v8238, %v8242
    %v8244 = vadd.s32 %v8243, 536870912
    %v8245 = vshrl.u32 %v8244, 30
    %v8246 = vshll.u32 %v8245, 30
    %v8247 = vsub.s32 %v8243, %v8246
    %vm8248 = vcmp.lt.s32.totalorder %v8247, 0
    %v8249 = vsub.s32 0, %v8247
    %v8250 = vsel %vm8248, %v8249, %v8247
    %v8251 = vclz %v8250
    %v8252 = vsub.s32 %v8251, 2
    %vm8253 = vcmp.gt.s32.totalorder 0, %v8252
    %v8254 = vsel %vm8253, 0, %v8252
    %v8255 = vsub.s32 32, %v8254
    %v8256 = vshll.u32 %v8247, %v8254
    %v8257 = vshrl.u32 %v8239, %v8255
    %v8258 = vor.u32 %v8256, %v8257
    %v8259 = vsub.s32 4294967266, %v8254
    %v8260 = vadd.s32 %v8259, 127
    %v8261 = vshll.u32 %v8260, 23
    %v8262 = vor.u32 4788187, %v8261
    %v8263 = vand.u32 2147483647, %v8262
    %v8265 = vcvt.s32.f32 %v8258
    %v8266 = vmul.f32 %v8265, %v8263
    %v8267 = vxor.u32 %v8266, 2147483648
    %v8268 = vsel %vm8185, %v8267, %v8266
    %v8269 = vsub.s32 4, %v8245
    %v8270 = vsel %vm8185, %v8269, %v8245
    %v8271 = vsel %vm8184, %v7036, %v8268
    %v8272 = vsel %vm8184, 0, %v8270
    %v8273 = vcosq.f32.pop %v8271
    %v8274 = vsinq.f32.pop %v8271
    %vm8275 = vweird.f32 %v7036
    %v8276 = vadd.s32 %v8272, 3
    %v8277 = vand.u32 %v8276, 3
    %vm8278 = vcmp.lt.s32.totalorder %v8277, 2
    %vm8279 = vcmp.eq.s32.totalorder %v8277, 0
    %v8280 = vxor.u32 %v8274, 2147483648
    %v8281 = vsel %vm8279, %v8273, %v8280
    %vm8282 = vcmp.eq.s32.totalorder %v8277, 2
    %v8283 = vxor.u32 %v8273, 2147483648
    %v8284 = vsel %vm8282, %v8283, %v8274
    %v8285 = vsel %vm8278, %v8281, %v8284
    %v8286 = vsel %vm8275, nan, %v8285
    %v8287 = vld [vmem:[%s4] sm:$0x1]
    %v8288 = vld [vmem:[#allocation2] sm:$0x1]
    %v8289 = vpack.c.bf16 %v6098, %v5786
    %v8290 = vpack.c.bf16 %v6202, %v5890
    %v8291 = vpack.c.bf16 %v6306, %v5994
    %v8292 = vpack.c.bf16 %v6722, %v6410
    %v8293 = vpack.c.bf16 %v6826, %v6514
    %v8294 = vpack.c.bf16 %v6930, %v6618
    %8296 = vset.pattern.permute.xlu0 0
    %8297 = vperm.xlu0 %8296, %v8288
    %v8298 = vpop.permute.xlu0 %8297
    %v8300 = vlaneseq
    %v8301 = vshrl.u32 %v8300, 7
    %v8302 = vsub.s32 0, %v8301
    %v8303 = vrot.slane %v8298, %v8302
    %v8305 = vsel %vm2818, %v8287, 0
    %8307 = vmatprep.subr.bf16.mxu0 %v8290
    %8308 = vmatpush1.bf16.msra.mxu0 %v8289
    %8309 = vmatprep.subr.bf16.mxu0 %v8293
    %8310 = vmatpush1.bf16.msra.mxu0 %v8292
    %8311 = vmatprep.subr.bf16.mxu0 0
    %8312 = vmatpush1.bf16.msra.mxu0 0
    %8313 = vmatprep.subr.bf16.mxu0 0
    %8314 = vmatpush1.bf16.msra.mxu0 0
    %8315 = vmatprep.subr.bf16.mxu0 0
    %8316 = vmatpush1.bf16.msra.mxu0 0
    %8317 = vmatprep.subr.bf16.mxu0 0
    %8318 = vmatpush1.bf16.msra.mxu0 0
    %8319 = vmatprep.subr.bf16.mxu0 0
    %8320 = vmatpush1.bf16.msra.mxu0 0
    %8321 = vmatprep.subr.bf16.mxu0 0
    %8322 = vmatpush1.bf16.msra.mxu0 0
    %8323 = vmatprep.subr.bf16.mxu0 0
    %8324 = vmatpush1.bf16.msra.mxu0 0
    %8325 = vmatprep.subr.bf16.mxu0 0
    %8326 = vmatpush1.bf16.msra.mxu0 0
    %8327 = vmatprep.subr.bf16.mxu0 0
    %8328 = vmatpush1.bf16.msra.mxu0 0
    %8329 = vmatprep.subr.bf16.mxu0 0
    %8330 = vmatpush1.bf16.msra.mxu0 0
    %8331 = vmatprep.subr.bf16.mxu0 0
    %8332 = vmatpush1.bf16.msra.mxu0 0
    %8333 = vmatprep.subr.bf16.mxu0 0
    %8334 = vmatpush1.bf16.msra.mxu0 0
    %8335 = vmatprep.subr.bf16.mxu0 0
    %8336 = vmatpush1.bf16.msra.mxu0 0
    %8337 = vmatprep.subr.bf16.mxu0 0
    %8338 = vmatpush1.bf16.msra.mxu0 0
    %8339 = vmatprep.mubr.bf16.mxu0 0
    %8340 = vmatmul.mubr.bf16.gmra.mrb[0].mxu0 %v8305
    %v8341 = vpop.f32.mrb[0].mxu0
    %v8342 = vadd.f32 %v8303, %v8341
    %v8343 = vpop.f32.mrb[0].mxu0
    %v8344 = vadd.f32 %v8303, %v8343
    %v8345 = vpop.f32.mrb[0].mxu0
    %v8346 = vpop.f32.mrb[0].mxu0
    %8347 = vdwg.mxu0
    %8348 = vmatprep.subr.bf16.mxu0 0
    %8349 = vmatpush1.bf16.msra.mxu0 %v8291
    %8350 = vmatprep.subr.bf16.mxu0 0
    %8351 = vmatpush1.bf16.msra.mxu0 %v8294
    %8352 = vmatprep.subr.bf16.mxu0 0
    %8353 = vmatpush1.bf16.msra.mxu0 0
    %8354 = vmatprep.subr.bf16.mxu0 0
    %8355 = vmatpush1.bf16.msra.mxu0 0
    %8356 = vmatprep.subr.bf16.mxu0 0
    %8357 = vmatpush1.bf16.msra.mxu0 0
    %8358 = vmatprep.subr.bf16.mxu0 0
    %8359 = vmatpush1.bf16.msra.mxu0 0
    %8360 = vmatprep.subr.bf16.mxu0 0
    %8361 = vmatpush1.bf16.msra.mxu0 0
    %8362 = vmatprep.subr.bf16.mxu0 0
    %8363 = vmatpush1.bf16.msra.mxu0 0
    %8364 = vmatprep.subr.bf16.mxu0 0
    %8365 = vmatpush1.bf16.msra.mxu0 0
    %8366 = vmatprep.subr.bf16.mxu0 0
    %8367 = vmatpush1.bf16.msra.mxu0 0
    %8368 = vmatprep.subr.bf16.mxu0 0
    %8369 = vmatpush1.bf16.msra.mxu0 0
    %8370 = vmatprep.subr.bf16.mxu0 0
    %8371 = vmatpush1.bf16.msra.mxu0 0
    %8372 = vmatprep.subr.bf16.mxu0 0
    %8373 = vmatpush1.bf16.msra.mxu0 0
    %8374 = vmatprep.subr.bf16.mxu0 0
    %8375 = vmatpush1.bf16.msra.mxu0 0
    %8376 = vmatprep.subr.bf16.mxu0 0
    %8377 = vmatpush1.bf16.msra.mxu0 0
    %8378 = vmatprep.subr.bf16.mxu0 0
    %8379 = vmatpush1.bf16.msra.mxu0 0
    %8380 = vmatprep.mubr.bf16.mxu0 0
    %8381 = vmatmul.mubr.bf16.gmra.mrb[0].mxu0 %v8305
    %v8382 = vpop.f32.mrb[0].mxu0
    %v8383 = vadd.f32 %v8303, %v8382
    %v8384 = vpop.f32.mrb[0].mxu0
    %v8385 = vpop.f32.mrb[0].mxu0
    %v8386 = vpop.f32.mrb[0].mxu0
    %8387 = vdwg.mxu0
    %v8388 = vpack.c.bf16 %v7454, %v7142
    %v8389 = vpack.c.bf16 %v7558, %v7246
    %v8390 = vpack.c.bf16 %v7662, %v7350
    %v8391 = vpack.c.bf16 %v8078, %v7766
    %v8392 = vpack.c.bf16 %v8182, %v7870
    %v8393 = vpack.c.bf16 %v8286, %v7974
    %8394 = vmatprep.subr.bf16.mxu0 %v8389
    %8395 = vmatpush1.bf16.msra.mxu0 %v8388
    %8396 = vmatprep.subr.bf16.mxu0 %v8392
    %8397 = vmatpush1.bf16.msra.mxu0 %v8391
    %8398 = vmatprep.subr.bf16.mxu0 0
    %8399 = vmatpush1.bf16.msra.mxu0 0
    %8400 = vmatprep.subr.bf16.mxu0 0
    %8401 = vmatpush1.bf16.msra.mxu0 0
    %8402 = vmatprep.subr.bf16.mxu0 0
    %8403 = vmatpush1.bf16.msra.mxu0 0
    %8404 = vmatprep.subr.bf16.mxu0 0
    %8405 = vmatpush1.bf16.msra.mxu0 0
    %8406 = vmatprep.subr.bf16.mxu0 0
    %8407 = vmatpush1.bf16.msra.mxu0 0
    %8408 = vmatprep.subr.bf16.mxu0 0
    %8409 = vmatpush1.bf16.msra.mxu0 0
    %8410 = vmatprep.subr.bf16.mxu0 0
    %8411 = vmatpush1.bf16.msra.mxu0 0
    %8412 = vmatprep.subr.bf16.mxu0 0
    %8413 = vmatpush1.bf16.msra.mxu0 0
    %8414 = vmatprep.subr.bf16.mxu0 0
    %8415 = vmatpush1.bf16.msra.mxu0 0
    %8416 = vmatprep.subr.bf16.mxu0 0
    %8417 = vmatpush1.bf16.msra.mxu0 0
    %8418 = vmatprep.subr.bf16.mxu0 0
    %8419 = vmatpush1.bf16.msra.mxu0 0
    %8420 = vmatprep.subr.bf16.mxu0 0
    %8421 = vmatpush1.bf16.msra.mxu0 0
    %8422 = vmatprep.subr.bf16.mxu0 0
    %8423 = vmatpush1.bf16.msra.mxu0 0
    %8424 = vmatprep.subr.bf16.mxu0 0
    %8425 = vmatpush1.bf16.msra.mxu0 0
    %8426 = vmatprep.mubr.bf16.mxu0 0
    %8427 = vmatmul.mubr.bf16.gmra.mrb[0].mxu0 %v8305
    %v8428 = vpop.f32.mrb[0].mxu0
    %v8429 = vadd.f32 %v8303, %v8428
    %v8430 = vpop.f32.mrb[0].mxu0
    %v8431 = vadd.f32 %v8303, %v8430
    %v8432 = vpop.f32.mrb[0].mxu0
    %v8433 = vpop.f32.mrb[0].mxu0
    %8434 = vdwg.mxu0
    %8435 = vmatprep.subr.bf16.mxu0 0
    %8436 = vmatpush1.bf16.msra.mxu0 %v8390
    %8437 = vmatprep.subr.bf16.mxu0 0
    %8438 = vmatpush1.bf16.msra.mxu0 %v8393
    %8439 = vmatprep.subr.bf16.mxu0 0
    %8440 = vmatpush1.bf16.msra.mxu0 0
    %8441 = vmatprep.subr.bf16.mxu0 0
    %8442 = vmatpush1.bf16.msra.mxu0 0
    %8443 = vmatprep.subr.bf16.mxu0 0
    %8444 = vmatpush1.bf16.msra.mxu0 0
    %8445 = vmatprep.subr.bf16.mxu0 0
    %8446 = vmatpush1.bf16.msra.mxu0 0
    %8447 = vmatprep.subr.bf16.mxu0 0
    %8448 = vmatpush1.bf16.msra.mxu0 0
    %8449 = vmatprep.subr.bf16.mxu0 0
    %8450 = vmatpush1.bf16.msra.mxu0 0
    %8451 = vmatprep.subr.bf16.mxu0 0
    %8452 = vmatpush1.bf16.msra.mxu0 0
    %8453 = vmatprep.subr.bf16.mxu0 0
    %8454 = vmatpush1.bf16.msra.mxu0 0
    %8455 = vmatprep.subr.bf16.mxu0 0
    %8456 = vmatpush1.bf16.msra.mxu0 0
    %8457 = vmatprep.subr.bf16.mxu0 0
    %8458 = vmatpush1.bf16.msra.mxu0 0
    %8459 = vmatprep.subr.bf16.mxu0 0
    %8460 = vmatpush1.bf16.msra.mxu0 0
    %8461 = vmatprep.subr.bf16.mxu0 0
    %8462 = vmatpush1.bf16.msra.mxu0 0
    %8463 = vmatprep.subr.bf16.mxu0 0
    %8464 = vmatpush1.bf16.msra.mxu0 0
    %8465 = vmatprep.subr.bf16.mxu0 0
    %8466 = vmatpush1.bf16.msra.mxu0 0
    %8467 = vmatprep.mubr.bf16.mxu0 0
    %8468 = vmatmul.mubr.bf16.gmra.mrb[0].mxu0 %v8305
    %v8469 = vpop.f32.mrb[0].mxu0
    %v8470 = vadd.f32 %v8303, %v8469
    %v8471 = vpop.f32.mrb[0].mxu0
    %v8472 = vpop.f32.mrb[0].mxu0
    %v8473 = vpop.f32.mrb[0].mxu0
    %8474 = vdwg.mxu0
    %v8475 = vadd.f32 %v8342, %v8429
    %v8476 = vadd.f32 %v8344, %v8431
    %v8477 = vadd.f32 %v8383, %v8470
    %v8481 = vcombine.low %v8475, %v8476
    %v8483 = vunpack.c.l.s4 1966171168
    %v8484 = vunpack.c.0.s8 %v8483
    %v8485 = vlaneseq
    %v8486 = vshrl.u32 %v8485, 7
    %v8487 = vsub.s32 %v8484, %v8486
    %v8488 = vrot.slane %v8481, %v8487
    %v8490 = vunpack.c.l.s4 1966171168
    %v8491 = vunpack.c.0.s8 %v8490
    %v8492 = vlaneseq
    %v8493 = vshrl.u32 %v8492, 7
    %v8494 = vsub.s32 %v8491, %v8493
    %v8495 = vrot.slane %v8477, %v8494
    %v8496 = vcombine.low %v8488, %v8495
    %v8498 = vunpack.c.l.s4 1966171168
    %v8499 = vunpack.c.0.s8 %v8498
    %v8500 = vlaneseq
    %v8501 = vshrl.u32 %v8500, 7
    %v8502 = vsub.s32 %v8499, %v8501
    %v8503 = vrot.slane %v8496, %v8502
    %v8505 = vlaneseq
    %vm8506 = vcmp.ge.s32.totalorder %v8505, 0
    %vm8507 = vcmp.lt.s32.totalorder %v8505, 384
    %vm8508 = vmand %vm8506, %vm8507
    %8509 = vst.msk [vmem:[#allocation3] sm:$0x7] %vm8508, %v8503
    // Predicated region
    $region38: #{tpu_custom_call.1} parent=1 // pred_check
      _
    $region39: #{tpu_custom_call.1} parent=1 // pred_check_branch
      %8511 = sbr.rel (0) target = $region41
    $region40: #{tpu_custom_call.1} parent=1 // pred_region
      %s8513 = ssub.s32 48, 48
      %8514 = vsyncadd [#allocation4], %s8513
      %s8516 = sshll.u32 [#allocation3], 4
      %s8517 = int_to_ptr.vmem [resolvable:$true] %s8516
      %8519 = dma.vmem_to_hbm [thread:$0]  %s8517, 48, %s9, [#allocation4]
    $region41: #{tpu_custom_call.1} parent=1 // pred_fallthru
      _
    // Predicated region
    $region42: #{tpu_custom_call.1} parent=1 // pred_check
      _
    $region43: #{tpu_custom_call.1} parent=1 // pred_check_branch
      %8521 = sbr.rel (0) target = $region45
    $region44: #{tpu_custom_call.1} parent=1 // pred_region
      %8522 = dma.done [#allocation4], 48
    $region45: #{tpu_custom_call.1} parent=1 // pred_fallthru
      _
    %8523 = vsyncpa [#allocation4], 1

</llo_original>
